<compile_context>
chip_gen: v5e
topology: v5e:2x2
jax: 0.10.0
libtpu: 0.0.40
codegen_flags: <defaults>
</compile_context>

<pallas_src>
import functools

import jax
import jax.numpy as jnp
from jax.experimental import pallas as pl
from jax.experimental.pallas import tpu as pltpu


def _round_up(x, m):
    return ((x + m - 1) // m) * m


# ---------------------------------------------------------------------------
# Pallas kernels
# ---------------------------------------------------------------------------

def _gemm_bias_relu_kernel(a_ref, b_ref, bias_ref, o_ref, *, relu):
    acc = jnp.dot(a_ref[...], b_ref[...], preferred_element_type=jnp.float32)
    acc = acc + bias_ref[...]                     # f32 epilogue
    if relu:
        acc = jnp.maximum(acc, 0.0)
    o_ref[...] = acc.astype(o_ref.dtype)


def _gemv_mask_kernel(w_ref, a_ref, bias_ref, m_ref, o_ref):
    acc = jnp.dot(w_ref[...], a_ref[...], preferred_element_type=jnp.float32)
    o_ref[...] = (acc + bias_ref[...]) * m_ref[...]


# ---------------------------------------------------------------------------
# GEMM wrappers
# ---------------------------------------------------------------------------

_VMEM_TILE_CAP = 20 * 1024 * 1024   # keep tiles well under scoped VMEM everywhere


def _tile_vmem_bytes(tm, tn, K, out_itemsize):
    # double-buffered A / B / bias input blocks + double-buffered output block
    return 2 * (tm * K * 2 + K * tn * 2 + tn * 4 + tm * tn * out_itemsize)


def _pick_tiles(M, K, N, out_itemsize):
    m8 = max(8, _round_up(M, 8))
    if m8 <= 256:
        tm = m8                       # whole (tiny) problem in one row block
    elif m8 <= 1024:
        tm = 256
    else:
        tm = 512
    m_tiles = _round_up(m8, tm) // tm
    if N % 128 != 0:
        tn = N                        # narrow unpadded output (enc1 only)
    elif m_tiles == 1 and N > 256 and N % 256 == 0:
        tn = 256                      # expose >=2 parallel steps (v7x: 2 TCs)
    else:
        tn = N                        # resident B
    while _tile_vmem_bytes(tm, tn, K, out_itemsize) > _VMEM_TILE_CAP and tm > 256:
        tm //= 2
    while (_tile_vmem_bytes(tm, tn, K, out_itemsize) > _VMEM_TILE_CAP
           and tn > 256 and tn % 256 == 0):
        tn //= 2
    return tm, tn


def matmul_bias_relu(a, b, bias, *, relu, out_dtype=jnp.bfloat16):
    """out = act(a @ b + bias).  a:(M,K), b:(K,N) bf16 (pre-padded), bias:(N,) f32."""
    M, K = a.shape
    Kb, N = b.shape
    assert Kb == K
    a = a.astype(jnp.bfloat16)
    bias2d = bias.reshape(1, N).astype(jnp.float32)

    out_itemsize = jnp.dtype(out_dtype).itemsize
    tm, tn = _pick_tiles(M, K, N, out_itemsize)
    assert N % tn == 0
    m_pad = _round_up(max(M, tm), tm)
    if m_pad != M:
        a = jnp.pad(a, ((0, m_pad - M), (0, 0)))
    grid = (m_pad // tm, N // tn)

    flops = 2 * m_pad * N * K
    bytes_accessed = (m_pad * K * 2 + K * N * 2 + N * 4
                      + m_pad * N * out_itemsize)

    cparams = dict(dimension_semantics=("parallel", "parallel"))
    if _tile_vmem_bytes(tm, tn, K, out_itemsize) > 12 * 1024 * 1024:
        # leave headroom under v7x's 64 MiB physical VMEM; above all defaults
        cparams["vmem_limit_bytes"] = 48 * 1024 * 1024

    kernel = functools.partial(_gemm_bias_relu_kernel, relu=relu)
    out = pl.pallas_call(
        kernel,
        out_shape=jax.ShapeDtypeStruct((m_pad, N), out_dtype),
        grid=grid,
        in_specs=[pl.BlockSpec((tm, K), lambda i, j: (i, 0)),
                  pl.BlockSpec((K, tn), lambda i, j: (0, j)),
                  pl.BlockSpec((1, tn), lambda i, j: (0, j))],
        out_specs=pl.BlockSpec((tm, tn), lambda i, j: (i, j)),
        compiler_params=pltpu.CompilerParams(**cparams),
        cost_estimate=pl.CostEstimate(flops=flops, transcendentals=0,
                                      bytes_accessed=bytes_accessed),
    )(a, b, bias2d)
    if m_pad != M:
        out = out[:M]
    return out


def gemv_bias_mask(w_row, a_t, bias11, mask_row):
    """out(1,M) = (w_row(1,K) @ a_t(K,M) + bias) * mask_row.

    Lane-dense layout: the big spatial dimension M sits on the 128-lane axis,
    so the f32 output is stored as full vregs (no masked vst.msk stores)."""
    K, M = a_t.shape
    kp = w_row.shape[1]
    if kp != K:
        a_t = jnp.pad(a_t, ((0, kp - K), (0, 0)))
    a_t = a_t.astype(jnp.bfloat16)
    mask_row = mask_row.astype(jnp.float32)

    m128 = _round_up(M, 128)
    tm = max(128, min(2048, _round_up(-(-m128 // 2), 128)))   # >=2 steps when big
    m_pad = _round_up(m128, tm)
    if m_pad != M:
        a_t = jnp.pad(a_t, ((0, 0), (0, m_pad - M)))
        mask_row = jnp.pad(mask_row, ((0, 0), (0, m_pad - M)))

    flops = 2 * m_pad * kp
    bytes_accessed = kp * m_pad * 2 + kp * 2 + 4 + m_pad * 4 + m_pad * 4
    out = pl.pallas_call(
        _gemv_mask_kernel,
        out_shape=jax.ShapeDtypeStruct((1, m_pad), jnp.float32),
        grid=(m_pad // tm,),
        in_specs=[pl.BlockSpec((1, kp), lambda i: (0, 0)),
                  pl.BlockSpec((kp, tm), lambda i: (0, i)),
                  pl.BlockSpec((1, 1), lambda i: (0, 0)),
                  pl.BlockSpec((1, tm), lambda i: (0, i))],
        out_specs=pl.BlockSpec((1, tm), lambda i: (0, i)),
        compiler_params=pltpu.CompilerParams(
            dimension_semantics=("parallel",)),
        cost_estimate=pl.CostEstimate(flops=flops, transcendentals=0,
                                      bytes_accessed=bytes_accessed),
    )(w_row, a_t, bias11, mask_row)
    return out[:, :M]


# ---------------------------------------------------------------------------
# Convolution lowering (NHWC, plain-JAX glue around the Pallas GEMMs)
# ---------------------------------------------------------------------------

def _im2col_nhwc(xp, kh, kw, stride):
    """xp: padded (N, Hp, Wp, C) -> (N*Ho*Wo, kh*kw*C), Ho, Wo.
    K ordering is (tap_row, tap_col, channel) to match HWIO weight reshape."""
    n, hp, wp, c = xp.shape
    ho = (hp - kh) // stride + 1
    wo = (wp - kw) // stride + 1
    cols = []
    for i in range(kh):
        for j in range(kw):
            cols.append(xp[:, i:i + stride * (ho - 1) + 1:stride,
                           j:j + stride * (wo - 1) + 1:stride, :])
    a = jnp.concatenate(cols, axis=-1)                 # (N, Ho, Wo, kh*kw*C)
    return a.reshape(n * ho * wo, kh * kw * c), ho, wo


def conv_gemm(x_nhwc, w2d, bias, *, kh, kw, stride, padding, nout, relu):
    """out = act(conv(x, w) + bias), weight pre-flattened to (kh*kw*Cin, Npad)."""
    n, h, w, c = x_nhwc.shape
    if kh == 3 and kw == 3 and stride == 1 and padding == 1 and h == 1 and w == 1:
        # 1x1 feature map: the 8 off-center taps only ever see zero padding.
        a = x_nhwc.reshape(n, c)
        b2d = w2d[4 * c:5 * c]
        ho = wo = 1
    else:
        xp = jnp.pad(x_nhwc, ((0, 0), (padding, padding),
                              (padding, padding), (0, 0)))
        a, ho, wo = _im2col_nhwc(xp, kh, kw, stride)
        b2d = w2d
    out2d = matmul_bias_relu(a, b2d, bias, relu=relu)        # (M, Npad)
    return out2d[:, :nout].reshape(n, ho, wo, nout)


def _deconv4x4_to_conv3x3(w_t):
    """ConvTranspose2d(k=4,s=2,p=1) weight (Cin, Cout, 4, 4) -> equivalent 3x3
    stride-1 conv weight (3, 3, Cin, 4*Cout); output channels are the 4
    sub-pixel phases ph = dh*2 + dw (dh/dw = output row/col parity)."""
    cin, cout = w_t.shape[0], w_t.shape[1]
    w3 = jnp.zeros((3, 3, cin, 4 * cout), w_t.dtype)
    for dh in range(2):
        for dw in range(2):
            ph = dh * 2 + dw
            for a in range(2):
                for b in range(2):
                    w3 = w3.at[a + dh, b + dw, :,
                               ph * cout:(ph + 1) * cout].set(
                        w_t[:, :, (3 - dh) - 2 * a, (3 - dw) - 2 * b])
    return w3


# ---------------------------------------------------------------------------
# shading_net parameters, preprocessing, forward
# ---------------------------------------------------------------------------

_LAYERS = [
    # name,   kind,     cin, cout, k, stride, pad
    ("enc1", "conv",      3,  16, 4, 2, 1),
    ("enc2", "conv",     16,  32, 4, 2, 1),
    ("enc3", "conv",     32,  64, 4, 2, 1),
    ("enc4", "conv",     64, 128, 4, 2, 1),
    ("enc5", "conv",    128, 256, 4, 2, 1),
    ("encf", "conv",    256, 256, 3, 1, 1),
    ("dec5", "deconv",  256, 128, 4, 2, 1),
    ("dec4", "deconv",  256,  64, 4, 2, 1),   # 128 + 128 skip
    ("dec3", "deconv",  128,  32, 4, 2, 1),   # 64 + 64 skip
    ("dec2", "deconv",   64,  16, 4, 2, 1),   # 32 + 32 skip
    ("dec1", "deconv",   32,  16, 4, 2, 1),   # 16 + 16 skip
    ("decf", "deconv",   16,   1, 3, 1, 1),
]
_META = {n: (kind, cin, cout, k, s, p) for n, kind, cin, cout, k, s, p in _LAYERS}


def init_params(key):
    params = {}
    for name, kind, cin, cout, k, _s, _p in _LAYERS:
        key, wk, bk = jax.random.split(key, 3)
        fan_in = cin * k * k
        std = (2.0 / fan_in) ** 0.5  # He-style init, deterministic from key
        wshape = (cout, cin, k, k) if kind == "conv" else (cin, cout, k, k)
        w = jax.random.normal(wk, wshape, jnp.float32) * std
        b = jax.random.normal(bk, (cout,), jnp.float32) * 0.01
        params[name] = (w, b)
    return params


def prepare_params(params):
    """One-time weight preprocessing hoisted out of the jitted forward:
    layout transforms, deconv->conv3x3 conversion, bias tiling, lane padding,
    and bf16 casts."""
    prep = {}
    for name, kind, cin, cout, k, s, p in _LAYERS:
        w, b = params[name]
        if name == "decf":
            # ConvTranspose2d(16,1,3,1,1) == conv with spatially flipped
            # kernel, swapped channels, padding 1; kept as a (1, K) row so the
            # GEMV output is lane-dense (spatial M on the 128-lane axis).
            w_hwio = jnp.flip(w, axis=(2, 3)).transpose(2, 3, 0, 1)  # (3,3,16,1)
            K = 3 * 3 * cin
            w_row = w_hwio.reshape(K, 1).T                           # (1, K)
            kp = _round_up(K, 8)
            if kp != K:
                w_row = jnp.pad(w_row, ((0, 0), (0, kp - K)))
            prep[name] = (w_row.astype(jnp.bfloat16),
                          b.reshape(1, 1).astype(jnp.float32))
            continue
        if kind == "conv":
            w_hwio = jnp.transpose(w, (2, 3, 1, 0))                  # (k,k,cin,cout)
            n_out = cout
            bias = b
        else:
            # stride-2 deconv -> 3x3 stride-1 conv over 4 sub-pixel phases
            w_hwio = _deconv4x4_to_conv3x3(w)                        # (3,3,cin,4*cout)
            n_out = 4 * cout
            bias = jnp.tile(b, 4)
        w2d = w_hwio.reshape(-1, n_out)
        # Lane-pad narrow outputs to 128 so stores are unmasked full vregs.
        # enc1 (N=16) stays unpadded: 8x extra HBM writeback is not a clear win.
        n_pad = 128 if 32 <= n_out < 128 else n_out
        if n_pad != n_out:
            w2d = jnp.pad(w2d, ((0, 0), (0, n_pad - n_out)))
            bias = jnp.pad(bias, (0, n_pad - n_out))
        prep[name] = (w2d.astype(jnp.bfloat16), bias.astype(jnp.float32))
    return prep


def shading_net_forward(prep, x, mask):
    # Module boundary: NCHW f32 in/out; internally NHWC, bf16 activations.
    xh = jnp.transpose(x, (0, 2, 3, 1)).astype(jnp.bfloat16)

    def enc(name, xin):
        _, _, cout, k, s, p = _META[name]
        w2d, bias = prep[name]
        return conv_gemm(xin, w2d, bias, kh=k, kw=k, stride=s, padding=p,
                         nout=cout, relu=True)

    e1 = enc("enc1", xh)
    e2 = enc("enc2", e1)
    e3 = enc("enc3", e2)
    e4 = enc("enc4", e3)
    e5 = enc("enc5", e4)
    e5 = enc("encf", e5)

    def dec(name, xin):
        _, _, cout, _, _, _ = _META[name]
        w2d, bias = prep[name]
        y4 = conv_gemm(xin, w2d, bias, kh=3, kw=3, stride=1, padding=1,
                       nout=4 * cout, relu=True)
        # Pixel shuffle (phase ph = dh*2 + dw); XLA reshape/transpose copy is
        # expected to fuse with the next layer's pad/concat/im2col copy.
        n, h, w, _ = y4.shape
        y = y4.reshape(n, h, w, 2, 2, cout)
        return y.transpose(0, 1, 3, 2, 4, 5).reshape(n, 2 * h, 2 * w, cout)

    d5 = dec("dec5", e5)
    d4 = dec("dec4", jnp.concatenate([e4, d5], axis=-1))
    d3 = dec("dec3", jnp.concatenate([e3, d4], axis=-1))
    d2 = dec("dec2", jnp.concatenate([e2, d3], axis=-1))
    d1 = dec("dec1", jnp.concatenate([e1, d2], axis=-1))

    # Final ConvTranspose2d(16,1,3,1,1): lane-dense GEMV with `y * mask` fused
    # into the epilogue.
    w_row, bias11 = prep["decf"]
    n, _, h, w = mask.shape
    xp = jnp.pad(d1, ((0, 0), (1, 1), (1, 1), (0, 0)))
    a, ho, wo = _im2col_nhwc(xp, 3, 3, 1)                   # (M, 144)
    a_t = jnp.transpose(a)                                  # (144, M) XLA copy
    mrow = jnp.transpose(mask, (0, 2, 3, 1)).reshape(1, n * h * w)
    y_row = gemv_bias_mask(w_row, a_t, bias11, mrow)        # (1, M) f32
    y = y_row.reshape(n, ho, wo, 1)
    return jnp.transpose(y, (0, 3, 1, 2))                   # (N, 1, H, W)


# ---------------------------------------------------------------------------
# Pure-JAX reference (lax.conv) with matching bf16 rounding, for validation
# ---------------------------------------------------------------------------

def _ref_conv(x, w, b, stride, padding, relu):
    y = jax.lax.conv_general_dilated(
        x.astype(jnp.bfloat16), w.astype(jnp.bfloat16),
        window_strides=(stride, stride),
        padding=[(padding, padding)] * 2,
        dimension_numbers=("NCHW", "OIHW", "NCHW"),
        preferred_element_type=jnp.float32)
    y = y + b.reshape(1, -1, 1, 1)
    if relu:
        y = jnp.maximum(y, 0.0)
    return y.astype(jnp.bfloat16)


def _ref_deconv(x, w, b, k, stride, padding, relu):
    # ConvTranspose2d == conv(lhs_dilation=stride, pad=k-1-p, flipped kernel,
    # in/out channels swapped).
    w_conv = jnp.flip(w, axis=(2, 3)).transpose(1, 0, 2, 3)
    y = jax.lax.conv_general_dilated(
        x.astype(jnp.bfloat16), w_conv.astype(jnp.bfloat16),
        window_strides=(1, 1),
        padding=[(k - 1 - padding, k - 1 - padding)] * 2,
        lhs_dilation=(stride, stride),
        dimension_numbers=("NCHW", "OIHW", "NCHW"),
        preferred_element_type=jnp.float32)
    y = y + b.reshape(1, -1, 1, 1)
    if relu:
        return jnp.maximum(y, 0.0).astype(jnp.bfloat16)
    return y.astype(jnp.float32)


def reference_forward(params, x, mask):
    e1 = _ref_conv(x, *params["enc1"], 2, 1, True)
    e2 = _ref_conv(e1, *params["enc2"], 2, 1, True)
    e3 = _ref_conv(e2, *params["enc3"], 2, 1, True)
    e4 = _ref_conv(e3, *params["enc4"], 2, 1, True)
    e5 = _ref_conv(e4, *params["enc5"], 2, 1, True)
    e5 = _ref_conv(e5, *params["encf"], 1, 1, True)
    d5 = _ref_deconv(e5, *params["dec5"], 4, 2, 1, True)
    d4 = _ref_deconv(jnp.concatenate([e4, d5], 1), *params["dec4"], 4, 2, 1, True)
    d3 = _ref_deconv(jnp.concatenate([e3, d4], 1), *params["dec3"], 4, 2, 1, True)
    d2 = _ref_deconv(jnp.concatenate([e2, d3], 1), *params["dec2"], 4, 2, 1, True)
    d1 = _ref_deconv(jnp.concatenate([e1, d2], 1), *params["dec1"], 4, 2, 1, True)
    y = _ref_deconv(d1, *params["decf"], 3, 1, 1, False)
    return y * mask


# ---------------------------------------------------------------------------
# main
# ---------------------------------------------------------------------------

if __name__ == "__main__":
    key = jax.random.PRNGKey(0)
    pkey, xkey, mkey = jax.random.split(key, 3)

    params = init_params(pkey)
    prep = prepare_params(params)          # one-time weight prep (outside jit)

    # Spatial size must be divisible by 2**5 = 32 (five stride-2 encoders).
    B, H, W = 2, 32, 32
    x = jax.random.normal(xkey, (B, 3, H, W), jnp.float32)
    mask = (jax.random.uniform(mkey, (B, 1, H, W)) > 0.5).astype(jnp.float32)

    fwd = jax.jit(shading_net_forward)
    y = jax.block_until_ready(fwd(prep, x, mask))
    assert y.shape == (B, 1, H, W), y.shape
    assert bool(jnp.all(jnp.isfinite(y)))

    # Correctness check vs a pure-JAX lax.conv reference that applies the same
    # bf16 rounding, so differences isolate lowering bugs from precision drift.
    y_ref = jax.block_until_ready(jax.jit(reference_forward)(params, x, mask))
    err = float(jnp.max(jnp.abs(y - y_ref)))
    scale = float(jnp.max(jnp.abs(y_ref))) + 1e-6
    assert err <= 0.05 * scale + 0.05, ("mismatch vs reference", err, scale)

    print("KERNEL_OK")
</pallas_src>

<mosaic_0001>
module attributes {stable_mosaic.version = 11 : i64} {
  func.func @_gemm_bias_relu_kernel(%arg0: i32, %arg1: i32, %arg2: memref<256x48xbf16, #tpu.memory_space<vmem>>, %arg3: memref<48x16xbf16, #tpu.memory_space<vmem>>, %arg4: memref<1x16xf32, #tpu.memory_space<vmem>>, %arg5: memref<256x16xbf16, #tpu.memory_space<vmem>>) attributes {dimension_semantics = [#tpu.dimension_semantics<parallel>, #tpu.dimension_semantics<parallel>], iteration_bounds = array<i64: 2, 1>, scalar_prefetch = 0 : i64, scratch_operands = 0 : i64, tpu.core_type = #tpu.core_type<tc>, window_params = [{transform_indices = @transform_0, window_bounds = array<i64: 256, 48>}, {transform_indices = @transform_1, window_bounds = array<i64: 48, 16>}, {transform_indices = @transform_2, window_bounds = array<i64: 1, 16>}, {transform_indices = @transform_3, window_bounds = array<i64: 256, 16>}]} {
    %c0 = arith.constant 0 : index
    %c0_0 = arith.constant 0 : index
    %0 = vector.load %arg2[%c0, %c0_0] : memref<256x48xbf16, #tpu.memory_space<vmem>>, vector<256x48xbf16>
    %c0_1 = arith.constant 0 : index
    %c0_2 = arith.constant 0 : index
    %1 = vector.load %arg3[%c0_1, %c0_2] : memref<48x16xbf16, #tpu.memory_space<vmem>>, vector<48x16xbf16>
    %cst = arith.constant dense<0.000000e+00> : vector<256x16xf32>
    %2 = tpu.matmul %0, %1, %cst {dimension_numbers = #tpu.dot_dimension_numbers<[1], [0], [0], [1], [0, 0, 1, 1], [], []>} : vector<256x48xbf16>, vector<48x16xbf16>, vector<256x16xf32> -> vector<256x16xf32>
    %c0_3 = arith.constant 0 : index
    %c0_4 = arith.constant 0 : index
    %3 = vector.load %arg4[%c0_3, %c0_4] : memref<1x16xf32, #tpu.memory_space<vmem>>, vector<1x16xf32>
    %4 = vector.broadcast %3 : vector<1x16xf32> to vector<256x16xf32>
    %5 = arith.addf %2, %4 : vector<256x16xf32>
    %cst_5 = arith.constant 0.000000e+00 : f32
    %6 = vector.broadcast %cst_5 : f32 to vector<256x16xf32>
    %7 = arith.maximumf %5, %6 : vector<256x16xf32>
    %8 = arith.truncf %7 : vector<256x16xf32> to vector<256x16xbf16>
    %c0_6 = arith.constant 0 : index
    %c0_7 = arith.constant 0 : index
    %9 = vector.load %arg5[%c0_6, %c0_7] : memref<256x16xbf16, #tpu.memory_space<vmem>>, vector<256x16xbf16>
    tpu.vector_store %arg5[%c0_6, %c0_7], %8 {strides = array<i32>} : memref<256x16xbf16, #tpu.memory_space<vmem>>, vector<256x16xbf16>,
    return
  }
  func.func @transform_0(%arg0: i32, %arg1: i32) -> (i32, i32) {
    %c0_i32 = arith.constant 0 : i32
    %c0_i32_0 = arith.constant 0 : i32
    return %arg0, %c0_i32 : i32, i32
  }
  func.func @transform_1(%arg0: i32, %arg1: i32) -> (i32, i32) {
    %c0_i32 = arith.constant 0 : i32
    %c0_i32_0 = arith.constant 0 : i32
    return %c0_i32, %arg1 : i32, i32
  }
  func.func @transform_2(%arg0: i32, %arg1: i32) -> (i32, i32) {
    %c0_i32 = arith.constant 0 : i32
    %c0_i32_0 = arith.constant 0 : i32
    return %c0_i32, %arg1 : i32, i32
  }
  func.func @transform_3(%arg0: i32, %arg1: i32) -> (i32, i32) {
    %c0_i32 = arith.constant 0 : i32
    return %arg0, %arg1 : i32, i32
  }
}

module attributes {stable_mosaic.version = 11 : i64} {
  func.func @_gemm_bias_relu_kernel(%arg0: i32, %arg1: i32, %arg2: memref<128x256xbf16, #tpu.memory_space<vmem>>, %arg3: memref<256x128xbf16, #tpu.memory_space<vmem>>, %arg4: memref<1x128xf32, #tpu.memory_space<vmem>>, %arg5: memref<128x128xbf16, #tpu.memory_space<vmem>>) attributes {dimension_semantics = [#tpu.dimension_semantics<parallel>, #tpu.dimension_semantics<parallel>], iteration_bounds = array<i64: 1, 1>, scalar_prefetch = 0 : i64, scratch_operands = 0 : i64, tpu.core_type = #tpu.core_type<tc>, window_params = [{transform_indices = @transform_0, window_bounds = array<i64: 128, 256>}, {transform_indices = @transform_1, window_bounds = array<i64: 256, 128>}, {transform_indices = @transform_2, window_bounds = array<i64: 1, 128>}, {transform_indices = @transform_3, window_bounds = array<i64: 128, 128>}]} {
    %c0 = arith.constant 0 : index
    %c0_0 = arith.constant 0 : index
    %0 = vector.load %arg2[%c0, %c0_0] : memref<128x256xbf16, #tpu.memory_space<vmem>>, vector<128x256xbf16>
    %c0_1 = arith.constant 0 : index
    %c0_2 = arith.constant 0 : index
    %1 = vector.load %arg3[%c0_1, %c0_2] : memref<256x128xbf16, #tpu.memory_space<vmem>>, vector<256x128xbf16>
    %cst = arith.constant dense<0.000000e+00> : vector<128x128xf32>
    %2 = tpu.matmul %0, %1, %cst {dimension_numbers = #tpu.dot_dimension_numbers<[1], [0], [0], [1], [0, 0, 1, 1], [], []>} : vector<128x256xbf16>, vector<256x128xbf16>, vector<128x128xf32> -> vector<128x128xf32>
    %c0_3 = arith.constant 0 : index
    %c0_4 = arith.constant 0 : index
    %3 = vector.load %arg4[%c0_3, %c0_4] : memref<1x128xf32, #tpu.memory_space<vmem>>, vector<1x128xf32>
    %4 = vector.broadcast %3 : vector<1x128xf32> to vector<128x128xf32>
    %5 = arith.addf %2, %4 : vector<128x128xf32>
    %cst_5 = arith.constant 0.000000e+00 : f32
    %6 = vector.broadcast %cst_5 : f32 to vector<128x128xf32>
    %7 = arith.maximumf %5, %6 : vector<128x128xf32>
    %8 = arith.truncf %7 : vector<128x128xf32> to vector<128x128xbf16>
    %c0_6 = arith.constant 0 : index
    %c0_7 = arith.constant 0 : index
    %9 = vector.load %arg5[%c0_6, %c0_7] : memref<128x128xbf16, #tpu.memory_space<vmem>>, vector<128x128xbf16>
    tpu.vector_store %arg5[%c0_6, %c0_7], %8 {strides = array<i32>} : memref<128x128xbf16, #tpu.memory_space<vmem>>, vector<128x128xbf16>,
    return
  }
  func.func @transform_0(%arg0: i32, %arg1: i32) -> (i32, i32) {
    %c0_i32 = arith.constant 0 : i32
    %c0_i32_0 = arith.constant 0 : i32
    return %arg0, %c0_i32 : i32, i32
  }
  func.func @transform_1(%arg0: i32, %arg1: i32) -> (i32, i32) {
    %c0_i32 = arith.constant 0 : i32
    %c0_i32_0 = arith.constant 0 : i32
    return %c0_i32, %arg1 : i32, i32
  }
  func.func @transform_2(%arg0: i32, %arg1: i32) -> (i32, i32) {
    %c0_i32 = arith.constant 0 : i32
    %c0_i32_0 = arith.constant 0 : i32
    return %c0_i32, %arg1 : i32, i32
  }
  func.func @transform_3(%arg0: i32, %arg1: i32) -> (i32, i32) {
    %c0_i32 = arith.constant 0 : i32
    return %arg0, %arg1 : i32, i32
  }
}

module attributes {stable_mosaic.version = 11 : i64} {
  func.func @_gemm_bias_relu_kernel(%arg0: i32, %arg1: i32, %arg2: memref<32x512xbf16, #tpu.memory_space<vmem>>, %arg3: memref<512x128xbf16, #tpu.memory_space<vmem>>, %arg4: memref<1x128xf32, #tpu.memory_space<vmem>>, %arg5: memref<32x128xbf16, #tpu.memory_space<vmem>>) attributes {dimension_semantics = [#tpu.dimension_semantics<parallel>, #tpu.dimension_semantics<parallel>], iteration_bounds = array<i64: 1, 1>, scalar_prefetch = 0 : i64, scratch_operands = 0 : i64, tpu.core_type = #tpu.core_type<tc>, window_params = [{transform_indices = @transform_0, window_bounds = array<i64: 32, 512>}, {transform_indices = @transform_1, window_bounds = array<i64: 512, 128>}, {transform_indices = @transform_2, window_bounds = array<i64: 1, 128>}, {transform_indices = @transform_3, window_bounds = array<i64: 32, 128>}]} {
    %c0 = arith.constant 0 : index
    %c0_0 = arith.constant 0 : index
    %0 = vector.load %arg2[%c0, %c0_0] : memref<32x512xbf16, #tpu.memory_space<vmem>>, vector<32x512xbf16>
    %c0_1 = arith.constant 0 : index
    %c0_2 = arith.constant 0 : index
    %1 = vector.load %arg3[%c0_1, %c0_2] : memref<512x128xbf16, #tpu.memory_space<vmem>>, vector<512x128xbf16>
    %cst = arith.constant dense<0.000000e+00> : vector<32x128xf32>
    %2 = tpu.matmul %0, %1, %cst {dimension_numbers = #tpu.dot_dimension_numbers<[1], [0], [0], [1], [0, 0, 1, 1], [], []>} : vector<32x512xbf16>, vector<512x128xbf16>, vector<32x128xf32> -> vector<32x128xf32>
    %c0_3 = arith.constant 0 : index
    %c0_4 = arith.constant 0 : index
    %3 = vector.load %arg4[%c0_3, %c0_4] : memref<1x128xf32, #tpu.memory_space<vmem>>, vector<1x128xf32>
    %4 = vector.broadcast %3 : vector<1x128xf32> to vector<32x128xf32>
    %5 = arith.addf %2, %4 : vector<32x128xf32>
    %cst_5 = arith.constant 0.000000e+00 : f32
    %6 = vector.broadcast %cst_5 : f32 to vector<32x128xf32>
    %7 = arith.maximumf %5, %6 : vector<32x128xf32>
    %8 = arith.truncf %7 : vector<32x128xf32> to vector<32x128xbf16>
    %c0_6 = arith.constant 0 : index
    %c0_7 = arith.constant 0 : index
    %9 = vector.load %arg5[%c0_6, %c0_7] : memref<32x128xbf16, #tpu.memory_space<vmem>>, vector<32x128xbf16>
    tpu.vector_store %arg5[%c0_6, %c0_7], %8 {strides = array<i32>} : memref<32x128xbf16, #tpu.memory_space<vmem>>, vector<32x128xbf16>,
    return
  }
  func.func @transform_0(%arg0: i32, %arg1: i32) -> (i32, i32) {
    %c0_i32 = arith.constant 0 : i32
    %c0_i32_0 = arith.constant 0 : i32
    return %arg0, %c0_i32 : i32, i32
  }
  func.func @transform_1(%arg0: i32, %arg1: i32) -> (i32, i32) {
    %c0_i32 = arith.constant 0 : i32
    %c0_i32_0 = arith.constant 0 : i32
    return %c0_i32, %arg1 : i32, i32
  }
  func.func @transform_2(%arg0: i32, %arg1: i32) -> (i32, i32) {
    %c0_i32 = arith.constant 0 : i32
    %c0_i32_0 = arith.constant 0 : i32
    return %c0_i32, %arg1 : i32, i32
  }
  func.func @transform_3(%arg0: i32, %arg1: i32) -> (i32, i32) {
    %c0_i32 = arith.constant 0 : i32
    return %arg0, %arg1 : i32, i32
  }
}

module attributes {stable_mosaic.version = 11 : i64} {
  func.func @_gemm_bias_relu_kernel(%arg0: i32, %arg1: i32, %arg2: memref<8x1024xbf16, #tpu.memory_space<vmem>>, %arg3: memref<1024x128xbf16, #tpu.memory_space<vmem>>, %arg4: memref<1x128xf32, #tpu.memory_space<vmem>>, %arg5: memref<8x128xbf16, #tpu.memory_space<vmem>>) attributes {dimension_semantics = [#tpu.dimension_semantics<parallel>, #tpu.dimension_semantics<parallel>], iteration_bounds = array<i64: 1, 1>, scalar_prefetch = 0 : i64, scratch_operands = 0 : i64, tpu.core_type = #tpu.core_type<tc>, window_params = [{transform_indices = @transform_0, window_bounds = array<i64: 8, 1024>}, {transform_indices = @transform_1, window_bounds = array<i64: 1024, 128>}, {transform_indices = @transform_2, window_bounds = array<i64: 1, 128>}, {transform_indices = @transform_3, window_bounds = array<i64: 8, 128>}]} {
    %c0 = arith.constant 0 : index
    %c0_0 = arith.constant 0 : index
    %0 = vector.load %arg2[%c0, %c0_0] : memref<8x1024xbf16, #tpu.memory_space<vmem>>, vector<8x1024xbf16>
    %c0_1 = arith.constant 0 : index
    %c0_2 = arith.constant 0 : index
    %1 = vector.load %arg3[%c0_1, %c0_2] : memref<1024x128xbf16, #tpu.memory_space<vmem>>, vector<1024x128xbf16>
    %cst = arith.constant dense<0.000000e+00> : vector<8x128xf32>
    %2 = tpu.matmul %0, %1, %cst {dimension_numbers = #tpu.dot_dimension_numbers<[1], [0], [0], [1], [0, 0, 1, 1], [], []>} : vector<8x1024xbf16>, vector<1024x128xbf16>, vector<8x128xf32> -> vector<8x128xf32>
    %c0_3 = arith.constant 0 : index
    %c0_4 = arith.constant 0 : index
    %3 = vector.load %arg4[%c0_3, %c0_4] : memref<1x128xf32, #tpu.memory_space<vmem>>, vector<1x128xf32>
    %4 = vector.broadcast %3 : vector<1x128xf32> to vector<8x128xf32>
    %5 = arith.addf %2, %4 : vector<8x128xf32>
    %cst_5 = arith.constant 0.000000e+00 : f32
    %6 = vector.broadcast %cst_5 : f32 to vector<8x128xf32>
    %7 = arith.maximumf %5, %6 : vector<8x128xf32>
    %8 = arith.truncf %7 : vector<8x128xf32> to vector<8x128xbf16>
    %c0_6 = arith.constant 0 : index
    %c0_7 = arith.constant 0 : index
    %9 = vector.load %arg5[%c0_6, %c0_7] : memref<8x128xbf16, #tpu.memory_space<vmem>>, vector<8x128xbf16>
    tpu.vector_store %arg5[%c0_6, %c0_7], %8 {strides = array<i32>} : memref<8x128xbf16, #tpu.memory_space<vmem>>, vector<8x128xbf16>,
    return
  }
  func.func @transform_0(%arg0: i32, %arg1: i32) -> (i32, i32) {
    %c0_i32 = arith.constant 0 : i32
    %c0_i32_0 = arith.constant 0 : i32
    return %arg0, %c0_i32 : i32, i32
  }
  func.func @transform_1(%arg0: i32, %arg1: i32) -> (i32, i32) {
    %c0_i32 = arith.constant 0 : i32
    %c0_i32_0 = arith.constant 0 : i32
    return %c0_i32, %arg1 : i32, i32
  }
  func.func @transform_2(%arg0: i32, %arg1: i32) -> (i32, i32) {
    %c0_i32 = arith.constant 0 : i32
    %c0_i32_0 = arith.constant 0 : i32
    return %c0_i32, %arg1 : i32, i32
  }
  func.func @transform_3(%arg0: i32, %arg1: i32) -> (i32, i32) {
    %c0_i32 = arith.constant 0 : i32
    return %arg0, %arg1 : i32, i32
  }
}

module attributes {stable_mosaic.version = 11 : i64} {
  func.func @_gemm_bias_relu_kernel(%arg0: i32, %arg1: i32, %arg2: memref<8x2048xbf16, #tpu.memory_space<vmem>>, %arg3: memref<2048x256xbf16, #tpu.memory_space<vmem>>, %arg4: memref<1x256xf32, #tpu.memory_space<vmem>>, %arg5: memref<8x256xbf16, #tpu.memory_space<vmem>>) attributes {dimension_semantics = [#tpu.dimension_semantics<parallel>, #tpu.dimension_semantics<parallel>], iteration_bounds = array<i64: 1, 1>, scalar_prefetch = 0 : i64, scratch_operands = 0 : i64, tpu.core_type = #tpu.core_type<tc>, window_params = [{transform_indices = @transform_0, window_bounds = array<i64: 8, 2048>}, {transform_indices = @transform_1, window_bounds = array<i64: 2048, 256>}, {transform_indices = @transform_2, window_bounds = array<i64: 1, 256>}, {transform_indices = @transform_3, window_bounds = array<i64: 8, 256>}]} {
    %c0 = arith.constant 0 : index
    %c0_0 = arith.constant 0 : index
    %0 = vector.load %arg2[%c0, %c0_0] : memref<8x2048xbf16, #tpu.memory_space<vmem>>, vector<8x2048xbf16>
    %c0_1 = arith.constant 0 : index
    %c0_2 = arith.constant 0 : index
    %1 = vector.load %arg3[%c0_1, %c0_2] : memref<2048x256xbf16, #tpu.memory_space<vmem>>, vector<2048x256xbf16>
    %cst = arith.constant dense<0.000000e+00> : vector<8x256xf32>
    %2 = tpu.matmul %0, %1, %cst {dimension_numbers = #tpu.dot_dimension_numbers<[1], [0], [0], [1], [0, 0, 1, 1], [], []>} : vector<8x2048xbf16>, vector<2048x256xbf16>, vector<8x256xf32> -> vector<8x256xf32>
    %c0_3 = arith.constant 0 : index
    %c0_4 = arith.constant 0 : index
    %3 = vector.load %arg4[%c0_3, %c0_4] : memref<1x256xf32, #tpu.memory_space<vmem>>, vector<1x256xf32>
    %4 = vector.broadcast %3 : vector<1x256xf32> to vector<8x256xf32>
    %5 = arith.addf %2, %4 : vector<8x256xf32>
    %cst_5 = arith.constant 0.000000e+00 : f32
    %6 = vector.broadcast %cst_5 : f32 to vector<8x256xf32>
    %7 = arith.maximumf %5, %6 : vector<8x256xf32>
    %8 = arith.truncf %7 : vector<8x256xf32> to vector<8x256xbf16>
    %c0_6 = arith.constant 0 : index
    %c0_7 = arith.constant 0 : index
    %9 = vector.load %arg5[%c0_6, %c0_7] : memref<8x256xbf16, #tpu.memory_space<vmem>>, vector<8x256xbf16>
    tpu.vector_store %arg5[%c0_6, %c0_7], %8 {strides = array<i32>} : memref<8x256xbf16, #tpu.memory_space<vmem>>, vector<8x256xbf16>,
    return
  }
  func.func @transform_0(%arg0: i32, %arg1: i32) -> (i32, i32) {
    %c0_i32 = arith.constant 0 : i32
    %c0_i32_0 = arith.constant 0 : i32
    return %arg0, %c0_i32 : i32, i32
  }
  func.func @transform_1(%arg0: i32, %arg1: i32) -> (i32, i32) {
    %c0_i32 = arith.constant 0 : i32
    %c0_i32_0 = arith.constant 0 : i32
    return %c0_i32, %arg1 : i32, i32
  }
  func.func @transform_2(%arg0: i32, %arg1: i32) -> (i32, i32) {
    %c0_i32 = arith.constant 0 : i32
    %c0_i32_0 = arith.constant 0 : i32
    return %c0_i32, %arg1 : i32, i32
  }
  func.func @transform_3(%arg0: i32, %arg1: i32) -> (i32, i32) {
    %c0_i32 = arith.constant 0 : i32
    return %arg0, %arg1 : i32, i32
  }
}

module attributes {stable_mosaic.version = 11 : i64} {
  func.func @_gemm_bias_relu_kernel(%arg0: i32, %arg1: i32, %arg2: memref<8x256xbf16, #tpu.memory_space<vmem>>, %arg3: memref<256x256xbf16, #tpu.memory_space<vmem>>, %arg4: memref<1x256xf32, #tpu.memory_space<vmem>>, %arg5: memref<8x256xbf16, #tpu.memory_space<vmem>>) attributes {dimension_semantics = [#tpu.dimension_semantics<parallel>, #tpu.dimension_semantics<parallel>], iteration_bounds = array<i64: 1, 1>, scalar_prefetch = 0 : i64, scratch_operands = 0 : i64, tpu.core_type = #tpu.core_type<tc>, window_params = [{transform_indices = @transform_0, window_bounds = array<i64: 8, 256>}, {transform_indices = @transform_1, window_bounds = array<i64: 256, 256>}, {transform_indices = @transform_2, window_bounds = array<i64: 1, 256>}, {transform_indices = @transform_3, window_bounds = array<i64: 8, 256>}]} {
    %c0 = arith.constant 0 : index
    %c0_0 = arith.constant 0 : index
    %0 = vector.load %arg2[%c0, %c0_0] : memref<8x256xbf16, #tpu.memory_space<vmem>>, vector<8x256xbf16>
    %c0_1 = arith.constant 0 : index
    %c0_2 = arith.constant 0 : index
    %1 = vector.load %arg3[%c0_1, %c0_2] : memref<256x256xbf16, #tpu.memory_space<vmem>>, vector<256x256xbf16>
    %cst = arith.constant dense<0.000000e+00> : vector<8x256xf32>
    %2 = tpu.matmul %0, %1, %cst {dimension_numbers = #tpu.dot_dimension_numbers<[1], [0], [0], [1], [0, 0, 1, 1], [], []>} : vector<8x256xbf16>, vector<256x256xbf16>, vector<8x256xf32> -> vector<8x256xf32>
    %c0_3 = arith.constant 0 : index
    %c0_4 = arith.constant 0 : index
    %3 = vector.load %arg4[%c0_3, %c0_4] : memref<1x256xf32, #tpu.memory_space<vmem>>, vector<1x256xf32>
    %4 = vector.broadcast %3 : vector<1x256xf32> to vector<8x256xf32>
    %5 = arith.addf %2, %4 : vector<8x256xf32>
    %cst_5 = arith.constant 0.000000e+00 : f32
    %6 = vector.broadcast %cst_5 : f32 to vector<8x256xf32>
    %7 = arith.maximumf %5, %6 : vector<8x256xf32>
    %8 = arith.truncf %7 : vector<8x256xf32> to vector<8x256xbf16>
    %c0_6 = arith.constant 0 : index
    %c0_7 = arith.constant 0 : index
    %9 = vector.load %arg5[%c0_6, %c0_7] : memref<8x256xbf16, #tpu.memory_space<vmem>>, vector<8x256xbf16>
    tpu.vector_store %arg5[%c0_6, %c0_7], %8 {strides = array<i32>} : memref<8x256xbf16, #tpu.memory_space<vmem>>, vector<8x256xbf16>,
    return
  }
  func.func @transform_0(%arg0: i32, %arg1: i32) -> (i32, i32) {
    %c0_i32 = arith.constant 0 : i32
    %c0_i32_0 = arith.constant 0 : i32
    return %arg0, %c0_i32 : i32, i32
  }
  func.func @transform_1(%arg0: i32, %arg1: i32) -> (i32, i32) {
    %c0_i32 = arith.constant 0 : i32
    %c0_i32_0 = arith.constant 0 : i32
    return %c0_i32, %arg1 : i32, i32
  }
  func.func @transform_2(%arg0: i32, %arg1: i32) -> (i32, i32) {
    %c0_i32 = arith.constant 0 : i32
    %c0_i32_0 = arith.constant 0 : i32
    return %c0_i32, %arg1 : i32, i32
  }
  func.func @transform_3(%arg0: i32, %arg1: i32) -> (i32, i32) {
    %c0_i32 = arith.constant 0 : i32
    return %arg0, %arg1 : i32, i32
  }
}

module attributes {stable_mosaic.version = 11 : i64} {
  func.func @_gemm_bias_relu_kernel(%arg0: i32, %arg1: i32, %arg2: memref<8x256xbf16, #tpu.memory_space<vmem>>, %arg3: memref<256x256xbf16, #tpu.memory_space<vmem>>, %arg4: memref<1x256xf32, #tpu.memory_space<vmem>>, %arg5: memref<8x256xbf16, #tpu.memory_space<vmem>>) attributes {dimension_semantics = [#tpu.dimension_semantics<parallel>, #tpu.dimension_semantics<parallel>], iteration_bounds = array<i64: 1, 2>, scalar_prefetch = 0 : i64, scratch_operands = 0 : i64, tpu.core_type = #tpu.core_type<tc>, window_params = [{transform_indices = @transform_0, window_bounds = array<i64: 8, 256>}, {transform_indices = @transform_1, window_bounds = array<i64: 256, 256>}, {transform_indices = @transform_2, window_bounds = array<i64: 1, 256>}, {transform_indices = @transform_3, window_bounds = array<i64: 8, 256>}]} {
    %c0 = arith.constant 0 : index
    %c0_0 = arith.constant 0 : index
    %0 = vector.load %arg2[%c0, %c0_0] : memref<8x256xbf16, #tpu.memory_space<vmem>>, vector<8x256xbf16>
    %c0_1 = arith.constant 0 : index
    %c0_2 = arith.constant 0 : index
    %1 = vector.load %arg3[%c0_1, %c0_2] : memref<256x256xbf16, #tpu.memory_space<vmem>>, vector<256x256xbf16>
    %cst = arith.constant dense<0.000000e+00> : vector<8x256xf32>
    %2 = tpu.matmul %0, %1, %cst {dimension_numbers = #tpu.dot_dimension_numbers<[1], [0], [0], [1], [0, 0, 1, 1], [], []>} : vector<8x256xbf16>, vector<256x256xbf16>, vector<8x256xf32> -> vector<8x256xf32>
    %c0_3 = arith.constant 0 : index
    %c0_4 = arith.constant 0 : index
    %3 = vector.load %arg4[%c0_3, %c0_4] : memref<1x256xf32, #tpu.memory_space<vmem>>, vector<1x256xf32>
    %4 = vector.broadcast %3 : vector<1x256xf32> to vector<8x256xf32>
    %5 = arith.addf %2, %4 : vector<8x256xf32>
    %cst_5 = arith.constant 0.000000e+00 : f32
    %6 = vector.broadcast %cst_5 : f32 to vector<8x256xf32>
    %7 = arith.maximumf %5, %6 : vector<8x256xf32>
    %8 = arith.truncf %7 : vector<8x256xf32> to vector<8x256xbf16>
    %c0_6 = arith.constant 0 : index
    %c0_7 = arith.constant 0 : index
    %9 = vector.load %arg5[%c0_6, %c0_7] : memref<8x256xbf16, #tpu.memory_space<vmem>>, vector<8x256xbf16>
    tpu.vector_store %arg5[%c0_6, %c0_7], %8 {strides = array<i32>} : memref<8x256xbf16, #tpu.memory_space<vmem>>, vector<8x256xbf16>,
    return
  }
  func.func @transform_0(%arg0: i32, %arg1: i32) -> (i32, i32) {
    %c0_i32 = arith.constant 0 : i32
    %c0_i32_0 = arith.constant 0 : i32
    return %arg0, %c0_i32 : i32, i32
  }
  func.func @transform_1(%arg0: i32, %arg1: i32) -> (i32, i32) {
    %c0_i32 = arith.constant 0 : i32
    %c0_i32_0 = arith.constant 0 : i32
    return %c0_i32, %arg1 : i32, i32
  }
  func.func @transform_2(%arg0: i32, %arg1: i32) -> (i32, i32) {
    %c0_i32 = arith.constant 0 : i32
    %c0_i32_0 = arith.constant 0 : i32
    return %c0_i32, %arg1 : i32, i32
  }
  func.func @transform_3(%arg0: i32, %arg1: i32) -> (i32, i32) {
    %c0_i32 = arith.constant 0 : i32
    return %arg0, %arg1 : i32, i32
  }
}

module attributes {stable_mosaic.version = 11 : i64} {
  func.func @_gemm_bias_relu_kernel(%arg0: i32, %arg1: i32, %arg2: memref<8x2304xbf16, #tpu.memory_space<vmem>>, %arg3: memref<2304x256xbf16, #tpu.memory_space<vmem>>, %arg4: memref<1x256xf32, #tpu.memory_space<vmem>>, %arg5: memref<8x256xbf16, #tpu.memory_space<vmem>>) attributes {dimension_semantics = [#tpu.dimension_semantics<parallel>, #tpu.dimension_semantics<parallel>], iteration_bounds = array<i64: 1, 1>, scalar_prefetch = 0 : i64, scratch_operands = 0 : i64, tpu.core_type = #tpu.core_type<tc>, window_params = [{transform_indices = @transform_0, window_bounds = array<i64: 8, 2304>}, {transform_indices = @transform_1, window_bounds = array<i64: 2304, 256>}, {transform_indices = @transform_2, window_bounds = array<i64: 1, 256>}, {transform_indices = @transform_3, window_bounds = array<i64: 8, 256>}]} {
    %c0 = arith.constant 0 : index
    %c0_0 = arith.constant 0 : index
    %0 = vector.load %arg2[%c0, %c0_0] : memref<8x2304xbf16, #tpu.memory_space<vmem>>, vector<8x2304xbf16>
    %c0_1 = arith.constant 0 : index
    %c0_2 = arith.constant 0 : index
    %1 = vector.load %arg3[%c0_1, %c0_2] : memref<2304x256xbf16, #tpu.memory_space<vmem>>, vector<2304x256xbf16>
    %cst = arith.constant dense<0.000000e+00> : vector<8x256xf32>
    %2 = tpu.matmul %0, %1, %cst {dimension_numbers = #tpu.dot_dimension_numbers<[1], [0], [0], [1], [0, 0, 1, 1], [], []>} : vector<8x2304xbf16>, vector<2304x256xbf16>, vector<8x256xf32> -> vector<8x256xf32>
    %c0_3 = arith.constant 0 : index
    %c0_4 = arith.constant 0 : index
    %3 = vector.load %arg4[%c0_3, %c0_4] : memref<1x256xf32, #tpu.memory_space<vmem>>, vector<1x256xf32>
    %4 = vector.broadcast %3 : vector<1x256xf32> to vector<8x256xf32>
    %5 = arith.addf %2, %4 : vector<8x256xf32>
    %cst_5 = arith.constant 0.000000e+00 : f32
    %6 = vector.broadcast %cst_5 : f32 to vector<8x256xf32>
    %7 = arith.maximumf %5, %6 : vector<8x256xf32>
    %8 = arith.truncf %7 : vector<8x256xf32> to vector<8x256xbf16>
    %c0_6 = arith.constant 0 : index
    %c0_7 = arith.constant 0 : index
    %9 = vector.load %arg5[%c0_6, %c0_7] : memref<8x256xbf16, #tpu.memory_space<vmem>>, vector<8x256xbf16>
    tpu.vector_store %arg5[%c0_6, %c0_7], %8 {strides = array<i32>} : memref<8x256xbf16, #tpu.memory_space<vmem>>, vector<8x256xbf16>,
    return
  }
  func.func @transform_0(%arg0: i32, %arg1: i32) -> (i32, i32) {
    %c0_i32 = arith.constant 0 : i32
    %c0_i32_0 = arith.constant 0 : i32
    return %arg0, %c0_i32 : i32, i32
  }
  func.func @transform_1(%arg0: i32, %arg1: i32) -> (i32, i32) {
    %c0_i32 = arith.constant 0 : i32
    %c0_i32_0 = arith.constant 0 : i32
    return %c0_i32, %arg1 : i32, i32
  }
  func.func @transform_2(%arg0: i32, %arg1: i32) -> (i32, i32) {
    %c0_i32 = arith.constant 0 : i32
    %c0_i32_0 = arith.constant 0 : i32
    return %c0_i32, %arg1 : i32, i32
  }
  func.func @transform_3(%arg0: i32, %arg1: i32) -> (i32, i32) {
    %c0_i32 = arith.constant 0 : i32
    return %arg0, %arg1 : i32, i32
  }
}

module attributes {stable_mosaic.version = 11 : i64} {
  func.func @_gemm_bias_relu_kernel(%arg0: i32, %arg1: i32, %arg2: memref<32x1152xbf16, #tpu.memory_space<vmem>>, %arg3: memref<1152x128xbf16, #tpu.memory_space<vmem>>, %arg4: memref<1x128xf32, #tpu.memory_space<vmem>>, %arg5: memref<32x128xbf16, #tpu.memory_space<vmem>>) attributes {dimension_semantics = [#tpu.dimension_semantics<parallel>, #tpu.dimension_semantics<parallel>], iteration_bounds = array<i64: 1, 1>, scalar_prefetch = 0 : i64, scratch_operands = 0 : i64, tpu.core_type = #tpu.core_type<tc>, window_params = [{transform_indices = @transform_0, window_bounds = array<i64: 32, 1152>}, {transform_indices = @transform_1, window_bounds = array<i64: 1152, 128>}, {transform_indices = @transform_2, window_bounds = array<i64: 1, 128>}, {transform_indices = @transform_3, window_bounds = array<i64: 32, 128>}]} {
    %c0 = arith.constant 0 : index
    %c0_0 = arith.constant 0 : index
    %0 = vector.load %arg2[%c0, %c0_0] : memref<32x1152xbf16, #tpu.memory_space<vmem>>, vector<32x1152xbf16>
    %c0_1 = arith.constant 0 : index
    %c0_2 = arith.constant 0 : index
    %1 = vector.load %arg3[%c0_1, %c0_2] : memref<1152x128xbf16, #tpu.memory_space<vmem>>, vector<1152x128xbf16>
    %cst = arith.constant dense<0.000000e+00> : vector<32x128xf32>
    %2 = tpu.matmul %0, %1, %cst {dimension_numbers = #tpu.dot_dimension_numbers<[1], [0], [0], [1], [0, 0, 1, 1], [], []>} : vector<32x1152xbf16>, vector<1152x128xbf16>, vector<32x128xf32> -> vector<32x128xf32>
    %c0_3 = arith.constant 0 : index
    %c0_4 = arith.constant 0 : index
    %3 = vector.load %arg4[%c0_3, %c0_4] : memref<1x128xf32, #tpu.memory_space<vmem>>, vector<1x128xf32>
    %4 = vector.broadcast %3 : vector<1x128xf32> to vector<32x128xf32>
    %5 = arith.addf %2, %4 : vector<32x128xf32>
    %cst_5 = arith.constant 0.000000e+00 : f32
    %6 = vector.broadcast %cst_5 : f32 to vector<32x128xf32>
    %7 = arith.maximumf %5, %6 : vector<32x128xf32>
    %8 = arith.truncf %7 : vector<32x128xf32> to vector<32x128xbf16>
    %c0_6 = arith.constant 0 : index
    %c0_7 = arith.constant 0 : index
    %9 = vector.load %arg5[%c0_6, %c0_7] : memref<32x128xbf16, #tpu.memory_space<vmem>>, vector<32x128xbf16>
    tpu.vector_store %arg5[%c0_6, %c0_7], %8 {strides = array<i32>} : memref<32x128xbf16, #tpu.memory_space<vmem>>, vector<32x128xbf16>,
    return
  }
  func.func @transform_0(%arg0: i32, %arg1: i32) -> (i32, i32) {
    %c0_i32 = arith.constant 0 : i32
    %c0_i32_0 = arith.constant 0 : i32
    return %arg0, %c0_i32 : i32, i32
  }
  func.func @transform_1(%arg0: i32, %arg1: i32) -> (i32, i32) {
    %c0_i32 = arith.constant 0 : i32
    %c0_i32_0 = arith.constant 0 : i32
    return %c0_i32, %arg1 : i32, i32
  }
  func.func @transform_2(%arg0: i32, %arg1: i32) -> (i32, i32) {
    %c0_i32 = arith.constant 0 : i32
    %c0_i32_0 = arith.constant 0 : i32
    return %c0_i32, %arg1 : i32, i32
  }
  func.func @transform_3(%arg0: i32, %arg1: i32) -> (i32, i32) {
    %c0_i32 = arith.constant 0 : i32
    return %arg0, %arg1 : i32, i32
  }
}

module attributes {stable_mosaic.version = 11 : i64} {
  func.func @_gemm_bias_relu_kernel(%arg0: i32, %arg1: i32, %arg2: memref<128x576xbf16, #tpu.memory_space<vmem>>, %arg3: memref<576x128xbf16, #tpu.memory_space<vmem>>, %arg4: memref<1x128xf32, #tpu.memory_space<vmem>>, %arg5: memref<128x128xbf16, #tpu.memory_space<vmem>>) attributes {dimension_semantics = [#tpu.dimension_semantics<parallel>, #tpu.dimension_semantics<parallel>], iteration_bounds = array<i64: 1, 1>, scalar_prefetch = 0 : i64, scratch_operands = 0 : i64, tpu.core_type = #tpu.core_type<tc>, window_params = [{transform_indices = @transform_0, window_bounds = array<i64: 128, 576>}, {transform_indices = @transform_1, window_bounds = array<i64: 576, 128>}, {transform_indices = @transform_2, window_bounds = array<i64: 1, 128>}, {transform_indices = @transform_3, window_bounds = array<i64: 128, 128>}]} {
    %c0 = arith.constant 0 : index
    %c0_0 = arith.constant 0 : index
    %0 = vector.load %arg2[%c0, %c0_0] : memref<128x576xbf16, #tpu.memory_space<vmem>>, vector<128x576xbf16>
    %c0_1 = arith.constant 0 : index
    %c0_2 = arith.constant 0 : index
    %1 = vector.load %arg3[%c0_1, %c0_2] : memref<576x128xbf16, #tpu.memory_space<vmem>>, vector<576x128xbf16>
    %cst = arith.constant dense<0.000000e+00> : vector<128x128xf32>
    %2 = tpu.matmul %0, %1, %cst {dimension_numbers = #tpu.dot_dimension_numbers<[1], [0], [0], [1], [0, 0, 1, 1], [], []>} : vector<128x576xbf16>, vector<576x128xbf16>, vector<128x128xf32> -> vector<128x128xf32>
    %c0_3 = arith.constant 0 : index
    %c0_4 = arith.constant 0 : index
    %3 = vector.load %arg4[%c0_3, %c0_4] : memref<1x128xf32, #tpu.memory_space<vmem>>, vector<1x128xf32>
    %4 = vector.broadcast %3 : vector<1x128xf32> to vector<128x128xf32>
    %5 = arith.addf %2, %4 : vector<128x128xf32>
    %cst_5 = arith.constant 0.000000e+00 : f32
    %6 = vector.broadcast %cst_5 : f32 to vector<128x128xf32>
    %7 = arith.maximumf %5, %6 : vector<128x128xf32>
    %8 = arith.truncf %7 : vector<128x128xf32> to vector<128x128xbf16>
    %c0_6 = arith.constant 0 : index
    %c0_7 = arith.constant 0 : index
    %9 = vector.load %arg5[%c0_6, %c0_7] : memref<128x128xbf16, #tpu.memory_space<vmem>>, vector<128x128xbf16>
    tpu.vector_store %arg5[%c0_6, %c0_7], %8 {strides = array<i32>} : memref<128x128xbf16, #tpu.memory_space<vmem>>, vector<128x128xbf16>,
    return
  }
  func.func @transform_0(%arg0: i32, %arg1: i32) -> (i32, i32) {
    %c0_i32 = arith.constant 0 : i32
    %c0_i32_0 = arith.constant 0 : i32
    return %arg0, %c0_i32 : i32, i32
  }
  func.func @transform_1(%arg0: i32, %arg1: i32) -> (i32, i32) {
    %c0_i32 = arith.constant 0 : i32
    %c0_i32_0 = arith.constant 0 : i32
    return %c0_i32, %arg1 : i32, i32
  }
  func.func @transform_2(%arg0: i32, %arg1: i32) -> (i32, i32) {
    %c0_i32 = arith.constant 0 : i32
    %c0_i32_0 = arith.constant 0 : i32
    return %c0_i32, %arg1 : i32, i32
  }
  func.func @transform_3(%arg0: i32, %arg1: i32) -> (i32, i32) {
    %c0_i32 = arith.constant 0 : i32
    return %arg0, %arg1 : i32, i32
  }
}

module attributes {stable_mosaic.version = 11 : i64} {
  func.func @_gemm_bias_relu_kernel(%arg0: i32, %arg1: i32, %arg2: memref<256x288xbf16, #tpu.memory_space<vmem>>, %arg3: memref<288x128xbf16, #tpu.memory_space<vmem>>, %arg4: memref<1x128xf32, #tpu.memory_space<vmem>>, %arg5: memref<256x128xbf16, #tpu.memory_space<vmem>>) attributes {dimension_semantics = [#tpu.dimension_semantics<parallel>, #tpu.dimension_semantics<parallel>], iteration_bounds = array<i64: 2, 1>, scalar_prefetch = 0 : i64, scratch_operands = 0 : i64, tpu.core_type = #tpu.core_type<tc>, window_params = [{transform_indices = @transform_0, window_bounds = array<i64: 256, 288>}, {transform_indices = @transform_1, window_bounds = array<i64: 288, 128>}, {transform_indices = @transform_2, window_bounds = array<i64: 1, 128>}, {transform_indices = @transform_3, window_bounds = array<i64: 256, 128>}]} {
    %c0 = arith.constant 0 : index
    %c0_0 = arith.constant 0 : index
    %0 = vector.load %arg2[%c0, %c0_0] : memref<256x288xbf16, #tpu.memory_space<vmem>>, vector<256x288xbf16>
    %c0_1 = arith.constant 0 : index
    %c0_2 = arith.constant 0 : index
    %1 = vector.load %arg3[%c0_1, %c0_2] : memref<288x128xbf16, #tpu.memory_space<vmem>>, vector<288x128xbf16>
    %cst = arith.constant dense<0.000000e+00> : vector<256x128xf32>
    %2 = tpu.matmul %0, %1, %cst {dimension_numbers = #tpu.dot_dimension_numbers<[1], [0], [0], [1], [0, 0, 1, 1], [], []>} : vector<256x288xbf16>, vector<288x128xbf16>, vector<256x128xf32> -> vector<256x128xf32>
    %c0_3 = arith.constant 0 : index
    %c0_4 = arith.constant 0 : index
    %3 = vector.load %arg4[%c0_3, %c0_4] : memref<1x128xf32, #tpu.memory_space<vmem>>, vector<1x128xf32>
    %4 = vector.broadcast %3 : vector<1x128xf32> to vector<256x128xf32>
    %5 = arith.addf %2, %4 : vector<256x128xf32>
    %cst_5 = arith.constant 0.000000e+00 : f32
    %6 = vector.broadcast %cst_5 : f32 to vector<256x128xf32>
    %7 = arith.maximumf %5, %6 : vector<256x128xf32>
    %8 = arith.truncf %7 : vector<256x128xf32> to vector<256x128xbf16>
    %c0_6 = arith.constant 0 : index
    %c0_7 = arith.constant 0 : index
    %9 = vector.load %arg5[%c0_6, %c0_7] : memref<256x128xbf16, #tpu.memory_space<vmem>>, vector<256x128xbf16>
    tpu.vector_store %arg5[%c0_6, %c0_7], %8 {strides = array<i32>} : memref<256x128xbf16, #tpu.memory_space<vmem>>, vector<256x128xbf16>,
    return
  }
  func.func @transform_0(%arg0: i32, %arg1: i32) -> (i32, i32) {
    %c0_i32 = arith.constant 0 : i32
    %c0_i32_0 = arith.constant 0 : i32
    return %arg0, %c0_i32 : i32, i32
  }
  func.func @transform_1(%arg0: i32, %arg1: i32) -> (i32, i32) {
    %c0_i32 = arith.constant 0 : i32
    %c0_i32_0 = arith.constant 0 : i32
    return %c0_i32, %arg1 : i32, i32
  }
  func.func @transform_2(%arg0: i32, %arg1: i32) -> (i32, i32) {
    %c0_i32 = arith.constant 0 : i32
    %c0_i32_0 = arith.constant 0 : i32
    return %c0_i32, %arg1 : i32, i32
  }
  func.func @transform_3(%arg0: i32, %arg1: i32) -> (i32, i32) {
    %c0_i32 = arith.constant 0 : i32
    return %arg0, %arg1 : i32, i32
  }
}

module attributes {stable_mosaic.version = 11 : i64} {
  func.func @_gemv_mask_kernel(%arg0: i32, %arg1: memref<1x144xbf16, #tpu.memory_space<vmem>>, %arg2: memref<144x1024xbf16, #tpu.memory_space<vmem>>, %arg3: memref<1x1xf32, #tpu.memory_space<vmem>>, %arg4: memref<1x1024xf32, #tpu.memory_space<vmem>>, %arg5: memref<1x1024xf32, #tpu.memory_space<vmem>>) attributes {dimension_semantics = [#tpu.dimension_semantics<parallel>], iteration_bounds = array<i64: 2>, scalar_prefetch = 0 : i64, scratch_operands = 0 : i64, tpu.core_type = #tpu.core_type<tc>, window_params = [{pipeline_mode = #tpu.pipeline_mode<synchronous>, transform_indices = @transform_0, window_bounds = array<i64: 1, 144>}, {transform_indices = @transform_1, window_bounds = array<i64: 144, 1024>}, {pipeline_mode = #tpu.pipeline_mode<synchronous>, transform_indices = @transform_2, window_bounds = array<i64: 1, 1>}, {transform_indices = @transform_3, window_bounds = array<i64: 1, 1024>}, {transform_indices = @transform_4, window_bounds = array<i64: 1, 1024>}]} {
    %c0 = arith.constant 0 : index
    %c0_0 = arith.constant 0 : index
    %0 = vector.load %arg1[%c0, %c0_0] : memref<1x144xbf16, #tpu.memory_space<vmem>>, vector<1x144xbf16>
    %c0_1 = arith.constant 0 : index
    %c0_2 = arith.constant 0 : index
    %1 = vector.load %arg2[%c0_1, %c0_2] : memref<144x1024xbf16, #tpu.memory_space<vmem>>, vector<144x1024xbf16>
    %cst = arith.constant dense<0.000000e+00> : vector<1x1024xf32>
    %2 = tpu.matmul %0, %1, %cst {dimension_numbers = #tpu.dot_dimension_numbers<[1], [0], [0], [1], [0, 0, 1, 1], [], []>} : vector<1x144xbf16>, vector<144x1024xbf16>, vector<1x1024xf32> -> vector<1x1024xf32>
    %c0_3 = arith.constant 0 : index
    %c0_4 = arith.constant 0 : index
    %3 = vector.load %arg3[%c0_3, %c0_4] : memref<1x1xf32, #tpu.memory_space<vmem>>, vector<1x1xf32>
    %4 = vector.broadcast %3 : vector<1x1xf32> to vector<1x1024xf32>
    %5 = arith.addf %2, %4 : vector<1x1024xf32>
    %c0_5 = arith.constant 0 : index
    %c0_6 = arith.constant 0 : index
    %6 = vector.load %arg4[%c0_5, %c0_6] : memref<1x1024xf32, #tpu.memory_space<vmem>>, vector<1x1024xf32>
    %7 = arith.mulf %5, %6 : vector<1x1024xf32>
    %c0_7 = arith.constant 0 : index
    %c0_8 = arith.constant 0 : index
    %8 = vector.load %arg5[%c0_7, %c0_8] : memref<1x1024xf32, #tpu.memory_space<vmem>>, vector<1x1024xf32>
    tpu.vector_store %arg5[%c0_7, %c0_8], %7 {strides = array<i32>} : memref<1x1024xf32, #tpu.memory_space<vmem>>, vector<1x1024xf32>,
    return
  }
  func.func @transform_0(%arg0: i32) -> (i32, i32) {
    %c0_i32 = arith.constant 0 : i32
    %c0_i32_0 = arith.constant 0 : i32
    %c0_i32_1 = arith.constant 0 : i32
    return %c0_i32, %c0_i32_0 : i32, i32
  }
  func.func @transform_1(%arg0: i32) -> (i32, i32) {
    %c0_i32 = arith.constant 0 : i32
    %c0_i32_0 = arith.constant 0 : i32
    return %c0_i32, %arg0 : i32, i32
  }
  func.func @transform_2(%arg0: i32) -> (i32, i32) {
    %c0_i32 = arith.constant 0 : i32
    %c0_i32_0 = arith.constant 0 : i32
    %c0_i32_1 = arith.constant 0 : i32
    return %c0_i32, %c0_i32_0 : i32, i32
  }
  func.func @transform_3(%arg0: i32) -> (i32, i32) {
    %c0_i32 = arith.constant 0 : i32
    %c0_i32_0 = arith.constant 0 : i32
    return %c0_i32, %arg0 : i32, i32
  }
  func.func @transform_4(%arg0: i32) -> (i32, i32) {
    %c0_i32 = arith.constant 0 : i32
    %c0_i32_0 = arith.constant 0 : i32
    return %c0_i32, %arg0 : i32, i32
  }
}

</mosaic_0001>

<llo_original>
// kernel: shading_net_forward.12
$region0: #{shading_net_forward.12}
  #allocation0 [shape = 'u32[]', space=smem, size = 0x4, offset = 0x4, fixed_abs, tag = 'smem constant byte address 0x4 - core index']
  #allocation1 [shape = 'u32[72,128]{1,0:T(1,128)}', space=vmem, size = 0x9000, scoped, tag = 'internal scratch']
  %s0 = inlined_call_operand.vmem [shape: bf16[512,48], index: 0, kind: input, shape index: {}]
  %s1 = inlined_call_operand.vmem [shape: bf16[48,16], index: 1, kind: input, shape index: {}]
  %s2 = inlined_call_operand.vmem [shape: f32[1,16], index: 2, kind: input, shape index: {}]
  %s3 = inlined_call_operand.vmem [shape: bf16[512,16], index: 3, kind: output, shape index: {}]
  %s4 = sld [smem:[#allocation0]]
  $region45: #{shading_net_forward.12} parent=0
    _
  %s6 = ssub.s32 1, %s4
  %s7 = scalar_select 0, %s6, %s4
  loop: start=0, step=1, limit=4
  $region2: #{shading_net_forward.12} parent=0 // loop_pre_header
    _
  $region3: #{shading_net_forward.12} parent=0 // loop_header
    %s9 = sphi 0, %s13
    %p10 = scmp.ge.s32.totalorder %s9, 4
    %s16 = sphi 0, %s28
    %s17 = sphi 0, %s24
    %s18 = sphi 0, %s16
    %s19 = sphi 0, %s17
    %s20 = sphi 0, %s18
    %s21 = sphi 0, %s19
    %s31 = sphi 0, %s33
    %s34 = sphi 0, %s31
    %s35 = sphi 0, %s34
    %s51 = sphi 0, %s35
    %s57 = sphi 0, %s59
    %s60 = sphi 0, %s57
    %s61 = sphi 0, %s60
    %s77 = sphi 0, %s61
    %s83 = sphi 0, %s85
    %s86 = sphi 0, %s83
    %s87 = sphi 0, %s86
    %s103 = sphi 0, %s87
    %s111 = sphi 0, %s113
    %s114 = sphi 0, %s111
    %s115 = sphi 0, %s114
    %s131 = sphi 0, %s115
  $region4: #{shading_net_forward.12} parent=0 // loop_header_branch
    %12 = sbr.rel (%p10) target = $region8
  $region5: #{shading_net_forward.12} parent=0 // loop_body
    %s14 = ssub.s32 %s9, 1
    %s15 = ssub.s32 %s9, 2
    %s22 = sadd.s32 1, %s17
    %p23 = scmp.ge.s32.totalorder %s22, 1
    %s24 = scalar_select %p23, 0, %s22
    %s25 = sadd.s32 1, %s16
    %s26 = scalar_select %p23, %s25, %s16
    %p27 = scmp.ge.s32.totalorder %s26, 2
    %s28 = scalar_select %p27, 0, %s26
    %s29 = ssub.s32 %s16, %s28
    %p30 = scmp.eq.s32.totalorder %s29, 0
    %s32 = sadd.s32 %s31, 1
    %s33 = scalar_select %p30, %s31, %s32
    %p36 = pneg %p30
    %p37 = scmp.eq.s32.totalorder %s9, 1
    %p38 = por %p36, %p37
    %p39 = scmp.ne.s32.totalorder %s31, %s34
    %p40 = scmp.eq.s32.totalorder %s9, 0
    %p41 = por %p39, %p40
    %p42 = scmp.ne.s32.totalorder %s31, %s34
    %p43 = scmp.eq.s32.totalorder %s14, 1
    %p44 = por %p42, %p43
    %p45 = scmp.ne.s32.totalorder %s34, %s35
    %p46 = scmp.eq.s32.totalorder %s14, 0
    %p47 = por %p45, %p46
    %p48 = scmp.ne.s32.totalorder %s34, %s35
    %p49 = scmp.eq.s32.totalorder %s15, 1
    %p50 = por %p48, %p49
    %p52 = scmp.ne.s32.totalorder %s35, %s51
    %p53 = scmp.eq.s32.totalorder %s15, 0
    %p54 = por %p52, %p53
    %s55 = ssub.s32 %s17, %s24
    %p56 = scmp.eq.s32.totalorder %s55, 0
    %s58 = sadd.s32 %s57, 1
    %s59 = scalar_select %p56, %s57, %s58
    %p62 = pneg %p56
    %p63 = scmp.eq.s32.totalorder %s9, 1
    %p64 = por %p62, %p63
    %p65 = scmp.ne.s32.totalorder %s57, %s60
    %p66 = scmp.eq.s32.totalorder %s9, 0
    %p67 = por %p65, %p66
    %p68 = scmp.ne.s32.totalorder %s57, %s60
    %p69 = scmp.eq.s32.totalorder %s14, 1
    %p70 = por %p68, %p69
    %p71 = scmp.ne.s32.totalorder %s60, %s61
    %p72 = scmp.eq.s32.totalorder %s14, 0
    %p73 = por %p71, %p72
    %p74 = scmp.ne.s32.totalorder %s60, %s61
    %p75 = scmp.eq.s32.totalorder %s15, 1
    %p76 = por %p74, %p75
    %p78 = scmp.ne.s32.totalorder %s61, %s77
    %p79 = scmp.eq.s32.totalorder %s15, 0
    %p80 = por %p78, %p79
    %s81 = ssub.s32 %s17, %s24
    %p82 = scmp.eq.s32.totalorder %s81, 0
    %s84 = sadd.s32 %s83, 1
    %s85 = scalar_select %p82, %s83, %s84
    %p88 = pneg %p82
    %p89 = scmp.eq.s32.totalorder %s9, 1
    %p90 = por %p88, %p89
    %p91 = scmp.ne.s32.totalorder %s83, %s86
    %p92 = scmp.eq.s32.totalorder %s9, 0
    %p93 = por %p91, %p92
    %p94 = scmp.ne.s32.totalorder %s83, %s86
    %p95 = scmp.eq.s32.totalorder %s14, 1
    %p96 = por %p94, %p95
    %p97 = scmp.ne.s32.totalorder %s86, %s87
    %p98 = scmp.eq.s32.totalorder %s14, 0
    %p99 = por %p97, %p98
    %p100 = scmp.ne.s32.totalorder %s86, %s87
    %p101 = scmp.eq.s32.totalorder %s15, 1
    %p102 = por %p100, %p101
    %p104 = scmp.ne.s32.totalorder %s87, %s103
    %p105 = scmp.eq.s32.totalorder %s15, 0
    %p106 = por %p104, %p105
    %s107 = ssub.s32 %s16, %s28
    %s108 = ssub.s32 %s17, %s24
    %s109 = sor.u32 %s107, %s108
    %p110 = scmp.eq.s32.totalorder %s109, 0
    %s112 = sadd.s32 %s111, 1
    %s113 = scalar_select %p110, %s111, %s112
    %p116 = pneg %p110
    %p117 = scmp.eq.s32.totalorder %s9, 1
    %p118 = por %p116, %p117
    %p119 = scmp.ne.s32.totalorder %s111, %s114
    %p120 = scmp.eq.s32.totalorder %s9, 0
    %p121 = por %p119, %p120
    %p122 = scmp.ne.s32.totalorder %s111, %s114
    %p123 = scmp.eq.s32.totalorder %s14, 1
    %p124 = por %p122, %p123
    %p125 = scmp.ne.s32.totalorder %s114, %s115
    %p126 = scmp.eq.s32.totalorder %s14, 0
    %p127 = por %p125, %p126
    %p128 = scmp.ne.s32.totalorder %s114, %s115
    %p129 = scmp.eq.s32.totalorder %s15, 1
    %p130 = por %p128, %p129
    %p132 = scmp.ne.s32.totalorder %s115, %s131
    %p133 = scmp.eq.s32.totalorder %s15, 0
    %p134 = por %p132, %p133
    %p135 = scmp.le.s32.totalorder 1, %s9
    %p136 = scmp.lt.s32.totalorder %s9, 3
    %p137 = pnand %p135, %p136
    %p138 = pneg %p137
    // Predicated region
    $region9: #{shading_net_forward.12} parent=5 // pred_check
      _
    $region10: #{shading_net_forward.12} parent=5 // pred_check_branch
      %140 = sbr.rel (%p137) target = $region12
    $region11: #{shading_net_forward.12} parent=5 // pred_region
      %s141 = ssub.s32 %s9, 1
      // Predicated region
      $region13: #{shading_net_forward.12} parent=11 // pred_check
        %p142 = pneg %p73
      $region14: #{shading_net_forward.12} parent=11 // pred_check_branch
        %144 = sbr.rel (%p142) target = $region16
      $region15: #{shading_net_forward.12} parent=11 // pred_region
        %p145 = scmp.lt.s32.totalorder %s19, 0
        %s146 = scalar_select %p145, %s19, 0
        %s147 = smul.addr %s146, 4
        %s148 = scalar_lea.vmem %s1, %s147
      $region16: #{shading_net_forward.12} parent=11 // pred_fallthru
        _
      // Predicated region
      $region17: #{shading_net_forward.12} parent=11 // pred_check
        %p149 = pneg %p99
      $region18: #{shading_net_forward.12} parent=11 // pred_check_branch
        %151 = sbr.rel (%p149) target = $region20
      $region19: #{shading_net_forward.12} parent=11 // pred_region
        %p152 = scmp.lt.s32.totalorder %s19, 0
        %s153 = scalar_select %p152, %s19, 0
        %s154 = scalar_lea.vmem %s2, %s153
      $region20: #{shading_net_forward.12} parent=11 // pred_fallthru
        _
    $region12: #{shading_net_forward.12} parent=5 // pred_fallthru
      _
    %p155 = scmp.lt.s32.totalorder %s9, 2
    // Predicated region
    $region21: #{shading_net_forward.12} parent=5 // pred_check
      %p156 = pneg %p155
    $region22: #{shading_net_forward.12} parent=5 // pred_check_branch
      %158 = sbr.rel (%p156) target = $region24
    $region23: #{shading_net_forward.12} parent=5 // pred_region
      // Predicated region
      $region25: #{shading_net_forward.12} parent=23 // pred_check
        %p159 = pneg %p41
      $region26: #{shading_net_forward.12} parent=23 // pred_check_branch
        %161 = sbr.rel (%p159) target = $region28
      $region27: #{shading_net_forward.12} parent=23 // pred_region
        %s162 = smul.u32 32, %s16
        %p163 = scmp.lt.s32.totalorder %s162, 63
        %s164 = scalar_select %p163, %s162, 63
        %s165 = smul.addr %s164, 4
        %s166 = scalar_lea.vmem %s0, %s165
        %s167 = smul.u32 32, %s16
      $region28: #{shading_net_forward.12} parent=23 // pred_fallthru
        _
    $region24: #{shading_net_forward.12} parent=5 // pred_fallthru
      _
    %p168 = scmp.le.s32.totalorder 1, %s9
    %p169 = scmp.lt.s32.totalorder %s9, 3
    %p170 = pnand %p168, %p169
    %p171 = pneg %p170
    // Predicated region
    $region29: #{shading_net_forward.12} parent=5 // pred_check
      _
    $region30: #{shading_net_forward.12} parent=5 // pred_check_branch
      %173 = sbr.rel (%p170) target = $region32
    $region31: #{shading_net_forward.12} parent=5 // pred_region
      %s174 = ssub.s32 %s9, 1
      %s175 = smul.u32 32, %s18
      %p176 = scmp.lt.s32.totalorder %s175, 63
      %s177 = scalar_select %p176, %s175, 63
      %s178 = smul.addr %s177, 4
      %s179 = scalar_lea.vmem %s0, %s178
      %p180 = pneg %p47
      %p181 = pneg %p44
      %p182 = scmp.lt.s32.totalorder %s19, 0
      %s183 = scalar_select %p182, %s19, 0
      %s184 = smul.addr %s183, 4
      %s185 = scalar_lea.vmem %s1, %s184
      %p186 = pneg %p73
      %p187 = pneg %p70
      %p188 = scmp.lt.s32.totalorder %s19, 0
      %s189 = scalar_select %p188, %s19, 0
      %s190 = scalar_lea.vmem %s2, %s189
      %p191 = pneg %p99
      %p192 = pneg %p96
      %p193 = pneg %p127
      %p194 = pneg %p124
      %s195 = smul.u32 32, %s18
      %p196 = scmp.lt.s32.totalorder %s195, 63
      %s197 = scalar_select %p196, %s195, 63
      %p198 = scmp.lt.s32.totalorder %s19, 0
      %s199 = scalar_select %p198, %s19, 0
      %s200 = sadd.s32 %s199, %s197
      %s201 = smul.addr %s200, 4
      %s202 = scalar_lea.vmem %s3, %s201
      %s203 = smul.u32 32, %s18
      %p204 = scmp.lt.s32.totalorder %s203, 63
      %s205 = scalar_select %p204, %s203, 63
      %s206 = smul.addr %s205, 4
      %s207 = scalar_lea.vmem %s0, %s206
      %s208 = smul.u32 32, %s18
      %p209 = scmp.lt.s32.totalorder %s19, 0
      %s210 = scalar_select %p209, %s19, 0
      %s211 = smul.addr %s210, 4
      %s212 = scalar_lea.vmem %s1, %s211
      %p213 = scmp.lt.s32.totalorder %s19, 0
      %s214 = scalar_select %p213, %s19, 0
      %s215 = scalar_lea.vmem %s2, %s214
      %s216 = smul.u32 32, %s18
      %p217 = scmp.lt.s32.totalorder %s216, 63
      %s218 = scalar_select %p217, %s216, 63
      %p219 = scmp.lt.s32.totalorder %s19, 0
      %s220 = scalar_select %p219, %s19, 0
      %s221 = sadd.s32 %s220, %s218
      %s222 = smul.addr %s221, 4
      %s223 = scalar_lea.vmem %s3, %s222
      %s224 = smul.u32 32, %s18
      %v226 = vld [vmem:[%s207] sm:$0xf]
      %v227 = vld [vmem:[%s207 + $0x4] sm:$0xf]
      %v228 = vld [vmem:[%s207 + $0x8] sm:$0xf]
      %v229 = vld [vmem:[%s207 + $0xc] sm:$0xf]
      %v230 = vld [vmem:[%s207 + $0x10] sm:$0xf]
      %v231 = vld [vmem:[%s207 + $0x14] sm:$0xf]
      %v232 = vld [vmem:[%s207 + $0x18] sm:$0xf]
      %v233 = vld [vmem:[%s207 + $0x1c] sm:$0xf]
      %v234 = vld [vmem:[%s207 + $0x20] sm:$0xf]
      %v235 = vld [vmem:[%s207 + $0x24] sm:$0xf]
      %v236 = vld [vmem:[%s207 + $0x28] sm:$0xf]
      %v237 = vld [vmem:[%s207 + $0x2c] sm:$0xf]
      %v238 = vld [vmem:[%s207 + $0x30] sm:$0xf]
      %v239 = vld [vmem:[%s207 + $0x34] sm:$0xf]
      %v240 = vld [vmem:[%s207 + $0x38] sm:$0xf]
      %v241 = vld [vmem:[%s207 + $0x3c] sm:$0xf]
      %v242 = vld [vmem:[%s207 + $0x40] sm:$0xf]
      %v243 = vld [vmem:[%s207 + $0x44] sm:$0xf]
      %v244 = vld [vmem:[%s207 + $0x48] sm:$0xf]
      %v245 = vld [vmem:[%s207 + $0x4c] sm:$0xf]
      %v246 = vld [vmem:[%s207 + $0x50] sm:$0xf]
      %v247 = vld [vmem:[%s207 + $0x54] sm:$0xf]
      %v248 = vld [vmem:[%s207 + $0x58] sm:$0xf]
      %v249 = vld [vmem:[%s207 + $0x5c] sm:$0xf]
      %v250 = vld [vmem:[%s207 + $0x60] sm:$0xf]
      %v251 = vld [vmem:[%s207 + $0x64] sm:$0xf]
      %v252 = vld [vmem:[%s207 + $0x68] sm:$0xf]
      %v253 = vld [vmem:[%s207 + $0x6c] sm:$0xf]
      %v254 = vld [vmem:[%s207 + $0x70] sm:$0xf]
      %v255 = vld [vmem:[%s207 + $0x74] sm:$0xf]
      %v256 = vld [vmem:[%s207 + $0x78] sm:$0xf]
      %v257 = vld [vmem:[%s207 + $0x7c] sm:$0xf]
      %v258 = vld [vmem:[%s212] sm:$0xf]
      %v259 = vld [vmem:[%s212 + $0x4] sm:$0xf]
      %v260 = vld [vmem:[%s212 + $0x8] sm:$0xf]
      %v261 = vld [vmem:[%s212 + $0xc] sm:$0xf]
      %v262 = vld [vmem:[%s212 + $0x10] sm:$0xf]
      %v263 = vld [vmem:[%s212 + $0x14] sm:$0xf]
      %v264 = vld [vmem:[%s215] sm:$0x1]
      %v266 = vperm.slane %v264, 0
      %v300 = vunpack.c.l.b16 %v226
      %v301 = vunpack.c.l.b16 %v227
      %v302 = vunpack.c.l.b16 %v228
      %v303 = vunpack.c.l.b16 %v229
      %v304 = vunpack.c.l.b16 %v230
      %v305 = vunpack.c.l.b16 %v231
      %v306 = vunpack.c.l.b16 %v232
      %v307 = vunpack.c.l.b16 %v233
      %v308 = vunpack.c.l.b16 %v234
      %v309 = vunpack.c.l.b16 %v235
      %v310 = vunpack.c.l.b16 %v236
      %v311 = vunpack.c.l.b16 %v237
      %v312 = vunpack.c.l.b16 %v238
      %v313 = vunpack.c.l.b16 %v239
      %v314 = vunpack.c.l.b16 %v240
      %v315 = vunpack.c.l.b16 %v241
      %v316 = vunpack.c.l.b16 %v242
      %v317 = vunpack.c.l.b16 %v243
      %v318 = vunpack.c.l.b16 %v244
      %v319 = vunpack.c.l.b16 %v245
      %v320 = vunpack.c.l.b16 %v246
      %v321 = vunpack.c.l.b16 %v247
      %v322 = vunpack.c.l.b16 %v248
      %v323 = vunpack.c.l.b16 %v249
      %v324 = vunpack.c.l.b16 %v250
      %v325 = vunpack.c.l.b16 %v251
      %v326 = vunpack.c.l.b16 %v252
      %v327 = vunpack.c.l.b16 %v253
      %v328 = vunpack.c.l.b16 %v254
      %v329 = vunpack.c.l.b16 %v255
      %v330 = vunpack.c.l.b16 %v256
      %v331 = vunpack.c.l.b16 %v257
      %v332 = vpack.c.b16 %v301, %v300
      %v333 = vpack.c.b16 %v303, %v302
      %v334 = vpack.c.b16 %v305, %v304
      %v335 = vpack.c.b16 %v307, %v306
      %v336 = vpack.c.b16 %v309, %v308
      %v337 = vpack.c.b16 %v311, %v310
      %v338 = vpack.c.b16 %v313, %v312
      %v339 = vpack.c.b16 %v315, %v314
      %v340 = vpack.c.b16 %v317, %v316
      %v341 = vpack.c.b16 %v319, %v318
      %v342 = vpack.c.b16 %v321, %v320
      %v343 = vpack.c.b16 %v323, %v322
      %v344 = vpack.c.b16 %v325, %v324
      %v345 = vpack.c.b16 %v327, %v326
      %v346 = vpack.c.b16 %v329, %v328
      %v347 = vpack.c.b16 %v331, %v330
      %v354 = vunpack.c.l.b16 %v258
      %v355 = vunpack.c.l.b16 %v259
      %v356 = vunpack.c.l.b16 %v260
      %v357 = vunpack.c.l.b16 %v261
      %v358 = vunpack.c.l.b16 %v262
      %v359 = vunpack.c.l.b16 %v263
      %v360 = vpack.c.b16 %v355, %v354
      %v361 = vpack.c.b16 %v357, %v356
      %v362 = vpack.c.b16 %v359, %v358
      %vm366 = vcmask 392192
      %v368 = vsel %vm366, %v332, 0
      %v371 = vsel %vm366, %v333, 0
      %v374 = vsel %vm366, %v334, 0
      %v377 = vsel %vm366, %v335, 0
      %v380 = vsel %vm366, %v336, 0
      %v383 = vsel %vm366, %v337, 0
      %v386 = vsel %vm366, %v338, 0
      %v389 = vsel %vm366, %v339, 0
      %v392 = vsel %vm366, %v340, 0
      %v395 = vsel %vm366, %v341, 0
      %v398 = vsel %vm366, %v342, 0
      %v401 = vsel %vm366, %v343, 0
      %v404 = vsel %vm366, %v344, 0
      %v407 = vsel %vm366, %v345, 0
      %v410 = vsel %vm366, %v346, 0
      %v413 = vsel %vm366, %v347, 0
      %415 = vmatpush.bf16.msra.mxu0 0
      %416 = vmatpush.bf16.msra.mxu0 0
      %417 = vmatpush.bf16.msra.mxu0 0
      %418 = vmatpush.bf16.msra.mxu0 0
      %419 = vmatpush.bf16.msra.mxu0 0
      %420 = vmatpush.bf16.msra.mxu0 %v362
      %421 = vmatpush.bf16.msra.mxu0 %v361
      %422 = vmatpush.bf16.msra.mxu0 %v360
      %423 = vmatmul.bf16.gmra.mxu0 %v368
      %v424 = vpop.f32.mrf.mxu0
      %v425 = vadd.f32 %v266, %v424
      %v426 = vpop.f32.mrf.mxu0
      %v427 = vadd.f32 %v266, %v426
      %428 = vmatmul.bf16.gmra.mxu0 %v371
      %v429 = vpop.f32.mrf.mxu0
      %v430 = vadd.f32 %v266, %v429
      %v431 = vpop.f32.mrf.mxu0
      %v432 = vadd.f32 %v266, %v431
      %433 = vmatmul.bf16.gmra.mxu0 %v374
      %v434 = vpop.f32.mrf.mxu0
      %v435 = vadd.f32 %v266, %v434
      %v436 = vpop.f32.mrf.mxu0
      %v437 = vadd.f32 %v266, %v436
      %438 = vmatmul.bf16.gmra.mxu0 %v377
      %v439 = vpop.f32.mrf.mxu0
      %v440 = vadd.f32 %v266, %v439
      %v441 = vpop.f32.mrf.mxu0
      %v442 = vadd.f32 %v266, %v441
      %443 = vmatmul.bf16.gmra.mxu0 %v380
      %v444 = vpop.f32.mrf.mxu0
      %v445 = vadd.f32 %v266, %v444
      %v446 = vpop.f32.mrf.mxu0
      %v447 = vadd.f32 %v266, %v446
      %448 = vmatmul.bf16.gmra.mxu0 %v383
      %v449 = vpop.f32.mrf.mxu0
      %v450 = vadd.f32 %v266, %v449
      %v451 = vpop.f32.mrf.mxu0
      %v452 = vadd.f32 %v266, %v451
      %453 = vmatmul.bf16.gmra.mxu0 %v386
      %v454 = vpop.f32.mrf.mxu0
      %v455 = vadd.f32 %v266, %v454
      %v456 = vpop.f32.mrf.mxu0
      %v457 = vadd.f32 %v266, %v456
      %458 = vmatmul.bf16.gmra.mxu0 %v389
      %v459 = vpop.f32.mrf.mxu0
      %v460 = vadd.f32 %v266, %v459
      %v461 = vpop.f32.mrf.mxu0
      %v462 = vadd.f32 %v266, %v461
      %463 = vmatmul.bf16.gmra.mxu0 %v392
      %v464 = vpop.f32.mrf.mxu0
      %v465 = vadd.f32 %v266, %v464
      %v466 = vpop.f32.mrf.mxu0
      %v467 = vadd.f32 %v266, %v466
      %468 = vmatmul.bf16.gmra.mxu0 %v395
      %v469 = vpop.f32.mrf.mxu0
      %v470 = vadd.f32 %v266, %v469
      %v471 = vpop.f32.mrf.mxu0
      %v472 = vadd.f32 %v266, %v471
      %473 = vmatmul.bf16.gmra.mxu0 %v398
      %v474 = vpop.f32.mrf.mxu0
      %v475 = vadd.f32 %v266, %v474
      %v476 = vpop.f32.mrf.mxu0
      %v477 = vadd.f32 %v266, %v476
      %478 = vmatmul.bf16.gmra.mxu0 %v401
      %v479 = vpop.f32.mrf.mxu0
      %v480 = vadd.f32 %v266, %v479
      %v481 = vpop.f32.mrf.mxu0
      %v482 = vadd.f32 %v266, %v481
      %483 = vmatmul.bf16.gmra.mxu0 %v404
      %v484 = vpop.f32.mrf.mxu0
      %v485 = vadd.f32 %v266, %v484
      %v486 = vpop.f32.mrf.mxu0
      %v487 = vadd.f32 %v266, %v486
      %488 = vmatmul.bf16.gmra.mxu0 %v407
      %v489 = vpop.f32.mrf.mxu0
      %v490 = vadd.f32 %v266, %v489
      %v491 = vpop.f32.mrf.mxu0
      %v492 = vadd.f32 %v266, %v491
      %493 = vmatmul.bf16.gmra.mxu0 %v410
      %v494 = vpop.f32.mrf.mxu0
      %v495 = vadd.f32 %v266, %v494
      %v496 = vpop.f32.mrf.mxu0
      %v497 = vadd.f32 %v266, %v496
      %498 = vmatmul.bf16.gmra.mxu0 %v413
      %v499 = vpop.f32.mrf.mxu0
      %v500 = vadd.f32 %v266, %v499
      %v501 = vpop.f32.mrf.mxu0
      %v502 = vadd.f32 %v266, %v501
      %503 = vdwg.mxu0
      %v504 = vmax.f32 %v425, 0.0
      %v505 = vmax.f32 %v427, 0.0
      %v506 = vmax.f32 %v430, 0.0
      %v507 = vmax.f32 %v432, 0.0
      %v508 = vmax.f32 %v435, 0.0
      %v509 = vmax.f32 %v437, 0.0
      %v510 = vmax.f32 %v440, 0.0
      %v511 = vmax.f32 %v442, 0.0
      %v512 = vmax.f32 %v445, 0.0
      %v513 = vmax.f32 %v447, 0.0
      %v514 = vmax.f32 %v450, 0.0
      %v515 = vmax.f32 %v452, 0.0
      %v516 = vmax.f32 %v455, 0.0
      %v517 = vmax.f32 %v457, 0.0
      %v518 = vmax.f32 %v460, 0.0
      %v519 = vmax.f32 %v462, 0.0
      %v520 = vmax.f32 %v465, 0.0
      %v521 = vmax.f32 %v467, 0.0
      %v522 = vmax.f32 %v470, 0.0
      %v523 = vmax.f32 %v472, 0.0
      %v524 = vmax.f32 %v475, 0.0
      %v525 = vmax.f32 %v477, 0.0
      %v526 = vmax.f32 %v480, 0.0
      %v527 = vmax.f32 %v482, 0.0
      %v528 = vmax.f32 %v485, 0.0
      %v529 = vmax.f32 %v487, 0.0
      %v530 = vmax.f32 %v490, 0.0
      %v531 = vmax.f32 %v492, 0.0
      %v532 = vmax.f32 %v495, 0.0
      %v533 = vmax.f32 %v497, 0.0
      %v534 = vmax.f32 %v500, 0.0
      %v535 = vmax.f32 %v502, 0.0
      %v536 = vpack.c.bf16 %v504, %v504
      %v537 = vpack.c.bf16 %v505, %v505
      %v538 = vpack.c.bf16 %v506, %v506
      %v539 = vpack.c.bf16 %v507, %v507
      %v540 = vpack.c.bf16 %v508, %v508
      %v541 = vpack.c.bf16 %v509, %v509
      %v542 = vpack.c.bf16 %v510, %v510
      %v543 = vpack.c.bf16 %v511, %v511
      %v544 = vpack.c.bf16 %v512, %v512
      %v545 = vpack.c.bf16 %v513, %v513
      %v546 = vpack.c.bf16 %v514, %v514
      %v547 = vpack.c.bf16 %v515, %v515
      %v548 = vpack.c.bf16 %v516, %v516
      %v549 = vpack.c.bf16 %v517, %v517
      %v550 = vpack.c.bf16 %v518, %v518
      %v551 = vpack.c.bf16 %v519, %v519
      %v552 = vpack.c.bf16 %v520, %v520
      %v553 = vpack.c.bf16 %v521, %v521
      %v554 = vpack.c.bf16 %v522, %v522
      %v555 = vpack.c.bf16 %v523, %v523
      %v556 = vpack.c.bf16 %v524, %v524
      %v557 = vpack.c.bf16 %v525, %v525
      %v558 = vpack.c.bf16 %v526, %v526
      %v559 = vpack.c.bf16 %v527, %v527
      %v560 = vpack.c.bf16 %v528, %v528
      %v561 = vpack.c.bf16 %v529, %v529
      %v562 = vpack.c.bf16 %v530, %v530
      %v563 = vpack.c.bf16 %v531, %v531
      %v564 = vpack.c.bf16 %v532, %v532
      %v565 = vpack.c.bf16 %v533, %v533
      %v566 = vpack.c.bf16 %v534, %v534
      %v567 = vpack.c.bf16 %v535, %v535
      %vm568 = vcmask 125952
      %569 = vst.msk [vmem:[%s223] sm:$0xf] %vm568, %v536
      %570 = vst.msk [vmem:[%s223 + $0x4] sm:$0xf] %vm568, %v537
      %571 = vst.msk [vmem:[%s223 + $0x8] sm:$0xf] %vm568, %v538
      %572 = vst.msk [vmem:[%s223 + $0xc] sm:$0xf] %vm568, %v539
      %573 = vst.msk [vmem:[%s223 + $0x10] sm:$0xf] %vm568, %v540
      %574 = vst.msk [vmem:[%s223 + $0x14] sm:$0xf] %vm568, %v541
      %575 = vst.msk [vmem:[%s223 + $0x18] sm:$0xf] %vm568, %v542
      %576 = vst.msk [vmem:[%s223 + $0x1c] sm:$0xf] %vm568, %v543
      %577 = vst.msk [vmem:[%s223 + $0x20] sm:$0xf] %vm568, %v544
      %578 = vst.msk [vmem:[%s223 + $0x24] sm:$0xf] %vm568, %v545
      %579 = vst.msk [vmem:[%s223 + $0x28] sm:$0xf] %vm568, %v546
      %580 = vst.msk [vmem:[%s223 + $0x2c] sm:$0xf] %vm568, %v547
      %581 = vst.msk [vmem:[%s223 + $0x30] sm:$0xf] %vm568, %v548
      %582 = vst.msk [vmem:[%s223 + $0x34] sm:$0xf] %vm568, %v549
      %583 = vst.msk [vmem:[%s223 + $0x38] sm:$0xf] %vm568, %v550
      %584 = vst.msk [vmem:[%s223 + $0x3c] sm:$0xf] %vm568, %v551
      %585 = vst.msk [vmem:[%s223 + $0x40] sm:$0xf] %vm568, %v552
      %586 = vst.msk [vmem:[%s223 + $0x44] sm:$0xf] %vm568, %v553
      %587 = vst.msk [vmem:[%s223 + $0x48] sm:$0xf] %vm568, %v554
      %588 = vst.msk [vmem:[%s223 + $0x4c] sm:$0xf] %vm568, %v555
      %589 = vst.msk [vmem:[%s223 + $0x50] sm:$0xf] %vm568, %v556
      %590 = vst.msk [vmem:[%s223 + $0x54] sm:$0xf] %vm568, %v557
      %591 = vst.msk [vmem:[%s223 + $0x58] sm:$0xf] %vm568, %v558
      %592 = vst.msk [vmem:[%s223 + $0x5c] sm:$0xf] %vm568, %v559
      %593 = vst.msk [vmem:[%s223 + $0x60] sm:$0xf] %vm568, %v560
      %594 = vst.msk [vmem:[%s223 + $0x64] sm:$0xf] %vm568, %v561
      %595 = vst.msk [vmem:[%s223 + $0x68] sm:$0xf] %vm568, %v562
      %596 = vst.msk [vmem:[%s223 + $0x6c] sm:$0xf] %vm568, %v563
      %597 = vst.msk [vmem:[%s223 + $0x70] sm:$0xf] %vm568, %v564
      %598 = vst.msk [vmem:[%s223 + $0x74] sm:$0xf] %vm568, %v565
      %599 = vst.msk [vmem:[%s223 + $0x78] sm:$0xf] %vm568, %v566
      %600 = vst.msk [vmem:[%s223 + $0x7c] sm:$0xf] %vm568, %v567
      %s601 = smul.u32 32, %s18
      %p602 = scmp.lt.s32.totalorder %s601, 63
      %s603 = scalar_select %p602, %s601, 63
      %p604 = scmp.lt.s32.totalorder %s19, 0
      %s605 = scalar_select %p604, %s19, 0
      %s606 = sadd.s32 %s605, %s603
      %s607 = smul.addr %s606, 4
      %s608 = scalar_lea.vmem %s3, %s607
      // Predicated region
      $region33: #{shading_net_forward.12} parent=31 // pred_check
        %p609 = pneg %p124
      $region34: #{shading_net_forward.12} parent=31 // pred_check_branch
        %611 = sbr.rel (%p609) target = $region36
      $region35: #{shading_net_forward.12} parent=31 // pred_region
        %s612 = smul.u32 32, %s18
      $region36: #{shading_net_forward.12} parent=31 // pred_fallthru
        _
    $region32: #{shading_net_forward.12} parent=5 // pred_fallthru
      _
    %p613 = scmp.le.s32.totalorder 2, %s9
    // Predicated region
    $region37: #{shading_net_forward.12} parent=5 // pred_check
      %p614 = pneg %p613
    $region38: #{shading_net_forward.12} parent=5 // pred_check_branch
      %616 = sbr.rel (%p614) target = $region40
    $region39: #{shading_net_forward.12} parent=5 // pred_region
      %s617 = ssub.s32 %s9, 2
      // Predicated region
      $region41: #{shading_net_forward.12} parent=39 // pred_check
        %p618 = pneg %p130
      $region42: #{shading_net_forward.12} parent=39 // pred_check_branch
        %620 = sbr.rel (%p618) target = $region44
      $region43: #{shading_net_forward.12} parent=39 // pred_region
        %s621 = smul.u32 32, %s20
        %p622 = scmp.lt.s32.totalorder %s621, 63
        %s623 = scalar_select %p622, %s621, 63
        %p624 = scmp.lt.s32.totalorder %s21, 0
        %s625 = scalar_select %p624, %s21, 0
        %s626 = sadd.s32 %s625, %s623
        %s627 = smul.addr %s626, 4
        %s628 = scalar_lea.vmem %s3, %s627
      $region44: #{shading_net_forward.12} parent=39 // pred_fallthru
        _
    $region40: #{shading_net_forward.12} parent=5 // pred_fallthru
      _
  $region6: #{shading_net_forward.12} parent=0 // loop_footer
    %s13 = sadd.s32 1, %s9
  $region7: #{shading_net_forward.12} parent=0 // loop_footer_branch
    %8 = sbr.rel target = $region3
  $region8: #{shading_net_forward.12} parent=0 // loop_exit
    _

// kernel: shading_net_forward.13
$region0: #{shading_net_forward.13}
  #allocation0 [shape = 'u32[]', space=smem, size = 0x4, offset = 0x4, fixed_abs, tag = 'smem constant byte address 0x4 - core index']
  #allocation1 [shape = 'u32[72,128]{1,0:T(1,128)}', space=vmem, size = 0x9000, scoped, tag = 'internal scratch']
  %s0 = inlined_call_operand.vmem [shape: bf16[128,256], index: 0, kind: input, shape index: {}]
  %s1 = inlined_call_operand.vmem [shape: bf16[256,128], index: 1, kind: input, shape index: {}]
  %s2 = inlined_call_operand.vmem [shape: f32[1,128], index: 2, kind: input, shape index: {}]
  %s3 = inlined_call_operand.vmem [shape: bf16[128,128], index: 3, kind: output, shape index: {}]
  %s4 = sld [smem:[#allocation0]]
  $region22: #{shading_net_forward.13} parent=0
    _
  %s6 = ssub.s32 1, %s4
  %s7 = scalar_select 0, %s6, %s4
  // Predicated region
  $region2: #{shading_net_forward.13} parent=0 // pred_check
    _
  $region3: #{shading_net_forward.13} parent=0 // pred_check_branch
    %9 = sbr.rel (0) target = $region5
  $region4: #{shading_net_forward.13} parent=0 // pred_region
    _
  $region5: #{shading_net_forward.13} parent=0 // pred_fallthru
    _
  // Predicated region
  $region6: #{shading_net_forward.13} parent=0 // pred_check
    _
  $region7: #{shading_net_forward.13} parent=0 // pred_check_branch
    %11 = sbr.rel (0) target = $region9
  $region8: #{shading_net_forward.13} parent=0 // pred_region
    _
  $region9: #{shading_net_forward.13} parent=0 // pred_fallthru
    _
  // Predicated region
  $region10: #{shading_net_forward.13} parent=0 // pred_check
    _
  $region11: #{shading_net_forward.13} parent=0 // pred_check_branch
    %13 = sbr.rel (0) target = $region13
  $region12: #{shading_net_forward.13} parent=0 // pred_region
    _
  $region13: #{shading_net_forward.13} parent=0 // pred_fallthru
    _
  %v14 = vld [vmem:[%s0] sm:$0xff]
  %v15 = vld [vmem:[%s0 + $0x8] sm:$0xff]
  %v16 = vld [vmem:[%s0 + $0x10] sm:$0xff]
  %v17 = vld [vmem:[%s0 + $0x18] sm:$0xff]
  %v18 = vld [vmem:[%s0 + $0x20] sm:$0xff]
  %v19 = vld [vmem:[%s0 + $0x28] sm:$0xff]
  %v20 = vld [vmem:[%s0 + $0x30] sm:$0xff]
  %v21 = vld [vmem:[%s0 + $0x38] sm:$0xff]
  %v22 = vld [vmem:[%s0 + $0x40] sm:$0xff]
  %v23 = vld [vmem:[%s0 + $0x48] sm:$0xff]
  %v24 = vld [vmem:[%s0 + $0x50] sm:$0xff]
  %v25 = vld [vmem:[%s0 + $0x58] sm:$0xff]
  %v26 = vld [vmem:[%s0 + $0x60] sm:$0xff]
  %v27 = vld [vmem:[%s0 + $0x68] sm:$0xff]
  %v28 = vld [vmem:[%s0 + $0x70] sm:$0xff]
  %v29 = vld [vmem:[%s0 + $0x78] sm:$0xff]
  %v30 = vld [vmem:[%s1] sm:$0xf]
  %v31 = vld [vmem:[%s1 + $0x4] sm:$0xf]
  %v32 = vld [vmem:[%s1 + $0x8] sm:$0xf]
  %v33 = vld [vmem:[%s1 + $0xc] sm:$0xf]
  %v34 = vld [vmem:[%s1 + $0x10] sm:$0xf]
  %v35 = vld [vmem:[%s1 + $0x14] sm:$0xf]
  %v36 = vld [vmem:[%s1 + $0x18] sm:$0xf]
  %v37 = vld [vmem:[%s1 + $0x1c] sm:$0xf]
  %v38 = vld [vmem:[%s1 + $0x20] sm:$0xf]
  %v39 = vld [vmem:[%s1 + $0x24] sm:$0xf]
  %v40 = vld [vmem:[%s1 + $0x28] sm:$0xf]
  %v41 = vld [vmem:[%s1 + $0x2c] sm:$0xf]
  %v42 = vld [vmem:[%s1 + $0x30] sm:$0xf]
  %v43 = vld [vmem:[%s1 + $0x34] sm:$0xf]
  %v44 = vld [vmem:[%s1 + $0x38] sm:$0xf]
  %v45 = vld [vmem:[%s1 + $0x3c] sm:$0xf]
  %v46 = vld [vmem:[%s1 + $0x40] sm:$0xf]
  %v47 = vld [vmem:[%s1 + $0x44] sm:$0xf]
  %v48 = vld [vmem:[%s1 + $0x48] sm:$0xf]
  %v49 = vld [vmem:[%s1 + $0x4c] sm:$0xf]
  %v50 = vld [vmem:[%s1 + $0x50] sm:$0xf]
  %v51 = vld [vmem:[%s1 + $0x54] sm:$0xf]
  %v52 = vld [vmem:[%s1 + $0x58] sm:$0xf]
  %v53 = vld [vmem:[%s1 + $0x5c] sm:$0xf]
  %v54 = vld [vmem:[%s1 + $0x60] sm:$0xf]
  %v55 = vld [vmem:[%s1 + $0x64] sm:$0xf]
  %v56 = vld [vmem:[%s1 + $0x68] sm:$0xf]
  %v57 = vld [vmem:[%s1 + $0x6c] sm:$0xf]
  %v58 = vld [vmem:[%s1 + $0x70] sm:$0xf]
  %v59 = vld [vmem:[%s1 + $0x74] sm:$0xf]
  %v60 = vld [vmem:[%s1 + $0x78] sm:$0xf]
  %v61 = vld [vmem:[%s1 + $0x7c] sm:$0xf]
  %v62 = vld [vmem:[%s2] sm:$0x1]
  %v64 = vperm.slane %v62, 0
  %v82 = vunpack.c.l.b16 %v14
  %v83 = vunpack.c.h.b16 %v14
  %v84 = vunpack.c.l.b16 %v15
  %v85 = vunpack.c.h.b16 %v15
  %v86 = vunpack.c.l.b16 %v16
  %v87 = vunpack.c.h.b16 %v16
  %v88 = vunpack.c.l.b16 %v17
  %v89 = vunpack.c.h.b16 %v17
  %v90 = vunpack.c.l.b16 %v18
  %v91 = vunpack.c.h.b16 %v18
  %v92 = vunpack.c.l.b16 %v19
  %v93 = vunpack.c.h.b16 %v19
  %v94 = vunpack.c.l.b16 %v20
  %v95 = vunpack.c.h.b16 %v20
  %v96 = vunpack.c.l.b16 %v21
  %v97 = vunpack.c.h.b16 %v21
  %v98 = vunpack.c.l.b16 %v22
  %v99 = vunpack.c.h.b16 %v22
  %v100 = vunpack.c.l.b16 %v23
  %v101 = vunpack.c.h.b16 %v23
  %v102 = vunpack.c.l.b16 %v24
  %v103 = vunpack.c.h.b16 %v24
  %v104 = vunpack.c.l.b16 %v25
  %v105 = vunpack.c.h.b16 %v25
  %v106 = vunpack.c.l.b16 %v26
  %v107 = vunpack.c.h.b16 %v26
  %v108 = vunpack.c.l.b16 %v27
  %v109 = vunpack.c.h.b16 %v27
  %v110 = vunpack.c.l.b16 %v28
  %v111 = vunpack.c.h.b16 %v28
  %v112 = vunpack.c.l.b16 %v29
  %v113 = vunpack.c.h.b16 %v29
  %v114 = vpack.c.b16 %v84, %v82
  %v115 = vpack.c.b16 %v85, %v83
  %v116 = vpack.c.b16 %v88, %v86
  %v117 = vpack.c.b16 %v89, %v87
  %v118 = vpack.c.b16 %v92, %v90
  %v119 = vpack.c.b16 %v93, %v91
  %v120 = vpack.c.b16 %v96, %v94
  %v121 = vpack.c.b16 %v97, %v95
  %v122 = vpack.c.b16 %v100, %v98
  %v123 = vpack.c.b16 %v101, %v99
  %v124 = vpack.c.b16 %v104, %v102
  %v125 = vpack.c.b16 %v105, %v103
  %v126 = vpack.c.b16 %v108, %v106
  %v127 = vpack.c.b16 %v109, %v107
  %v128 = vpack.c.b16 %v112, %v110
  %v129 = vpack.c.b16 %v113, %v111
  %v178 = vunpack.c.l.b16 %v30
  %v179 = vunpack.c.l.b16 %v31
  %v180 = vunpack.c.l.b16 %v32
  %v181 = vunpack.c.l.b16 %v33
  %v182 = vunpack.c.l.b16 %v34
  %v183 = vunpack.c.l.b16 %v35
  %v184 = vunpack.c.l.b16 %v36
  %v185 = vunpack.c.l.b16 %v37
  %v186 = vunpack.c.l.b16 %v38
  %v187 = vunpack.c.l.b16 %v39
  %v188 = vunpack.c.l.b16 %v40
  %v189 = vunpack.c.l.b16 %v41
  %v190 = vunpack.c.l.b16 %v42
  %v191 = vunpack.c.l.b16 %v43
  %v192 = vunpack.c.l.b16 %v44
  %v193 = vunpack.c.l.b16 %v45
  %v194 = vunpack.c.l.b16 %v46
  %v195 = vunpack.c.l.b16 %v47
  %v196 = vunpack.c.l.b16 %v48
  %v197 = vunpack.c.l.b16 %v49
  %v198 = vunpack.c.l.b16 %v50
  %v199 = vunpack.c.l.b16 %v51
  %v200 = vunpack.c.l.b16 %v52
  %v201 = vunpack.c.l.b16 %v53
  %v202 = vunpack.c.l.b16 %v54
  %v203 = vunpack.c.l.b16 %v55
  %v204 = vunpack.c.l.b16 %v56
  %v205 = vunpack.c.l.b16 %v57
  %v206 = vunpack.c.l.b16 %v58
  %v207 = vunpack.c.l.b16 %v59
  %v208 = vunpack.c.l.b16 %v60
  %v209 = vunpack.c.l.b16 %v61
  %v210 = vpack.c.b16 %v179, %v178
  %v211 = vpack.c.b16 %v181, %v180
  %v212 = vpack.c.b16 %v183, %v182
  %v213 = vpack.c.b16 %v185, %v184
  %v214 = vpack.c.b16 %v187, %v186
  %v215 = vpack.c.b16 %v189, %v188
  %v216 = vpack.c.b16 %v191, %v190
  %v217 = vpack.c.b16 %v193, %v192
  %v218 = vpack.c.b16 %v195, %v194
  %v219 = vpack.c.b16 %v197, %v196
  %v220 = vpack.c.b16 %v199, %v198
  %v221 = vpack.c.b16 %v201, %v200
  %v222 = vpack.c.b16 %v203, %v202
  %v223 = vpack.c.b16 %v205, %v204
  %v224 = vpack.c.b16 %v207, %v206
  %v225 = vpack.c.b16 %v209, %v208
  %242 = vmatpush.bf16.msra.mxu0 %v217
  %243 = vmatpush.bf16.msra.mxu0 %v216
  %244 = vmatpush.bf16.msra.mxu0 %v215
  %245 = vmatpush.bf16.msra.mxu0 %v214
  %246 = vmatpush.bf16.msra.mxu0 %v213
  %247 = vmatpush.bf16.msra.mxu0 %v212
  %248 = vmatpush.bf16.msra.mxu0 %v211
  %249 = vmatpush.bf16.msra.mxu0 %v210
  %250 = vmatmul.bf16.gmra.mxu0 %v114
  %v251 = vpop.f32.mrf.mxu0
  %v252 = vadd.f32 %v64, %v251
  %v253 = vpop.f32.mrf.mxu0
  %v254 = vadd.f32 %v64, %v253
  %255 = vmatmul.bf16.gmra.mxu0 %v116
  %v256 = vpop.f32.mrf.mxu0
  %v257 = vadd.f32 %v64, %v256
  %v258 = vpop.f32.mrf.mxu0
  %v259 = vadd.f32 %v64, %v258
  %260 = vmatmul.bf16.gmra.mxu0 %v118
  %v261 = vpop.f32.mrf.mxu0
  %v262 = vadd.f32 %v64, %v261
  %v263 = vpop.f32.mrf.mxu0
  %v264 = vadd.f32 %v64, %v263
  %265 = vmatmul.bf16.gmra.mxu0 %v120
  %v266 = vpop.f32.mrf.mxu0
  %v267 = vadd.f32 %v64, %v266
  %v268 = vpop.f32.mrf.mxu0
  %v269 = vadd.f32 %v64, %v268
  %270 = vmatmul.bf16.gmra.mxu0 %v122
  %v271 = vpop.f32.mrf.mxu0
  %v272 = vadd.f32 %v64, %v271
  %v273 = vpop.f32.mrf.mxu0
  %v274 = vadd.f32 %v64, %v273
  %275 = vmatmul.bf16.gmra.mxu0 %v124
  %v276 = vpop.f32.mrf.mxu0
  %v277 = vadd.f32 %v64, %v276
  %v278 = vpop.f32.mrf.mxu0
  %v279 = vadd.f32 %v64, %v278
  %280 = vmatmul.bf16.gmra.mxu0 %v126
  %v281 = vpop.f32.mrf.mxu0
  %v282 = vadd.f32 %v64, %v281
  %v283 = vpop.f32.mrf.mxu0
  %v284 = vadd.f32 %v64, %v283
  %285 = vmatmul.bf16.gmra.mxu0 %v128
  %v286 = vpop.f32.mrf.mxu0
  %v287 = vadd.f32 %v64, %v286
  %v288 = vpop.f32.mrf.mxu0
  %v289 = vadd.f32 %v64, %v288
  %290 = vdwg.mxu0
  %291 = vmatpush.bf16.msra.mxu0 %v225
  %292 = vmatpush.bf16.msra.mxu0 %v224
  %293 = vmatpush.bf16.msra.mxu0 %v223
  %294 = vmatpush.bf16.msra.mxu0 %v222
  %295 = vmatpush.bf16.msra.mxu0 %v221
  %296 = vmatpush.bf16.msra.mxu0 %v220
  %297 = vmatpush.bf16.msra.mxu0 %v219
  %298 = vmatpush.bf16.msra.mxu0 %v218
  %299 = vmatmul.bf16.gmra.mxu0 %v115
  %v300 = vpop.f32.mrf.mxu0
  %v301 = vadd.f32 %v252, %v300
  %v302 = vpop.f32.mrf.mxu0
  %v303 = vadd.f32 %v254, %v302
  %304 = vmatmul.bf16.gmra.mxu0 %v117
  %v305 = vpop.f32.mrf.mxu0
  %v306 = vadd.f32 %v257, %v305
  %v307 = vpop.f32.mrf.mxu0
  %v308 = vadd.f32 %v259, %v307
  %309 = vmatmul.bf16.gmra.mxu0 %v119
  %v310 = vpop.f32.mrf.mxu0
  %v311 = vadd.f32 %v262, %v310
  %v312 = vpop.f32.mrf.mxu0
  %v313 = vadd.f32 %v264, %v312
  %314 = vmatmul.bf16.gmra.mxu0 %v121
  %v315 = vpop.f32.mrf.mxu0
  %v316 = vadd.f32 %v267, %v315
  %v317 = vpop.f32.mrf.mxu0
  %v318 = vadd.f32 %v269, %v317
  %319 = vmatmul.bf16.gmra.mxu0 %v123
  %v320 = vpop.f32.mrf.mxu0
  %v321 = vadd.f32 %v272, %v320
  %v322 = vpop.f32.mrf.mxu0
  %v323 = vadd.f32 %v274, %v322
  %324 = vmatmul.bf16.gmra.mxu0 %v125
  %v325 = vpop.f32.mrf.mxu0
  %v326 = vadd.f32 %v277, %v325
  %v327 = vpop.f32.mrf.mxu0
  %v328 = vadd.f32 %v279, %v327
  %329 = vmatmul.bf16.gmra.mxu0 %v127
  %v330 = vpop.f32.mrf.mxu0
  %v331 = vadd.f32 %v282, %v330
  %v332 = vpop.f32.mrf.mxu0
  %v333 = vadd.f32 %v284, %v332
  %334 = vmatmul.bf16.gmra.mxu0 %v129
  %v335 = vpop.f32.mrf.mxu0
  %v336 = vadd.f32 %v287, %v335
  %v337 = vpop.f32.mrf.mxu0
  %v338 = vadd.f32 %v289, %v337
  %339 = vdwg.mxu0
  %v340 = vmax.f32 %v301, 0.0
  %v341 = vmax.f32 %v303, 0.0
  %v342 = vmax.f32 %v306, 0.0
  %v343 = vmax.f32 %v308, 0.0
  %v344 = vmax.f32 %v311, 0.0
  %v345 = vmax.f32 %v313, 0.0
  %v346 = vmax.f32 %v316, 0.0
  %v347 = vmax.f32 %v318, 0.0
  %v348 = vmax.f32 %v321, 0.0
  %v349 = vmax.f32 %v323, 0.0
  %v350 = vmax.f32 %v326, 0.0
  %v351 = vmax.f32 %v328, 0.0
  %v352 = vmax.f32 %v331, 0.0
  %v353 = vmax.f32 %v333, 0.0
  %v354 = vmax.f32 %v336, 0.0
  %v355 = vmax.f32 %v338, 0.0
  %v356 = vpack.c.bf16 %v340, %v340
  %v357 = vpack.c.bf16 %v341, %v341
  %v358 = vpack.c.bf16 %v342, %v342
  %v359 = vpack.c.bf16 %v343, %v343
  %v360 = vpack.c.bf16 %v344, %v344
  %v361 = vpack.c.bf16 %v345, %v345
  %v362 = vpack.c.bf16 %v346, %v346
  %v363 = vpack.c.bf16 %v347, %v347
  %v364 = vpack.c.bf16 %v348, %v348
  %v365 = vpack.c.bf16 %v349, %v349
  %v366 = vpack.c.bf16 %v350, %v350
  %v367 = vpack.c.bf16 %v351, %v351
  %v368 = vpack.c.bf16 %v352, %v352
  %v369 = vpack.c.bf16 %v353, %v353
  %v370 = vpack.c.bf16 %v354, %v354
  %v371 = vpack.c.bf16 %v355, %v355
  %372 = vst [vmem:[%s3] sm:$0xf] %v356
  %373 = vst [vmem:[%s3 + $0x4] sm:$0xf] %v357
  %374 = vst [vmem:[%s3 + $0x8] sm:$0xf] %v358
  %375 = vst [vmem:[%s3 + $0xc] sm:$0xf] %v359
  %376 = vst [vmem:[%s3 + $0x10] sm:$0xf] %v360
  %377 = vst [vmem:[%s3 + $0x14] sm:$0xf] %v361
  %378 = vst [vmem:[%s3 + $0x18] sm:$0xf] %v362
  %379 = vst [vmem:[%s3 + $0x1c] sm:$0xf] %v363
  %380 = vst [vmem:[%s3 + $0x20] sm:$0xf] %v364
  %381 = vst [vmem:[%s3 + $0x24] sm:$0xf] %v365
  %382 = vst [vmem:[%s3 + $0x28] sm:$0xf] %v366
  %383 = vst [vmem:[%s3 + $0x2c] sm:$0xf] %v367
  %384 = vst [vmem:[%s3 + $0x30] sm:$0xf] %v368
  %385 = vst [vmem:[%s3 + $0x34] sm:$0xf] %v369
  %386 = vst [vmem:[%s3 + $0x38] sm:$0xf] %v370
  %387 = vst [vmem:[%s3 + $0x3c] sm:$0xf] %v371
  // Predicated region
  $region14: #{shading_net_forward.13} parent=0 // pred_check
    _
  $region15: #{shading_net_forward.13} parent=0 // pred_check_branch
    %389 = sbr.rel (0) target = $region17
  $region16: #{shading_net_forward.13} parent=0 // pred_region
    _
  $region17: #{shading_net_forward.13} parent=0 // pred_fallthru
    _
  // Predicated region
  $region18: #{shading_net_forward.13} parent=0 // pred_check
    _
  $region19: #{shading_net_forward.13} parent=0 // pred_check_branch
    %391 = sbr.rel (0) target = $region21
  $region20: #{shading_net_forward.13} parent=0 // pred_region
    _
  $region21: #{shading_net_forward.13} parent=0 // pred_fallthru
    _

// kernel: shading_net_forward.14
$region0: #{shading_net_forward.14}
  #allocation0 [shape = 'u32[]', space=smem, size = 0x4, offset = 0x4, fixed_abs, tag = 'smem constant byte address 0x4 - core index']
  #allocation1 [shape = 'u32[72,128]{1,0:T(1,128)}', space=vmem, size = 0x9000, scoped, tag = 'internal scratch']
  %s0 = inlined_call_operand.vmem [shape: bf16[32,512], index: 0, kind: input, shape index: {}]
  %s1 = inlined_call_operand.vmem [shape: bf16[512,128], index: 1, kind: input, shape index: {}]
  %s2 = inlined_call_operand.vmem [shape: f32[1,128], index: 2, kind: input, shape index: {}]
  %s3 = inlined_call_operand.vmem [shape: bf16[32,128], index: 3, kind: output, shape index: {}]
  %s4 = sld [smem:[#allocation0]]
  $region22: #{shading_net_forward.14} parent=0
    _
  %s6 = ssub.s32 1, %s4
  %s7 = scalar_select 0, %s6, %s4
  // Predicated region
  $region2: #{shading_net_forward.14} parent=0 // pred_check
    _
  $region3: #{shading_net_forward.14} parent=0 // pred_check_branch
    %9 = sbr.rel (0) target = $region5
  $region4: #{shading_net_forward.14} parent=0 // pred_region
    _
  $region5: #{shading_net_forward.14} parent=0 // pred_fallthru
    _
  // Predicated region
  $region6: #{shading_net_forward.14} parent=0 // pred_check
    _
  $region7: #{shading_net_forward.14} parent=0 // pred_check_branch
    %11 = sbr.rel (0) target = $region9
  $region8: #{shading_net_forward.14} parent=0 // pred_region
    _
  $region9: #{shading_net_forward.14} parent=0 // pred_fallthru
    _
  // Predicated region
  $region10: #{shading_net_forward.14} parent=0 // pred_check
    _
  $region11: #{shading_net_forward.14} parent=0 // pred_check_branch
    %13 = sbr.rel (0) target = $region13
  $region12: #{shading_net_forward.14} parent=0 // pred_region
    _
  $region13: #{shading_net_forward.14} parent=0 // pred_fallthru
    _
  %v14 = vld [vmem:[%s0] sm:$0xff]
  %v15 = vld [vmem:[%s0 + $0x8] sm:$0xff]
  %v16 = vld [vmem:[%s0 + $0x10] sm:$0xff]
  %v17 = vld [vmem:[%s0 + $0x18] sm:$0xff]
  %v18 = vld [vmem:[%s0 + $0x20] sm:$0xff]
  %v19 = vld [vmem:[%s0 + $0x28] sm:$0xff]
  %v20 = vld [vmem:[%s0 + $0x30] sm:$0xff]
  %v21 = vld [vmem:[%s0 + $0x38] sm:$0xff]
  %v22 = vld [vmem:[%s1] sm:$0xf]
  %v23 = vld [vmem:[%s1 + $0x4] sm:$0xf]
  %v24 = vld [vmem:[%s1 + $0x8] sm:$0xf]
  %v25 = vld [vmem:[%s1 + $0xc] sm:$0xf]
  %v26 = vld [vmem:[%s1 + $0x10] sm:$0xf]
  %v27 = vld [vmem:[%s1 + $0x14] sm:$0xf]
  %v28 = vld [vmem:[%s1 + $0x18] sm:$0xf]
  %v29 = vld [vmem:[%s1 + $0x1c] sm:$0xf]
  %v30 = vld [vmem:[%s1 + $0x20] sm:$0xf]
  %v31 = vld [vmem:[%s1 + $0x24] sm:$0xf]
  %v32 = vld [vmem:[%s1 + $0x28] sm:$0xf]
  %v33 = vld [vmem:[%s1 + $0x2c] sm:$0xf]
  %v34 = vld [vmem:[%s1 + $0x30] sm:$0xf]
  %v35 = vld [vmem:[%s1 + $0x34] sm:$0xf]
  %v36 = vld [vmem:[%s1 + $0x38] sm:$0xf]
  %v37 = vld [vmem:[%s1 + $0x3c] sm:$0xf]
  %v38 = vld [vmem:[%s1 + $0x40] sm:$0xf]
  %v39 = vld [vmem:[%s1 + $0x44] sm:$0xf]
  %v40 = vld [vmem:[%s1 + $0x48] sm:$0xf]
  %v41 = vld [vmem:[%s1 + $0x4c] sm:$0xf]
  %v42 = vld [vmem:[%s1 + $0x50] sm:$0xf]
  %v43 = vld [vmem:[%s1 + $0x54] sm:$0xf]
  %v44 = vld [vmem:[%s1 + $0x58] sm:$0xf]
  %v45 = vld [vmem:[%s1 + $0x5c] sm:$0xf]
  %v46 = vld [vmem:[%s1 + $0x60] sm:$0xf]
  %v47 = vld [vmem:[%s1 + $0x64] sm:$0xf]
  %v48 = vld [vmem:[%s1 + $0x68] sm:$0xf]
  %v49 = vld [vmem:[%s1 + $0x6c] sm:$0xf]
  %v50 = vld [vmem:[%s1 + $0x70] sm:$0xf]
  %v51 = vld [vmem:[%s1 + $0x74] sm:$0xf]
  %v52 = vld [vmem:[%s1 + $0x78] sm:$0xf]
  %v53 = vld [vmem:[%s1 + $0x7c] sm:$0xf]
  %v54 = vld [vmem:[%s1 + $0x80] sm:$0xf]
  %v55 = vld [vmem:[%s1 + $0x84] sm:$0xf]
  %v56 = vld [vmem:[%s1 + $0x88] sm:$0xf]
  %v57 = vld [vmem:[%s1 + $0x8c] sm:$0xf]
  %v58 = vld [vmem:[%s1 + $0x90] sm:$0xf]
  %v59 = vld [vmem:[%s1 + $0x94] sm:$0xf]
  %v60 = vld [vmem:[%s1 + $0x98] sm:$0xf]
  %v61 = vld [vmem:[%s1 + $0x9c] sm:$0xf]
  %v62 = vld [vmem:[%s1 + $0xa0] sm:$0xf]
  %v63 = vld [vmem:[%s1 + $0xa4] sm:$0xf]
  %v64 = vld [vmem:[%s1 + $0xa8] sm:$0xf]
  %v65 = vld [vmem:[%s1 + $0xac] sm:$0xf]
  %v66 = vld [vmem:[%s1 + $0xb0] sm:$0xf]
  %v67 = vld [vmem:[%s1 + $0xb4] sm:$0xf]
  %v68 = vld [vmem:[%s1 + $0xb8] sm:$0xf]
  %v69 = vld [vmem:[%s1 + $0xbc] sm:$0xf]
  %v70 = vld [vmem:[%s1 + $0xc0] sm:$0xf]
  %v71 = vld [vmem:[%s1 + $0xc4] sm:$0xf]
  %v72 = vld [vmem:[%s1 + $0xc8] sm:$0xf]
  %v73 = vld [vmem:[%s1 + $0xcc] sm:$0xf]
  %v74 = vld [vmem:[%s1 + $0xd0] sm:$0xf]
  %v75 = vld [vmem:[%s1 + $0xd4] sm:$0xf]
  %v76 = vld [vmem:[%s1 + $0xd8] sm:$0xf]
  %v77 = vld [vmem:[%s1 + $0xdc] sm:$0xf]
  %v78 = vld [vmem:[%s1 + $0xe0] sm:$0xf]
  %v79 = vld [vmem:[%s1 + $0xe4] sm:$0xf]
  %v80 = vld [vmem:[%s1 + $0xe8] sm:$0xf]
  %v81 = vld [vmem:[%s1 + $0xec] sm:$0xf]
  %v82 = vld [vmem:[%s1 + $0xf0] sm:$0xf]
  %v83 = vld [vmem:[%s1 + $0xf4] sm:$0xf]
  %v84 = vld [vmem:[%s1 + $0xf8] sm:$0xf]
  %v85 = vld [vmem:[%s1 + $0xfc] sm:$0xf]
  %v86 = vld [vmem:[%s2] sm:$0x1]
  %v88 = vperm.slane %v86, 0
  %v98 = vunpack.c.l.b16 %v14
  %v99 = vunpack.c.h.b16 %v14
  %v100 = vunpack.c.l.b16 %v15
  %v101 = vunpack.c.h.b16 %v15
  %v102 = vunpack.c.l.b16 %v16
  %v103 = vunpack.c.h.b16 %v16
  %v104 = vunpack.c.l.b16 %v17
  %v105 = vunpack.c.h.b16 %v17
  %v106 = vunpack.c.l.b16 %v18
  %v107 = vunpack.c.h.b16 %v18
  %v108 = vunpack.c.l.b16 %v19
  %v109 = vunpack.c.h.b16 %v19
  %v110 = vunpack.c.l.b16 %v20
  %v111 = vunpack.c.h.b16 %v20
  %v112 = vunpack.c.l.b16 %v21
  %v113 = vunpack.c.h.b16 %v21
  %v114 = vpack.c.b16 %v102, %v98
  %v115 = vpack.c.b16 %v103, %v99
  %v116 = vpack.c.b16 %v104, %v100
  %v117 = vpack.c.b16 %v105, %v101
  %v118 = vpack.c.b16 %v110, %v106
  %v119 = vpack.c.b16 %v111, %v107
  %v120 = vpack.c.b16 %v112, %v108
  %v121 = vpack.c.b16 %v113, %v109
  %v194 = vunpack.c.l.b16 %v22
  %v195 = vunpack.c.l.b16 %v23
  %v196 = vunpack.c.l.b16 %v24
  %v197 = vunpack.c.l.b16 %v25
  %v198 = vunpack.c.l.b16 %v26
  %v199 = vunpack.c.l.b16 %v27
  %v200 = vunpack.c.l.b16 %v28
  %v201 = vunpack.c.l.b16 %v29
  %v202 = vunpack.c.l.b16 %v30
  %v203 = vunpack.c.l.b16 %v31
  %v204 = vunpack.c.l.b16 %v32
  %v205 = vunpack.c.l.b16 %v33
  %v206 = vunpack.c.l.b16 %v34
  %v207 = vunpack.c.l.b16 %v35
  %v208 = vunpack.c.l.b16 %v36
  %v209 = vunpack.c.l.b16 %v37
  %v210 = vunpack.c.l.b16 %v38
  %v211 = vunpack.c.l.b16 %v39
  %v212 = vunpack.c.l.b16 %v40
  %v213 = vunpack.c.l.b16 %v41
  %v214 = vunpack.c.l.b16 %v42
  %v215 = vunpack.c.l.b16 %v43
  %v216 = vunpack.c.l.b16 %v44
  %v217 = vunpack.c.l.b16 %v45
  %v218 = vunpack.c.l.b16 %v46
  %v219 = vunpack.c.l.b16 %v47
  %v220 = vunpack.c.l.b16 %v48
  %v221 = vunpack.c.l.b16 %v49
  %v222 = vunpack.c.l.b16 %v50
  %v223 = vunpack.c.l.b16 %v51
  %v224 = vunpack.c.l.b16 %v52
  %v225 = vunpack.c.l.b16 %v53
  %v226 = vunpack.c.l.b16 %v54
  %v227 = vunpack.c.l.b16 %v55
  %v228 = vunpack.c.l.b16 %v56
  %v229 = vunpack.c.l.b16 %v57
  %v230 = vunpack.c.l.b16 %v58
  %v231 = vunpack.c.l.b16 %v59
  %v232 = vunpack.c.l.b16 %v60
  %v233 = vunpack.c.l.b16 %v61
  %v234 = vunpack.c.l.b16 %v62
  %v235 = vunpack.c.l.b16 %v63
  %v236 = vunpack.c.l.b16 %v64
  %v237 = vunpack.c.l.b16 %v65
  %v238 = vunpack.c.l.b16 %v66
  %v239 = vunpack.c.l.b16 %v67
  %v240 = vunpack.c.l.b16 %v68
  %v241 = vunpack.c.l.b16 %v69
  %v242 = vunpack.c.l.b16 %v70
  %v243 = vunpack.c.l.b16 %v71
  %v244 = vunpack.c.l.b16 %v72
  %v245 = vunpack.c.l.b16 %v73
  %v246 = vunpack.c.l.b16 %v74
  %v247 = vunpack.c.l.b16 %v75
  %v248 = vunpack.c.l.b16 %v76
  %v249 = vunpack.c.l.b16 %v77
  %v250 = vunpack.c.l.b16 %v78
  %v251 = vunpack.c.l.b16 %v79
  %v252 = vunpack.c.l.b16 %v80
  %v253 = vunpack.c.l.b16 %v81
  %v254 = vunpack.c.l.b16 %v82
  %v255 = vunpack.c.l.b16 %v83
  %v256 = vunpack.c.l.b16 %v84
  %v257 = vunpack.c.l.b16 %v85
  %v258 = vpack.c.b16 %v195, %v194
  %v259 = vpack.c.b16 %v197, %v196
  %v260 = vpack.c.b16 %v199, %v198
  %v261 = vpack.c.b16 %v201, %v200
  %v262 = vpack.c.b16 %v203, %v202
  %v263 = vpack.c.b16 %v205, %v204
  %v264 = vpack.c.b16 %v207, %v206
  %v265 = vpack.c.b16 %v209, %v208
  %v266 = vpack.c.b16 %v211, %v210
  %v267 = vpack.c.b16 %v213, %v212
  %v268 = vpack.c.b16 %v215, %v214
  %v269 = vpack.c.b16 %v217, %v216
  %v270 = vpack.c.b16 %v219, %v218
  %v271 = vpack.c.b16 %v221, %v220
  %v272 = vpack.c.b16 %v223, %v222
  %v273 = vpack.c.b16 %v225, %v224
  %v274 = vpack.c.b16 %v227, %v226
  %v275 = vpack.c.b16 %v229, %v228
  %v276 = vpack.c.b16 %v231, %v230
  %v277 = vpack.c.b16 %v233, %v232
  %v278 = vpack.c.b16 %v235, %v234
  %v279 = vpack.c.b16 %v237, %v236
  %v280 = vpack.c.b16 %v239, %v238
  %v281 = vpack.c.b16 %v241, %v240
  %v282 = vpack.c.b16 %v243, %v242
  %v283 = vpack.c.b16 %v245, %v244
  %v284 = vpack.c.b16 %v247, %v246
  %v285 = vpack.c.b16 %v249, %v248
  %v286 = vpack.c.b16 %v251, %v250
  %v287 = vpack.c.b16 %v253, %v252
  %v288 = vpack.c.b16 %v255, %v254
  %v289 = vpack.c.b16 %v257, %v256
  %322 = vmatpush.bf16.msra.mxu0 %v265
  %323 = vmatpush.bf16.msra.mxu0 %v264
  %324 = vmatpush.bf16.msra.mxu0 %v263
  %325 = vmatpush.bf16.msra.mxu0 %v262
  %326 = vmatpush.bf16.msra.mxu0 %v261
  %327 = vmatpush.bf16.msra.mxu0 %v260
  %328 = vmatpush.bf16.msra.mxu0 %v259
  %329 = vmatpush.bf16.msra.mxu0 %v258
  %330 = vmatmul.bf16.gmra.mxu0 %v114
  %v331 = vpop.f32.mrf.mxu0
  %v332 = vadd.f32 %v88, %v331
  %v333 = vpop.f32.mrf.mxu0
  %v334 = vadd.f32 %v88, %v333
  %335 = vmatmul.bf16.gmra.mxu0 %v118
  %v336 = vpop.f32.mrf.mxu0
  %v337 = vadd.f32 %v88, %v336
  %v338 = vpop.f32.mrf.mxu0
  %v339 = vadd.f32 %v88, %v338
  %340 = vdwg.mxu0
  %341 = vmatpush.bf16.msra.mxu0 %v273
  %342 = vmatpush.bf16.msra.mxu0 %v272
  %343 = vmatpush.bf16.msra.mxu0 %v271
  %344 = vmatpush.bf16.msra.mxu0 %v270
  %345 = vmatpush.bf16.msra.mxu0 %v269
  %346 = vmatpush.bf16.msra.mxu0 %v268
  %347 = vmatpush.bf16.msra.mxu0 %v267
  %348 = vmatpush.bf16.msra.mxu0 %v266
  %349 = vmatmul.bf16.gmra.mxu0 %v115
  %v350 = vpop.f32.mrf.mxu0
  %v351 = vadd.f32 %v332, %v350
  %v352 = vpop.f32.mrf.mxu0
  %v353 = vadd.f32 %v334, %v352
  %354 = vmatmul.bf16.gmra.mxu0 %v119
  %v355 = vpop.f32.mrf.mxu0
  %v356 = vadd.f32 %v337, %v355
  %v357 = vpop.f32.mrf.mxu0
  %v358 = vadd.f32 %v339, %v357
  %359 = vdwg.mxu0
  %360 = vmatpush.bf16.msra.mxu0 %v281
  %361 = vmatpush.bf16.msra.mxu0 %v280
  %362 = vmatpush.bf16.msra.mxu0 %v279
  %363 = vmatpush.bf16.msra.mxu0 %v278
  %364 = vmatpush.bf16.msra.mxu0 %v277
  %365 = vmatpush.bf16.msra.mxu0 %v276
  %366 = vmatpush.bf16.msra.mxu0 %v275
  %367 = vmatpush.bf16.msra.mxu0 %v274
  %368 = vmatmul.bf16.gmra.mxu0 %v116
  %v369 = vpop.f32.mrf.mxu0
  %v370 = vadd.f32 %v351, %v369
  %v371 = vpop.f32.mrf.mxu0
  %v372 = vadd.f32 %v353, %v371
  %373 = vmatmul.bf16.gmra.mxu0 %v120
  %v374 = vpop.f32.mrf.mxu0
  %v375 = vadd.f32 %v356, %v374
  %v376 = vpop.f32.mrf.mxu0
  %v377 = vadd.f32 %v358, %v376
  %378 = vdwg.mxu0
  %379 = vmatpush.bf16.msra.mxu0 %v289
  %380 = vmatpush.bf16.msra.mxu0 %v288
  %381 = vmatpush.bf16.msra.mxu0 %v287
  %382 = vmatpush.bf16.msra.mxu0 %v286
  %383 = vmatpush.bf16.msra.mxu0 %v285
  %384 = vmatpush.bf16.msra.mxu0 %v284
  %385 = vmatpush.bf16.msra.mxu0 %v283
  %386 = vmatpush.bf16.msra.mxu0 %v282
  %387 = vmatmul.bf16.gmra.mxu0 %v117
  %v388 = vpop.f32.mrf.mxu0
  %v389 = vadd.f32 %v370, %v388
  %v390 = vpop.f32.mrf.mxu0
  %v391 = vadd.f32 %v372, %v390
  %392 = vmatmul.bf16.gmra.mxu0 %v121
  %v393 = vpop.f32.mrf.mxu0
  %v394 = vadd.f32 %v375, %v393
  %v395 = vpop.f32.mrf.mxu0
  %v396 = vadd.f32 %v377, %v395
  %397 = vdwg.mxu0
  %v398 = vmax.f32 %v389, 0.0
  %v399 = vmax.f32 %v391, 0.0
  %v400 = vmax.f32 %v394, 0.0
  %v401 = vmax.f32 %v396, 0.0
  %v402 = vpack.c.bf16 %v398, %v398
  %v403 = vpack.c.bf16 %v399, %v399
  %v404 = vpack.c.bf16 %v400, %v400
  %v405 = vpack.c.bf16 %v401, %v401
  %406 = vst [vmem:[%s3] sm:$0xf] %v402
  %407 = vst [vmem:[%s3 + $0x4] sm:$0xf] %v403
  %408 = vst [vmem:[%s3 + $0x8] sm:$0xf] %v404
  %409 = vst [vmem:[%s3 + $0xc] sm:$0xf] %v405
  // Predicated region
  $region14: #{shading_net_forward.14} parent=0 // pred_check
    _
  $region15: #{shading_net_forward.14} parent=0 // pred_check_branch
    %411 = sbr.rel (0) target = $region17
  $region16: #{shading_net_forward.14} parent=0 // pred_region
    _
  $region17: #{shading_net_forward.14} parent=0 // pred_fallthru
    _
  // Predicated region
  $region18: #{shading_net_forward.14} parent=0 // pred_check
    _
  $region19: #{shading_net_forward.14} parent=0 // pred_check_branch
    %413 = sbr.rel (0) target = $region21
  $region20: #{shading_net_forward.14} parent=0 // pred_region
    _
  $region21: #{shading_net_forward.14} parent=0 // pred_fallthru
    _

// kernel: shading_net_forward.17
$region0: #{shading_net_forward.17}
  #allocation0 [shape = 'u32[]', space=smem, size = 0x4, offset = 0x4, fixed_abs, tag = 'smem constant byte address 0x4 - core index']
  #allocation1 [shape = 'u32[72,128]{1,0:T(1,128)}', space=vmem, size = 0x9000, scoped, tag = 'internal scratch']
  %s0 = inlined_call_operand.vmem [shape: bf16[8,256], index: 0, kind: input, shape index: {}]
  %s1 = inlined_call_operand.vmem [shape: bf16[256,256], index: 1, kind: input, shape index: {}]
  %s2 = inlined_call_operand.vmem [shape: f32[1,256], index: 2, kind: input, shape index: {}]
  %s3 = inlined_call_operand.vmem [shape: bf16[8,256], index: 3, kind: output, shape index: {}]
  %s4 = sld [smem:[#allocation0]]
  $region22: #{shading_net_forward.17} parent=0
    _
  %s6 = ssub.s32 1, %s4
  %s7 = scalar_select 0, %s6, %s4
  // Predicated region
  $region2: #{shading_net_forward.17} parent=0 // pred_check
    _
  $region3: #{shading_net_forward.17} parent=0 // pred_check_branch
    %9 = sbr.rel (0) target = $region5
  $region4: #{shading_net_forward.17} parent=0 // pred_region
    _
  $region5: #{shading_net_forward.17} parent=0 // pred_fallthru
    _
  // Predicated region
  $region6: #{shading_net_forward.17} parent=0 // pred_check
    _
  $region7: #{shading_net_forward.17} parent=0 // pred_check_branch
    %11 = sbr.rel (0) target = $region9
  $region8: #{shading_net_forward.17} parent=0 // pred_region
    _
  $region9: #{shading_net_forward.17} parent=0 // pred_fallthru
    _
  // Predicated region
  $region10: #{shading_net_forward.17} parent=0 // pred_check
    _
  $region11: #{shading_net_forward.17} parent=0 // pred_check_branch
    %13 = sbr.rel (0) target = $region13
  $region12: #{shading_net_forward.17} parent=0 // pred_region
    _
  $region13: #{shading_net_forward.17} parent=0 // pred_fallthru
    _
  %v14 = vld [vmem:[%s0] sm:$0xff]
  %v15 = vld [vmem:[%s1] sm:$0xff]
  %v16 = vld [vmem:[%s1 + $0x8] sm:$0xff]
  %v17 = vld [vmem:[%s1 + $0x10] sm:$0xff]
  %v18 = vld [vmem:[%s1 + $0x18] sm:$0xff]
  %v19 = vld [vmem:[%s1 + $0x20] sm:$0xff]
  %v20 = vld [vmem:[%s1 + $0x28] sm:$0xff]
  %v21 = vld [vmem:[%s1 + $0x30] sm:$0xff]
  %v22 = vld [vmem:[%s1 + $0x38] sm:$0xff]
  %v23 = vld [vmem:[%s1 + $0x40] sm:$0xff]
  %v24 = vld [vmem:[%s1 + $0x48] sm:$0xff]
  %v25 = vld [vmem:[%s1 + $0x50] sm:$0xff]
  %v26 = vld [vmem:[%s1 + $0x58] sm:$0xff]
  %v27 = vld [vmem:[%s1 + $0x60] sm:$0xff]
  %v28 = vld [vmem:[%s1 + $0x68] sm:$0xff]
  %v29 = vld [vmem:[%s1 + $0x70] sm:$0xff]
  %v30 = vld [vmem:[%s1 + $0x78] sm:$0xff]
  %v31 = vld [vmem:[%s1 + $0x80] sm:$0xff]
  %v32 = vld [vmem:[%s1 + $0x88] sm:$0xff]
  %v33 = vld [vmem:[%s1 + $0x90] sm:$0xff]
  %v34 = vld [vmem:[%s1 + $0x98] sm:$0xff]
  %v35 = vld [vmem:[%s1 + $0xa0] sm:$0xff]
  %v36 = vld [vmem:[%s1 + $0xa8] sm:$0xff]
  %v37 = vld [vmem:[%s1 + $0xb0] sm:$0xff]
  %v38 = vld [vmem:[%s1 + $0xb8] sm:$0xff]
  %v39 = vld [vmem:[%s1 + $0xc0] sm:$0xff]
  %v40 = vld [vmem:[%s1 + $0xc8] sm:$0xff]
  %v41 = vld [vmem:[%s1 + $0xd0] sm:$0xff]
  %v42 = vld [vmem:[%s1 + $0xd8] sm:$0xff]
  %v43 = vld [vmem:[%s1 + $0xe0] sm:$0xff]
  %v44 = vld [vmem:[%s1 + $0xe8] sm:$0xff]
  %v45 = vld [vmem:[%s1 + $0xf0] sm:$0xff]
  %v46 = vld [vmem:[%s1 + $0xf8] sm:$0xff]
  %v47 = vld [vmem:[%s2] sm:$0x3]
  %v49 = vperm.slane %v47, 0
  %v50 = vperm.slane %v47, 1
  %v54 = vunpack.c.l.b16 %v14
  %v55 = vunpack.c.h.b16 %v14
  %v56 = vpack.c.b16 %v54, %v54
  %v57 = vpack.c.b16 %v55, %v55
  %v92 = vunpack.c.l.b16 %v15
  %v93 = vunpack.c.h.b16 %v15
  %v94 = vunpack.c.l.b16 %v16
  %v95 = vunpack.c.h.b16 %v16
  %v96 = vunpack.c.l.b16 %v17
  %v97 = vunpack.c.h.b16 %v17
  %v98 = vunpack.c.l.b16 %v18
  %v99 = vunpack.c.h.b16 %v18
  %v100 = vunpack.c.l.b16 %v19
  %v101 = vunpack.c.h.b16 %v19
  %v102 = vunpack.c.l.b16 %v20
  %v103 = vunpack.c.h.b16 %v20
  %v104 = vunpack.c.l.b16 %v21
  %v105 = vunpack.c.h.b16 %v21
  %v106 = vunpack.c.l.b16 %v22
  %v107 = vunpack.c.h.b16 %v22
  %v108 = vunpack.c.l.b16 %v23
  %v109 = vunpack.c.h.b16 %v23
  %v110 = vunpack.c.l.b16 %v24
  %v111 = vunpack.c.h.b16 %v24
  %v112 = vunpack.c.l.b16 %v25
  %v113 = vunpack.c.h.b16 %v25
  %v114 = vunpack.c.l.b16 %v26
  %v115 = vunpack.c.h.b16 %v26
  %v116 = vunpack.c.l.b16 %v27
  %v117 = vunpack.c.h.b16 %v27
  %v118 = vunpack.c.l.b16 %v28
  %v119 = vunpack.c.h.b16 %v28
  %v120 = vunpack.c.l.b16 %v29
  %v121 = vunpack.c.h.b16 %v29
  %v122 = vunpack.c.l.b16 %v30
  %v123 = vunpack.c.h.b16 %v30
  %v124 = vunpack.c.l.b16 %v31
  %v125 = vunpack.c.h.b16 %v31
  %v126 = vunpack.c.l.b16 %v32
  %v127 = vunpack.c.h.b16 %v32
  %v128 = vunpack.c.l.b16 %v33
  %v129 = vunpack.c.h.b16 %v33
  %v130 = vunpack.c.l.b16 %v34
  %v131 = vunpack.c.h.b16 %v34
  %v132 = vunpack.c.l.b16 %v35
  %v133 = vunpack.c.h.b16 %v35
  %v134 = vunpack.c.l.b16 %v36
  %v135 = vunpack.c.h.b16 %v36
  %v136 = vunpack.c.l.b16 %v37
  %v137 = vunpack.c.h.b16 %v37
  %v138 = vunpack.c.l.b16 %v38
  %v139 = vunpack.c.h.b16 %v38
  %v140 = vunpack.c.l.b16 %v39
  %v141 = vunpack.c.h.b16 %v39
  %v142 = vunpack.c.l.b16 %v40
  %v143 = vunpack.c.h.b16 %v40
  %v144 = vunpack.c.l.b16 %v41
  %v145 = vunpack.c.h.b16 %v41
  %v146 = vunpack.c.l.b16 %v42
  %v147 = vunpack.c.h.b16 %v42
  %v148 = vunpack.c.l.b16 %v43
  %v149 = vunpack.c.h.b16 %v43
  %v150 = vunpack.c.l.b16 %v44
  %v151 = vunpack.c.h.b16 %v44
  %v152 = vunpack.c.l.b16 %v45
  %v153 = vunpack.c.h.b16 %v45
  %v154 = vunpack.c.l.b16 %v46
  %v155 = vunpack.c.h.b16 %v46
  %v156 = vpack.c.b16 %v94, %v92
  %v157 = vpack.c.b16 %v95, %v93
  %v158 = vpack.c.b16 %v98, %v96
  %v159 = vpack.c.b16 %v99, %v97
  %v160 = vpack.c.b16 %v102, %v100
  %v161 = vpack.c.b16 %v103, %v101
  %v162 = vpack.c.b16 %v106, %v104
  %v163 = vpack.c.b16 %v107, %v105
  %v164 = vpack.c.b16 %v110, %v108
  %v165 = vpack.c.b16 %v111, %v109
  %v166 = vpack.c.b16 %v114, %v112
  %v167 = vpack.c.b16 %v115, %v113
  %v168 = vpack.c.b16 %v118, %v116
  %v169 = vpack.c.b16 %v119, %v117
  %v170 = vpack.c.b16 %v122, %v120
  %v171 = vpack.c.b16 %v123, %v121
  %v172 = vpack.c.b16 %v126, %v124
  %v173 = vpack.c.b16 %v127, %v125
  %v174 = vpack.c.b16 %v130, %v128
  %v175 = vpack.c.b16 %v131, %v129
  %v176 = vpack.c.b16 %v134, %v132
  %v177 = vpack.c.b16 %v135, %v133
  %v178 = vpack.c.b16 %v138, %v136
  %v179 = vpack.c.b16 %v139, %v137
  %v180 = vpack.c.b16 %v142, %v140
  %v181 = vpack.c.b16 %v143, %v141
  %v182 = vpack.c.b16 %v146, %v144
  %v183 = vpack.c.b16 %v147, %v145
  %v184 = vpack.c.b16 %v150, %v148
  %v185 = vpack.c.b16 %v151, %v149
  %v186 = vpack.c.b16 %v154, %v152
  %v187 = vpack.c.b16 %v155, %v153
  %220 = vmatpush.bf16.msra.mxu0 %v170
  %221 = vmatpush.bf16.msra.mxu0 %v168
  %222 = vmatpush.bf16.msra.mxu0 %v166
  %223 = vmatpush.bf16.msra.mxu0 %v164
  %224 = vmatpush.bf16.msra.mxu0 %v162
  %225 = vmatpush.bf16.msra.mxu0 %v160
  %226 = vmatpush.bf16.msra.mxu0 %v158
  %227 = vmatpush.bf16.msra.mxu0 %v156
  %228 = vmatmul.bf16.gmra.mxu0 %v56
  %v229 = vpop.f32.mrf.mxu0
  %v230 = vadd.f32 %v49, %v229
  %v231 = vpop.f32.mrf.mxu0
  %232 = vdwg.mxu0
  %233 = vmatpush.bf16.msra.mxu0 %v186
  %234 = vmatpush.bf16.msra.mxu0 %v184
  %235 = vmatpush.bf16.msra.mxu0 %v182
  %236 = vmatpush.bf16.msra.mxu0 %v180
  %237 = vmatpush.bf16.msra.mxu0 %v178
  %238 = vmatpush.bf16.msra.mxu0 %v176
  %239 = vmatpush.bf16.msra.mxu0 %v174
  %240 = vmatpush.bf16.msra.mxu0 %v172
  %241 = vmatmul.bf16.gmra.mxu0 %v57
  %v242 = vpop.f32.mrf.mxu0
  %v243 = vadd.f32 %v230, %v242
  %v244 = vpop.f32.mrf.mxu0
  %245 = vdwg.mxu0
  %246 = vmatpush.bf16.msra.mxu0 %v171
  %247 = vmatpush.bf16.msra.mxu0 %v169
  %248 = vmatpush.bf16.msra.mxu0 %v167
  %249 = vmatpush.bf16.msra.mxu0 %v165
  %250 = vmatpush.bf16.msra.mxu0 %v163
  %251 = vmatpush.bf16.msra.mxu0 %v161
  %252 = vmatpush.bf16.msra.mxu0 %v159
  %253 = vmatpush.bf16.msra.mxu0 %v157
  %254 = vmatmul.bf16.gmra.mxu0 %v56
  %v255 = vpop.f32.mrf.mxu0
  %v256 = vadd.f32 %v50, %v255
  %v257 = vpop.f32.mrf.mxu0
  %258 = vdwg.mxu0
  %259 = vmatpush.bf16.msra.mxu0 %v187
  %260 = vmatpush.bf16.msra.mxu0 %v185
  %261 = vmatpush.bf16.msra.mxu0 %v183
  %262 = vmatpush.bf16.msra.mxu0 %v181
  %263 = vmatpush.bf16.msra.mxu0 %v179
  %264 = vmatpush.bf16.msra.mxu0 %v177
  %265 = vmatpush.bf16.msra.mxu0 %v175
  %266 = vmatpush.bf16.msra.mxu0 %v173
  %267 = vmatmul.bf16.gmra.mxu0 %v57
  %v268 = vpop.f32.mrf.mxu0
  %v269 = vadd.f32 %v256, %v268
  %v270 = vpop.f32.mrf.mxu0
  %271 = vdwg.mxu0
  %v272 = vmax.f32 %v243, 0.0
  %v273 = vmax.f32 %v269, 0.0
  %v274 = vpack.c.bf16 %v273, %v272
  %275 = vst [vmem:[%s3] sm:$0xff] %v274
  // Predicated region
  $region14: #{shading_net_forward.17} parent=0 // pred_check
    _
  $region15: #{shading_net_forward.17} parent=0 // pred_check_branch
    %277 = sbr.rel (0) target = $region17
  $region16: #{shading_net_forward.17} parent=0 // pred_region
    _
  $region17: #{shading_net_forward.17} parent=0 // pred_fallthru
    _
  // Predicated region
  $region18: #{shading_net_forward.17} parent=0 // pred_check
    _
  $region19: #{shading_net_forward.17} parent=0 // pred_check_branch
    %279 = sbr.rel (0) target = $region21
  $region20: #{shading_net_forward.17} parent=0 // pred_region
    _
  $region21: #{shading_net_forward.17} parent=0 // pred_fallthru
    _

// kernel: shading_net_forward.18
$region0: #{shading_net_forward.18}
  #allocation0 [shape = 'u32[]', space=smem, size = 0x4, offset = 0x4, fixed_abs, tag = 'smem constant byte address 0x4 - core index']
  #allocation1 [shape = 'u32[72,128]{1,0:T(1,128)}', space=vmem, size = 0x9000, scoped, tag = 'internal scratch']
  %s0 = inlined_call_operand.vmem [shape: bf16[8,256], index: 0, kind: input, shape index: {}]
  %s1 = inlined_call_operand.vmem [shape: bf16[256,512], index: 1, kind: input, shape index: {}]
  %s2 = inlined_call_operand.vmem [shape: f32[1,512], index: 2, kind: input, shape index: {}]
  %s3 = inlined_call_operand.vmem [shape: bf16[8,512], index: 3, kind: output, shape index: {}]
  %s4 = sld [smem:[#allocation0]]
  $region83: #{shading_net_forward.18} parent=0
    _
  %s6 = ssub.s32 1, %s4
  %s7 = scalar_select 0, %s6, %s4
  $region1: #{shading_net_forward.18} parent=0
    #allocation2 [shape = 'u8[262144]{0}', space=vmem, size = 0x40000, scoped, tag = 'input window, operand 1']
    loop: start=0, step=1, limit=4
    $region2: #{shading_net_forward.18} parent=1 // loop_pre_header
      _
    $region3: #{shading_net_forward.18} parent=1 // loop_header
      %s9 = sphi 0, %s13
      %p10 = scmp.ge.s32.totalorder %s9, 4
      %s16 = sphi 0, %s28
      %s17 = sphi 0, %s24
      %s18 = sphi 0, %s16
      %s19 = sphi 0, %s17
      %s20 = sphi 0, %s18
      %s21 = sphi 0, %s19
      %s31 = sphi 0, %s33
      %s34 = sphi 0, %s31
      %s35 = sphi 0, %s34
      %s51 = sphi 0, %s35
      %s57 = sphi 0, %s59
      %s60 = sphi 0, %s57
      %s61 = sphi 0, %s60
      %s77 = sphi 0, %s61
      %s83 = sphi 0, %s85
      %s86 = sphi 0, %s83
      %s87 = sphi 0, %s86
      %s103 = sphi 0, %s87
      %s111 = sphi 0, %s113
      %s114 = sphi 0, %s111
      %s115 = sphi 0, %s114
      %s131 = sphi 0, %s115
    $region4: #{shading_net_forward.18} parent=1 // loop_header_branch
      %12 = sbr.rel (%p10) target = $region8
    $region5: #{shading_net_forward.18} parent=1 // loop_body
      %s14 = ssub.s32 %s9, 1
      %s15 = ssub.s32 %s9, 2
      %s22 = sadd.s32 1, %s17
      %p23 = scmp.ge.s32.totalorder %s22, 2
      %s24 = scalar_select %p23, 0, %s22
      %s25 = sadd.s32 1, %s16
      %s26 = scalar_select %p23, %s25, %s16
      %p27 = scmp.ge.s32.totalorder %s26, 1
      %s28 = scalar_select %p27, 0, %s26
      %s29 = ssub.s32 %s16, %s28
      %p30 = scmp.eq.s32.totalorder %s29, 0
      %s32 = sadd.s32 %s31, 1
      %s33 = scalar_select %p30, %s31, %s32
      %p36 = pneg %p30
      %p37 = scmp.eq.s32.totalorder %s9, 1
      %p38 = por %p36, %p37
      %p39 = scmp.ne.s32.totalorder %s31, %s34
      %p40 = scmp.eq.s32.totalorder %s9, 0
      %p41 = por %p39, %p40
      %p42 = scmp.ne.s32.totalorder %s31, %s34
      %p43 = scmp.eq.s32.totalorder %s14, 1
      %p44 = por %p42, %p43
      %p45 = scmp.ne.s32.totalorder %s34, %s35
      %p46 = scmp.eq.s32.totalorder %s14, 0
      %p47 = por %p45, %p46
      %p48 = scmp.ne.s32.totalorder %s34, %s35
      %p49 = scmp.eq.s32.totalorder %s15, 1
      %p50 = por %p48, %p49
      %p52 = scmp.ne.s32.totalorder %s35, %s51
      %p53 = scmp.eq.s32.totalorder %s15, 0
      %p54 = por %p52, %p53
      %s55 = ssub.s32 %s17, %s24
      %p56 = scmp.eq.s32.totalorder %s55, 0
      %s58 = sadd.s32 %s57, 1
      %s59 = scalar_select %p56, %s57, %s58
      %p62 = pneg %p56
      %p63 = scmp.eq.s32.totalorder %s9, 1
      %p64 = por %p62, %p63
      %p65 = scmp.ne.s32.totalorder %s57, %s60
      %p66 = scmp.eq.s32.totalorder %s9, 0
      %p67 = por %p65, %p66
      %p68 = scmp.ne.s32.totalorder %s57, %s60
      %p69 = scmp.eq.s32.totalorder %s14, 1
      %p70 = por %p68, %p69
      %p71 = scmp.ne.s32.totalorder %s60, %s61
      %p72 = scmp.eq.s32.totalorder %s14, 0
      %p73 = por %p71, %p72
      %p74 = scmp.ne.s32.totalorder %s60, %s61
      %p75 = scmp.eq.s32.totalorder %s15, 1
      %p76 = por %p74, %p75
      %p78 = scmp.ne.s32.totalorder %s61, %s77
      %p79 = scmp.eq.s32.totalorder %s15, 0
      %p80 = por %p78, %p79
      %s81 = ssub.s32 %s17, %s24
      %p82 = scmp.eq.s32.totalorder %s81, 0
      %s84 = sadd.s32 %s83, 1
      %s85 = scalar_select %p82, %s83, %s84
      %p88 = pneg %p82
      %p89 = scmp.eq.s32.totalorder %s9, 1
      %p90 = por %p88, %p89
      %p91 = scmp.ne.s32.totalorder %s83, %s86
      %p92 = scmp.eq.s32.totalorder %s9, 0
      %p93 = por %p91, %p92
      %p94 = scmp.ne.s32.totalorder %s83, %s86
      %p95 = scmp.eq.s32.totalorder %s14, 1
      %p96 = por %p94, %p95
      %p97 = scmp.ne.s32.totalorder %s86, %s87
      %p98 = scmp.eq.s32.totalorder %s14, 0
      %p99 = por %p97, %p98
      %p100 = scmp.ne.s32.totalorder %s86, %s87
      %p101 = scmp.eq.s32.totalorder %s15, 1
      %p102 = por %p100, %p101
      %p104 = scmp.ne.s32.totalorder %s87, %s103
      %p105 = scmp.eq.s32.totalorder %s15, 0
      %p106 = por %p104, %p105
      %s107 = ssub.s32 %s16, %s28
      %s108 = ssub.s32 %s17, %s24
      %s109 = sor.u32 %s107, %s108
      %p110 = scmp.eq.s32.totalorder %s109, 0
      %s112 = sadd.s32 %s111, 1
      %s113 = scalar_select %p110, %s111, %s112
      %p116 = pneg %p110
      %p117 = scmp.eq.s32.totalorder %s9, 1
      %p118 = por %p116, %p117
      %p119 = scmp.ne.s32.totalorder %s111, %s114
      %p120 = scmp.eq.s32.totalorder %s9, 0
      %p121 = por %p119, %p120
      %p122 = scmp.ne.s32.totalorder %s111, %s114
      %p123 = scmp.eq.s32.totalorder %s14, 1
      %p124 = por %p122, %p123
      %p125 = scmp.ne.s32.totalorder %s114, %s115
      %p126 = scmp.eq.s32.totalorder %s14, 0
      %p127 = por %p125, %p126
      %p128 = scmp.ne.s32.totalorder %s114, %s115
      %p129 = scmp.eq.s32.totalorder %s15, 1
      %p130 = por %p128, %p129
      %p132 = scmp.ne.s32.totalorder %s115, %s131
      %p133 = scmp.eq.s32.totalorder %s15, 0
      %p134 = por %p132, %p133
      %p135 = scmp.le.s32.totalorder 1, %s9
      %p136 = scmp.lt.s32.totalorder %s9, 3
      %p137 = pnand %p135, %p136
      %p138 = pneg %p137
      // Predicated region
      $region9: #{shading_net_forward.18} parent=5 // pred_check
        _
      $region10: #{shading_net_forward.18} parent=5 // pred_check_branch
        %140 = sbr.rel (%p137) target = $region12
      $region11: #{shading_net_forward.18} parent=5 // pred_region
        %s141 = ssub.s32 %s9, 1
        // Predicated region
        $region13: #{shading_net_forward.18} parent=11 // pred_check
          %p142 = pneg %p47
        $region14: #{shading_net_forward.18} parent=11 // pred_check_branch
          %144 = sbr.rel (%p142) target = $region16
        $region15: #{shading_net_forward.18} parent=11 // pred_region
          %p145 = scmp.lt.s32.totalorder %s18, 0
          %s146 = scalar_select %p145, %s18, 0
          %s147 = smul.addr %s146, 2
          %s148 = smul.addr %s147, 4
          %s149 = scalar_lea.vmem %s0, %s148
        $region16: #{shading_net_forward.18} parent=11 // pred_fallthru
          _
      $region12: #{shading_net_forward.18} parent=5 // pred_fallthru
        _
      %p150 = scmp.lt.s32.totalorder %s9, 2
      // Predicated region
      $region17: #{shading_net_forward.18} parent=5 // pred_check
        %p151 = pneg %p150
      $region18: #{shading_net_forward.18} parent=5 // pred_check_branch
        %153 = sbr.rel (%p151) target = $region20
      $region19: #{shading_net_forward.18} parent=5 // pred_region
        // Predicated region
        $region21: #{shading_net_forward.18} parent=19 // pred_check
          %p154 = pneg %p67
        $region22: #{shading_net_forward.18} parent=19 // pred_check_branch
          %156 = sbr.rel (%p154) target = $region24
        $region23: #{shading_net_forward.18} parent=19 // pred_region
          %s157 = sand.u32 %s57, 1
          %s158 = sand.u32 %s57, 1
          %s159 = smul.addr %s158, 256
          %s160 = scalar_lea.vmem [#allocation2], %s159
          %s161 = smul.u32 2, %s17
          %s162 = smul.addr %s161, 4
          %s163 = scalar_lea.vmem %s1, %s162
          // Predicated region
          $region25: #{shading_net_forward.18} parent=23 // pred_check
            _
          $region26: #{shading_net_forward.18} parent=23 // pred_check_branch
            %165 = sbr.rel (0) target = $region28
          $region27: #{shading_net_forward.18} parent=23 // pred_region
            // Predicated region
            $region29: #{shading_net_forward.18} parent=27 // pred_check
              _
            $region30: #{shading_net_forward.18} parent=27 // pred_check_branch
              %167 = sbr.rel (0) target = $region32
            $region31: #{shading_net_forward.18} parent=27 // pred_region
              // Predicated region
              $region44: #{shading_net_forward.18} parent=31 // pred_check
                _
              $region45: #{shading_net_forward.18} parent=31 // pred_check_branch
                %245 = sbr.rel (0) target = $region47
              $region46: #{shading_net_forward.18} parent=31 // pred_region
                loop: start=0, step=1, limit=1
                $region48: #{shading_net_forward.18} parent=46 // loop_pre_header
                  _
                $region49: #{shading_net_forward.18} parent=46 // loop_header
                  %s247 = sphi 0, %s251
                  %p248 = scmp.ge.s32.totalorder %s247, 1
                  %s252 = sphi %s163, %s163
                  %s253 = sphi %s160, %s160
                $region50: #{shading_net_forward.18} parent=46 // loop_header_branch
                  %250 = sbr.rel (%p248) target = $region54
                $region51: #{shading_net_forward.18} parent=46 // loop_body
                  %v254 = vld [vmem:[%s252] sm:$0xff]
                  %255 = vst [vmem:[%s253] sm:$0xff] %v254
                  %v256 = vld [vmem:[%s252 + $0x10] sm:$0xff]
                  %257 = vst [vmem:[%s253 + $0x8] sm:$0xff] %v256
                  %v258 = vld [vmem:[%s252 + $0x20] sm:$0xff]
                  %259 = vst [vmem:[%s253 + $0x10] sm:$0xff] %v258
                  %v260 = vld [vmem:[%s252 + $0x30] sm:$0xff]
                  %261 = vst [vmem:[%s253 + $0x18] sm:$0xff] %v260
                  %v262 = vld [vmem:[%s252 + $0x40] sm:$0xff]
                  %263 = vst [vmem:[%s253 + $0x20] sm:$0xff] %v262
                  %v264 = vld [vmem:[%s252 + $0x50] sm:$0xff]
                  %265 = vst [vmem:[%s253 + $0x28] sm:$0xff] %v264
                  %v266 = vld [vmem:[%s252 + $0x60] sm:$0xff]
                  %267 = vst [vmem:[%s253 + $0x30] sm:$0xff] %v266
                  %v268 = vld [vmem:[%s252 + $0x70] sm:$0xff]
                  %269 = vst [vmem:[%s253 + $0x38] sm:$0xff] %v268
                  %v270 = vld [vmem:[%s252 + $0x80] sm:$0xff]
                  %271 = vst [vmem:[%s253 + $0x40] sm:$0xff] %v270
                  %v272 = vld [vmem:[%s252 + $0x90] sm:$0xff]
                  %273 = vst [vmem:[%s253 + $0x48] sm:$0xff] %v272
                  %v274 = vld [vmem:[%s252 + $0xa0] sm:$0xff]
                  %275 = vst [vmem:[%s253 + $0x50] sm:$0xff] %v274
                  %v276 = vld [vmem:[%s252 + $0xb0] sm:$0xff]
                  %277 = vst [vmem:[%s253 + $0x58] sm:$0xff] %v276
                  %v278 = vld [vmem:[%s252 + $0xc0] sm:$0xff]
                  %279 = vst [vmem:[%s253 + $0x60] sm:$0xff] %v278
                  %v280 = vld [vmem:[%s252 + $0xd0] sm:$0xff]
                  %281 = vst [vmem:[%s253 + $0x68] sm:$0xff] %v280
                  %v282 = vld [vmem:[%s252 + $0xe0] sm:$0xff]
                  %283 = vst [vmem:[%s253 + $0x70] sm:$0xff] %v282
                  %v284 = vld [vmem:[%s252 + $0xf0] sm:$0xff]
                  %285 = vst [vmem:[%s253 + $0x78] sm:$0xff] %v284
                  %v286 = vld [vmem:[%s252 + $0x100] sm:$0xff]
                  %287 = vst [vmem:[%s253 + $0x80] sm:$0xff] %v286
                  %v288 = vld [vmem:[%s252 + $0x110] sm:$0xff]
                  %289 = vst [vmem:[%s253 + $0x88] sm:$0xff] %v288
                  %v290 = vld [vmem:[%s252 + $0x120] sm:$0xff]
                  %291 = vst [vmem:[%s253 + $0x90] sm:$0xff] %v290
                  %v292 = vld [vmem:[%s252 + $0x130] sm:$0xff]
                  %293 = vst [vmem:[%s253 + $0x98] sm:$0xff] %v292
                  %v294 = vld [vmem:[%s252 + $0x140] sm:$0xff]
                  %295 = vst [vmem:[%s253 + $0xa0] sm:$0xff] %v294
                  %v296 = vld [vmem:[%s252 + $0x150] sm:$0xff]
                  %297 = vst [vmem:[%s253 + $0xa8] sm:$0xff] %v296
                  %v298 = vld [vmem:[%s252 + $0x160] sm:$0xff]
                  %299 = vst [vmem:[%s253 + $0xb0] sm:$0xff] %v298
                  %v300 = vld [vmem:[%s252 + $0x170] sm:$0xff]
                  %301 = vst [vmem:[%s253 + $0xb8] sm:$0xff] %v300
                  %v302 = vld [vmem:[%s252 + $0x180] sm:$0xff]
                  %303 = vst [vmem:[%s253 + $0xc0] sm:$0xff] %v302
                  %v304 = vld [vmem:[%s252 + $0x190] sm:$0xff]
                  %305 = vst [vmem:[%s253 + $0xc8] sm:$0xff] %v304
                  %v306 = vld [vmem:[%s252 + $0x1a0] sm:$0xff]
                  %307 = vst [vmem:[%s253 + $0xd0] sm:$0xff] %v306
                  %v308 = vld [vmem:[%s252 + $0x1b0] sm:$0xff]
                  %309 = vst [vmem:[%s253 + $0xd8] sm:$0xff] %v308
                  %v310 = vld [vmem:[%s252 + $0x1c0] sm:$0xff]
                  %311 = vst [vmem:[%s253 + $0xe0] sm:$0xff] %v310
                  %v312 = vld [vmem:[%s252 + $0x1d0] sm:$0xff]
                  %313 = vst [vmem:[%s253 + $0xe8] sm:$0xff] %v312
                  %v314 = vld [vmem:[%s252 + $0x1e0] sm:$0xff]
                  %315 = vst [vmem:[%s253 + $0xf0] sm:$0xff] %v314
                  %v316 = vld [vmem:[%s252 + $0x1f0] sm:$0xff]
                  %317 = vst [vmem:[%s253 + $0xf8] sm:$0xff] %v316
                $region52: #{shading_net_forward.18} parent=46 // loop_footer
                  %s251 = sadd.s32 1, %s247
                $region53: #{shading_net_forward.18} parent=46 // loop_footer_branch
                  %246 = sbr.rel target = $region49
                $region54: #{shading_net_forward.18} parent=46 // loop_exit
                  _
              $region47: #{shading_net_forward.18} parent=31 // pred_fallthru
                _
              // Predicated region
              $region55: #{shading_net_forward.18} parent=31 // pred_check
                _
              $region56: #{shading_net_forward.18} parent=31 // pred_check_branch
                %319 = sbr.rel target = $region58
              $region57: #{shading_net_forward.18} parent=31 // pred_region
                _
              $region58: #{shading_net_forward.18} parent=31 // pred_fallthru
                _
            $region32: #{shading_net_forward.18} parent=27 // pred_fallthru
              _
            // Predicated region
            $region33: #{shading_net_forward.18} parent=27 // pred_check
              _
            $region34: #{shading_net_forward.18} parent=27 // pred_check_branch
              %169 = sbr.rel target = $region36
            $region35: #{shading_net_forward.18} parent=27 // pred_region
              %s171 = ssub.s32 256, 1
              loop: start=0, step=1, limit=1
              $region37: #{shading_net_forward.18} parent=35 // loop_pre_header
                _
              $region38: #{shading_net_forward.18} parent=35 // loop_header
                %s173 = sphi 0, %s177
                %p174 = scmp.ge.s32.totalorder %s173, 1
                %s178 = sphi %s163, %s163
                %s179 = sphi %s160, %s160
              $region39: #{shading_net_forward.18} parent=35 // loop_header_branch
                %176 = sbr.rel (%p174) target = $region43
              $region40: #{shading_net_forward.18} parent=35 // loop_body
                %v180 = vld [vmem:[%s178] sm:%s171]
                %181 = vst [vmem:[%s179] sm:%s171] %v180
                %v182 = vld [vmem:[%s178 + $0x10] sm:%s171]
                %183 = vst [vmem:[%s179 + $0x8] sm:%s171] %v182
                %v184 = vld [vmem:[%s178 + $0x20] sm:%s171]
                %185 = vst [vmem:[%s179 + $0x10] sm:%s171] %v184
                %v186 = vld [vmem:[%s178 + $0x30] sm:%s171]
                %187 = vst [vmem:[%s179 + $0x18] sm:%s171] %v186
                %v188 = vld [vmem:[%s178 + $0x40] sm:%s171]
                %189 = vst [vmem:[%s179 + $0x20] sm:%s171] %v188
                %v190 = vld [vmem:[%s178 + $0x50] sm:%s171]
                %191 = vst [vmem:[%s179 + $0x28] sm:%s171] %v190
                %v192 = vld [vmem:[%s178 + $0x60] sm:%s171]
                %193 = vst [vmem:[%s179 + $0x30] sm:%s171] %v192
                %v194 = vld [vmem:[%s178 + $0x70] sm:%s171]
                %195 = vst [vmem:[%s179 + $0x38] sm:%s171] %v194
                %v196 = vld [vmem:[%s178 + $0x80] sm:%s171]
                %197 = vst [vmem:[%s179 + $0x40] sm:%s171] %v196
                %v198 = vld [vmem:[%s178 + $0x90] sm:%s171]
                %199 = vst [vmem:[%s179 + $0x48] sm:%s171] %v198
                %v200 = vld [vmem:[%s178 + $0xa0] sm:%s171]
                %201 = vst [vmem:[%s179 + $0x50] sm:%s171] %v200
                %v202 = vld [vmem:[%s178 + $0xb0] sm:%s171]
                %203 = vst [vmem:[%s179 + $0x58] sm:%s171] %v202
                %v204 = vld [vmem:[%s178 + $0xc0] sm:%s171]
                %205 = vst [vmem:[%s179 + $0x60] sm:%s171] %v204
                %v206 = vld [vmem:[%s178 + $0xd0] sm:%s171]
                %207 = vst [vmem:[%s179 + $0x68] sm:%s171] %v206
                %v208 = vld [vmem:[%s178 + $0xe0] sm:%s171]
                %209 = vst [vmem:[%s179 + $0x70] sm:%s171] %v208
                %v210 = vld [vmem:[%s178 + $0xf0] sm:%s171]
                %211 = vst [vmem:[%s179 + $0x78] sm:%s171] %v210
                %v212 = vld [vmem:[%s178 + $0x100] sm:%s171]
                %213 = vst [vmem:[%s179 + $0x80] sm:%s171] %v212
                %v214 = vld [vmem:[%s178 + $0x110] sm:%s171]
                %215 = vst [vmem:[%s179 + $0x88] sm:%s171] %v214
                %v216 = vld [vmem:[%s178 + $0x120] sm:%s171]
                %217 = vst [vmem:[%s179 + $0x90] sm:%s171] %v216
                %v218 = vld [vmem:[%s178 + $0x130] sm:%s171]
                %219 = vst [vmem:[%s179 + $0x98] sm:%s171] %v218
                %v220 = vld [vmem:[%s178 + $0x140] sm:%s171]
                %221 = vst [vmem:[%s179 + $0xa0] sm:%s171] %v220
                %v222 = vld [vmem:[%s178 + $0x150] sm:%s171]
                %223 = vst [vmem:[%s179 + $0xa8] sm:%s171] %v222
                %v224 = vld [vmem:[%s178 + $0x160] sm:%s171]
                %225 = vst [vmem:[%s179 + $0xb0] sm:%s171] %v224
                %v226 = vld [vmem:[%s178 + $0x170] sm:%s171]
                %227 = vst [vmem:[%s179 + $0xb8] sm:%s171] %v226
                %v228 = vld [vmem:[%s178 + $0x180] sm:%s171]
                %229 = vst [vmem:[%s179 + $0xc0] sm:%s171] %v228
                %v230 = vld [vmem:[%s178 + $0x190] sm:%s171]
                %231 = vst [vmem:[%s179 + $0xc8] sm:%s171] %v230
                %v232 = vld [vmem:[%s178 + $0x1a0] sm:%s171]
                %233 = vst [vmem:[%s179 + $0xd0] sm:%s171] %v232
                %v234 = vld [vmem:[%s178 + $0x1b0] sm:%s171]
                %235 = vst [vmem:[%s179 + $0xd8] sm:%s171] %v234
                %v236 = vld [vmem:[%s178 + $0x1c0] sm:%s171]
                %237 = vst [vmem:[%s179 + $0xe0] sm:%s171] %v236
                %v238 = vld [vmem:[%s178 + $0x1d0] sm:%s171]
                %239 = vst [vmem:[%s179 + $0xe8] sm:%s171] %v238
                %v240 = vld [vmem:[%s178 + $0x1e0] sm:%s171]
                %241 = vst [vmem:[%s179 + $0xf0] sm:%s171] %v240
                %v242 = vld [vmem:[%s178 + $0x1f0] sm:%s171]
                %243 = vst [vmem:[%s179 + $0xf8] sm:%s171] %v242
              $region41: #{shading_net_forward.18} parent=35 // loop_footer
                %s177 = sadd.s32 1, %s173
              $region42: #{shading_net_forward.18} parent=35 // loop_footer_branch
                %172 = sbr.rel target = $region38
              $region43: #{shading_net_forward.18} parent=35 // loop_exit
                _
            $region36: #{shading_net_forward.18} parent=27 // pred_fallthru
              _
          $region28: #{shading_net_forward.18} parent=23 // pred_fallthru
            _
          %320 = vnop
        $region24: #{shading_net_forward.18} parent=19 // pred_fallthru
          _
        // Predicated region
        $region59: #{shading_net_forward.18} parent=19 // pred_check
          %p321 = pneg %p93
        $region60: #{shading_net_forward.18} parent=19 // pred_check_branch
          %323 = sbr.rel (%p321) target = $region62
        $region61: #{shading_net_forward.18} parent=19 // pred_region
          %s324 = smul.u32 2, %s17
          %p325 = scmp.lt.s32.totalorder %s324, 3
          %s326 = scalar_select %p325, %s324, 3
          %s327 = scalar_lea.vmem %s2, %s326
          %s328 = smul.u32 2, %s17
        $region62: #{shading_net_forward.18} parent=19 // pred_fallthru
          _
      $region20: #{shading_net_forward.18} parent=5 // pred_fallthru
        _
      %p329 = scmp.le.s32.totalorder 1, %s9
      %p330 = scmp.lt.s32.totalorder %s9, 3
      %p331 = pnand %p329, %p330
      %p332 = pneg %p331
      // Predicated region
      $region63: #{shading_net_forward.18} parent=5 // pred_check
        _
      $region64: #{shading_net_forward.18} parent=5 // pred_check_branch
        %334 = sbr.rel (%p331) target = $region66
      $region65: #{shading_net_forward.18} parent=5 // pred_region
        %s335 = ssub.s32 %s9, 1
        %s336 = sand.u32 %s60, 1
        %s337 = sand.u32 %s60, 1
        %s338 = smul.addr %s337, 256
        %s339 = scalar_lea.vmem [#allocation2], %s338
        // Predicated region
        $region67: #{shading_net_forward.18} parent=65 // pred_check
          %p340 = pneg %p73
        $region68: #{shading_net_forward.18} parent=65 // pred_check_branch
          %342 = sbr.rel (%p340) target = $region70
        $region69: #{shading_net_forward.18} parent=65 // pred_region
          _
        $region70: #{shading_net_forward.18} parent=65 // pred_fallthru
          _
        %p343 = scmp.lt.s32.totalorder %s18, 0
        %s344 = scalar_select %p343, %s18, 0
        %s345 = smul.addr %s344, 2
        %s346 = smul.addr %s345, 4
        %s347 = scalar_lea.vmem %s0, %s346
        %p348 = pneg %p47
        %p349 = pneg %p44
        %s350 = sand.u32 %s60, 1
        %s351 = sand.u32 %s60, 1
        %s352 = smul.addr %s351, 256
        %s353 = scalar_lea.vmem [#allocation2], %s352
        %p354 = pneg %p73
        %p355 = pneg %p70
        %s356 = smul.u32 2, %s19
        %p357 = scmp.lt.s32.totalorder %s356, 3
        %s358 = scalar_select %p357, %s356, 3
        %s359 = scalar_lea.vmem %s2, %s358
        %p360 = pneg %p99
        %p361 = pneg %p96
        %p362 = pneg %p127
        %p363 = pneg %p124
        %s364 = smul.u32 2, %s19
        %p365 = scmp.lt.s32.totalorder %s18, 0
        %s366 = scalar_select %p365, %s18, 0
        %p367 = scmp.lt.s32.totalorder %s364, 3
        %s368 = scalar_select %p367, %s364, 3
        %s369 = smul.addr %s366, 4
        %s370 = sadd.s32 %s368, %s369
        %s371 = smul.addr %s370, 4
        %s372 = scalar_lea.vmem %s3, %s371
        %p373 = scmp.lt.s32.totalorder %s18, 0
        %s374 = scalar_select %p373, %s18, 0
        %s375 = smul.addr %s374, 2
        %s376 = smul.addr %s375, 4
        %s377 = scalar_lea.vmem %s0, %s376
        %s378 = smul.u32 2, %s19
        %s379 = smul.u32 2, %s19
        %p380 = scmp.lt.s32.totalorder %s379, 3
        %s381 = scalar_select %p380, %s379, 3
        %s382 = scalar_lea.vmem %s2, %s381
        %s383 = smul.u32 2, %s19
        %s384 = smul.u32 2, %s19
        %p385 = scmp.lt.s32.totalorder %s18, 0
        %s386 = scalar_select %p385, %s18, 0
        %p387 = scmp.lt.s32.totalorder %s384, 3
        %s388 = scalar_select %p387, %s384, 3
        %s389 = smul.addr %s386, 4
        %s390 = sadd.s32 %s388, %s389
        %s391 = smul.addr %s390, 4
        %s392 = scalar_lea.vmem %s3, %s391
        %s393 = smul.u32 2, %s19
        %v394 = vld [vmem:[%s377] sm:$0xff]
        %v395 = vld [vmem:[%s339] sm:$0xff]
        %v396 = vld [vmem:[%s339 + $0x8] sm:$0xff]
        %v397 = vld [vmem:[%s339 + $0x10] sm:$0xff]
        %v398 = vld [vmem:[%s339 + $0x18] sm:$0xff]
        %v399 = vld [vmem:[%s339 + $0x20] sm:$0xff]
        %v400 = vld [vmem:[%s339 + $0x28] sm:$0xff]
        %v401 = vld [vmem:[%s339 + $0x30] sm:$0xff]
        %v402 = vld [vmem:[%s339 + $0x38] sm:$0xff]
        %v403 = vld [vmem:[%s339 + $0x40] sm:$0xff]
        %v404 = vld [vmem:[%s339 + $0x48] sm:$0xff]
        %v405 = vld [vmem:[%s339 + $0x50] sm:$0xff]
        %v406 = vld [vmem:[%s339 + $0x58] sm:$0xff]
        %v407 = vld [vmem:[%s339 + $0x60] sm:$0xff]
        %v408 = vld [vmem:[%s339 + $0x68] sm:$0xff]
        %v409 = vld [vmem:[%s339 + $0x70] sm:$0xff]
        %v410 = vld [vmem:[%s339 + $0x78] sm:$0xff]
        %v411 = vld [vmem:[%s339 + $0x80] sm:$0xff]
        %v412 = vld [vmem:[%s339 + $0x88] sm:$0xff]
        %v413 = vld [vmem:[%s339 + $0x90] sm:$0xff]
        %v414 = vld [vmem:[%s339 + $0x98] sm:$0xff]
        %v415 = vld [vmem:[%s339 + $0xa0] sm:$0xff]
        %v416 = vld [vmem:[%s339 + $0xa8] sm:$0xff]
        %v417 = vld [vmem:[%s339 + $0xb0] sm:$0xff]
        %v418 = vld [vmem:[%s339 + $0xb8] sm:$0xff]
        %v419 = vld [vmem:[%s339 + $0xc0] sm:$0xff]
        %v420 = vld [vmem:[%s339 + $0xc8] sm:$0xff]
        %v421 = vld [vmem:[%s339 + $0xd0] sm:$0xff]
        %v422 = vld [vmem:[%s339 + $0xd8] sm:$0xff]
        %v423 = vld [vmem:[%s339 + $0xe0] sm:$0xff]
        %v424 = vld [vmem:[%s339 + $0xe8] sm:$0xff]
        %v425 = vld [vmem:[%s339 + $0xf0] sm:$0xff]
        %v426 = vld [vmem:[%s339 + $0xf8] sm:$0xff]
        %v427 = vld [vmem:[%s382] sm:$0x3]
        %v429 = vperm.slane %v427, 0
        %v430 = vperm.slane %v427, 1
        %v434 = vunpack.c.l.b16 %v394
        %v435 = vunpack.c.h.b16 %v394
        %v436 = vpack.c.b16 %v434, %v434
        %v437 = vpack.c.b16 %v435, %v435
        %v472 = vunpack.c.l.b16 %v395
        %v473 = vunpack.c.h.b16 %v395
        %v474 = vunpack.c.l.b16 %v396
        %v475 = vunpack.c.h.b16 %v396
        %v476 = vunpack.c.l.b16 %v397
        %v477 = vunpack.c.h.b16 %v397
        %v478 = vunpack.c.l.b16 %v398
        %v479 = vunpack.c.h.b16 %v398
        %v480 = vunpack.c.l.b16 %v399
        %v481 = vunpack.c.h.b16 %v399
        %v482 = vunpack.c.l.b16 %v400
        %v483 = vunpack.c.h.b16 %v400
        %v484 = vunpack.c.l.b16 %v401
        %v485 = vunpack.c.h.b16 %v401
        %v486 = vunpack.c.l.b16 %v402
        %v487 = vunpack.c.h.b16 %v402
        %v488 = vunpack.c.l.b16 %v403
        %v489 = vunpack.c.h.b16 %v403
        %v490 = vunpack.c.l.b16 %v404
        %v491 = vunpack.c.h.b16 %v404
        %v492 = vunpack.c.l.b16 %v405
        %v493 = vunpack.c.h.b16 %v405
        %v494 = vunpack.c.l.b16 %v406
        %v495 = vunpack.c.h.b16 %v406
        %v496 = vunpack.c.l.b16 %v407
        %v497 = vunpack.c.h.b16 %v407
        %v498 = vunpack.c.l.b16 %v408
        %v499 = vunpack.c.h.b16 %v408
        %v500 = vunpack.c.l.b16 %v409
        %v501 = vunpack.c.h.b16 %v409
        %v502 = vunpack.c.l.b16 %v410
        %v503 = vunpack.c.h.b16 %v410
        %v504 = vunpack.c.l.b16 %v411
        %v505 = vunpack.c.h.b16 %v411
        %v506 = vunpack.c.l.b16 %v412
        %v507 = vunpack.c.h.b16 %v412
        %v508 = vunpack.c.l.b16 %v413
        %v509 = vunpack.c.h.b16 %v413
        %v510 = vunpack.c.l.b16 %v414
        %v511 = vunpack.c.h.b16 %v414
        %v512 = vunpack.c.l.b16 %v415
        %v513 = vunpack.c.h.b16 %v415
        %v514 = vunpack.c.l.b16 %v416
        %v515 = vunpack.c.h.b16 %v416
        %v516 = vunpack.c.l.b16 %v417
        %v517 = vunpack.c.h.b16 %v417
        %v518 = vunpack.c.l.b16 %v418
        %v519 = vunpack.c.h.b16 %v418
        %v520 = vunpack.c.l.b16 %v419
        %v521 = vunpack.c.h.b16 %v419
        %v522 = vunpack.c.l.b16 %v420
        %v523 = vunpack.c.h.b16 %v420
        %v524 = vunpack.c.l.b16 %v421
        %v525 = vunpack.c.h.b16 %v421
        %v526 = vunpack.c.l.b16 %v422
        %v527 = vunpack.c.h.b16 %v422
        %v528 = vunpack.c.l.b16 %v423
        %v529 = vunpack.c.h.b16 %v423
        %v530 = vunpack.c.l.b16 %v424
        %v531 = vunpack.c.h.b16 %v424
        %v532 = vunpack.c.l.b16 %v425
        %v533 = vunpack.c.h.b16 %v425
        %v534 = vunpack.c.l.b16 %v426
        %v535 = vunpack.c.h.b16 %v426
        %v536 = vpack.c.b16 %v474, %v472
        %v537 = vpack.c.b16 %v475, %v473
        %v538 = vpack.c.b16 %v478, %v476
        %v539 = vpack.c.b16 %v479, %v477
        %v540 = vpack.c.b16 %v482, %v480
        %v541 = vpack.c.b16 %v483, %v481
        %v542 = vpack.c.b16 %v486, %v484
        %v543 = vpack.c.b16 %v487, %v485
        %v544 = vpack.c.b16 %v490, %v488
        %v545 = vpack.c.b16 %v491, %v489
        %v546 = vpack.c.b16 %v494, %v492
        %v547 = vpack.c.b16 %v495, %v493
        %v548 = vpack.c.b16 %v498, %v496
        %v549 = vpack.c.b16 %v499, %v497
        %v550 = vpack.c.b16 %v502, %v500
        %v551 = vpack.c.b16 %v503, %v501
        %v552 = vpack.c.b16 %v506, %v504
        %v553 = vpack.c.b16 %v507, %v505
        %v554 = vpack.c.b16 %v510, %v508
        %v555 = vpack.c.b16 %v511, %v509
        %v556 = vpack.c.b16 %v514, %v512
        %v557 = vpack.c.b16 %v515, %v513
        %v558 = vpack.c.b16 %v518, %v516
        %v559 = vpack.c.b16 %v519, %v517
        %v560 = vpack.c.b16 %v522, %v520
        %v561 = vpack.c.b16 %v523, %v521
        %v562 = vpack.c.b16 %v526, %v524
        %v563 = vpack.c.b16 %v527, %v525
        %v564 = vpack.c.b16 %v530, %v528
        %v565 = vpack.c.b16 %v531, %v529
        %v566 = vpack.c.b16 %v534, %v532
        %v567 = vpack.c.b16 %v535, %v533
        %600 = vmatpush.bf16.msra.mxu0 %v550
        %601 = vmatpush.bf16.msra.mxu0 %v548
        %602 = vmatpush.bf16.msra.mxu0 %v546
        %603 = vmatpush.bf16.msra.mxu0 %v544
        %604 = vmatpush.bf16.msra.mxu0 %v542
        %605 = vmatpush.bf16.msra.mxu0 %v540
        %606 = vmatpush.bf16.msra.mxu0 %v538
        %607 = vmatpush.bf16.msra.mxu0 %v536
        %608 = vmatmul.bf16.gmra.mxu0 %v436
        %v609 = vpop.f32.mrf.mxu0
        %v610 = vadd.f32 %v429, %v609
        %v611 = vpop.f32.mrf.mxu0
        %612 = vdwg.mxu0
        %613 = vmatpush.bf16.msra.mxu0 %v566
        %614 = vmatpush.bf16.msra.mxu0 %v564
        %615 = vmatpush.bf16.msra.mxu0 %v562
        %616 = vmatpush.bf16.msra.mxu0 %v560
        %617 = vmatpush.bf16.msra.mxu0 %v558
        %618 = vmatpush.bf16.msra.mxu0 %v556
        %619 = vmatpush.bf16.msra.mxu0 %v554
        %620 = vmatpush.bf16.msra.mxu0 %v552
        %621 = vmatmul.bf16.gmra.mxu0 %v437
        %v622 = vpop.f32.mrf.mxu0
        %v623 = vadd.f32 %v610, %v622
        %v624 = vpop.f32.mrf.mxu0
        %625 = vdwg.mxu0
        %626 = vmatpush.bf16.msra.mxu0 %v551
        %627 = vmatpush.bf16.msra.mxu0 %v549
        %628 = vmatpush.bf16.msra.mxu0 %v547
        %629 = vmatpush.bf16.msra.mxu0 %v545
        %630 = vmatpush.bf16.msra.mxu0 %v543
        %631 = vmatpush.bf16.msra.mxu0 %v541
        %632 = vmatpush.bf16.msra.mxu0 %v539
        %633 = vmatpush.bf16.msra.mxu0 %v537
        %634 = vmatmul.bf16.gmra.mxu0 %v436
        %v635 = vpop.f32.mrf.mxu0
        %v636 = vadd.f32 %v430, %v635
        %v637 = vpop.f32.mrf.mxu0
        %638 = vdwg.mxu0
        %639 = vmatpush.bf16.msra.mxu0 %v567
        %640 = vmatpush.bf16.msra.mxu0 %v565
        %641 = vmatpush.bf16.msra.mxu0 %v563
        %642 = vmatpush.bf16.msra.mxu0 %v561
        %643 = vmatpush.bf16.msra.mxu0 %v559
        %644 = vmatpush.bf16.msra.mxu0 %v557
        %645 = vmatpush.bf16.msra.mxu0 %v555
        %646 = vmatpush.bf16.msra.mxu0 %v553
        %647 = vmatmul.bf16.gmra.mxu0 %v437
        %v648 = vpop.f32.mrf.mxu0
        %v649 = vadd.f32 %v636, %v648
        %v650 = vpop.f32.mrf.mxu0
        %651 = vdwg.mxu0
        %v652 = vmax.f32 %v623, 0.0
        %v653 = vmax.f32 %v649, 0.0
        %v654 = vpack.c.bf16 %v653, %v652
        %655 = vst [vmem:[%s392] sm:$0xff] %v654
        %s656 = smul.u32 2, %s19
        %p657 = scmp.lt.s32.totalorder %s18, 0
        %s658 = scalar_select %p657, %s18, 0
        %p659 = scmp.lt.s32.totalorder %s656, 3
        %s660 = scalar_select %p659, %s656, 3
        %s661 = smul.addr %s658, 4
        %s662 = sadd.s32 %s660, %s661
        %s663 = smul.addr %s662, 4
        %s664 = scalar_lea.vmem %s3, %s663
        // Predicated region
        $region71: #{shading_net_forward.18} parent=65 // pred_check
          %p665 = pneg %p124
        $region72: #{shading_net_forward.18} parent=65 // pred_check_branch
          %667 = sbr.rel (%p665) target = $region74
        $region73: #{shading_net_forward.18} parent=65 // pred_region
          %s668 = smul.u32 2, %s19
        $region74: #{shading_net_forward.18} parent=65 // pred_fallthru
          _
      $region66: #{shading_net_forward.18} parent=5 // pred_fallthru
        _
      %p669 = scmp.le.s32.totalorder 2, %s9
      // Predicated region
      $region75: #{shading_net_forward.18} parent=5 // pred_check
        %p670 = pneg %p669
      $region76: #{shading_net_forward.18} parent=5 // pred_check_branch
        %672 = sbr.rel (%p670) target = $region78
      $region77: #{shading_net_forward.18} parent=5 // pred_region
        %s673 = ssub.s32 %s9, 2
        // Predicated region
        $region79: #{shading_net_forward.18} parent=77 // pred_check
          %p674 = pneg %p130
        $region80: #{shading_net_forward.18} parent=77 // pred_check_branch
          %676 = sbr.rel (%p674) target = $region82
        $region81: #{shading_net_forward.18} parent=77 // pred_region
          %s677 = smul.u32 2, %s21
          %p678 = scmp.lt.s32.totalorder %s20, 0
          %s679 = scalar_select %p678, %s20, 0
          %p680 = scmp.lt.s32.totalorder %s677, 3
          %s681 = scalar_select %p680, %s677, 3
          %s682 = smul.addr %s679, 4
          %s683 = sadd.s32 %s681, %s682
          %s684 = smul.addr %s683, 4
          %s685 = scalar_lea.vmem %s3, %s684
        $region82: #{shading_net_forward.18} parent=77 // pred_fallthru
          _
      $region78: #{shading_net_forward.18} parent=5 // pred_fallthru
        _
    $region6: #{shading_net_forward.18} parent=1 // loop_footer
      %s13 = sadd.s32 1, %s9
    $region7: #{shading_net_forward.18} parent=1 // loop_footer_branch
      %8 = sbr.rel target = $region3
    $region8: #{shading_net_forward.18} parent=1 // loop_exit
      _

// kernel: shading_net_forward.15
$region0: #{shading_net_forward.15}
  #allocation0 [shape = 'u32[]', space=smem, size = 0x4, offset = 0x4, fixed_abs, tag = 'smem constant byte address 0x4 - core index']
  #allocation1 [shape = 'u32[72,128]{1,0:T(1,128)}', space=vmem, size = 0x9000, scoped, tag = 'internal scratch']
  %s0 = inlined_call_operand.vmem [shape: bf16[8,1024], index: 0, kind: input, shape index: {}]
  %s1 = inlined_call_operand.vmem [shape: bf16[1024,128], index: 1, kind: input, shape index: {}]
  %s2 = inlined_call_operand.vmem [shape: f32[1,128], index: 2, kind: input, shape index: {}]
  %s3 = inlined_call_operand.vmem [shape: bf16[8,128], index: 3, kind: output, shape index: {}]
  %s4 = sld [smem:[#allocation0]]
  $region22: #{shading_net_forward.15} parent=0
    _
  %s6 = ssub.s32 1, %s4
  %s7 = scalar_select 0, %s6, %s4
  // Predicated region
  $region2: #{shading_net_forward.15} parent=0 // pred_check
    _
  $region3: #{shading_net_forward.15} parent=0 // pred_check_branch
    %9 = sbr.rel (0) target = $region5
  $region4: #{shading_net_forward.15} parent=0 // pred_region
    _
  $region5: #{shading_net_forward.15} parent=0 // pred_fallthru
    _
  // Predicated region
  $region6: #{shading_net_forward.15} parent=0 // pred_check
    _
  $region7: #{shading_net_forward.15} parent=0 // pred_check_branch
    %11 = sbr.rel (0) target = $region9
  $region8: #{shading_net_forward.15} parent=0 // pred_region
    _
  $region9: #{shading_net_forward.15} parent=0 // pred_fallthru
    _
  // Predicated region
  $region10: #{shading_net_forward.15} parent=0 // pred_check
    _
  $region11: #{shading_net_forward.15} parent=0 // pred_check_branch
    %13 = sbr.rel (0) target = $region13
  $region12: #{shading_net_forward.15} parent=0 // pred_region
    _
  $region13: #{shading_net_forward.15} parent=0 // pred_fallthru
    _
  %v14 = vld [vmem:[%s0] sm:$0xff]
  %v15 = vld [vmem:[%s0 + $0x8] sm:$0xff]
  %v16 = vld [vmem:[%s0 + $0x10] sm:$0xff]
  %v17 = vld [vmem:[%s0 + $0x18] sm:$0xff]
  %v18 = vld [vmem:[%s1] sm:$0xf]
  %v19 = vld [vmem:[%s1 + $0x4] sm:$0xf]
  %v20 = vld [vmem:[%s1 + $0x8] sm:$0xf]
  %v21 = vld [vmem:[%s1 + $0xc] sm:$0xf]
  %v22 = vld [vmem:[%s1 + $0x10] sm:$0xf]
  %v23 = vld [vmem:[%s1 + $0x14] sm:$0xf]
  %v24 = vld [vmem:[%s1 + $0x18] sm:$0xf]
  %v25 = vld [vmem:[%s1 + $0x1c] sm:$0xf]
  %v26 = vld [vmem:[%s1 + $0x20] sm:$0xf]
  %v27 = vld [vmem:[%s1 + $0x24] sm:$0xf]
  %v28 = vld [vmem:[%s1 + $0x28] sm:$0xf]
  %v29 = vld [vmem:[%s1 + $0x2c] sm:$0xf]
  %v30 = vld [vmem:[%s1 + $0x30] sm:$0xf]
  %v31 = vld [vmem:[%s1 + $0x34] sm:$0xf]
  %v32 = vld [vmem:[%s1 + $0x38] sm:$0xf]
  %v33 = vld [vmem:[%s1 + $0x3c] sm:$0xf]
  %v34 = vld [vmem:[%s1 + $0x40] sm:$0xf]
  %v35 = vld [vmem:[%s1 + $0x44] sm:$0xf]
  %v36 = vld [vmem:[%s1 + $0x48] sm:$0xf]
  %v37 = vld [vmem:[%s1 + $0x4c] sm:$0xf]
  %v38 = vld [vmem:[%s1 + $0x50] sm:$0xf]
  %v39 = vld [vmem:[%s1 + $0x54] sm:$0xf]
  %v40 = vld [vmem:[%s1 + $0x58] sm:$0xf]
  %v41 = vld [vmem:[%s1 + $0x5c] sm:$0xf]
  %v42 = vld [vmem:[%s1 + $0x60] sm:$0xf]
  %v43 = vld [vmem:[%s1 + $0x64] sm:$0xf]
  %v44 = vld [vmem:[%s1 + $0x68] sm:$0xf]
  %v45 = vld [vmem:[%s1 + $0x6c] sm:$0xf]
  %v46 = vld [vmem:[%s1 + $0x70] sm:$0xf]
  %v47 = vld [vmem:[%s1 + $0x74] sm:$0xf]
  %v48 = vld [vmem:[%s1 + $0x78] sm:$0xf]
  %v49 = vld [vmem:[%s1 + $0x7c] sm:$0xf]
  %v50 = vld [vmem:[%s1 + $0x80] sm:$0xf]
  %v51 = vld [vmem:[%s1 + $0x84] sm:$0xf]
  %v52 = vld [vmem:[%s1 + $0x88] sm:$0xf]
  %v53 = vld [vmem:[%s1 + $0x8c] sm:$0xf]
  %v54 = vld [vmem:[%s1 + $0x90] sm:$0xf]
  %v55 = vld [vmem:[%s1 + $0x94] sm:$0xf]
  %v56 = vld [vmem:[%s1 + $0x98] sm:$0xf]
  %v57 = vld [vmem:[%s1 + $0x9c] sm:$0xf]
  %v58 = vld [vmem:[%s1 + $0xa0] sm:$0xf]
  %v59 = vld [vmem:[%s1 + $0xa4] sm:$0xf]
  %v60 = vld [vmem:[%s1 + $0xa8] sm:$0xf]
  %v61 = vld [vmem:[%s1 + $0xac] sm:$0xf]
  %v62 = vld [vmem:[%s1 + $0xb0] sm:$0xf]
  %v63 = vld [vmem:[%s1 + $0xb4] sm:$0xf]
  %v64 = vld [vmem:[%s1 + $0xb8] sm:$0xf]
  %v65 = vld [vmem:[%s1 + $0xbc] sm:$0xf]
  %v66 = vld [vmem:[%s1 + $0xc0] sm:$0xf]
  %v67 = vld [vmem:[%s1 + $0xc4] sm:$0xf]
  %v68 = vld [vmem:[%s1 + $0xc8] sm:$0xf]
  %v69 = vld [vmem:[%s1 + $0xcc] sm:$0xf]
  %v70 = vld [vmem:[%s1 + $0xd0] sm:$0xf]
  %v71 = vld [vmem:[%s1 + $0xd4] sm:$0xf]
  %v72 = vld [vmem:[%s1 + $0xd8] sm:$0xf]
  %v73 = vld [vmem:[%s1 + $0xdc] sm:$0xf]
  %v74 = vld [vmem:[%s1 + $0xe0] sm:$0xf]
  %v75 = vld [vmem:[%s1 + $0xe4] sm:$0xf]
  %v76 = vld [vmem:[%s1 + $0xe8] sm:$0xf]
  %v77 = vld [vmem:[%s1 + $0xec] sm:$0xf]
  %v78 = vld [vmem:[%s1 + $0xf0] sm:$0xf]
  %v79 = vld [vmem:[%s1 + $0xf4] sm:$0xf]
  %v80 = vld [vmem:[%s1 + $0xf8] sm:$0xf]
  %v81 = vld [vmem:[%s1 + $0xfc] sm:$0xf]
  %v82 = vld [vmem:[%s1 + $0x100] sm:$0xf]
  %v83 = vld [vmem:[%s1 + $0x104] sm:$0xf]
  %v84 = vld [vmem:[%s1 + $0x108] sm:$0xf]
  %v85 = vld [vmem:[%s1 + $0x10c] sm:$0xf]
  %v86 = vld [vmem:[%s1 + $0x110] sm:$0xf]
  %v87 = vld [vmem:[%s1 + $0x114] sm:$0xf]
  %v88 = vld [vmem:[%s1 + $0x118] sm:$0xf]
  %v89 = vld [vmem:[%s1 + $0x11c] sm:$0xf]
  %v90 = vld [vmem:[%s1 + $0x120] sm:$0xf]
  %v91 = vld [vmem:[%s1 + $0x124] sm:$0xf]
  %v92 = vld [vmem:[%s1 + $0x128] sm:$0xf]
  %v93 = vld [vmem:[%s1 + $0x12c] sm:$0xf]
  %v94 = vld [vmem:[%s1 + $0x130] sm:$0xf]
  %v95 = vld [vmem:[%s1 + $0x134] sm:$0xf]
  %v96 = vld [vmem:[%s1 + $0x138] sm:$0xf]
  %v97 = vld [vmem:[%s1 + $0x13c] sm:$0xf]
  %v98 = vld [vmem:[%s1 + $0x140] sm:$0xf]
  %v99 = vld [vmem:[%s1 + $0x144] sm:$0xf]
  %v100 = vld [vmem:[%s1 + $0x148] sm:$0xf]
  %v101 = vld [vmem:[%s1 + $0x14c] sm:$0xf]
  %v102 = vld [vmem:[%s1 + $0x150] sm:$0xf]
  %v103 = vld [vmem:[%s1 + $0x154] sm:$0xf]
  %v104 = vld [vmem:[%s1 + $0x158] sm:$0xf]
  %v105 = vld [vmem:[%s1 + $0x15c] sm:$0xf]
  %v106 = vld [vmem:[%s1 + $0x160] sm:$0xf]
  %v107 = vld [vmem:[%s1 + $0x164] sm:$0xf]
  %v108 = vld [vmem:[%s1 + $0x168] sm:$0xf]
  %v109 = vld [vmem:[%s1 + $0x16c] sm:$0xf]
  %v110 = vld [vmem:[%s1 + $0x170] sm:$0xf]
  %v111 = vld [vmem:[%s1 + $0x174] sm:$0xf]
  %v112 = vld [vmem:[%s1 + $0x178] sm:$0xf]
  %v113 = vld [vmem:[%s1 + $0x17c] sm:$0xf]
  %v114 = vld [vmem:[%s1 + $0x180] sm:$0xf]
  %v115 = vld [vmem:[%s1 + $0x184] sm:$0xf]
  %v116 = vld [vmem:[%s1 + $0x188] sm:$0xf]
  %v117 = vld [vmem:[%s1 + $0x18c] sm:$0xf]
  %v118 = vld [vmem:[%s1 + $0x190] sm:$0xf]
  %v119 = vld [vmem:[%s1 + $0x194] sm:$0xf]
  %v120 = vld [vmem:[%s1 + $0x198] sm:$0xf]
  %v121 = vld [vmem:[%s1 + $0x19c] sm:$0xf]
  %v122 = vld [vmem:[%s1 + $0x1a0] sm:$0xf]
  %v123 = vld [vmem:[%s1 + $0x1a4] sm:$0xf]
  %v124 = vld [vmem:[%s1 + $0x1a8] sm:$0xf]
  %v125 = vld [vmem:[%s1 + $0x1ac] sm:$0xf]
  %v126 = vld [vmem:[%s1 + $0x1b0] sm:$0xf]
  %v127 = vld [vmem:[%s1 + $0x1b4] sm:$0xf]
  %v128 = vld [vmem:[%s1 + $0x1b8] sm:$0xf]
  %v129 = vld [vmem:[%s1 + $0x1bc] sm:$0xf]
  %v130 = vld [vmem:[%s1 + $0x1c0] sm:$0xf]
  %v131 = vld [vmem:[%s1 + $0x1c4] sm:$0xf]
  %v132 = vld [vmem:[%s1 + $0x1c8] sm:$0xf]
  %v133 = vld [vmem:[%s1 + $0x1cc] sm:$0xf]
  %v134 = vld [vmem:[%s1 + $0x1d0] sm:$0xf]
  %v135 = vld [vmem:[%s1 + $0x1d4] sm:$0xf]
  %v136 = vld [vmem:[%s1 + $0x1d8] sm:$0xf]
  %v137 = vld [vmem:[%s1 + $0x1dc] sm:$0xf]
  %v138 = vld [vmem:[%s1 + $0x1e0] sm:$0xf]
  %v139 = vld [vmem:[%s1 + $0x1e4] sm:$0xf]
  %v140 = vld [vmem:[%s1 + $0x1e8] sm:$0xf]
  %v141 = vld [vmem:[%s1 + $0x1ec] sm:$0xf]
  %v142 = vld [vmem:[%s1 + $0x1f0] sm:$0xf]
  %v143 = vld [vmem:[%s1 + $0x1f4] sm:$0xf]
  %v144 = vld [vmem:[%s1 + $0x1f8] sm:$0xf]
  %v145 = vld [vmem:[%s1 + $0x1fc] sm:$0xf]
  %v146 = vld [vmem:[%s2] sm:$0x1]
  %v148 = vperm.slane %v146, 0
  %v154 = vunpack.c.l.b16 %v14
  %v155 = vunpack.c.h.b16 %v14
  %v156 = vunpack.c.l.b16 %v15
  %v157 = vunpack.c.h.b16 %v15
  %v158 = vunpack.c.l.b16 %v16
  %v159 = vunpack.c.h.b16 %v16
  %v160 = vunpack.c.l.b16 %v17
  %v161 = vunpack.c.h.b16 %v17
  %v162 = vpack.c.b16 %v154, %v154
  %v163 = vpack.c.b16 %v155, %v155
  %v164 = vpack.c.b16 %v156, %v156
  %v165 = vpack.c.b16 %v157, %v157
  %v166 = vpack.c.b16 %v158, %v158
  %v167 = vpack.c.b16 %v159, %v159
  %v168 = vpack.c.b16 %v160, %v160
  %v169 = vpack.c.b16 %v161, %v161
  %v306 = vunpack.c.l.b16 %v18
  %v307 = vunpack.c.l.b16 %v19
  %v308 = vunpack.c.l.b16 %v20
  %v309 = vunpack.c.l.b16 %v21
  %v310 = vunpack.c.l.b16 %v22
  %v311 = vunpack.c.l.b16 %v23
  %v312 = vunpack.c.l.b16 %v24
  %v313 = vunpack.c.l.b16 %v25
  %v314 = vunpack.c.l.b16 %v26
  %v315 = vunpack.c.l.b16 %v27
  %v316 = vunpack.c.l.b16 %v28
  %v317 = vunpack.c.l.b16 %v29
  %v318 = vunpack.c.l.b16 %v30
  %v319 = vunpack.c.l.b16 %v31
  %v320 = vunpack.c.l.b16 %v32
  %v321 = vunpack.c.l.b16 %v33
  %v322 = vunpack.c.l.b16 %v34
  %v323 = vunpack.c.l.b16 %v35
  %v324 = vunpack.c.l.b16 %v36
  %v325 = vunpack.c.l.b16 %v37
  %v326 = vunpack.c.l.b16 %v38
  %v327 = vunpack.c.l.b16 %v39
  %v328 = vunpack.c.l.b16 %v40
  %v329 = vunpack.c.l.b16 %v41
  %v330 = vunpack.c.l.b16 %v42
  %v331 = vunpack.c.l.b16 %v43
  %v332 = vunpack.c.l.b16 %v44
  %v333 = vunpack.c.l.b16 %v45
  %v334 = vunpack.c.l.b16 %v46
  %v335 = vunpack.c.l.b16 %v47
  %v336 = vunpack.c.l.b16 %v48
  %v337 = vunpack.c.l.b16 %v49
  %v338 = vunpack.c.l.b16 %v50
  %v339 = vunpack.c.l.b16 %v51
  %v340 = vunpack.c.l.b16 %v52
  %v341 = vunpack.c.l.b16 %v53
  %v342 = vunpack.c.l.b16 %v54
  %v343 = vunpack.c.l.b16 %v55
  %v344 = vunpack.c.l.b16 %v56
  %v345 = vunpack.c.l.b16 %v57
  %v346 = vunpack.c.l.b16 %v58
  %v347 = vunpack.c.l.b16 %v59
  %v348 = vunpack.c.l.b16 %v60
  %v349 = vunpack.c.l.b16 %v61
  %v350 = vunpack.c.l.b16 %v62
  %v351 = vunpack.c.l.b16 %v63
  %v352 = vunpack.c.l.b16 %v64
  %v353 = vunpack.c.l.b16 %v65
  %v354 = vunpack.c.l.b16 %v66
  %v355 = vunpack.c.l.b16 %v67
  %v356 = vunpack.c.l.b16 %v68
  %v357 = vunpack.c.l.b16 %v69
  %v358 = vunpack.c.l.b16 %v70
  %v359 = vunpack.c.l.b16 %v71
  %v360 = vunpack.c.l.b16 %v72
  %v361 = vunpack.c.l.b16 %v73
  %v362 = vunpack.c.l.b16 %v74
  %v363 = vunpack.c.l.b16 %v75
  %v364 = vunpack.c.l.b16 %v76
  %v365 = vunpack.c.l.b16 %v77
  %v366 = vunpack.c.l.b16 %v78
  %v367 = vunpack.c.l.b16 %v79
  %v368 = vunpack.c.l.b16 %v80
  %v369 = vunpack.c.l.b16 %v81
  %v370 = vunpack.c.l.b16 %v82
  %v371 = vunpack.c.l.b16 %v83
  %v372 = vunpack.c.l.b16 %v84
  %v373 = vunpack.c.l.b16 %v85
  %v374 = vunpack.c.l.b16 %v86
  %v375 = vunpack.c.l.b16 %v87
  %v376 = vunpack.c.l.b16 %v88
  %v377 = vunpack.c.l.b16 %v89
  %v378 = vunpack.c.l.b16 %v90
  %v379 = vunpack.c.l.b16 %v91
  %v380 = vunpack.c.l.b16 %v92
  %v381 = vunpack.c.l.b16 %v93
  %v382 = vunpack.c.l.b16 %v94
  %v383 = vunpack.c.l.b16 %v95
  %v384 = vunpack.c.l.b16 %v96
  %v385 = vunpack.c.l.b16 %v97
  %v386 = vunpack.c.l.b16 %v98
  %v387 = vunpack.c.l.b16 %v99
  %v388 = vunpack.c.l.b16 %v100
  %v389 = vunpack.c.l.b16 %v101
  %v390 = vunpack.c.l.b16 %v102
  %v391 = vunpack.c.l.b16 %v103
  %v392 = vunpack.c.l.b16 %v104
  %v393 = vunpack.c.l.b16 %v105
  %v394 = vunpack.c.l.b16 %v106
  %v395 = vunpack.c.l.b16 %v107
  %v396 = vunpack.c.l.b16 %v108
  %v397 = vunpack.c.l.b16 %v109
  %v398 = vunpack.c.l.b16 %v110
  %v399 = vunpack.c.l.b16 %v111
  %v400 = vunpack.c.l.b16 %v112
  %v401 = vunpack.c.l.b16 %v113
  %v402 = vunpack.c.l.b16 %v114
  %v403 = vunpack.c.l.b16 %v115
  %v404 = vunpack.c.l.b16 %v116
  %v405 = vunpack.c.l.b16 %v117
  %v406 = vunpack.c.l.b16 %v118
  %v407 = vunpack.c.l.b16 %v119
  %v408 = vunpack.c.l.b16 %v120
  %v409 = vunpack.c.l.b16 %v121
  %v410 = vunpack.c.l.b16 %v122
  %v411 = vunpack.c.l.b16 %v123
  %v412 = vunpack.c.l.b16 %v124
  %v413 = vunpack.c.l.b16 %v125
  %v414 = vunpack.c.l.b16 %v126
  %v415 = vunpack.c.l.b16 %v127
  %v416 = vunpack.c.l.b16 %v128
  %v417 = vunpack.c.l.b16 %v129
  %v418 = vunpack.c.l.b16 %v130
  %v419 = vunpack.c.l.b16 %v131
  %v420 = vunpack.c.l.b16 %v132
  %v421 = vunpack.c.l.b16 %v133
  %v422 = vunpack.c.l.b16 %v134
  %v423 = vunpack.c.l.b16 %v135
  %v424 = vunpack.c.l.b16 %v136
  %v425 = vunpack.c.l.b16 %v137
  %v426 = vunpack.c.l.b16 %v138
  %v427 = vunpack.c.l.b16 %v139
  %v428 = vunpack.c.l.b16 %v140
  %v429 = vunpack.c.l.b16 %v141
  %v430 = vunpack.c.l.b16 %v142
  %v431 = vunpack.c.l.b16 %v143
  %v432 = vunpack.c.l.b16 %v144
  %v433 = vunpack.c.l.b16 %v145
  %v434 = vpack.c.b16 %v307, %v306
  %v435 = vpack.c.b16 %v309, %v308
  %v436 = vpack.c.b16 %v311, %v310
  %v437 = vpack.c.b16 %v313, %v312
  %v438 = vpack.c.b16 %v315, %v314
  %v439 = vpack.c.b16 %v317, %v316
  %v440 = vpack.c.b16 %v319, %v318
  %v441 = vpack.c.b16 %v321, %v320
  %v442 = vpack.c.b16 %v323, %v322
  %v443 = vpack.c.b16 %v325, %v324
  %v444 = vpack.c.b16 %v327, %v326
  %v445 = vpack.c.b16 %v329, %v328
  %v446 = vpack.c.b16 %v331, %v330
  %v447 = vpack.c.b16 %v333, %v332
  %v448 = vpack.c.b16 %v335, %v334
  %v449 = vpack.c.b16 %v337, %v336
  %v450 = vpack.c.b16 %v339, %v338
  %v451 = vpack.c.b16 %v341, %v340
  %v452 = vpack.c.b16 %v343, %v342
  %v453 = vpack.c.b16 %v345, %v344
  %v454 = vpack.c.b16 %v347, %v346
  %v455 = vpack.c.b16 %v349, %v348
  %v456 = vpack.c.b16 %v351, %v350
  %v457 = vpack.c.b16 %v353, %v352
  %v458 = vpack.c.b16 %v355, %v354
  %v459 = vpack.c.b16 %v357, %v356
  %v460 = vpack.c.b16 %v359, %v358
  %v461 = vpack.c.b16 %v361, %v360
  %v462 = vpack.c.b16 %v363, %v362
  %v463 = vpack.c.b16 %v365, %v364
  %v464 = vpack.c.b16 %v367, %v366
  %v465 = vpack.c.b16 %v369, %v368
  %v466 = vpack.c.b16 %v371, %v370
  %v467 = vpack.c.b16 %v373, %v372
  %v468 = vpack.c.b16 %v375, %v374
  %v469 = vpack.c.b16 %v377, %v376
  %v470 = vpack.c.b16 %v379, %v378
  %v471 = vpack.c.b16 %v381, %v380
  %v472 = vpack.c.b16 %v383, %v382
  %v473 = vpack.c.b16 %v385, %v384
  %v474 = vpack.c.b16 %v387, %v386
  %v475 = vpack.c.b16 %v389, %v388
  %v476 = vpack.c.b16 %v391, %v390
  %v477 = vpack.c.b16 %v393, %v392
  %v478 = vpack.c.b16 %v395, %v394
  %v479 = vpack.c.b16 %v397, %v396
  %v480 = vpack.c.b16 %v399, %v398
  %v481 = vpack.c.b16 %v401, %v400
  %v482 = vpack.c.b16 %v403, %v402
  %v483 = vpack.c.b16 %v405, %v404
  %v484 = vpack.c.b16 %v407, %v406
  %v485 = vpack.c.b16 %v409, %v408
  %v486 = vpack.c.b16 %v411, %v410
  %v487 = vpack.c.b16 %v413, %v412
  %v488 = vpack.c.b16 %v415, %v414
  %v489 = vpack.c.b16 %v417, %v416
  %v490 = vpack.c.b16 %v419, %v418
  %v491 = vpack.c.b16 %v421, %v420
  %v492 = vpack.c.b16 %v423, %v422
  %v493 = vpack.c.b16 %v425, %v424
  %v494 = vpack.c.b16 %v427, %v426
  %v495 = vpack.c.b16 %v429, %v428
  %v496 = vpack.c.b16 %v431, %v430
  %v497 = vpack.c.b16 %v433, %v432
  %562 = vmatpush.bf16.msra.mxu0 %v441
  %563 = vmatpush.bf16.msra.mxu0 %v440
  %564 = vmatpush.bf16.msra.mxu0 %v439
  %565 = vmatpush.bf16.msra.mxu0 %v438
  %566 = vmatpush.bf16.msra.mxu0 %v437
  %567 = vmatpush.bf16.msra.mxu0 %v436
  %568 = vmatpush.bf16.msra.mxu0 %v435
  %569 = vmatpush.bf16.msra.mxu0 %v434
  %570 = vmatmul.bf16.gmra.mxu0 %v162
  %v571 = vpop.f32.mrf.mxu0
  %v572 = vadd.f32 %v148, %v571
  %v573 = vpop.f32.mrf.mxu0
  %574 = vdwg.mxu0
  %575 = vmatpush.bf16.msra.mxu0 %v449
  %576 = vmatpush.bf16.msra.mxu0 %v448
  %577 = vmatpush.bf16.msra.mxu0 %v447
  %578 = vmatpush.bf16.msra.mxu0 %v446
  %579 = vmatpush.bf16.msra.mxu0 %v445
  %580 = vmatpush.bf16.msra.mxu0 %v444
  %581 = vmatpush.bf16.msra.mxu0 %v443
  %582 = vmatpush.bf16.msra.mxu0 %v442
  %583 = vmatmul.bf16.gmra.mxu0 %v163
  %v584 = vpop.f32.mrf.mxu0
  %v585 = vadd.f32 %v572, %v584
  %v586 = vpop.f32.mrf.mxu0
  %587 = vdwg.mxu0
  %588 = vmatpush.bf16.msra.mxu0 %v457
  %589 = vmatpush.bf16.msra.mxu0 %v456
  %590 = vmatpush.bf16.msra.mxu0 %v455
  %591 = vmatpush.bf16.msra.mxu0 %v454
  %592 = vmatpush.bf16.msra.mxu0 %v453
  %593 = vmatpush.bf16.msra.mxu0 %v452
  %594 = vmatpush.bf16.msra.mxu0 %v451
  %595 = vmatpush.bf16.msra.mxu0 %v450
  %596 = vmatmul.bf16.gmra.mxu0 %v164
  %v597 = vpop.f32.mrf.mxu0
  %v598 = vadd.f32 %v585, %v597
  %v599 = vpop.f32.mrf.mxu0
  %600 = vdwg.mxu0
  %601 = vmatpush.bf16.msra.mxu0 %v465
  %602 = vmatpush.bf16.msra.mxu0 %v464
  %603 = vmatpush.bf16.msra.mxu0 %v463
  %604 = vmatpush.bf16.msra.mxu0 %v462
  %605 = vmatpush.bf16.msra.mxu0 %v461
  %606 = vmatpush.bf16.msra.mxu0 %v460
  %607 = vmatpush.bf16.msra.mxu0 %v459
  %608 = vmatpush.bf16.msra.mxu0 %v458
  %609 = vmatmul.bf16.gmra.mxu0 %v165
  %v610 = vpop.f32.mrf.mxu0
  %v611 = vadd.f32 %v598, %v610
  %v612 = vpop.f32.mrf.mxu0
  %613 = vdwg.mxu0
  %614 = vmatpush.bf16.msra.mxu0 %v473
  %615 = vmatpush.bf16.msra.mxu0 %v472
  %616 = vmatpush.bf16.msra.mxu0 %v471
  %617 = vmatpush.bf16.msra.mxu0 %v470
  %618 = vmatpush.bf16.msra.mxu0 %v469
  %619 = vmatpush.bf16.msra.mxu0 %v468
  %620 = vmatpush.bf16.msra.mxu0 %v467
  %621 = vmatpush.bf16.msra.mxu0 %v466
  %622 = vmatmul.bf16.gmra.mxu0 %v166
  %v623 = vpop.f32.mrf.mxu0
  %v624 = vadd.f32 %v611, %v623
  %v625 = vpop.f32.mrf.mxu0
  %626 = vdwg.mxu0
  %627 = vmatpush.bf16.msra.mxu0 %v481
  %628 = vmatpush.bf16.msra.mxu0 %v480
  %629 = vmatpush.bf16.msra.mxu0 %v479
  %630 = vmatpush.bf16.msra.mxu0 %v478
  %631 = vmatpush.bf16.msra.mxu0 %v477
  %632 = vmatpush.bf16.msra.mxu0 %v476
  %633 = vmatpush.bf16.msra.mxu0 %v475
  %634 = vmatpush.bf16.msra.mxu0 %v474
  %635 = vmatmul.bf16.gmra.mxu0 %v167
  %v636 = vpop.f32.mrf.mxu0
  %v637 = vadd.f32 %v624, %v636
  %v638 = vpop.f32.mrf.mxu0
  %639 = vdwg.mxu0
  %640 = vmatpush.bf16.msra.mxu0 %v489
  %641 = vmatpush.bf16.msra.mxu0 %v488
  %642 = vmatpush.bf16.msra.mxu0 %v487
  %643 = vmatpush.bf16.msra.mxu0 %v486
  %644 = vmatpush.bf16.msra.mxu0 %v485
  %645 = vmatpush.bf16.msra.mxu0 %v484
  %646 = vmatpush.bf16.msra.mxu0 %v483
  %647 = vmatpush.bf16.msra.mxu0 %v482
  %648 = vmatmul.bf16.gmra.mxu0 %v168
  %v649 = vpop.f32.mrf.mxu0
  %v650 = vadd.f32 %v637, %v649
  %v651 = vpop.f32.mrf.mxu0
  %652 = vdwg.mxu0
  %653 = vmatpush.bf16.msra.mxu0 %v497
  %654 = vmatpush.bf16.msra.mxu0 %v496
  %655 = vmatpush.bf16.msra.mxu0 %v495
  %656 = vmatpush.bf16.msra.mxu0 %v494
  %657 = vmatpush.bf16.msra.mxu0 %v493
  %658 = vmatpush.bf16.msra.mxu0 %v492
  %659 = vmatpush.bf16.msra.mxu0 %v491
  %660 = vmatpush.bf16.msra.mxu0 %v490
  %661 = vmatmul.bf16.gmra.mxu0 %v169
  %v662 = vpop.f32.mrf.mxu0
  %v663 = vadd.f32 %v650, %v662
  %v664 = vpop.f32.mrf.mxu0
  %665 = vdwg.mxu0
  %v666 = vmax.f32 %v663, 0.0
  %v667 = vpack.c.bf16 %v666, %v666
  %668 = vst [vmem:[%s3] sm:$0xf] %v667
  // Predicated region
  $region14: #{shading_net_forward.15} parent=0 // pred_check
    _
  $region15: #{shading_net_forward.15} parent=0 // pred_check_branch
    %670 = sbr.rel (0) target = $region17
  $region16: #{shading_net_forward.15} parent=0 // pred_region
    _
  $region17: #{shading_net_forward.15} parent=0 // pred_fallthru
    _
  // Predicated region
  $region18: #{shading_net_forward.15} parent=0 // pred_check
    _
  $region19: #{shading_net_forward.15} parent=0 // pred_check_branch
    %672 = sbr.rel (0) target = $region21
  $region20: #{shading_net_forward.15} parent=0 // pred_region
    _
  $region21: #{shading_net_forward.15} parent=0 // pred_fallthru
    _

// kernel: shading_net_forward.16
$region0: #{shading_net_forward.16}
  #allocation0 [shape = 'u32[]', space=smem, size = 0x4, offset = 0x4, fixed_abs, tag = 'smem constant byte address 0x4 - core index']
  #allocation1 [shape = 'u32[72,128]{1,0:T(1,128)}', space=vmem, size = 0x9000, scoped, tag = 'internal scratch']
  %s0 = inlined_call_operand.vmem [shape: bf16[8,2048], index: 0, kind: input, shape index: {}]
  %s1 = inlined_call_operand.vmem [shape: bf16[2048,256], index: 1, kind: input, shape index: {}]
  %s2 = inlined_call_operand.vmem [shape: f32[1,256], index: 2, kind: input, shape index: {}]
  %s3 = inlined_call_operand.vmem [shape: bf16[8,256], index: 3, kind: output, shape index: {}]
  %s4 = sld [smem:[#allocation0]]
  $region22: #{shading_net_forward.16} parent=0
    _
  %s6 = ssub.s32 1, %s4
  %s7 = scalar_select 0, %s6, %s4
  // Predicated region
  $region2: #{shading_net_forward.16} parent=0 // pred_check
    _
  $region3: #{shading_net_forward.16} parent=0 // pred_check_branch
    %9 = sbr.rel (0) target = $region5
  $region4: #{shading_net_forward.16} parent=0 // pred_region
    _
  $region5: #{shading_net_forward.16} parent=0 // pred_fallthru
    _
  // Predicated region
  $region6: #{shading_net_forward.16} parent=0 // pred_check
    _
  $region7: #{shading_net_forward.16} parent=0 // pred_check_branch
    %11 = sbr.rel (0) target = $region9
  $region8: #{shading_net_forward.16} parent=0 // pred_region
    _
  $region9: #{shading_net_forward.16} parent=0 // pred_fallthru
    _
  // Predicated region
  $region10: #{shading_net_forward.16} parent=0 // pred_check
    _
  $region11: #{shading_net_forward.16} parent=0 // pred_check_branch
    %13 = sbr.rel (0) target = $region13
  $region12: #{shading_net_forward.16} parent=0 // pred_region
    _
  $region13: #{shading_net_forward.16} parent=0 // pred_fallthru
    _
  %v14 = vld [vmem:[%s0] sm:$0xff]
  %v15 = vld [vmem:[%s0 + $0x8] sm:$0xff]
  %v16 = vld [vmem:[%s0 + $0x10] sm:$0xff]
  %v17 = vld [vmem:[%s0 + $0x18] sm:$0xff]
  %v18 = vld [vmem:[%s0 + $0x20] sm:$0xff]
  %v19 = vld [vmem:[%s0 + $0x28] sm:$0xff]
  %v20 = vld [vmem:[%s0 + $0x30] sm:$0xff]
  %v21 = vld [vmem:[%s0 + $0x38] sm:$0xff]
  %v22 = vld [vmem:[%s1] sm:$0xff]
  %v23 = vld [vmem:[%s1 + $0x8] sm:$0xff]
  %v24 = vld [vmem:[%s1 + $0x10] sm:$0xff]
  %v25 = vld [vmem:[%s1 + $0x18] sm:$0xff]
  %v26 = vld [vmem:[%s1 + $0x20] sm:$0xff]
  %v27 = vld [vmem:[%s1 + $0x28] sm:$0xff]
  %v28 = vld [vmem:[%s1 + $0x30] sm:$0xff]
  %v29 = vld [vmem:[%s1 + $0x38] sm:$0xff]
  %v30 = vld [vmem:[%s1 + $0x40] sm:$0xff]
  %v31 = vld [vmem:[%s1 + $0x48] sm:$0xff]
  %v32 = vld [vmem:[%s1 + $0x50] sm:$0xff]
  %v33 = vld [vmem:[%s1 + $0x58] sm:$0xff]
  %v34 = vld [vmem:[%s1 + $0x60] sm:$0xff]
  %v35 = vld [vmem:[%s1 + $0x68] sm:$0xff]
  %v36 = vld [vmem:[%s1 + $0x70] sm:$0xff]
  %v37 = vld [vmem:[%s1 + $0x78] sm:$0xff]
  %v38 = vld [vmem:[%s1 + $0x80] sm:$0xff]
  %v39 = vld [vmem:[%s1 + $0x88] sm:$0xff]
  %v40 = vld [vmem:[%s1 + $0x90] sm:$0xff]
  %v41 = vld [vmem:[%s1 + $0x98] sm:$0xff]
  %v42 = vld [vmem:[%s1 + $0xa0] sm:$0xff]
  %v43 = vld [vmem:[%s1 + $0xa8] sm:$0xff]
  %v44 = vld [vmem:[%s1 + $0xb0] sm:$0xff]
  %v45 = vld [vmem:[%s1 + $0xb8] sm:$0xff]
  %v46 = vld [vmem:[%s1 + $0xc0] sm:$0xff]
  %v47 = vld [vmem:[%s1 + $0xc8] sm:$0xff]
  %v48 = vld [vmem:[%s1 + $0xd0] sm:$0xff]
  %v49 = vld [vmem:[%s1 + $0xd8] sm:$0xff]
  %v50 = vld [vmem:[%s1 + $0xe0] sm:$0xff]
  %v51 = vld [vmem:[%s1 + $0xe8] sm:$0xff]
  %v52 = vld [vmem:[%s1 + $0xf0] sm:$0xff]
  %v53 = vld [vmem:[%s1 + $0xf8] sm:$0xff]
  %v54 = vld [vmem:[%s1 + $0x100] sm:$0xff]
  %v55 = vld [vmem:[%s1 + $0x108] sm:$0xff]
  %v56 = vld [vmem:[%s1 + $0x110] sm:$0xff]
  %v57 = vld [vmem:[%s1 + $0x118] sm:$0xff]
  %v58 = vld [vmem:[%s1 + $0x120] sm:$0xff]
  %v59 = vld [vmem:[%s1 + $0x128] sm:$0xff]
  %v60 = vld [vmem:[%s1 + $0x130] sm:$0xff]
  %v61 = vld [vmem:[%s1 + $0x138] sm:$0xff]
  %v62 = vld [vmem:[%s1 + $0x140] sm:$0xff]
  %v63 = vld [vmem:[%s1 + $0x148] sm:$0xff]
  %v64 = vld [vmem:[%s1 + $0x150] sm:$0xff]
  %v65 = vld [vmem:[%s1 + $0x158] sm:$0xff]
  %v66 = vld [vmem:[%s1 + $0x160] sm:$0xff]
  %v67 = vld [vmem:[%s1 + $0x168] sm:$0xff]
  %v68 = vld [vmem:[%s1 + $0x170] sm:$0xff]
  %v69 = vld [vmem:[%s1 + $0x178] sm:$0xff]
  %v70 = vld [vmem:[%s1 + $0x180] sm:$0xff]
  %v71 = vld [vmem:[%s1 + $0x188] sm:$0xff]
  %v72 = vld [vmem:[%s1 + $0x190] sm:$0xff]
  %v73 = vld [vmem:[%s1 + $0x198] sm:$0xff]
  %v74 = vld [vmem:[%s1 + $0x1a0] sm:$0xff]
  %v75 = vld [vmem:[%s1 + $0x1a8] sm:$0xff]
  %v76 = vld [vmem:[%s1 + $0x1b0] sm:$0xff]
  %v77 = vld [vmem:[%s1 + $0x1b8] sm:$0xff]
  %v78 = vld [vmem:[%s1 + $0x1c0] sm:$0xff]
  %v79 = vld [vmem:[%s1 + $0x1c8] sm:$0xff]
  %v80 = vld [vmem:[%s1 + $0x1d0] sm:$0xff]
  %v81 = vld [vmem:[%s1 + $0x1d8] sm:$0xff]
  %v82 = vld [vmem:[%s1 + $0x1e0] sm:$0xff]
  %v83 = vld [vmem:[%s1 + $0x1e8] sm:$0xff]
  %v84 = vld [vmem:[%s1 + $0x1f0] sm:$0xff]
  %v85 = vld [vmem:[%s1 + $0x1f8] sm:$0xff]
  %v86 = vld [vmem:[%s1 + $0x200] sm:$0xff]
  %v87 = vld [vmem:[%s1 + $0x208] sm:$0xff]
  %v88 = vld [vmem:[%s1 + $0x210] sm:$0xff]
  %v89 = vld [vmem:[%s1 + $0x218] sm:$0xff]
  %v90 = vld [vmem:[%s1 + $0x220] sm:$0xff]
  %v91 = vld [vmem:[%s1 + $0x228] sm:$0xff]
  %v92 = vld [vmem:[%s1 + $0x230] sm:$0xff]
  %v93 = vld [vmem:[%s1 + $0x238] sm:$0xff]
  %v94 = vld [vmem:[%s1 + $0x240] sm:$0xff]
  %v95 = vld [vmem:[%s1 + $0x248] sm:$0xff]
  %v96 = vld [vmem:[%s1 + $0x250] sm:$0xff]
  %v97 = vld [vmem:[%s1 + $0x258] sm:$0xff]
  %v98 = vld [vmem:[%s1 + $0x260] sm:$0xff]
  %v99 = vld [vmem:[%s1 + $0x268] sm:$0xff]
  %v100 = vld [vmem:[%s1 + $0x270] sm:$0xff]
  %v101 = vld [vmem:[%s1 + $0x278] sm:$0xff]
  %v102 = vld [vmem:[%s1 + $0x280] sm:$0xff]
  %v103 = vld [vmem:[%s1 + $0x288] sm:$0xff]
  %v104 = vld [vmem:[%s1 + $0x290] sm:$0xff]
  %v105 = vld [vmem:[%s1 + $0x298] sm:$0xff]
  %v106 = vld [vmem:[%s1 + $0x2a0] sm:$0xff]
  %v107 = vld [vmem:[%s1 + $0x2a8] sm:$0xff]
  %v108 = vld [vmem:[%s1 + $0x2b0] sm:$0xff]
  %v109 = vld [vmem:[%s1 + $0x2b8] sm:$0xff]
  %v110 = vld [vmem:[%s1 + $0x2c0] sm:$0xff]
  %v111 = vld [vmem:[%s1 + $0x2c8] sm:$0xff]
  %v112 = vld [vmem:[%s1 + $0x2d0] sm:$0xff]
  %v113 = vld [vmem:[%s1 + $0x2d8] sm:$0xff]
  %v114 = vld [vmem:[%s1 + $0x2e0] sm:$0xff]
  %v115 = vld [vmem:[%s1 + $0x2e8] sm:$0xff]
  %v116 = vld [vmem:[%s1 + $0x2f0] sm:$0xff]
  %v117 = vld [vmem:[%s1 + $0x2f8] sm:$0xff]
  %v118 = vld [vmem:[%s1 + $0x300] sm:$0xff]
  %v119 = vld [vmem:[%s1 + $0x308] sm:$0xff]
  %v120 = vld [vmem:[%s1 + $0x310] sm:$0xff]
  %v121 = vld [vmem:[%s1 + $0x318] sm:$0xff]
  %v122 = vld [vmem:[%s1 + $0x320] sm:$0xff]
  %v123 = vld [vmem:[%s1 + $0x328] sm:$0xff]
  %v124 = vld [vmem:[%s1 + $0x330] sm:$0xff]
  %v125 = vld [vmem:[%s1 + $0x338] sm:$0xff]
  %v126 = vld [vmem:[%s1 + $0x340] sm:$0xff]
  %v127 = vld [vmem:[%s1 + $0x348] sm:$0xff]
  %v128 = vld [vmem:[%s1 + $0x350] sm:$0xff]
  %v129 = vld [vmem:[%s1 + $0x358] sm:$0xff]
  %v130 = vld [vmem:[%s1 + $0x360] sm:$0xff]
  %v131 = vld [vmem:[%s1 + $0x368] sm:$0xff]
  %v132 = vld [vmem:[%s1 + $0x370] sm:$0xff]
  %v133 = vld [vmem:[%s1 + $0x378] sm:$0xff]
  %v134 = vld [vmem:[%s1 + $0x380] sm:$0xff]
  %v135 = vld [vmem:[%s1 + $0x388] sm:$0xff]
  %v136 = vld [vmem:[%s1 + $0x390] sm:$0xff]
  %v137 = vld [vmem:[%s1 + $0x398] sm:$0xff]
  %v138 = vld [vmem:[%s1 + $0x3a0] sm:$0xff]
  %v139 = vld [vmem:[%s1 + $0x3a8] sm:$0xff]
  %v140 = vld [vmem:[%s1 + $0x3b0] sm:$0xff]
  %v141 = vld [vmem:[%s1 + $0x3b8] sm:$0xff]
  %v142 = vld [vmem:[%s1 + $0x3c0] sm:$0xff]
  %v143 = vld [vmem:[%s1 + $0x3c8] sm:$0xff]
  %v144 = vld [vmem:[%s1 + $0x3d0] sm:$0xff]
  %v145 = vld [vmem:[%s1 + $0x3d8] sm:$0xff]
  %v146 = vld [vmem:[%s1 + $0x3e0] sm:$0xff]
  %v147 = vld [vmem:[%s1 + $0x3e8] sm:$0xff]
  %v148 = vld [vmem:[%s1 + $0x3f0] sm:$0xff]
  %v149 = vld [vmem:[%s1 + $0x3f8] sm:$0xff]
  %v150 = vld [vmem:[%s1 + $0x400] sm:$0xff]
  %v151 = vld [vmem:[%s1 + $0x408] sm:$0xff]
  %v152 = vld [vmem:[%s1 + $0x410] sm:$0xff]
  %v153 = vld [vmem:[%s1 + $0x418] sm:$0xff]
  %v154 = vld [vmem:[%s1 + $0x420] sm:$0xff]
  %v155 = vld [vmem:[%s1 + $0x428] sm:$0xff]
  %v156 = vld [vmem:[%s1 + $0x430] sm:$0xff]
  %v157 = vld [vmem:[%s1 + $0x438] sm:$0xff]
  %v158 = vld [vmem:[%s1 + $0x440] sm:$0xff]
  %v159 = vld [vmem:[%s1 + $0x448] sm:$0xff]
  %v160 = vld [vmem:[%s1 + $0x450] sm:$0xff]
  %v161 = vld [vmem:[%s1 + $0x458] sm:$0xff]
  %v162 = vld [vmem:[%s1 + $0x460] sm:$0xff]
  %v163 = vld [vmem:[%s1 + $0x468] sm:$0xff]
  %v164 = vld [vmem:[%s1 + $0x470] sm:$0xff]
  %v165 = vld [vmem:[%s1 + $0x478] sm:$0xff]
  %v166 = vld [vmem:[%s1 + $0x480] sm:$0xff]
  %v167 = vld [vmem:[%s1 + $0x488] sm:$0xff]
  %v168 = vld [vmem:[%s1 + $0x490] sm:$0xff]
  %v169 = vld [vmem:[%s1 + $0x498] sm:$0xff]
  %v170 = vld [vmem:[%s1 + $0x4a0] sm:$0xff]
  %v171 = vld [vmem:[%s1 + $0x4a8] sm:$0xff]
  %v172 = vld [vmem:[%s1 + $0x4b0] sm:$0xff]
  %v173 = vld [vmem:[%s1 + $0x4b8] sm:$0xff]
  %v174 = vld [vmem:[%s1 + $0x4c0] sm:$0xff]
  %v175 = vld [vmem:[%s1 + $0x4c8] sm:$0xff]
  %v176 = vld [vmem:[%s1 + $0x4d0] sm:$0xff]
  %v177 = vld [vmem:[%s1 + $0x4d8] sm:$0xff]
  %v178 = vld [vmem:[%s1 + $0x4e0] sm:$0xff]
  %v179 = vld [vmem:[%s1 + $0x4e8] sm:$0xff]
  %v180 = vld [vmem:[%s1 + $0x4f0] sm:$0xff]
  %v181 = vld [vmem:[%s1 + $0x4f8] sm:$0xff]
  %v182 = vld [vmem:[%s1 + $0x500] sm:$0xff]
  %v183 = vld [vmem:[%s1 + $0x508] sm:$0xff]
  %v184 = vld [vmem:[%s1 + $0x510] sm:$0xff]
  %v185 = vld [vmem:[%s1 + $0x518] sm:$0xff]
  %v186 = vld [vmem:[%s1 + $0x520] sm:$0xff]
  %v187 = vld [vmem:[%s1 + $0x528] sm:$0xff]
  %v188 = vld [vmem:[%s1 + $0x530] sm:$0xff]
  %v189 = vld [vmem:[%s1 + $0x538] sm:$0xff]
  %v190 = vld [vmem:[%s1 + $0x540] sm:$0xff]
  %v191 = vld [vmem:[%s1 + $0x548] sm:$0xff]
  %v192 = vld [vmem:[%s1 + $0x550] sm:$0xff]
  %v193 = vld [vmem:[%s1 + $0x558] sm:$0xff]
  %v194 = vld [vmem:[%s1 + $0x560] sm:$0xff]
  %v195 = vld [vmem:[%s1 + $0x568] sm:$0xff]
  %v196 = vld [vmem:[%s1 + $0x570] sm:$0xff]
  %v197 = vld [vmem:[%s1 + $0x578] sm:$0xff]
  %v198 = vld [vmem:[%s1 + $0x580] sm:$0xff]
  %v199 = vld [vmem:[%s1 + $0x588] sm:$0xff]
  %v200 = vld [vmem:[%s1 + $0x590] sm:$0xff]
  %v201 = vld [vmem:[%s1 + $0x598] sm:$0xff]
  %v202 = vld [vmem:[%s1 + $0x5a0] sm:$0xff]
  %v203 = vld [vmem:[%s1 + $0x5a8] sm:$0xff]
  %v204 = vld [vmem:[%s1 + $0x5b0] sm:$0xff]
  %v205 = vld [vmem:[%s1 + $0x5b8] sm:$0xff]
  %v206 = vld [vmem:[%s1 + $0x5c0] sm:$0xff]
  %v207 = vld [vmem:[%s1 + $0x5c8] sm:$0xff]
  %v208 = vld [vmem:[%s1 + $0x5d0] sm:$0xff]
  %v209 = vld [vmem:[%s1 + $0x5d8] sm:$0xff]
  %v210 = vld [vmem:[%s1 + $0x5e0] sm:$0xff]
  %v211 = vld [vmem:[%s1 + $0x5e8] sm:$0xff]
  %v212 = vld [vmem:[%s1 + $0x5f0] sm:$0xff]
  %v213 = vld [vmem:[%s1 + $0x5f8] sm:$0xff]
  %v214 = vld [vmem:[%s1 + $0x600] sm:$0xff]
  %v215 = vld [vmem:[%s1 + $0x608] sm:$0xff]
  %v216 = vld [vmem:[%s1 + $0x610] sm:$0xff]
  %v217 = vld [vmem:[%s1 + $0x618] sm:$0xff]
  %v218 = vld [vmem:[%s1 + $0x620] sm:$0xff]
  %v219 = vld [vmem:[%s1 + $0x628] sm:$0xff]
  %v220 = vld [vmem:[%s1 + $0x630] sm:$0xff]
  %v221 = vld [vmem:[%s1 + $0x638] sm:$0xff]
  %v222 = vld [vmem:[%s1 + $0x640] sm:$0xff]
  %v223 = vld [vmem:[%s1 + $0x648] sm:$0xff]
  %v224 = vld [vmem:[%s1 + $0x650] sm:$0xff]
  %v225 = vld [vmem:[%s1 + $0x658] sm:$0xff]
  %v226 = vld [vmem:[%s1 + $0x660] sm:$0xff]
  %v227 = vld [vmem:[%s1 + $0x668] sm:$0xff]
  %v228 = vld [vmem:[%s1 + $0x670] sm:$0xff]
  %v229 = vld [vmem:[%s1 + $0x678] sm:$0xff]
  %v230 = vld [vmem:[%s1 + $0x680] sm:$0xff]
  %v231 = vld [vmem:[%s1 + $0x688] sm:$0xff]
  %v232 = vld [vmem:[%s1 + $0x690] sm:$0xff]
  %v233 = vld [vmem:[%s1 + $0x698] sm:$0xff]
  %v234 = vld [vmem:[%s1 + $0x6a0] sm:$0xff]
  %v235 = vld [vmem:[%s1 + $0x6a8] sm:$0xff]
  %v236 = vld [vmem:[%s1 + $0x6b0] sm:$0xff]
  %v237 = vld [vmem:[%s1 + $0x6b8] sm:$0xff]
  %v238 = vld [vmem:[%s1 + $0x6c0] sm:$0xff]
  %v239 = vld [vmem:[%s1 + $0x6c8] sm:$0xff]
  %v240 = vld [vmem:[%s1 + $0x6d0] sm:$0xff]
  %v241 = vld [vmem:[%s1 + $0x6d8] sm:$0xff]
  %v242 = vld [vmem:[%s1 + $0x6e0] sm:$0xff]
  %v243 = vld [vmem:[%s1 + $0x6e8] sm:$0xff]
  %v244 = vld [vmem:[%s1 + $0x6f0] sm:$0xff]
  %v245 = vld [vmem:[%s1 + $0x6f8] sm:$0xff]
  %v246 = vld [vmem:[%s1 + $0x700] sm:$0xff]
  %v247 = vld [vmem:[%s1 + $0x708] sm:$0xff]
  %v248 = vld [vmem:[%s1 + $0x710] sm:$0xff]
  %v249 = vld [vmem:[%s1 + $0x718] sm:$0xff]
  %v250 = vld [vmem:[%s1 + $0x720] sm:$0xff]
  %v251 = vld [vmem:[%s1 + $0x728] sm:$0xff]
  %v252 = vld [vmem:[%s1 + $0x730] sm:$0xff]
  %v253 = vld [vmem:[%s1 + $0x738] sm:$0xff]
  %v254 = vld [vmem:[%s1 + $0x740] sm:$0xff]
  %v255 = vld [vmem:[%s1 + $0x748] sm:$0xff]
  %v256 = vld [vmem:[%s1 + $0x750] sm:$0xff]
  %v257 = vld [vmem:[%s1 + $0x758] sm:$0xff]
  %v258 = vld [vmem:[%s1 + $0x760] sm:$0xff]
  %v259 = vld [vmem:[%s1 + $0x768] sm:$0xff]
  %v260 = vld [vmem:[%s1 + $0x770] sm:$0xff]
  %v261 = vld [vmem:[%s1 + $0x778] sm:$0xff]
  %v262 = vld [vmem:[%s1 + $0x780] sm:$0xff]
  %v263 = vld [vmem:[%s1 + $0x788] sm:$0xff]
  %v264 = vld [vmem:[%s1 + $0x790] sm:$0xff]
  %v265 = vld [vmem:[%s1 + $0x798] sm:$0xff]
  %v266 = vld [vmem:[%s1 + $0x7a0] sm:$0xff]
  %v267 = vld [vmem:[%s1 + $0x7a8] sm:$0xff]
  %v268 = vld [vmem:[%s1 + $0x7b0] sm:$0xff]
  %v269 = vld [vmem:[%s1 + $0x7b8] sm:$0xff]
  %v270 = vld [vmem:[%s1 + $0x7c0] sm:$0xff]
  %v271 = vld [vmem:[%s1 + $0x7c8] sm:$0xff]
  %v272 = vld [vmem:[%s1 + $0x7d0] sm:$0xff]
  %v273 = vld [vmem:[%s1 + $0x7d8] sm:$0xff]
  %v274 = vld [vmem:[%s1 + $0x7e0] sm:$0xff]
  %v275 = vld [vmem:[%s1 + $0x7e8] sm:$0xff]
  %v276 = vld [vmem:[%s1 + $0x7f0] sm:$0xff]
  %v277 = vld [vmem:[%s1 + $0x7f8] sm:$0xff]
  %v278 = vld [vmem:[%s2] sm:$0x3]
  %v280 = vperm.slane %v278, 0
  %v281 = vperm.slane %v278, 1
  %v292 = vunpack.c.l.b16 %v14
  %v293 = vunpack.c.h.b16 %v14
  %v294 = vunpack.c.l.b16 %v15
  %v295 = vunpack.c.h.b16 %v15
  %v296 = vunpack.c.l.b16 %v16
  %v297 = vunpack.c.h.b16 %v16
  %v298 = vunpack.c.l.b16 %v17
  %v299 = vunpack.c.h.b16 %v17
  %v300 = vunpack.c.l.b16 %v18
  %v301 = vunpack.c.h.b16 %v18
  %v302 = vunpack.c.l.b16 %v19
  %v303 = vunpack.c.h.b16 %v19
  %v304 = vunpack.c.l.b16 %v20
  %v305 = vunpack.c.h.b16 %v20
  %v306 = vunpack.c.l.b16 %v21
  %v307 = vunpack.c.h.b16 %v21
  %v308 = vpack.c.b16 %v292, %v292
  %v309 = vpack.c.b16 %v293, %v293
  %v310 = vpack.c.b16 %v294, %v294
  %v311 = vpack.c.b16 %v295, %v295
  %v312 = vpack.c.b16 %v296, %v296
  %v313 = vpack.c.b16 %v297, %v297
  %v314 = vpack.c.b16 %v298, %v298
  %v315 = vpack.c.b16 %v299, %v299
  %v316 = vpack.c.b16 %v300, %v300
  %v317 = vpack.c.b16 %v301, %v301
  %v318 = vpack.c.b16 %v302, %v302
  %v319 = vpack.c.b16 %v303, %v303
  %v320 = vpack.c.b16 %v304, %v304
  %v321 = vpack.c.b16 %v305, %v305
  %v322 = vpack.c.b16 %v306, %v306
  %v323 = vpack.c.b16 %v307, %v307
  %v596 = vunpack.c.l.b16 %v22
  %v597 = vunpack.c.h.b16 %v22
  %v598 = vunpack.c.l.b16 %v23
  %v599 = vunpack.c.h.b16 %v23
  %v600 = vunpack.c.l.b16 %v24
  %v601 = vunpack.c.h.b16 %v24
  %v602 = vunpack.c.l.b16 %v25
  %v603 = vunpack.c.h.b16 %v25
  %v604 = vunpack.c.l.b16 %v26
  %v605 = vunpack.c.h.b16 %v26
  %v606 = vunpack.c.l.b16 %v27
  %v607 = vunpack.c.h.b16 %v27
  %v608 = vunpack.c.l.b16 %v28
  %v609 = vunpack.c.h.b16 %v28
  %v610 = vunpack.c.l.b16 %v29
  %v611 = vunpack.c.h.b16 %v29
  %v612 = vunpack.c.l.b16 %v30
  %v613 = vunpack.c.h.b16 %v30
  %v614 = vunpack.c.l.b16 %v31
  %v615 = vunpack.c.h.b16 %v31
  %v616 = vunpack.c.l.b16 %v32
  %v617 = vunpack.c.h.b16 %v32
  %v618 = vunpack.c.l.b16 %v33
  %v619 = vunpack.c.h.b16 %v33
  %v620 = vunpack.c.l.b16 %v34
  %v621 = vunpack.c.h.b16 %v34
  %v622 = vunpack.c.l.b16 %v35
  %v623 = vunpack.c.h.b16 %v35
  %v624 = vunpack.c.l.b16 %v36
  %v625 = vunpack.c.h.b16 %v36
  %v626 = vunpack.c.l.b16 %v37
  %v627 = vunpack.c.h.b16 %v37
  %v628 = vunpack.c.l.b16 %v38
  %v629 = vunpack.c.h.b16 %v38
  %v630 = vunpack.c.l.b16 %v39
  %v631 = vunpack.c.h.b16 %v39
  %v632 = vunpack.c.l.b16 %v40
  %v633 = vunpack.c.h.b16 %v40
  %v634 = vunpack.c.l.b16 %v41
  %v635 = vunpack.c.h.b16 %v41
  %v636 = vunpack.c.l.b16 %v42
  %v637 = vunpack.c.h.b16 %v42
  %v638 = vunpack.c.l.b16 %v43
  %v639 = vunpack.c.h.b16 %v43
  %v640 = vunpack.c.l.b16 %v44
  %v641 = vunpack.c.h.b16 %v44
  %v642 = vunpack.c.l.b16 %v45
  %v643 = vunpack.c.h.b16 %v45
  %v644 = vunpack.c.l.b16 %v46
  %v645 = vunpack.c.h.b16 %v46
  %v646 = vunpack.c.l.b16 %v47
  %v647 = vunpack.c.h.b16 %v47
  %v648 = vunpack.c.l.b16 %v48
  %v649 = vunpack.c.h.b16 %v48
  %v650 = vunpack.c.l.b16 %v49
  %v651 = vunpack.c.h.b16 %v49
  %v652 = vunpack.c.l.b16 %v50
  %v653 = vunpack.c.h.b16 %v50
  %v654 = vunpack.c.l.b16 %v51
  %v655 = vunpack.c.h.b16 %v51
  %v656 = vunpack.c.l.b16 %v52
  %v657 = vunpack.c.h.b16 %v52
  %v658 = vunpack.c.l.b16 %v53
  %v659 = vunpack.c.h.b16 %v53
  %v660 = vunpack.c.l.b16 %v54
  %v661 = vunpack.c.h.b16 %v54
  %v662 = vunpack.c.l.b16 %v55
  %v663 = vunpack.c.h.b16 %v55
  %v664 = vunpack.c.l.b16 %v56
  %v665 = vunpack.c.h.b16 %v56
  %v666 = vunpack.c.l.b16 %v57
  %v667 = vunpack.c.h.b16 %v57
  %v668 = vunpack.c.l.b16 %v58
  %v669 = vunpack.c.h.b16 %v58
  %v670 = vunpack.c.l.b16 %v59
  %v671 = vunpack.c.h.b16 %v59
  %v672 = vunpack.c.l.b16 %v60
  %v673 = vunpack.c.h.b16 %v60
  %v674 = vunpack.c.l.b16 %v61
  %v675 = vunpack.c.h.b16 %v61
  %v676 = vunpack.c.l.b16 %v62
  %v677 = vunpack.c.h.b16 %v62
  %v678 = vunpack.c.l.b16 %v63
  %v679 = vunpack.c.h.b16 %v63
  %v680 = vunpack.c.l.b16 %v64
  %v681 = vunpack.c.h.b16 %v64
  %v682 = vunpack.c.l.b16 %v65
  %v683 = vunpack.c.h.b16 %v65
  %v684 = vunpack.c.l.b16 %v66
  %v685 = vunpack.c.h.b16 %v66
  %v686 = vunpack.c.l.b16 %v67
  %v687 = vunpack.c.h.b16 %v67
  %v688 = vunpack.c.l.b16 %v68
  %v689 = vunpack.c.h.b16 %v68
  %v690 = vunpack.c.l.b16 %v69
  %v691 = vunpack.c.h.b16 %v69
  %v692 = vunpack.c.l.b16 %v70
  %v693 = vunpack.c.h.b16 %v70
  %v694 = vunpack.c.l.b16 %v71
  %v695 = vunpack.c.h.b16 %v71
  %v696 = vunpack.c.l.b16 %v72
  %v697 = vunpack.c.h.b16 %v72
  %v698 = vunpack.c.l.b16 %v73
  %v699 = vunpack.c.h.b16 %v73
  %v700 = vunpack.c.l.b16 %v74
  %v701 = vunpack.c.h.b16 %v74
  %v702 = vunpack.c.l.b16 %v75
  %v703 = vunpack.c.h.b16 %v75
  %v704 = vunpack.c.l.b16 %v76
  %v705 = vunpack.c.h.b16 %v76
  %v706 = vunpack.c.l.b16 %v77
  %v707 = vunpack.c.h.b16 %v77
  %v708 = vunpack.c.l.b16 %v78
  %v709 = vunpack.c.h.b16 %v78
  %v710 = vunpack.c.l.b16 %v79
  %v711 = vunpack.c.h.b16 %v79
  %v712 = vunpack.c.l.b16 %v80
  %v713 = vunpack.c.h.b16 %v80
  %v714 = vunpack.c.l.b16 %v81
  %v715 = vunpack.c.h.b16 %v81
  %v716 = vunpack.c.l.b16 %v82
  %v717 = vunpack.c.h.b16 %v82
  %v718 = vunpack.c.l.b16 %v83
  %v719 = vunpack.c.h.b16 %v83
  %v720 = vunpack.c.l.b16 %v84
  %v721 = vunpack.c.h.b16 %v84
  %v722 = vunpack.c.l.b16 %v85
  %v723 = vunpack.c.h.b16 %v85
  %v724 = vunpack.c.l.b16 %v86
  %v725 = vunpack.c.h.b16 %v86
  %v726 = vunpack.c.l.b16 %v87
  %v727 = vunpack.c.h.b16 %v87
  %v728 = vunpack.c.l.b16 %v88
  %v729 = vunpack.c.h.b16 %v88
  %v730 = vunpack.c.l.b16 %v89
  %v731 = vunpack.c.h.b16 %v89
  %v732 = vunpack.c.l.b16 %v90
  %v733 = vunpack.c.h.b16 %v90
  %v734 = vunpack.c.l.b16 %v91
  %v735 = vunpack.c.h.b16 %v91
  %v736 = vunpack.c.l.b16 %v92
  %v737 = vunpack.c.h.b16 %v92
  %v738 = vunpack.c.l.b16 %v93
  %v739 = vunpack.c.h.b16 %v93
  %v740 = vunpack.c.l.b16 %v94
  %v741 = vunpack.c.h.b16 %v94
  %v742 = vunpack.c.l.b16 %v95
  %v743 = vunpack.c.h.b16 %v95
  %v744 = vunpack.c.l.b16 %v96
  %v745 = vunpack.c.h.b16 %v96
  %v746 = vunpack.c.l.b16 %v97
  %v747 = vunpack.c.h.b16 %v97
  %v748 = vunpack.c.l.b16 %v98
  %v749 = vunpack.c.h.b16 %v98
  %v750 = vunpack.c.l.b16 %v99
  %v751 = vunpack.c.h.b16 %v99
  %v752 = vunpack.c.l.b16 %v100
  %v753 = vunpack.c.h.b16 %v100
  %v754 = vunpack.c.l.b16 %v101
  %v755 = vunpack.c.h.b16 %v101
  %v756 = vunpack.c.l.b16 %v102
  %v757 = vunpack.c.h.b16 %v102
  %v758 = vunpack.c.l.b16 %v103
  %v759 = vunpack.c.h.b16 %v103
  %v760 = vunpack.c.l.b16 %v104
  %v761 = vunpack.c.h.b16 %v104
  %v762 = vunpack.c.l.b16 %v105
  %v763 = vunpack.c.h.b16 %v105
  %v764 = vunpack.c.l.b16 %v106
  %v765 = vunpack.c.h.b16 %v106
  %v766 = vunpack.c.l.b16 %v107
  %v767 = vunpack.c.h.b16 %v107
  %v768 = vunpack.c.l.b16 %v108
  %v769 = vunpack.c.h.b16 %v108
  %v770 = vunpack.c.l.b16 %v109
  %v771 = vunpack.c.h.b16 %v109
  %v772 = vunpack.c.l.b16 %v110
  %v773 = vunpack.c.h.b16 %v110
  %v774 = vunpack.c.l.b16 %v111
  %v775 = vunpack.c.h.b16 %v111
  %v776 = vunpack.c.l.b16 %v112
  %v777 = vunpack.c.h.b16 %v112
  %v778 = vunpack.c.l.b16 %v113
  %v779 = vunpack.c.h.b16 %v113
  %v780 = vunpack.c.l.b16 %v114
  %v781 = vunpack.c.h.b16 %v114
  %v782 = vunpack.c.l.b16 %v115
  %v783 = vunpack.c.h.b16 %v115
  %v784 = vunpack.c.l.b16 %v116
  %v785 = vunpack.c.h.b16 %v116
  %v786 = vunpack.c.l.b16 %v117
  %v787 = vunpack.c.h.b16 %v117
  %v788 = vunpack.c.l.b16 %v118
  %v789 = vunpack.c.h.b16 %v118
  %v790 = vunpack.c.l.b16 %v119
  %v791 = vunpack.c.h.b16 %v119
  %v792 = vunpack.c.l.b16 %v120
  %v793 = vunpack.c.h.b16 %v120
  %v794 = vunpack.c.l.b16 %v121
  %v795 = vunpack.c.h.b16 %v121
  %v796 = vunpack.c.l.b16 %v122
  %v797 = vunpack.c.h.b16 %v122
  %v798 = vunpack.c.l.b16 %v123
  %v799 = vunpack.c.h.b16 %v123
  %v800 = vunpack.c.l.b16 %v124
  %v801 = vunpack.c.h.b16 %v124
  %v802 = vunpack.c.l.b16 %v125
  %v803 = vunpack.c.h.b16 %v125
  %v804 = vunpack.c.l.b16 %v126
  %v805 = vunpack.c.h.b16 %v126
  %v806 = vunpack.c.l.b16 %v127
  %v807 = vunpack.c.h.b16 %v127
  %v808 = vunpack.c.l.b16 %v128
  %v809 = vunpack.c.h.b16 %v128
  %v810 = vunpack.c.l.b16 %v129
  %v811 = vunpack.c.h.b16 %v129
  %v812 = vunpack.c.l.b16 %v130
  %v813 = vunpack.c.h.b16 %v130
  %v814 = vunpack.c.l.b16 %v131
  %v815 = vunpack.c.h.b16 %v131
  %v816 = vunpack.c.l.b16 %v132
  %v817 = vunpack.c.h.b16 %v132
  %v818 = vunpack.c.l.b16 %v133
  %v819 = vunpack.c.h.b16 %v133
  %v820 = vunpack.c.l.b16 %v134
  %v821 = vunpack.c.h.b16 %v134
  %v822 = vunpack.c.l.b16 %v135
  %v823 = vunpack.c.h.b16 %v135
  %v824 = vunpack.c.l.b16 %v136
  %v825 = vunpack.c.h.b16 %v136
  %v826 = vunpack.c.l.b16 %v137
  %v827 = vunpack.c.h.b16 %v137
  %v828 = vunpack.c.l.b16 %v138
  %v829 = vunpack.c.h.b16 %v138
  %v830 = vunpack.c.l.b16 %v139
  %v831 = vunpack.c.h.b16 %v139
  %v832 = vunpack.c.l.b16 %v140
  %v833 = vunpack.c.h.b16 %v140
  %v834 = vunpack.c.l.b16 %v141
  %v835 = vunpack.c.h.b16 %v141
  %v836 = vunpack.c.l.b16 %v142
  %v837 = vunpack.c.h.b16 %v142
  %v838 = vunpack.c.l.b16 %v143
  %v839 = vunpack.c.h.b16 %v143
  %v840 = vunpack.c.l.b16 %v144
  %v841 = vunpack.c.h.b16 %v144
  %v842 = vunpack.c.l.b16 %v145
  %v843 = vunpack.c.h.b16 %v145
  %v844 = vunpack.c.l.b16 %v146
  %v845 = vunpack.c.h.b16 %v146
  %v846 = vunpack.c.l.b16 %v147
  %v847 = vunpack.c.h.b16 %v147
  %v848 = vunpack.c.l.b16 %v148
  %v849 = vunpack.c.h.b16 %v148
  %v850 = vunpack.c.l.b16 %v149
  %v851 = vunpack.c.h.b16 %v149
  %v852 = vunpack.c.l.b16 %v150
  %v853 = vunpack.c.h.b16 %v150
  %v854 = vunpack.c.l.b16 %v151
  %v855 = vunpack.c.h.b16 %v151
  %v856 = vunpack.c.l.b16 %v152
  %v857 = vunpack.c.h.b16 %v152
  %v858 = vunpack.c.l.b16 %v153
  %v859 = vunpack.c.h.b16 %v153
  %v860 = vunpack.c.l.b16 %v154
  %v861 = vunpack.c.h.b16 %v154
  %v862 = vunpack.c.l.b16 %v155
  %v863 = vunpack.c.h.b16 %v155
  %v864 = vunpack.c.l.b16 %v156
  %v865 = vunpack.c.h.b16 %v156
  %v866 = vunpack.c.l.b16 %v157
  %v867 = vunpack.c.h.b16 %v157
  %v868 = vunpack.c.l.b16 %v158
  %v869 = vunpack.c.h.b16 %v158
  %v870 = vunpack.c.l.b16 %v159
  %v871 = vunpack.c.h.b16 %v159
  %v872 = vunpack.c.l.b16 %v160
  %v873 = vunpack.c.h.b16 %v160
  %v874 = vunpack.c.l.b16 %v161
  %v875 = vunpack.c.h.b16 %v161
  %v876 = vunpack.c.l.b16 %v162
  %v877 = vunpack.c.h.b16 %v162
  %v878 = vunpack.c.l.b16 %v163
  %v879 = vunpack.c.h.b16 %v163
  %v880 = vunpack.c.l.b16 %v164
  %v881 = vunpack.c.h.b16 %v164
  %v882 = vunpack.c.l.b16 %v165
  %v883 = vunpack.c.h.b16 %v165
  %v884 = vunpack.c.l.b16 %v166
  %v885 = vunpack.c.h.b16 %v166
  %v886 = vunpack.c.l.b16 %v167
  %v887 = vunpack.c.h.b16 %v167
  %v888 = vunpack.c.l.b16 %v168
  %v889 = vunpack.c.h.b16 %v168
  %v890 = vunpack.c.l.b16 %v169
  %v891 = vunpack.c.h.b16 %v169
  %v892 = vunpack.c.l.b16 %v170
  %v893 = vunpack.c.h.b16 %v170
  %v894 = vunpack.c.l.b16 %v171
  %v895 = vunpack.c.h.b16 %v171
  %v896 = vunpack.c.l.b16 %v172
  %v897 = vunpack.c.h.b16 %v172
  %v898 = vunpack.c.l.b16 %v173
  %v899 = vunpack.c.h.b16 %v173
  %v900 = vunpack.c.l.b16 %v174
  %v901 = vunpack.c.h.b16 %v174
  %v902 = vunpack.c.l.b16 %v175
  %v903 = vunpack.c.h.b16 %v175
  %v904 = vunpack.c.l.b16 %v176
  %v905 = vunpack.c.h.b16 %v176
  %v906 = vunpack.c.l.b16 %v177
  %v907 = vunpack.c.h.b16 %v177
  %v908 = vunpack.c.l.b16 %v178
  %v909 = vunpack.c.h.b16 %v178
  %v910 = vunpack.c.l.b16 %v179
  %v911 = vunpack.c.h.b16 %v179
  %v912 = vunpack.c.l.b16 %v180
  %v913 = vunpack.c.h.b16 %v180
  %v914 = vunpack.c.l.b16 %v181
  %v915 = vunpack.c.h.b16 %v181
  %v916 = vunpack.c.l.b16 %v182
  %v917 = vunpack.c.h.b16 %v182
  %v918 = vunpack.c.l.b16 %v183
  %v919 = vunpack.c.h.b16 %v183
  %v920 = vunpack.c.l.b16 %v184
  %v921 = vunpack.c.h.b16 %v184
  %v922 = vunpack.c.l.b16 %v185
  %v923 = vunpack.c.h.b16 %v185
  %v924 = vunpack.c.l.b16 %v186
  %v925 = vunpack.c.h.b16 %v186
  %v926 = vunpack.c.l.b16 %v187
  %v927 = vunpack.c.h.b16 %v187
  %v928 = vunpack.c.l.b16 %v188
  %v929 = vunpack.c.h.b16 %v188
  %v930 = vunpack.c.l.b16 %v189
  %v931 = vunpack.c.h.b16 %v189
  %v932 = vunpack.c.l.b16 %v190
  %v933 = vunpack.c.h.b16 %v190
  %v934 = vunpack.c.l.b16 %v191
  %v935 = vunpack.c.h.b16 %v191
  %v936 = vunpack.c.l.b16 %v192
  %v937 = vunpack.c.h.b16 %v192
  %v938 = vunpack.c.l.b16 %v193
  %v939 = vunpack.c.h.b16 %v193
  %v940 = vunpack.c.l.b16 %v194
  %v941 = vunpack.c.h.b16 %v194
  %v942 = vunpack.c.l.b16 %v195
  %v943 = vunpack.c.h.b16 %v195
  %v944 = vunpack.c.l.b16 %v196
  %v945 = vunpack.c.h.b16 %v196
  %v946 = vunpack.c.l.b16 %v197
  %v947 = vunpack.c.h.b16 %v197
  %v948 = vunpack.c.l.b16 %v198
  %v949 = vunpack.c.h.b16 %v198
  %v950 = vunpack.c.l.b16 %v199
  %v951 = vunpack.c.h.b16 %v199
  %v952 = vunpack.c.l.b16 %v200
  %v953 = vunpack.c.h.b16 %v200
  %v954 = vunpack.c.l.b16 %v201
  %v955 = vunpack.c.h.b16 %v201
  %v956 = vunpack.c.l.b16 %v202
  %v957 = vunpack.c.h.b16 %v202
  %v958 = vunpack.c.l.b16 %v203
  %v959 = vunpack.c.h.b16 %v203
  %v960 = vunpack.c.l.b16 %v204
  %v961 = vunpack.c.h.b16 %v204
  %v962 = vunpack.c.l.b16 %v205
  %v963 = vunpack.c.h.b16 %v205
  %v964 = vunpack.c.l.b16 %v206
  %v965 = vunpack.c.h.b16 %v206
  %v966 = vunpack.c.l.b16 %v207
  %v967 = vunpack.c.h.b16 %v207
  %v968 = vunpack.c.l.b16 %v208
  %v969 = vunpack.c.h.b16 %v208
  %v970 = vunpack.c.l.b16 %v209
  %v971 = vunpack.c.h.b16 %v209
  %v972 = vunpack.c.l.b16 %v210
  %v973 = vunpack.c.h.b16 %v210
  %v974 = vunpack.c.l.b16 %v211
  %v975 = vunpack.c.h.b16 %v211
  %v976 = vunpack.c.l.b16 %v212
  %v977 = vunpack.c.h.b16 %v212
  %v978 = vunpack.c.l.b16 %v213
  %v979 = vunpack.c.h.b16 %v213
  %v980 = vunpack.c.l.b16 %v214
  %v981 = vunpack.c.h.b16 %v214
  %v982 = vunpack.c.l.b16 %v215
  %v983 = vunpack.c.h.b16 %v215
  %v984 = vunpack.c.l.b16 %v216
  %v985 = vunpack.c.h.b16 %v216
  %v986 = vunpack.c.l.b16 %v217
  %v987 = vunpack.c.h.b16 %v217
  %v988 = vunpack.c.l.b16 %v218
  %v989 = vunpack.c.h.b16 %v218
  %v990 = vunpack.c.l.b16 %v219
  %v991 = vunpack.c.h.b16 %v219
  %v992 = vunpack.c.l.b16 %v220
  %v993 = vunpack.c.h.b16 %v220
  %v994 = vunpack.c.l.b16 %v221
  %v995 = vunpack.c.h.b16 %v221
  %v996 = vunpack.c.l.b16 %v222
  %v997 = vunpack.c.h.b16 %v222
  %v998 = vunpack.c.l.b16 %v223
  %v999 = vunpack.c.h.b16 %v223
  %v1000 = vunpack.c.l.b16 %v224
  %v1001 = vunpack.c.h.b16 %v224
  %v1002 = vunpack.c.l.b16 %v225
  %v1003 = vunpack.c.h.b16 %v225
  %v1004 = vunpack.c.l.b16 %v226
  %v1005 = vunpack.c.h.b16 %v226
  %v1006 = vunpack.c.l.b16 %v227
  %v1007 = vunpack.c.h.b16 %v227
  %v1008 = vunpack.c.l.b16 %v228
  %v1009 = vunpack.c.h.b16 %v228
  %v1010 = vunpack.c.l.b16 %v229
  %v1011 = vunpack.c.h.b16 %v229
  %v1012 = vunpack.c.l.b16 %v230
  %v1013 = vunpack.c.h.b16 %v230
  %v1014 = vunpack.c.l.b16 %v231
  %v1015 = vunpack.c.h.b16 %v231
  %v1016 = vunpack.c.l.b16 %v232
  %v1017 = vunpack.c.h.b16 %v232
  %v1018 = vunpack.c.l.b16 %v233
  %v1019 = vunpack.c.h.b16 %v233
  %v1020 = vunpack.c.l.b16 %v234
  %v1021 = vunpack.c.h.b16 %v234
  %v1022 = vunpack.c.l.b16 %v235
  %v1023 = vunpack.c.h.b16 %v235
  %v1024 = vunpack.c.l.b16 %v236
  %v1025 = vunpack.c.h.b16 %v236
  %v1026 = vunpack.c.l.b16 %v237
  %v1027 = vunpack.c.h.b16 %v237
  %v1028 = vunpack.c.l.b16 %v238
  %v1029 = vunpack.c.h.b16 %v238
  %v1030 = vunpack.c.l.b16 %v239
  %v1031 = vunpack.c.h.b16 %v239
  %v1032 = vunpack.c.l.b16 %v240
  %v1033 = vunpack.c.h.b16 %v240
  %v1034 = vunpack.c.l.b16 %v241
  %v1035 = vunpack.c.h.b16 %v241
  %v1036 = vunpack.c.l.b16 %v242
  %v1037 = vunpack.c.h.b16 %v242
  %v1038 = vunpack.c.l.b16 %v243
  %v1039 = vunpack.c.h.b16 %v243
  %v1040 = vunpack.c.l.b16 %v244
  %v1041 = vunpack.c.h.b16 %v244
  %v1042 = vunpack.c.l.b16 %v245
  %v1043 = vunpack.c.h.b16 %v245
  %v1044 = vunpack.c.l.b16 %v246
  %v1045 = vunpack.c.h.b16 %v246
  %v1046 = vunpack.c.l.b16 %v247
  %v1047 = vunpack.c.h.b16 %v247
  %v1048 = vunpack.c.l.b16 %v248
  %v1049 = vunpack.c.h.b16 %v248
  %v1050 = vunpack.c.l.b16 %v249
  %v1051 = vunpack.c.h.b16 %v249
  %v1052 = vunpack.c.l.b16 %v250
  %v1053 = vunpack.c.h.b16 %v250
  %v1054 = vunpack.c.l.b16 %v251
  %v1055 = vunpack.c.h.b16 %v251
  %v1056 = vunpack.c.l.b16 %v252
  %v1057 = vunpack.c.h.b16 %v252
  %v1058 = vunpack.c.l.b16 %v253
  %v1059 = vunpack.c.h.b16 %v253
  %v1060 = vunpack.c.l.b16 %v254
  %v1061 = vunpack.c.h.b16 %v254
  %v1062 = vunpack.c.l.b16 %v255
  %v1063 = vunpack.c.h.b16 %v255
  %v1064 = vunpack.c.l.b16 %v256
  %v1065 = vunpack.c.h.b16 %v256
  %v1066 = vunpack.c.l.b16 %v257
  %v1067 = vunpack.c.h.b16 %v257
  %v1068 = vunpack.c.l.b16 %v258
  %v1069 = vunpack.c.h.b16 %v258
  %v1070 = vunpack.c.l.b16 %v259
  %v1071 = vunpack.c.h.b16 %v259
  %v1072 = vunpack.c.l.b16 %v260
  %v1073 = vunpack.c.h.b16 %v260
  %v1074 = vunpack.c.l.b16 %v261
  %v1075 = vunpack.c.h.b16 %v261
  %v1076 = vunpack.c.l.b16 %v262
  %v1077 = vunpack.c.h.b16 %v262
  %v1078 = vunpack.c.l.b16 %v263
  %v1079 = vunpack.c.h.b16 %v263
  %v1080 = vunpack.c.l.b16 %v264
  %v1081 = vunpack.c.h.b16 %v264
  %v1082 = vunpack.c.l.b16 %v265
  %v1083 = vunpack.c.h.b16 %v265
  %v1084 = vunpack.c.l.b16 %v266
  %v1085 = vunpack.c.h.b16 %v266
  %v1086 = vunpack.c.l.b16 %v267
  %v1087 = vunpack.c.h.b16 %v267
  %v1088 = vunpack.c.l.b16 %v268
  %v1089 = vunpack.c.h.b16 %v268
  %v1090 = vunpack.c.l.b16 %v269
  %v1091 = vunpack.c.h.b16 %v269
  %v1092 = vunpack.c.l.b16 %v270
  %v1093 = vunpack.c.h.b16 %v270
  %v1094 = vunpack.c.l.b16 %v271
  %v1095 = vunpack.c.h.b16 %v271
  %v1096 = vunpack.c.l.b16 %v272
  %v1097 = vunpack.c.h.b16 %v272
  %v1098 = vunpack.c.l.b16 %v273
  %v1099 = vunpack.c.h.b16 %v273
  %v1100 = vunpack.c.l.b16 %v274
  %v1101 = vunpack.c.h.b16 %v274
  %v1102 = vunpack.c.l.b16 %v275
  %v1103 = vunpack.c.h.b16 %v275
  %v1104 = vunpack.c.l.b16 %v276
  %v1105 = vunpack.c.h.b16 %v276
  %v1106 = vunpack.c.l.b16 %v277
  %v1107 = vunpack.c.h.b16 %v277
  %v1108 = vpack.c.b16 %v598, %v596
  %v1109 = vpack.c.b16 %v599, %v597
  %v1110 = vpack.c.b16 %v602, %v600
  %v1111 = vpack.c.b16 %v603, %v601
  %v1112 = vpack.c.b16 %v606, %v604
  %v1113 = vpack.c.b16 %v607, %v605
  %v1114 = vpack.c.b16 %v610, %v608
  %v1115 = vpack.c.b16 %v611, %v609
  %v1116 = vpack.c.b16 %v614, %v612
  %v1117 = vpack.c.b16 %v615, %v613
  %v1118 = vpack.c.b16 %v618, %v616
  %v1119 = vpack.c.b16 %v619, %v617
  %v1120 = vpack.c.b16 %v622, %v620
  %v1121 = vpack.c.b16 %v623, %v621
  %v1122 = vpack.c.b16 %v626, %v624
  %v1123 = vpack.c.b16 %v627, %v625
  %v1124 = vpack.c.b16 %v630, %v628
  %v1125 = vpack.c.b16 %v631, %v629
  %v1126 = vpack.c.b16 %v634, %v632
  %v1127 = vpack.c.b16 %v635, %v633
  %v1128 = vpack.c.b16 %v638, %v636
  %v1129 = vpack.c.b16 %v639, %v637
  %v1130 = vpack.c.b16 %v642, %v640
  %v1131 = vpack.c.b16 %v643, %v641
  %v1132 = vpack.c.b16 %v646, %v644
  %v1133 = vpack.c.b16 %v647, %v645
  %v1134 = vpack.c.b16 %v650, %v648
  %v1135 = vpack.c.b16 %v651, %v649
  %v1136 = vpack.c.b16 %v654, %v652
  %v1137 = vpack.c.b16 %v655, %v653
  %v1138 = vpack.c.b16 %v658, %v656
  %v1139 = vpack.c.b16 %v659, %v657
  %v1140 = vpack.c.b16 %v662, %v660
  %v1141 = vpack.c.b16 %v663, %v661
  %v1142 = vpack.c.b16 %v666, %v664
  %v1143 = vpack.c.b16 %v667, %v665
  %v1144 = vpack.c.b16 %v670, %v668
  %v1145 = vpack.c.b16 %v671, %v669
  %v1146 = vpack.c.b16 %v674, %v672
  %v1147 = vpack.c.b16 %v675, %v673
  %v1148 = vpack.c.b16 %v678, %v676
  %v1149 = vpack.c.b16 %v679, %v677
  %v1150 = vpack.c.b16 %v682, %v680
  %v1151 = vpack.c.b16 %v683, %v681
  %v1152 = vpack.c.b16 %v686, %v684
  %v1153 = vpack.c.b16 %v687, %v685
  %v1154 = vpack.c.b16 %v690, %v688
  %v1155 = vpack.c.b16 %v691, %v689
  %v1156 = vpack.c.b16 %v694, %v692
  %v1157 = vpack.c.b16 %v695, %v693
  %v1158 = vpack.c.b16 %v698, %v696
  %v1159 = vpack.c.b16 %v699, %v697
  %v1160 = vpack.c.b16 %v702, %v700
  %v1161 = vpack.c.b16 %v703, %v701
  %v1162 = vpack.c.b16 %v706, %v704
  %v1163 = vpack.c.b16 %v707, %v705
  %v1164 = vpack.c.b16 %v710, %v708
  %v1165 = vpack.c.b16 %v711, %v709
  %v1166 = vpack.c.b16 %v714, %v712
  %v1167 = vpack.c.b16 %v715, %v713
  %v1168 = vpack.c.b16 %v718, %v716
  %v1169 = vpack.c.b16 %v719, %v717
  %v1170 = vpack.c.b16 %v722, %v720
  %v1171 = vpack.c.b16 %v723, %v721
  %v1172 = vpack.c.b16 %v726, %v724
  %v1173 = vpack.c.b16 %v727, %v725
  %v1174 = vpack.c.b16 %v730, %v728
  %v1175 = vpack.c.b16 %v731, %v729
  %v1176 = vpack.c.b16 %v734, %v732
  %v1177 = vpack.c.b16 %v735, %v733
  %v1178 = vpack.c.b16 %v738, %v736
  %v1179 = vpack.c.b16 %v739, %v737
  %v1180 = vpack.c.b16 %v742, %v740
  %v1181 = vpack.c.b16 %v743, %v741
  %v1182 = vpack.c.b16 %v746, %v744
  %v1183 = vpack.c.b16 %v747, %v745
  %v1184 = vpack.c.b16 %v750, %v748
  %v1185 = vpack.c.b16 %v751, %v749
  %v1186 = vpack.c.b16 %v754, %v752
  %v1187 = vpack.c.b16 %v755, %v753
  %v1188 = vpack.c.b16 %v758, %v756
  %v1189 = vpack.c.b16 %v759, %v757
  %v1190 = vpack.c.b16 %v762, %v760
  %v1191 = vpack.c.b16 %v763, %v761
  %v1192 = vpack.c.b16 %v766, %v764
  %v1193 = vpack.c.b16 %v767, %v765
  %v1194 = vpack.c.b16 %v770, %v768
  %v1195 = vpack.c.b16 %v771, %v769
  %v1196 = vpack.c.b16 %v774, %v772
  %v1197 = vpack.c.b16 %v775, %v773
  %v1198 = vpack.c.b16 %v778, %v776
  %v1199 = vpack.c.b16 %v779, %v777
  %v1200 = vpack.c.b16 %v782, %v780
  %v1201 = vpack.c.b16 %v783, %v781
  %v1202 = vpack.c.b16 %v786, %v784
  %v1203 = vpack.c.b16 %v787, %v785
  %v1204 = vpack.c.b16 %v790, %v788
  %v1205 = vpack.c.b16 %v791, %v789
  %v1206 = vpack.c.b16 %v794, %v792
  %v1207 = vpack.c.b16 %v795, %v793
  %v1208 = vpack.c.b16 %v798, %v796
  %v1209 = vpack.c.b16 %v799, %v797
  %v1210 = vpack.c.b16 %v802, %v800
  %v1211 = vpack.c.b16 %v803, %v801
  %v1212 = vpack.c.b16 %v806, %v804
  %v1213 = vpack.c.b16 %v807, %v805
  %v1214 = vpack.c.b16 %v810, %v808
  %v1215 = vpack.c.b16 %v811, %v809
  %v1216 = vpack.c.b16 %v814, %v812
  %v1217 = vpack.c.b16 %v815, %v813
  %v1218 = vpack.c.b16 %v818, %v816
  %v1219 = vpack.c.b16 %v819, %v817
  %v1220 = vpack.c.b16 %v822, %v820
  %v1221 = vpack.c.b16 %v823, %v821
  %v1222 = vpack.c.b16 %v826, %v824
  %v1223 = vpack.c.b16 %v827, %v825
  %v1224 = vpack.c.b16 %v830, %v828
  %v1225 = vpack.c.b16 %v831, %v829
  %v1226 = vpack.c.b16 %v834, %v832
  %v1227 = vpack.c.b16 %v835, %v833
  %v1228 = vpack.c.b16 %v838, %v836
  %v1229 = vpack.c.b16 %v839, %v837
  %v1230 = vpack.c.b16 %v842, %v840
  %v1231 = vpack.c.b16 %v843, %v841
  %v1232 = vpack.c.b16 %v846, %v844
  %v1233 = vpack.c.b16 %v847, %v845
  %v1234 = vpack.c.b16 %v850, %v848
  %v1235 = vpack.c.b16 %v851, %v849
  %v1236 = vpack.c.b16 %v854, %v852
  %v1237 = vpack.c.b16 %v855, %v853
  %v1238 = vpack.c.b16 %v858, %v856
  %v1239 = vpack.c.b16 %v859, %v857
  %v1240 = vpack.c.b16 %v862, %v860
  %v1241 = vpack.c.b16 %v863, %v861
  %v1242 = vpack.c.b16 %v866, %v864
  %v1243 = vpack.c.b16 %v867, %v865
  %v1244 = vpack.c.b16 %v870, %v868
  %v1245 = vpack.c.b16 %v871, %v869
  %v1246 = vpack.c.b16 %v874, %v872
  %v1247 = vpack.c.b16 %v875, %v873
  %v1248 = vpack.c.b16 %v878, %v876
  %v1249 = vpack.c.b16 %v879, %v877
  %v1250 = vpack.c.b16 %v882, %v880
  %v1251 = vpack.c.b16 %v883, %v881
  %v1252 = vpack.c.b16 %v886, %v884
  %v1253 = vpack.c.b16 %v887, %v885
  %v1254 = vpack.c.b16 %v890, %v888
  %v1255 = vpack.c.b16 %v891, %v889
  %v1256 = vpack.c.b16 %v894, %v892
  %v1257 = vpack.c.b16 %v895, %v893
  %v1258 = vpack.c.b16 %v898, %v896
  %v1259 = vpack.c.b16 %v899, %v897
  %v1260 = vpack.c.b16 %v902, %v900
  %v1261 = vpack.c.b16 %v903, %v901
  %v1262 = vpack.c.b16 %v906, %v904
  %v1263 = vpack.c.b16 %v907, %v905
  %v1264 = vpack.c.b16 %v910, %v908
  %v1265 = vpack.c.b16 %v911, %v909
  %v1266 = vpack.c.b16 %v914, %v912
  %v1267 = vpack.c.b16 %v915, %v913
  %v1268 = vpack.c.b16 %v918, %v916
  %v1269 = vpack.c.b16 %v919, %v917
  %v1270 = vpack.c.b16 %v922, %v920
  %v1271 = vpack.c.b16 %v923, %v921
  %v1272 = vpack.c.b16 %v926, %v924
  %v1273 = vpack.c.b16 %v927, %v925
  %v1274 = vpack.c.b16 %v930, %v928
  %v1275 = vpack.c.b16 %v931, %v929
  %v1276 = vpack.c.b16 %v934, %v932
  %v1277 = vpack.c.b16 %v935, %v933
  %v1278 = vpack.c.b16 %v938, %v936
  %v1279 = vpack.c.b16 %v939, %v937
  %v1280 = vpack.c.b16 %v942, %v940
  %v1281 = vpack.c.b16 %v943, %v941
  %v1282 = vpack.c.b16 %v946, %v944
  %v1283 = vpack.c.b16 %v947, %v945
  %v1284 = vpack.c.b16 %v950, %v948
  %v1285 = vpack.c.b16 %v951, %v949
  %v1286 = vpack.c.b16 %v954, %v952
  %v1287 = vpack.c.b16 %v955, %v953
  %v1288 = vpack.c.b16 %v958, %v956
  %v1289 = vpack.c.b16 %v959, %v957
  %v1290 = vpack.c.b16 %v962, %v960
  %v1291 = vpack.c.b16 %v963, %v961
  %v1292 = vpack.c.b16 %v966, %v964
  %v1293 = vpack.c.b16 %v967, %v965
  %v1294 = vpack.c.b16 %v970, %v968
  %v1295 = vpack.c.b16 %v971, %v969
  %v1296 = vpack.c.b16 %v974, %v972
  %v1297 = vpack.c.b16 %v975, %v973
  %v1298 = vpack.c.b16 %v978, %v976
  %v1299 = vpack.c.b16 %v979, %v977
  %v1300 = vpack.c.b16 %v982, %v980
  %v1301 = vpack.c.b16 %v983, %v981
  %v1302 = vpack.c.b16 %v986, %v984
  %v1303 = vpack.c.b16 %v987, %v985
  %v1304 = vpack.c.b16 %v990, %v988
  %v1305 = vpack.c.b16 %v991, %v989
  %v1306 = vpack.c.b16 %v994, %v992
  %v1307 = vpack.c.b16 %v995, %v993
  %v1308 = vpack.c.b16 %v998, %v996
  %v1309 = vpack.c.b16 %v999, %v997
  %v1310 = vpack.c.b16 %v1002, %v1000
  %v1311 = vpack.c.b16 %v1003, %v1001
  %v1312 = vpack.c.b16 %v1006, %v1004
  %v1313 = vpack.c.b16 %v1007, %v1005
  %v1314 = vpack.c.b16 %v1010, %v1008
  %v1315 = vpack.c.b16 %v1011, %v1009
  %v1316 = vpack.c.b16 %v1014, %v1012
  %v1317 = vpack.c.b16 %v1015, %v1013
  %v1318 = vpack.c.b16 %v1018, %v1016
  %v1319 = vpack.c.b16 %v1019, %v1017
  %v1320 = vpack.c.b16 %v1022, %v1020
  %v1321 = vpack.c.b16 %v1023, %v1021
  %v1322 = vpack.c.b16 %v1026, %v1024
  %v1323 = vpack.c.b16 %v1027, %v1025
  %v1324 = vpack.c.b16 %v1030, %v1028
  %v1325 = vpack.c.b16 %v1031, %v1029
  %v1326 = vpack.c.b16 %v1034, %v1032
  %v1327 = vpack.c.b16 %v1035, %v1033
  %v1328 = vpack.c.b16 %v1038, %v1036
  %v1329 = vpack.c.b16 %v1039, %v1037
  %v1330 = vpack.c.b16 %v1042, %v1040
  %v1331 = vpack.c.b16 %v1043, %v1041
  %v1332 = vpack.c.b16 %v1046, %v1044
  %v1333 = vpack.c.b16 %v1047, %v1045
  %v1334 = vpack.c.b16 %v1050, %v1048
  %v1335 = vpack.c.b16 %v1051, %v1049
  %v1336 = vpack.c.b16 %v1054, %v1052
  %v1337 = vpack.c.b16 %v1055, %v1053
  %v1338 = vpack.c.b16 %v1058, %v1056
  %v1339 = vpack.c.b16 %v1059, %v1057
  %v1340 = vpack.c.b16 %v1062, %v1060
  %v1341 = vpack.c.b16 %v1063, %v1061
  %v1342 = vpack.c.b16 %v1066, %v1064
  %v1343 = vpack.c.b16 %v1067, %v1065
  %v1344 = vpack.c.b16 %v1070, %v1068
  %v1345 = vpack.c.b16 %v1071, %v1069
  %v1346 = vpack.c.b16 %v1074, %v1072
  %v1347 = vpack.c.b16 %v1075, %v1073
  %v1348 = vpack.c.b16 %v1078, %v1076
  %v1349 = vpack.c.b16 %v1079, %v1077
  %v1350 = vpack.c.b16 %v1082, %v1080
  %v1351 = vpack.c.b16 %v1083, %v1081
  %v1352 = vpack.c.b16 %v1086, %v1084
  %v1353 = vpack.c.b16 %v1087, %v1085
  %v1354 = vpack.c.b16 %v1090, %v1088
  %v1355 = vpack.c.b16 %v1091, %v1089
  %v1356 = vpack.c.b16 %v1094, %v1092
  %v1357 = vpack.c.b16 %v1095, %v1093
  %v1358 = vpack.c.b16 %v1098, %v1096
  %v1359 = vpack.c.b16 %v1099, %v1097
  %v1360 = vpack.c.b16 %v1102, %v1100
  %v1361 = vpack.c.b16 %v1103, %v1101
  %v1362 = vpack.c.b16 %v1106, %v1104
  %v1363 = vpack.c.b16 %v1107, %v1105
  %1620 = vmatpush.bf16.msra.mxu0 %v1122
  %1621 = vmatpush.bf16.msra.mxu0 %v1120
  %1622 = vmatpush.bf16.msra.mxu0 %v1118
  %1623 = vmatpush.bf16.msra.mxu0 %v1116
  %1624 = vmatpush.bf16.msra.mxu0 %v1114
  %1625 = vmatpush.bf16.msra.mxu0 %v1112
  %1626 = vmatpush.bf16.msra.mxu0 %v1110
  %1627 = vmatpush.bf16.msra.mxu0 %v1108
  %1628 = vmatmul.bf16.gmra.mxu0 %v308
  %v1629 = vpop.f32.mrf.mxu0
  %v1630 = vadd.f32 %v280, %v1629
  %v1631 = vpop.f32.mrf.mxu0
  %1632 = vdwg.mxu0
  %1633 = vmatpush.bf16.msra.mxu0 %v1138
  %1634 = vmatpush.bf16.msra.mxu0 %v1136
  %1635 = vmatpush.bf16.msra.mxu0 %v1134
  %1636 = vmatpush.bf16.msra.mxu0 %v1132
  %1637 = vmatpush.bf16.msra.mxu0 %v1130
  %1638 = vmatpush.bf16.msra.mxu0 %v1128
  %1639 = vmatpush.bf16.msra.mxu0 %v1126
  %1640 = vmatpush.bf16.msra.mxu0 %v1124
  %1641 = vmatmul.bf16.gmra.mxu0 %v309
  %v1642 = vpop.f32.mrf.mxu0
  %v1643 = vadd.f32 %v1630, %v1642
  %v1644 = vpop.f32.mrf.mxu0
  %1645 = vdwg.mxu0
  %1646 = vmatpush.bf16.msra.mxu0 %v1154
  %1647 = vmatpush.bf16.msra.mxu0 %v1152
  %1648 = vmatpush.bf16.msra.mxu0 %v1150
  %1649 = vmatpush.bf16.msra.mxu0 %v1148
  %1650 = vmatpush.bf16.msra.mxu0 %v1146
  %1651 = vmatpush.bf16.msra.mxu0 %v1144
  %1652 = vmatpush.bf16.msra.mxu0 %v1142
  %1653 = vmatpush.bf16.msra.mxu0 %v1140
  %1654 = vmatmul.bf16.gmra.mxu0 %v310
  %v1655 = vpop.f32.mrf.mxu0
  %v1656 = vadd.f32 %v1643, %v1655
  %v1657 = vpop.f32.mrf.mxu0
  %1658 = vdwg.mxu0
  %1659 = vmatpush.bf16.msra.mxu0 %v1170
  %1660 = vmatpush.bf16.msra.mxu0 %v1168
  %1661 = vmatpush.bf16.msra.mxu0 %v1166
  %1662 = vmatpush.bf16.msra.mxu0 %v1164
  %1663 = vmatpush.bf16.msra.mxu0 %v1162
  %1664 = vmatpush.bf16.msra.mxu0 %v1160
  %1665 = vmatpush.bf16.msra.mxu0 %v1158
  %1666 = vmatpush.bf16.msra.mxu0 %v1156
  %1667 = vmatmul.bf16.gmra.mxu0 %v311
  %v1668 = vpop.f32.mrf.mxu0
  %v1669 = vadd.f32 %v1656, %v1668
  %v1670 = vpop.f32.mrf.mxu0
  %1671 = vdwg.mxu0
  %1672 = vmatpush.bf16.msra.mxu0 %v1186
  %1673 = vmatpush.bf16.msra.mxu0 %v1184
  %1674 = vmatpush.bf16.msra.mxu0 %v1182
  %1675 = vmatpush.bf16.msra.mxu0 %v1180
  %1676 = vmatpush.bf16.msra.mxu0 %v1178
  %1677 = vmatpush.bf16.msra.mxu0 %v1176
  %1678 = vmatpush.bf16.msra.mxu0 %v1174
  %1679 = vmatpush.bf16.msra.mxu0 %v1172
  %1680 = vmatmul.bf16.gmra.mxu0 %v312
  %v1681 = vpop.f32.mrf.mxu0
  %v1682 = vadd.f32 %v1669, %v1681
  %v1683 = vpop.f32.mrf.mxu0
  %1684 = vdwg.mxu0
  %1685 = vmatpush.bf16.msra.mxu0 %v1202
  %1686 = vmatpush.bf16.msra.mxu0 %v1200
  %1687 = vmatpush.bf16.msra.mxu0 %v1198
  %1688 = vmatpush.bf16.msra.mxu0 %v1196
  %1689 = vmatpush.bf16.msra.mxu0 %v1194
  %1690 = vmatpush.bf16.msra.mxu0 %v1192
  %1691 = vmatpush.bf16.msra.mxu0 %v1190
  %1692 = vmatpush.bf16.msra.mxu0 %v1188
  %1693 = vmatmul.bf16.gmra.mxu0 %v313
  %v1694 = vpop.f32.mrf.mxu0
  %v1695 = vadd.f32 %v1682, %v1694
  %v1696 = vpop.f32.mrf.mxu0
  %1697 = vdwg.mxu0
  %1698 = vmatpush.bf16.msra.mxu0 %v1218
  %1699 = vmatpush.bf16.msra.mxu0 %v1216
  %1700 = vmatpush.bf16.msra.mxu0 %v1214
  %1701 = vmatpush.bf16.msra.mxu0 %v1212
  %1702 = vmatpush.bf16.msra.mxu0 %v1210
  %1703 = vmatpush.bf16.msra.mxu0 %v1208
  %1704 = vmatpush.bf16.msra.mxu0 %v1206
  %1705 = vmatpush.bf16.msra.mxu0 %v1204
  %1706 = vmatmul.bf16.gmra.mxu0 %v314
  %v1707 = vpop.f32.mrf.mxu0
  %v1708 = vadd.f32 %v1695, %v1707
  %v1709 = vpop.f32.mrf.mxu0
  %1710 = vdwg.mxu0
  %1711 = vmatpush.bf16.msra.mxu0 %v1234
  %1712 = vmatpush.bf16.msra.mxu0 %v1232
  %1713 = vmatpush.bf16.msra.mxu0 %v1230
  %1714 = vmatpush.bf16.msra.mxu0 %v1228
  %1715 = vmatpush.bf16.msra.mxu0 %v1226
  %1716 = vmatpush.bf16.msra.mxu0 %v1224
  %1717 = vmatpush.bf16.msra.mxu0 %v1222
  %1718 = vmatpush.bf16.msra.mxu0 %v1220
  %1719 = vmatmul.bf16.gmra.mxu0 %v315
  %v1720 = vpop.f32.mrf.mxu0
  %v1721 = vadd.f32 %v1708, %v1720
  %v1722 = vpop.f32.mrf.mxu0
  %1723 = vdwg.mxu0
  %1724 = vmatpush.bf16.msra.mxu0 %v1250
  %1725 = vmatpush.bf16.msra.mxu0 %v1248
  %1726 = vmatpush.bf16.msra.mxu0 %v1246
  %1727 = vmatpush.bf16.msra.mxu0 %v1244
  %1728 = vmatpush.bf16.msra.mxu0 %v1242
  %1729 = vmatpush.bf16.msra.mxu0 %v1240
  %1730 = vmatpush.bf16.msra.mxu0 %v1238
  %1731 = vmatpush.bf16.msra.mxu0 %v1236
  %1732 = vmatmul.bf16.gmra.mxu0 %v316
  %v1733 = vpop.f32.mrf.mxu0
  %v1734 = vadd.f32 %v1721, %v1733
  %v1735 = vpop.f32.mrf.mxu0
  %1736 = vdwg.mxu0
  %1737 = vmatpush.bf16.msra.mxu0 %v1266
  %1738 = vmatpush.bf16.msra.mxu0 %v1264
  %1739 = vmatpush.bf16.msra.mxu0 %v1262
  %1740 = vmatpush.bf16.msra.mxu0 %v1260
  %1741 = vmatpush.bf16.msra.mxu0 %v1258
  %1742 = vmatpush.bf16.msra.mxu0 %v1256
  %1743 = vmatpush.bf16.msra.mxu0 %v1254
  %1744 = vmatpush.bf16.msra.mxu0 %v1252
  %1745 = vmatmul.bf16.gmra.mxu0 %v317
  %v1746 = vpop.f32.mrf.mxu0
  %v1747 = vadd.f32 %v1734, %v1746
  %v1748 = vpop.f32.mrf.mxu0
  %1749 = vdwg.mxu0
  %1750 = vmatpush.bf16.msra.mxu0 %v1282
  %1751 = vmatpush.bf16.msra.mxu0 %v1280
  %1752 = vmatpush.bf16.msra.mxu0 %v1278
  %1753 = vmatpush.bf16.msra.mxu0 %v1276
  %1754 = vmatpush.bf16.msra.mxu0 %v1274
  %1755 = vmatpush.bf16.msra.mxu0 %v1272
  %1756 = vmatpush.bf16.msra.mxu0 %v1270
  %1757 = vmatpush.bf16.msra.mxu0 %v1268
  %1758 = vmatmul.bf16.gmra.mxu0 %v318
  %v1759 = vpop.f32.mrf.mxu0
  %v1760 = vadd.f32 %v1747, %v1759
  %v1761 = vpop.f32.mrf.mxu0
  %1762 = vdwg.mxu0
  %1763 = vmatpush.bf16.msra.mxu0 %v1298
  %1764 = vmatpush.bf16.msra.mxu0 %v1296
  %1765 = vmatpush.bf16.msra.mxu0 %v1294
  %1766 = vmatpush.bf16.msra.mxu0 %v1292
  %1767 = vmatpush.bf16.msra.mxu0 %v1290
  %1768 = vmatpush.bf16.msra.mxu0 %v1288
  %1769 = vmatpush.bf16.msra.mxu0 %v1286
  %1770 = vmatpush.bf16.msra.mxu0 %v1284
  %1771 = vmatmul.bf16.gmra.mxu0 %v319
  %v1772 = vpop.f32.mrf.mxu0
  %v1773 = vadd.f32 %v1760, %v1772
  %v1774 = vpop.f32.mrf.mxu0
  %1775 = vdwg.mxu0
  %1776 = vmatpush.bf16.msra.mxu0 %v1314
  %1777 = vmatpush.bf16.msra.mxu0 %v1312
  %1778 = vmatpush.bf16.msra.mxu0 %v1310
  %1779 = vmatpush.bf16.msra.mxu0 %v1308
  %1780 = vmatpush.bf16.msra.mxu0 %v1306
  %1781 = vmatpush.bf16.msra.mxu0 %v1304
  %1782 = vmatpush.bf16.msra.mxu0 %v1302
  %1783 = vmatpush.bf16.msra.mxu0 %v1300
  %1784 = vmatmul.bf16.gmra.mxu0 %v320
  %v1785 = vpop.f32.mrf.mxu0
  %v1786 = vadd.f32 %v1773, %v1785
  %v1787 = vpop.f32.mrf.mxu0
  %1788 = vdwg.mxu0
  %1789 = vmatpush.bf16.msra.mxu0 %v1330
  %1790 = vmatpush.bf16.msra.mxu0 %v1328
  %1791 = vmatpush.bf16.msra.mxu0 %v1326
  %1792 = vmatpush.bf16.msra.mxu0 %v1324
  %1793 = vmatpush.bf16.msra.mxu0 %v1322
  %1794 = vmatpush.bf16.msra.mxu0 %v1320
  %1795 = vmatpush.bf16.msra.mxu0 %v1318
  %1796 = vmatpush.bf16.msra.mxu0 %v1316
  %1797 = vmatmul.bf16.gmra.mxu0 %v321
  %v1798 = vpop.f32.mrf.mxu0
  %v1799 = vadd.f32 %v1786, %v1798
  %v1800 = vpop.f32.mrf.mxu0
  %1801 = vdwg.mxu0
  %1802 = vmatpush.bf16.msra.mxu0 %v1346
  %1803 = vmatpush.bf16.msra.mxu0 %v1344
  %1804 = vmatpush.bf16.msra.mxu0 %v1342
  %1805 = vmatpush.bf16.msra.mxu0 %v1340
  %1806 = vmatpush.bf16.msra.mxu0 %v1338
  %1807 = vmatpush.bf16.msra.mxu0 %v1336
  %1808 = vmatpush.bf16.msra.mxu0 %v1334
  %1809 = vmatpush.bf16.msra.mxu0 %v1332
  %1810 = vmatmul.bf16.gmra.mxu0 %v322
  %v1811 = vpop.f32.mrf.mxu0
  %v1812 = vadd.f32 %v1799, %v1811
  %v1813 = vpop.f32.mrf.mxu0
  %1814 = vdwg.mxu0
  %1815 = vmatpush.bf16.msra.mxu0 %v1362
  %1816 = vmatpush.bf16.msra.mxu0 %v1360
  %1817 = vmatpush.bf16.msra.mxu0 %v1358
  %1818 = vmatpush.bf16.msra.mxu0 %v1356
  %1819 = vmatpush.bf16.msra.mxu0 %v1354
  %1820 = vmatpush.bf16.msra.mxu0 %v1352
  %1821 = vmatpush.bf16.msra.mxu0 %v1350
  %1822 = vmatpush.bf16.msra.mxu0 %v1348
  %1823 = vmatmul.bf16.gmra.mxu0 %v323
  %v1824 = vpop.f32.mrf.mxu0
  %v1825 = vadd.f32 %v1812, %v1824
  %v1826 = vpop.f32.mrf.mxu0
  %1827 = vdwg.mxu0
  %1828 = vmatpush.bf16.msra.mxu0 %v1123
  %1829 = vmatpush.bf16.msra.mxu0 %v1121
  %1830 = vmatpush.bf16.msra.mxu0 %v1119
  %1831 = vmatpush.bf16.msra.mxu0 %v1117
  %1832 = vmatpush.bf16.msra.mxu0 %v1115
  %1833 = vmatpush.bf16.msra.mxu0 %v1113
  %1834 = vmatpush.bf16.msra.mxu0 %v1111
  %1835 = vmatpush.bf16.msra.mxu0 %v1109
  %1836 = vmatmul.bf16.gmra.mxu0 %v308
  %v1837 = vpop.f32.mrf.mxu0
  %v1838 = vadd.f32 %v281, %v1837
  %v1839 = vpop.f32.mrf.mxu0
  %1840 = vdwg.mxu0
  %1841 = vmatpush.bf16.msra.mxu0 %v1139
  %1842 = vmatpush.bf16.msra.mxu0 %v1137
  %1843 = vmatpush.bf16.msra.mxu0 %v1135
  %1844 = vmatpush.bf16.msra.mxu0 %v1133
  %1845 = vmatpush.bf16.msra.mxu0 %v1131
  %1846 = vmatpush.bf16.msra.mxu0 %v1129
  %1847 = vmatpush.bf16.msra.mxu0 %v1127
  %1848 = vmatpush.bf16.msra.mxu0 %v1125
  %1849 = vmatmul.bf16.gmra.mxu0 %v309
  %v1850 = vpop.f32.mrf.mxu0
  %v1851 = vadd.f32 %v1838, %v1850
  %v1852 = vpop.f32.mrf.mxu0
  %1853 = vdwg.mxu0
  %1854 = vmatpush.bf16.msra.mxu0 %v1155
  %1855 = vmatpush.bf16.msra.mxu0 %v1153
  %1856 = vmatpush.bf16.msra.mxu0 %v1151
  %1857 = vmatpush.bf16.msra.mxu0 %v1149
  %1858 = vmatpush.bf16.msra.mxu0 %v1147
  %1859 = vmatpush.bf16.msra.mxu0 %v1145
  %1860 = vmatpush.bf16.msra.mxu0 %v1143
  %1861 = vmatpush.bf16.msra.mxu0 %v1141
  %1862 = vmatmul.bf16.gmra.mxu0 %v310
  %v1863 = vpop.f32.mrf.mxu0
  %v1864 = vadd.f32 %v1851, %v1863
  %v1865 = vpop.f32.mrf.mxu0
  %1866 = vdwg.mxu0
  %1867 = vmatpush.bf16.msra.mxu0 %v1171
  %1868 = vmatpush.bf16.msra.mxu0 %v1169
  %1869 = vmatpush.bf16.msra.mxu0 %v1167
  %1870 = vmatpush.bf16.msra.mxu0 %v1165
  %1871 = vmatpush.bf16.msra.mxu0 %v1163
  %1872 = vmatpush.bf16.msra.mxu0 %v1161
  %1873 = vmatpush.bf16.msra.mxu0 %v1159
  %1874 = vmatpush.bf16.msra.mxu0 %v1157
  %1875 = vmatmul.bf16.gmra.mxu0 %v311
  %v1876 = vpop.f32.mrf.mxu0
  %v1877 = vadd.f32 %v1864, %v1876
  %v1878 = vpop.f32.mrf.mxu0
  %1879 = vdwg.mxu0
  %1880 = vmatpush.bf16.msra.mxu0 %v1187
  %1881 = vmatpush.bf16.msra.mxu0 %v1185
  %1882 = vmatpush.bf16.msra.mxu0 %v1183
  %1883 = vmatpush.bf16.msra.mxu0 %v1181
  %1884 = vmatpush.bf16.msra.mxu0 %v1179
  %1885 = vmatpush.bf16.msra.mxu0 %v1177
  %1886 = vmatpush.bf16.msra.mxu0 %v1175
  %1887 = vmatpush.bf16.msra.mxu0 %v1173
  %1888 = vmatmul.bf16.gmra.mxu0 %v312
  %v1889 = vpop.f32.mrf.mxu0
  %v1890 = vadd.f32 %v1877, %v1889
  %v1891 = vpop.f32.mrf.mxu0
  %1892 = vdwg.mxu0
  %1893 = vmatpush.bf16.msra.mxu0 %v1203
  %1894 = vmatpush.bf16.msra.mxu0 %v1201
  %1895 = vmatpush.bf16.msra.mxu0 %v1199
  %1896 = vmatpush.bf16.msra.mxu0 %v1197
  %1897 = vmatpush.bf16.msra.mxu0 %v1195
  %1898 = vmatpush.bf16.msra.mxu0 %v1193
  %1899 = vmatpush.bf16.msra.mxu0 %v1191
  %1900 = vmatpush.bf16.msra.mxu0 %v1189
  %1901 = vmatmul.bf16.gmra.mxu0 %v313
  %v1902 = vpop.f32.mrf.mxu0
  %v1903 = vadd.f32 %v1890, %v1902
  %v1904 = vpop.f32.mrf.mxu0
  %1905 = vdwg.mxu0
  %1906 = vmatpush.bf16.msra.mxu0 %v1219
  %1907 = vmatpush.bf16.msra.mxu0 %v1217
  %1908 = vmatpush.bf16.msra.mxu0 %v1215
  %1909 = vmatpush.bf16.msra.mxu0 %v1213
  %1910 = vmatpush.bf16.msra.mxu0 %v1211
  %1911 = vmatpush.bf16.msra.mxu0 %v1209
  %1912 = vmatpush.bf16.msra.mxu0 %v1207
  %1913 = vmatpush.bf16.msra.mxu0 %v1205
  %1914 = vmatmul.bf16.gmra.mxu0 %v314
  %v1915 = vpop.f32.mrf.mxu0
  %v1916 = vadd.f32 %v1903, %v1915
  %v1917 = vpop.f32.mrf.mxu0
  %1918 = vdwg.mxu0
  %1919 = vmatpush.bf16.msra.mxu0 %v1235
  %1920 = vmatpush.bf16.msra.mxu0 %v1233
  %1921 = vmatpush.bf16.msra.mxu0 %v1231
  %1922 = vmatpush.bf16.msra.mxu0 %v1229
  %1923 = vmatpush.bf16.msra.mxu0 %v1227
  %1924 = vmatpush.bf16.msra.mxu0 %v1225
  %1925 = vmatpush.bf16.msra.mxu0 %v1223
  %1926 = vmatpush.bf16.msra.mxu0 %v1221
  %1927 = vmatmul.bf16.gmra.mxu0 %v315
  %v1928 = vpop.f32.mrf.mxu0
  %v1929 = vadd.f32 %v1916, %v1928
  %v1930 = vpop.f32.mrf.mxu0
  %1931 = vdwg.mxu0
  %1932 = vmatpush.bf16.msra.mxu0 %v1251
  %1933 = vmatpush.bf16.msra.mxu0 %v1249
  %1934 = vmatpush.bf16.msra.mxu0 %v1247
  %1935 = vmatpush.bf16.msra.mxu0 %v1245
  %1936 = vmatpush.bf16.msra.mxu0 %v1243
  %1937 = vmatpush.bf16.msra.mxu0 %v1241
  %1938 = vmatpush.bf16.msra.mxu0 %v1239
  %1939 = vmatpush.bf16.msra.mxu0 %v1237
  %1940 = vmatmul.bf16.gmra.mxu0 %v316
  %v1941 = vpop.f32.mrf.mxu0
  %v1942 = vadd.f32 %v1929, %v1941
  %v1943 = vpop.f32.mrf.mxu0
  %1944 = vdwg.mxu0
  %1945 = vmatpush.bf16.msra.mxu0 %v1267
  %1946 = vmatpush.bf16.msra.mxu0 %v1265
  %1947 = vmatpush.bf16.msra.mxu0 %v1263
  %1948 = vmatpush.bf16.msra.mxu0 %v1261
  %1949 = vmatpush.bf16.msra.mxu0 %v1259
  %1950 = vmatpush.bf16.msra.mxu0 %v1257
  %1951 = vmatpush.bf16.msra.mxu0 %v1255
  %1952 = vmatpush.bf16.msra.mxu0 %v1253
  %1953 = vmatmul.bf16.gmra.mxu0 %v317
  %v1954 = vpop.f32.mrf.mxu0
  %v1955 = vadd.f32 %v1942, %v1954
  %v1956 = vpop.f32.mrf.mxu0
  %1957 = vdwg.mxu0
  %1958 = vmatpush.bf16.msra.mxu0 %v1283
  %1959 = vmatpush.bf16.msra.mxu0 %v1281
  %1960 = vmatpush.bf16.msra.mxu0 %v1279
  %1961 = vmatpush.bf16.msra.mxu0 %v1277
  %1962 = vmatpush.bf16.msra.mxu0 %v1275
  %1963 = vmatpush.bf16.msra.mxu0 %v1273
  %1964 = vmatpush.bf16.msra.mxu0 %v1271
  %1965 = vmatpush.bf16.msra.mxu0 %v1269
  %1966 = vmatmul.bf16.gmra.mxu0 %v318
  %v1967 = vpop.f32.mrf.mxu0
  %v1968 = vadd.f32 %v1955, %v1967
  %v1969 = vpop.f32.mrf.mxu0
  %1970 = vdwg.mxu0
  %1971 = vmatpush.bf16.msra.mxu0 %v1299
  %1972 = vmatpush.bf16.msra.mxu0 %v1297
  %1973 = vmatpush.bf16.msra.mxu0 %v1295
  %1974 = vmatpush.bf16.msra.mxu0 %v1293
  %1975 = vmatpush.bf16.msra.mxu0 %v1291
  %1976 = vmatpush.bf16.msra.mxu0 %v1289
  %1977 = vmatpush.bf16.msra.mxu0 %v1287
  %1978 = vmatpush.bf16.msra.mxu0 %v1285
  %1979 = vmatmul.bf16.gmra.mxu0 %v319
  %v1980 = vpop.f32.mrf.mxu0
  %v1981 = vadd.f32 %v1968, %v1980
  %v1982 = vpop.f32.mrf.mxu0
  %1983 = vdwg.mxu0
  %1984 = vmatpush.bf16.msra.mxu0 %v1315
  %1985 = vmatpush.bf16.msra.mxu0 %v1313
  %1986 = vmatpush.bf16.msra.mxu0 %v1311
  %1987 = vmatpush.bf16.msra.mxu0 %v1309
  %1988 = vmatpush.bf16.msra.mxu0 %v1307
  %1989 = vmatpush.bf16.msra.mxu0 %v1305
  %1990 = vmatpush.bf16.msra.mxu0 %v1303
  %1991 = vmatpush.bf16.msra.mxu0 %v1301
  %1992 = vmatmul.bf16.gmra.mxu0 %v320
  %v1993 = vpop.f32.mrf.mxu0
  %v1994 = vadd.f32 %v1981, %v1993
  %v1995 = vpop.f32.mrf.mxu0
  %1996 = vdwg.mxu0
  %1997 = vmatpush.bf16.msra.mxu0 %v1331
  %1998 = vmatpush.bf16.msra.mxu0 %v1329
  %1999 = vmatpush.bf16.msra.mxu0 %v1327
  %2000 = vmatpush.bf16.msra.mxu0 %v1325
  %2001 = vmatpush.bf16.msra.mxu0 %v1323
  %2002 = vmatpush.bf16.msra.mxu0 %v1321
  %2003 = vmatpush.bf16.msra.mxu0 %v1319
  %2004 = vmatpush.bf16.msra.mxu0 %v1317
  %2005 = vmatmul.bf16.gmra.mxu0 %v321
  %v2006 = vpop.f32.mrf.mxu0
  %v2007 = vadd.f32 %v1994, %v2006
  %v2008 = vpop.f32.mrf.mxu0
  %2009 = vdwg.mxu0
  %2010 = vmatpush.bf16.msra.mxu0 %v1347
  %2011 = vmatpush.bf16.msra.mxu0 %v1345
  %2012 = vmatpush.bf16.msra.mxu0 %v1343
  %2013 = vmatpush.bf16.msra.mxu0 %v1341
  %2014 = vmatpush.bf16.msra.mxu0 %v1339
  %2015 = vmatpush.bf16.msra.mxu0 %v1337
  %2016 = vmatpush.bf16.msra.mxu0 %v1335
  %2017 = vmatpush.bf16.msra.mxu0 %v1333
  %2018 = vmatmul.bf16.gmra.mxu0 %v322
  %v2019 = vpop.f32.mrf.mxu0
  %v2020 = vadd.f32 %v2007, %v2019
  %v2021 = vpop.f32.mrf.mxu0
  %2022 = vdwg.mxu0
  %2023 = vmatpush.bf16.msra.mxu0 %v1363
  %2024 = vmatpush.bf16.msra.mxu0 %v1361
  %2025 = vmatpush.bf16.msra.mxu0 %v1359
  %2026 = vmatpush.bf16.msra.mxu0 %v1357
  %2027 = vmatpush.bf16.msra.mxu0 %v1355
  %2028 = vmatpush.bf16.msra.mxu0 %v1353
  %2029 = vmatpush.bf16.msra.mxu0 %v1351
  %2030 = vmatpush.bf16.msra.mxu0 %v1349
  %2031 = vmatmul.bf16.gmra.mxu0 %v323
  %v2032 = vpop.f32.mrf.mxu0
  %v2033 = vadd.f32 %v2020, %v2032
  %v2034 = vpop.f32.mrf.mxu0
  %2035 = vdwg.mxu0
  %v2036 = vmax.f32 %v1825, 0.0
  %v2037 = vmax.f32 %v2033, 0.0
  %v2038 = vpack.c.bf16 %v2037, %v2036
  %2039 = vst [vmem:[%s3] sm:$0xff] %v2038
  // Predicated region
  $region14: #{shading_net_forward.16} parent=0 // pred_check
    _
  $region15: #{shading_net_forward.16} parent=0 // pred_check_branch
    %2041 = sbr.rel (0) target = $region17
  $region16: #{shading_net_forward.16} parent=0 // pred_region
    _
  $region17: #{shading_net_forward.16} parent=0 // pred_fallthru
    _
  // Predicated region
  $region18: #{shading_net_forward.16} parent=0 // pred_check
    _
  $region19: #{shading_net_forward.16} parent=0 // pred_check_branch
    %2043 = sbr.rel (0) target = $region21
  $region20: #{shading_net_forward.16} parent=0 // pred_region
    _
  $region21: #{shading_net_forward.16} parent=0 // pred_fallthru
    _

// kernel: shading_net_forward.20
$region0: #{shading_net_forward.20}
  #allocation0 [shape = 'u32[]', space=smem, size = 0x4, offset = 0x4, fixed_abs, tag = 'smem constant byte address 0x4 - core index']
  #allocation1 [shape = 'u32[72,128]{1,0:T(1,128)}', space=vmem, size = 0x9000, scoped, tag = 'internal scratch']
  %s0 = inlined_call_operand.vmem [shape: bf16[32,1152], index: 0, kind: input, shape index: {}]
  %s1 = inlined_call_operand.vmem [shape: bf16[1152,128], index: 1, kind: input, shape index: {}]
  %s2 = inlined_call_operand.vmem [shape: f32[1,128], index: 2, kind: input, shape index: {}]
  %s3 = inlined_call_operand.vmem [shape: bf16[32,128], index: 3, kind: output, shape index: {}]
  %s4 = sld [smem:[#allocation0]]
  $region22: #{shading_net_forward.20} parent=0
    _
  %s6 = ssub.s32 1, %s4
  %s7 = scalar_select 0, %s6, %s4
  // Predicated region
  $region2: #{shading_net_forward.20} parent=0 // pred_check
    _
  $region3: #{shading_net_forward.20} parent=0 // pred_check_branch
    %9 = sbr.rel (0) target = $region5
  $region4: #{shading_net_forward.20} parent=0 // pred_region
    _
  $region5: #{shading_net_forward.20} parent=0 // pred_fallthru
    _
  // Predicated region
  $region6: #{shading_net_forward.20} parent=0 // pred_check
    _
  $region7: #{shading_net_forward.20} parent=0 // pred_check_branch
    %11 = sbr.rel (0) target = $region9
  $region8: #{shading_net_forward.20} parent=0 // pred_region
    _
  $region9: #{shading_net_forward.20} parent=0 // pred_fallthru
    _
  // Predicated region
  $region10: #{shading_net_forward.20} parent=0 // pred_check
    _
  $region11: #{shading_net_forward.20} parent=0 // pred_check_branch
    %13 = sbr.rel (0) target = $region13
  $region12: #{shading_net_forward.20} parent=0 // pred_region
    _
  $region13: #{shading_net_forward.20} parent=0 // pred_fallthru
    _
  %v14 = vld [vmem:[%s0] sm:$0xff]
  %v15 = vld [vmem:[%s0 + $0x8] sm:$0xff]
  %v16 = vld [vmem:[%s0 + $0x10] sm:$0xff]
  %v17 = vld [vmem:[%s0 + $0x18] sm:$0xff]
  %v18 = vld [vmem:[%s0 + $0x20] sm:$0xf]
  %v19 = vld [vmem:[%s0 + $0x24] sm:$0xff]
  %v20 = vld [vmem:[%s0 + $0x2c] sm:$0xff]
  %v21 = vld [vmem:[%s0 + $0x34] sm:$0xff]
  %v22 = vld [vmem:[%s0 + $0x3c] sm:$0xff]
  %v23 = vld [vmem:[%s0 + $0x44] sm:$0xf]
  %v24 = vld [vmem:[%s0 + $0x48] sm:$0xff]
  %v25 = vld [vmem:[%s0 + $0x50] sm:$0xff]
  %v26 = vld [vmem:[%s0 + $0x58] sm:$0xff]
  %v27 = vld [vmem:[%s0 + $0x60] sm:$0xff]
  %v28 = vld [vmem:[%s0 + $0x68] sm:$0xf]
  %v29 = vld [vmem:[%s0 + $0x6c] sm:$0xff]
  %v30 = vld [vmem:[%s0 + $0x74] sm:$0xff]
  %v31 = vld [vmem:[%s0 + $0x7c] sm:$0xff]
  %v32 = vld [vmem:[%s0 + $0x84] sm:$0xff]
  %v33 = vld [vmem:[%s0 + $0x8c] sm:$0xf]
  %v34 = vld [vmem:[%s1] sm:$0xf]
  %v35 = vld [vmem:[%s1 + $0x4] sm:$0xf]
  %v36 = vld [vmem:[%s1 + $0x8] sm:$0xf]
  %v37 = vld [vmem:[%s1 + $0xc] sm:$0xf]
  %v38 = vld [vmem:[%s1 + $0x10] sm:$0xf]
  %v39 = vld [vmem:[%s1 + $0x14] sm:$0xf]
  %v40 = vld [vmem:[%s1 + $0x18] sm:$0xf]
  %v41 = vld [vmem:[%s1 + $0x1c] sm:$0xf]
  %v42 = vld [vmem:[%s1 + $0x20] sm:$0xf]
  %v43 = vld [vmem:[%s1 + $0x24] sm:$0xf]
  %v44 = vld [vmem:[%s1 + $0x28] sm:$0xf]
  %v45 = vld [vmem:[%s1 + $0x2c] sm:$0xf]
  %v46 = vld [vmem:[%s1 + $0x30] sm:$0xf]
  %v47 = vld [vmem:[%s1 + $0x34] sm:$0xf]
  %v48 = vld [vmem:[%s1 + $0x38] sm:$0xf]
  %v49 = vld [vmem:[%s1 + $0x3c] sm:$0xf]
  %v50 = vld [vmem:[%s1 + $0x40] sm:$0xf]
  %v51 = vld [vmem:[%s1 + $0x44] sm:$0xf]
  %v52 = vld [vmem:[%s1 + $0x48] sm:$0xf]
  %v53 = vld [vmem:[%s1 + $0x4c] sm:$0xf]
  %v54 = vld [vmem:[%s1 + $0x50] sm:$0xf]
  %v55 = vld [vmem:[%s1 + $0x54] sm:$0xf]
  %v56 = vld [vmem:[%s1 + $0x58] sm:$0xf]
  %v57 = vld [vmem:[%s1 + $0x5c] sm:$0xf]
  %v58 = vld [vmem:[%s1 + $0x60] sm:$0xf]
  %v59 = vld [vmem:[%s1 + $0x64] sm:$0xf]
  %v60 = vld [vmem:[%s1 + $0x68] sm:$0xf]
  %v61 = vld [vmem:[%s1 + $0x6c] sm:$0xf]
  %v62 = vld [vmem:[%s1 + $0x70] sm:$0xf]
  %v63 = vld [vmem:[%s1 + $0x74] sm:$0xf]
  %v64 = vld [vmem:[%s1 + $0x78] sm:$0xf]
  %v65 = vld [vmem:[%s1 + $0x7c] sm:$0xf]
  %v66 = vld [vmem:[%s1 + $0x80] sm:$0xf]
  %v67 = vld [vmem:[%s1 + $0x84] sm:$0xf]
  %v68 = vld [vmem:[%s1 + $0x88] sm:$0xf]
  %v69 = vld [vmem:[%s1 + $0x8c] sm:$0xf]
  %v70 = vld [vmem:[%s1 + $0x90] sm:$0xf]
  %v71 = vld [vmem:[%s1 + $0x94] sm:$0xf]
  %v72 = vld [vmem:[%s1 + $0x98] sm:$0xf]
  %v73 = vld [vmem:[%s1 + $0x9c] sm:$0xf]
  %v74 = vld [vmem:[%s1 + $0xa0] sm:$0xf]
  %v75 = vld [vmem:[%s1 + $0xa4] sm:$0xf]
  %v76 = vld [vmem:[%s1 + $0xa8] sm:$0xf]
  %v77 = vld [vmem:[%s1 + $0xac] sm:$0xf]
  %v78 = vld [vmem:[%s1 + $0xb0] sm:$0xf]
  %v79 = vld [vmem:[%s1 + $0xb4] sm:$0xf]
  %v80 = vld [vmem:[%s1 + $0xb8] sm:$0xf]
  %v81 = vld [vmem:[%s1 + $0xbc] sm:$0xf]
  %v82 = vld [vmem:[%s1 + $0xc0] sm:$0xf]
  %v83 = vld [vmem:[%s1 + $0xc4] sm:$0xf]
  %v84 = vld [vmem:[%s1 + $0xc8] sm:$0xf]
  %v85 = vld [vmem:[%s1 + $0xcc] sm:$0xf]
  %v86 = vld [vmem:[%s1 + $0xd0] sm:$0xf]
  %v87 = vld [vmem:[%s1 + $0xd4] sm:$0xf]
  %v88 = vld [vmem:[%s1 + $0xd8] sm:$0xf]
  %v89 = vld [vmem:[%s1 + $0xdc] sm:$0xf]
  %v90 = vld [vmem:[%s1 + $0xe0] sm:$0xf]
  %v91 = vld [vmem:[%s1 + $0xe4] sm:$0xf]
  %v92 = vld [vmem:[%s1 + $0xe8] sm:$0xf]
  %v93 = vld [vmem:[%s1 + $0xec] sm:$0xf]
  %v94 = vld [vmem:[%s1 + $0xf0] sm:$0xf]
  %v95 = vld [vmem:[%s1 + $0xf4] sm:$0xf]
  %v96 = vld [vmem:[%s1 + $0xf8] sm:$0xf]
  %v97 = vld [vmem:[%s1 + $0xfc] sm:$0xf]
  %v98 = vld [vmem:[%s1 + $0x100] sm:$0xf]
  %v99 = vld [vmem:[%s1 + $0x104] sm:$0xf]
  %v100 = vld [vmem:[%s1 + $0x108] sm:$0xf]
  %v101 = vld [vmem:[%s1 + $0x10c] sm:$0xf]
  %v102 = vld [vmem:[%s1 + $0x110] sm:$0xf]
  %v103 = vld [vmem:[%s1 + $0x114] sm:$0xf]
  %v104 = vld [vmem:[%s1 + $0x118] sm:$0xf]
  %v105 = vld [vmem:[%s1 + $0x11c] sm:$0xf]
  %v106 = vld [vmem:[%s1 + $0x120] sm:$0xf]
  %v107 = vld [vmem:[%s1 + $0x124] sm:$0xf]
  %v108 = vld [vmem:[%s1 + $0x128] sm:$0xf]
  %v109 = vld [vmem:[%s1 + $0x12c] sm:$0xf]
  %v110 = vld [vmem:[%s1 + $0x130] sm:$0xf]
  %v111 = vld [vmem:[%s1 + $0x134] sm:$0xf]
  %v112 = vld [vmem:[%s1 + $0x138] sm:$0xf]
  %v113 = vld [vmem:[%s1 + $0x13c] sm:$0xf]
  %v114 = vld [vmem:[%s1 + $0x140] sm:$0xf]
  %v115 = vld [vmem:[%s1 + $0x144] sm:$0xf]
  %v116 = vld [vmem:[%s1 + $0x148] sm:$0xf]
  %v117 = vld [vmem:[%s1 + $0x14c] sm:$0xf]
  %v118 = vld [vmem:[%s1 + $0x150] sm:$0xf]
  %v119 = vld [vmem:[%s1 + $0x154] sm:$0xf]
  %v120 = vld [vmem:[%s1 + $0x158] sm:$0xf]
  %v121 = vld [vmem:[%s1 + $0x15c] sm:$0xf]
  %v122 = vld [vmem:[%s1 + $0x160] sm:$0xf]
  %v123 = vld [vmem:[%s1 + $0x164] sm:$0xf]
  %v124 = vld [vmem:[%s1 + $0x168] sm:$0xf]
  %v125 = vld [vmem:[%s1 + $0x16c] sm:$0xf]
  %v126 = vld [vmem:[%s1 + $0x170] sm:$0xf]
  %v127 = vld [vmem:[%s1 + $0x174] sm:$0xf]
  %v128 = vld [vmem:[%s1 + $0x178] sm:$0xf]
  %v129 = vld [vmem:[%s1 + $0x17c] sm:$0xf]
  %v130 = vld [vmem:[%s1 + $0x180] sm:$0xf]
  %v131 = vld [vmem:[%s1 + $0x184] sm:$0xf]
  %v132 = vld [vmem:[%s1 + $0x188] sm:$0xf]
  %v133 = vld [vmem:[%s1 + $0x18c] sm:$0xf]
  %v134 = vld [vmem:[%s1 + $0x190] sm:$0xf]
  %v135 = vld [vmem:[%s1 + $0x194] sm:$0xf]
  %v136 = vld [vmem:[%s1 + $0x198] sm:$0xf]
  %v137 = vld [vmem:[%s1 + $0x19c] sm:$0xf]
  %v138 = vld [vmem:[%s1 + $0x1a0] sm:$0xf]
  %v139 = vld [vmem:[%s1 + $0x1a4] sm:$0xf]
  %v140 = vld [vmem:[%s1 + $0x1a8] sm:$0xf]
  %v141 = vld [vmem:[%s1 + $0x1ac] sm:$0xf]
  %v142 = vld [vmem:[%s1 + $0x1b0] sm:$0xf]
  %v143 = vld [vmem:[%s1 + $0x1b4] sm:$0xf]
  %v144 = vld [vmem:[%s1 + $0x1b8] sm:$0xf]
  %v145 = vld [vmem:[%s1 + $0x1bc] sm:$0xf]
  %v146 = vld [vmem:[%s1 + $0x1c0] sm:$0xf]
  %v147 = vld [vmem:[%s1 + $0x1c4] sm:$0xf]
  %v148 = vld [vmem:[%s1 + $0x1c8] sm:$0xf]
  %v149 = vld [vmem:[%s1 + $0x1cc] sm:$0xf]
  %v150 = vld [vmem:[%s1 + $0x1d0] sm:$0xf]
  %v151 = vld [vmem:[%s1 + $0x1d4] sm:$0xf]
  %v152 = vld [vmem:[%s1 + $0x1d8] sm:$0xf]
  %v153 = vld [vmem:[%s1 + $0x1dc] sm:$0xf]
  %v154 = vld [vmem:[%s1 + $0x1e0] sm:$0xf]
  %v155 = vld [vmem:[%s1 + $0x1e4] sm:$0xf]
  %v156 = vld [vmem:[%s1 + $0x1e8] sm:$0xf]
  %v157 = vld [vmem:[%s1 + $0x1ec] sm:$0xf]
  %v158 = vld [vmem:[%s1 + $0x1f0] sm:$0xf]
  %v159 = vld [vmem:[%s1 + $0x1f4] sm:$0xf]
  %v160 = vld [vmem:[%s1 + $0x1f8] sm:$0xf]
  %v161 = vld [vmem:[%s1 + $0x1fc] sm:$0xf]
  %v162 = vld [vmem:[%s1 + $0x200] sm:$0xf]
  %v163 = vld [vmem:[%s1 + $0x204] sm:$0xf]
  %v164 = vld [vmem:[%s1 + $0x208] sm:$0xf]
  %v165 = vld [vmem:[%s1 + $0x20c] sm:$0xf]
  %v166 = vld [vmem:[%s1 + $0x210] sm:$0xf]
  %v167 = vld [vmem:[%s1 + $0x214] sm:$0xf]
  %v168 = vld [vmem:[%s1 + $0x218] sm:$0xf]
  %v169 = vld [vmem:[%s1 + $0x21c] sm:$0xf]
  %v170 = vld [vmem:[%s1 + $0x220] sm:$0xf]
  %v171 = vld [vmem:[%s1 + $0x224] sm:$0xf]
  %v172 = vld [vmem:[%s1 + $0x228] sm:$0xf]
  %v173 = vld [vmem:[%s1 + $0x22c] sm:$0xf]
  %v174 = vld [vmem:[%s1 + $0x230] sm:$0xf]
  %v175 = vld [vmem:[%s1 + $0x234] sm:$0xf]
  %v176 = vld [vmem:[%s1 + $0x238] sm:$0xf]
  %v177 = vld [vmem:[%s1 + $0x23c] sm:$0xf]
  %v178 = vld [vmem:[%s2] sm:$0x1]
  %v180 = vperm.slane %v178, 0
  %v202 = vunpack.c.l.b16 %v14
  %v203 = vunpack.c.h.b16 %v14
  %v204 = vunpack.c.l.b16 %v15
  %v205 = vunpack.c.h.b16 %v15
  %v206 = vunpack.c.l.b16 %v16
  %v207 = vunpack.c.h.b16 %v16
  %v208 = vunpack.c.l.b16 %v17
  %v209 = vunpack.c.h.b16 %v17
  %v210 = vunpack.c.l.b16 %v18
  %v211 = vunpack.c.l.b16 %v19
  %v212 = vunpack.c.h.b16 %v19
  %v213 = vunpack.c.l.b16 %v20
  %v214 = vunpack.c.h.b16 %v20
  %v215 = vunpack.c.l.b16 %v21
  %v216 = vunpack.c.h.b16 %v21
  %v217 = vunpack.c.l.b16 %v22
  %v218 = vunpack.c.h.b16 %v22
  %v219 = vunpack.c.l.b16 %v23
  %v220 = vunpack.c.l.b16 %v24
  %v221 = vunpack.c.h.b16 %v24
  %v222 = vunpack.c.l.b16 %v25
  %v223 = vunpack.c.h.b16 %v25
  %v224 = vunpack.c.l.b16 %v26
  %v225 = vunpack.c.h.b16 %v26
  %v226 = vunpack.c.l.b16 %v27
  %v227 = vunpack.c.h.b16 %v27
  %v228 = vunpack.c.l.b16 %v28
  %v229 = vunpack.c.l.b16 %v29
  %v230 = vunpack.c.h.b16 %v29
  %v231 = vunpack.c.l.b16 %v30
  %v232 = vunpack.c.h.b16 %v30
  %v233 = vunpack.c.l.b16 %v31
  %v234 = vunpack.c.h.b16 %v31
  %v235 = vunpack.c.l.b16 %v32
  %v236 = vunpack.c.h.b16 %v32
  %v237 = vunpack.c.l.b16 %v33
  %v238 = vpack.c.b16 %v211, %v202
  %v239 = vpack.c.b16 %v212, %v203
  %v240 = vpack.c.b16 %v213, %v204
  %v241 = vpack.c.b16 %v214, %v205
  %v242 = vpack.c.b16 %v215, %v206
  %v243 = vpack.c.b16 %v216, %v207
  %v244 = vpack.c.b16 %v217, %v208
  %v245 = vpack.c.b16 %v218, %v209
  %v246 = vpack.c.b16 %v219, %v210
  %v247 = vpack.c.b16 %v229, %v220
  %v248 = vpack.c.b16 %v230, %v221
  %v249 = vpack.c.b16 %v231, %v222
  %v250 = vpack.c.b16 %v232, %v223
  %v251 = vpack.c.b16 %v233, %v224
  %v252 = vpack.c.b16 %v234, %v225
  %v253 = vpack.c.b16 %v235, %v226
  %v254 = vpack.c.b16 %v236, %v227
  %v255 = vpack.c.b16 %v237, %v228
  %v418 = vunpack.c.l.b16 %v34
  %v419 = vunpack.c.l.b16 %v35
  %v420 = vunpack.c.l.b16 %v36
  %v421 = vunpack.c.l.b16 %v37
  %v422 = vunpack.c.l.b16 %v38
  %v423 = vunpack.c.l.b16 %v39
  %v424 = vunpack.c.l.b16 %v40
  %v425 = vunpack.c.l.b16 %v41
  %v426 = vunpack.c.l.b16 %v42
  %v427 = vunpack.c.l.b16 %v43
  %v428 = vunpack.c.l.b16 %v44
  %v429 = vunpack.c.l.b16 %v45
  %v430 = vunpack.c.l.b16 %v46
  %v431 = vunpack.c.l.b16 %v47
  %v432 = vunpack.c.l.b16 %v48
  %v433 = vunpack.c.l.b16 %v49
  %v434 = vunpack.c.l.b16 %v50
  %v435 = vunpack.c.l.b16 %v51
  %v436 = vunpack.c.l.b16 %v52
  %v437 = vunpack.c.l.b16 %v53
  %v438 = vunpack.c.l.b16 %v54
  %v439 = vunpack.c.l.b16 %v55
  %v440 = vunpack.c.l.b16 %v56
  %v441 = vunpack.c.l.b16 %v57
  %v442 = vunpack.c.l.b16 %v58
  %v443 = vunpack.c.l.b16 %v59
  %v444 = vunpack.c.l.b16 %v60
  %v445 = vunpack.c.l.b16 %v61
  %v446 = vunpack.c.l.b16 %v62
  %v447 = vunpack.c.l.b16 %v63
  %v448 = vunpack.c.l.b16 %v64
  %v449 = vunpack.c.l.b16 %v65
  %v450 = vunpack.c.l.b16 %v66
  %v451 = vunpack.c.l.b16 %v67
  %v452 = vunpack.c.l.b16 %v68
  %v453 = vunpack.c.l.b16 %v69
  %v454 = vunpack.c.l.b16 %v70
  %v455 = vunpack.c.l.b16 %v71
  %v456 = vunpack.c.l.b16 %v72
  %v457 = vunpack.c.l.b16 %v73
  %v458 = vunpack.c.l.b16 %v74
  %v459 = vunpack.c.l.b16 %v75
  %v460 = vunpack.c.l.b16 %v76
  %v461 = vunpack.c.l.b16 %v77
  %v462 = vunpack.c.l.b16 %v78
  %v463 = vunpack.c.l.b16 %v79
  %v464 = vunpack.c.l.b16 %v80
  %v465 = vunpack.c.l.b16 %v81
  %v466 = vunpack.c.l.b16 %v82
  %v467 = vunpack.c.l.b16 %v83
  %v468 = vunpack.c.l.b16 %v84
  %v469 = vunpack.c.l.b16 %v85
  %v470 = vunpack.c.l.b16 %v86
  %v471 = vunpack.c.l.b16 %v87
  %v472 = vunpack.c.l.b16 %v88
  %v473 = vunpack.c.l.b16 %v89
  %v474 = vunpack.c.l.b16 %v90
  %v475 = vunpack.c.l.b16 %v91
  %v476 = vunpack.c.l.b16 %v92
  %v477 = vunpack.c.l.b16 %v93
  %v478 = vunpack.c.l.b16 %v94
  %v479 = vunpack.c.l.b16 %v95
  %v480 = vunpack.c.l.b16 %v96
  %v481 = vunpack.c.l.b16 %v97
  %v482 = vunpack.c.l.b16 %v98
  %v483 = vunpack.c.l.b16 %v99
  %v484 = vunpack.c.l.b16 %v100
  %v485 = vunpack.c.l.b16 %v101
  %v486 = vunpack.c.l.b16 %v102
  %v487 = vunpack.c.l.b16 %v103
  %v488 = vunpack.c.l.b16 %v104
  %v489 = vunpack.c.l.b16 %v105
  %v490 = vunpack.c.l.b16 %v106
  %v491 = vunpack.c.l.b16 %v107
  %v492 = vunpack.c.l.b16 %v108
  %v493 = vunpack.c.l.b16 %v109
  %v494 = vunpack.c.l.b16 %v110
  %v495 = vunpack.c.l.b16 %v111
  %v496 = vunpack.c.l.b16 %v112
  %v497 = vunpack.c.l.b16 %v113
  %v498 = vunpack.c.l.b16 %v114
  %v499 = vunpack.c.l.b16 %v115
  %v500 = vunpack.c.l.b16 %v116
  %v501 = vunpack.c.l.b16 %v117
  %v502 = vunpack.c.l.b16 %v118
  %v503 = vunpack.c.l.b16 %v119
  %v504 = vunpack.c.l.b16 %v120
  %v505 = vunpack.c.l.b16 %v121
  %v506 = vunpack.c.l.b16 %v122
  %v507 = vunpack.c.l.b16 %v123
  %v508 = vunpack.c.l.b16 %v124
  %v509 = vunpack.c.l.b16 %v125
  %v510 = vunpack.c.l.b16 %v126
  %v511 = vunpack.c.l.b16 %v127
  %v512 = vunpack.c.l.b16 %v128
  %v513 = vunpack.c.l.b16 %v129
  %v514 = vunpack.c.l.b16 %v130
  %v515 = vunpack.c.l.b16 %v131
  %v516 = vunpack.c.l.b16 %v132
  %v517 = vunpack.c.l.b16 %v133
  %v518 = vunpack.c.l.b16 %v134
  %v519 = vunpack.c.l.b16 %v135
  %v520 = vunpack.c.l.b16 %v136
  %v521 = vunpack.c.l.b16 %v137
  %v522 = vunpack.c.l.b16 %v138
  %v523 = vunpack.c.l.b16 %v139
  %v524 = vunpack.c.l.b16 %v140
  %v525 = vunpack.c.l.b16 %v141
  %v526 = vunpack.c.l.b16 %v142
  %v527 = vunpack.c.l.b16 %v143
  %v528 = vunpack.c.l.b16 %v144
  %v529 = vunpack.c.l.b16 %v145
  %v530 = vunpack.c.l.b16 %v146
  %v531 = vunpack.c.l.b16 %v147
  %v532 = vunpack.c.l.b16 %v148
  %v533 = vunpack.c.l.b16 %v149
  %v534 = vunpack.c.l.b16 %v150
  %v535 = vunpack.c.l.b16 %v151
  %v536 = vunpack.c.l.b16 %v152
  %v537 = vunpack.c.l.b16 %v153
  %v538 = vunpack.c.l.b16 %v154
  %v539 = vunpack.c.l.b16 %v155
  %v540 = vunpack.c.l.b16 %v156
  %v541 = vunpack.c.l.b16 %v157
  %v542 = vunpack.c.l.b16 %v158
  %v543 = vunpack.c.l.b16 %v159
  %v544 = vunpack.c.l.b16 %v160
  %v545 = vunpack.c.l.b16 %v161
  %v546 = vunpack.c.l.b16 %v162
  %v547 = vunpack.c.l.b16 %v163
  %v548 = vunpack.c.l.b16 %v164
  %v549 = vunpack.c.l.b16 %v165
  %v550 = vunpack.c.l.b16 %v166
  %v551 = vunpack.c.l.b16 %v167
  %v552 = vunpack.c.l.b16 %v168
  %v553 = vunpack.c.l.b16 %v169
  %v554 = vunpack.c.l.b16 %v170
  %v555 = vunpack.c.l.b16 %v171
  %v556 = vunpack.c.l.b16 %v172
  %v557 = vunpack.c.l.b16 %v173
  %v558 = vunpack.c.l.b16 %v174
  %v559 = vunpack.c.l.b16 %v175
  %v560 = vunpack.c.l.b16 %v176
  %v561 = vunpack.c.l.b16 %v177
  %v562 = vpack.c.b16 %v419, %v418
  %v563 = vpack.c.b16 %v421, %v420
  %v564 = vpack.c.b16 %v423, %v422
  %v565 = vpack.c.b16 %v425, %v424
  %v566 = vpack.c.b16 %v427, %v426
  %v567 = vpack.c.b16 %v429, %v428
  %v568 = vpack.c.b16 %v431, %v430
  %v569 = vpack.c.b16 %v433, %v432
  %v570 = vpack.c.b16 %v435, %v434
  %v571 = vpack.c.b16 %v437, %v436
  %v572 = vpack.c.b16 %v439, %v438
  %v573 = vpack.c.b16 %v441, %v440
  %v574 = vpack.c.b16 %v443, %v442
  %v575 = vpack.c.b16 %v445, %v444
  %v576 = vpack.c.b16 %v447, %v446
  %v577 = vpack.c.b16 %v449, %v448
  %v578 = vpack.c.b16 %v451, %v450
  %v579 = vpack.c.b16 %v453, %v452
  %v580 = vpack.c.b16 %v455, %v454
  %v581 = vpack.c.b16 %v457, %v456
  %v582 = vpack.c.b16 %v459, %v458
  %v583 = vpack.c.b16 %v461, %v460
  %v584 = vpack.c.b16 %v463, %v462
  %v585 = vpack.c.b16 %v465, %v464
  %v586 = vpack.c.b16 %v467, %v466
  %v587 = vpack.c.b16 %v469, %v468
  %v588 = vpack.c.b16 %v471, %v470
  %v589 = vpack.c.b16 %v473, %v472
  %v590 = vpack.c.b16 %v475, %v474
  %v591 = vpack.c.b16 %v477, %v476
  %v592 = vpack.c.b16 %v479, %v478
  %v593 = vpack.c.b16 %v481, %v480
  %v594 = vpack.c.b16 %v483, %v482
  %v595 = vpack.c.b16 %v485, %v484
  %v596 = vpack.c.b16 %v487, %v486
  %v597 = vpack.c.b16 %v489, %v488
  %v598 = vpack.c.b16 %v491, %v490
  %v599 = vpack.c.b16 %v493, %v492
  %v600 = vpack.c.b16 %v495, %v494
  %v601 = vpack.c.b16 %v497, %v496
  %v602 = vpack.c.b16 %v499, %v498
  %v603 = vpack.c.b16 %v501, %v500
  %v604 = vpack.c.b16 %v503, %v502
  %v605 = vpack.c.b16 %v505, %v504
  %v606 = vpack.c.b16 %v507, %v506
  %v607 = vpack.c.b16 %v509, %v508
  %v608 = vpack.c.b16 %v511, %v510
  %v609 = vpack.c.b16 %v513, %v512
  %v610 = vpack.c.b16 %v515, %v514
  %v611 = vpack.c.b16 %v517, %v516
  %v612 = vpack.c.b16 %v519, %v518
  %v613 = vpack.c.b16 %v521, %v520
  %v614 = vpack.c.b16 %v523, %v522
  %v615 = vpack.c.b16 %v525, %v524
  %v616 = vpack.c.b16 %v527, %v526
  %v617 = vpack.c.b16 %v529, %v528
  %v618 = vpack.c.b16 %v531, %v530
  %v619 = vpack.c.b16 %v533, %v532
  %v620 = vpack.c.b16 %v535, %v534
  %v621 = vpack.c.b16 %v537, %v536
  %v622 = vpack.c.b16 %v539, %v538
  %v623 = vpack.c.b16 %v541, %v540
  %v624 = vpack.c.b16 %v543, %v542
  %v625 = vpack.c.b16 %v545, %v544
  %v626 = vpack.c.b16 %v547, %v546
  %v627 = vpack.c.b16 %v549, %v548
  %v628 = vpack.c.b16 %v551, %v550
  %v629 = vpack.c.b16 %v553, %v552
  %v630 = vpack.c.b16 %v555, %v554
  %v631 = vpack.c.b16 %v557, %v556
  %v632 = vpack.c.b16 %v559, %v558
  %v633 = vpack.c.b16 %v561, %v560
  %706 = vmatpush.bf16.msra.mxu0 %v569
  %707 = vmatpush.bf16.msra.mxu0 %v568
  %708 = vmatpush.bf16.msra.mxu0 %v567
  %709 = vmatpush.bf16.msra.mxu0 %v566
  %710 = vmatpush.bf16.msra.mxu0 %v565
  %711 = vmatpush.bf16.msra.mxu0 %v564
  %712 = vmatpush.bf16.msra.mxu0 %v563
  %713 = vmatpush.bf16.msra.mxu0 %v562
  %714 = vmatmul.bf16.gmra.mxu0 %v238
  %v715 = vpop.f32.mrf.mxu0
  %v716 = vadd.f32 %v180, %v715
  %v717 = vpop.f32.mrf.mxu0
  %v718 = vadd.f32 %v180, %v717
  %719 = vmatmul.bf16.gmra.mxu0 %v247
  %v720 = vpop.f32.mrf.mxu0
  %v721 = vadd.f32 %v180, %v720
  %v722 = vpop.f32.mrf.mxu0
  %v723 = vadd.f32 %v180, %v722
  %724 = vdwg.mxu0
  %725 = vmatpush.bf16.msra.mxu0 %v577
  %726 = vmatpush.bf16.msra.mxu0 %v576
  %727 = vmatpush.bf16.msra.mxu0 %v575
  %728 = vmatpush.bf16.msra.mxu0 %v574
  %729 = vmatpush.bf16.msra.mxu0 %v573
  %730 = vmatpush.bf16.msra.mxu0 %v572
  %731 = vmatpush.bf16.msra.mxu0 %v571
  %732 = vmatpush.bf16.msra.mxu0 %v570
  %733 = vmatmul.bf16.gmra.mxu0 %v239
  %v734 = vpop.f32.mrf.mxu0
  %v735 = vadd.f32 %v716, %v734
  %v736 = vpop.f32.mrf.mxu0
  %v737 = vadd.f32 %v718, %v736
  %738 = vmatmul.bf16.gmra.mxu0 %v248
  %v739 = vpop.f32.mrf.mxu0
  %v740 = vadd.f32 %v721, %v739
  %v741 = vpop.f32.mrf.mxu0
  %v742 = vadd.f32 %v723, %v741
  %743 = vdwg.mxu0
  %744 = vmatpush.bf16.msra.mxu0 %v585
  %745 = vmatpush.bf16.msra.mxu0 %v584
  %746 = vmatpush.bf16.msra.mxu0 %v583
  %747 = vmatpush.bf16.msra.mxu0 %v582
  %748 = vmatpush.bf16.msra.mxu0 %v581
  %749 = vmatpush.bf16.msra.mxu0 %v580
  %750 = vmatpush.bf16.msra.mxu0 %v579
  %751 = vmatpush.bf16.msra.mxu0 %v578
  %752 = vmatmul.bf16.gmra.mxu0 %v240
  %v753 = vpop.f32.mrf.mxu0
  %v754 = vadd.f32 %v735, %v753
  %v755 = vpop.f32.mrf.mxu0
  %v756 = vadd.f32 %v737, %v755
  %757 = vmatmul.bf16.gmra.mxu0 %v249
  %v758 = vpop.f32.mrf.mxu0
  %v759 = vadd.f32 %v740, %v758
  %v760 = vpop.f32.mrf.mxu0
  %v761 = vadd.f32 %v742, %v760
  %762 = vdwg.mxu0
  %763 = vmatpush.bf16.msra.mxu0 %v593
  %764 = vmatpush.bf16.msra.mxu0 %v592
  %765 = vmatpush.bf16.msra.mxu0 %v591
  %766 = vmatpush.bf16.msra.mxu0 %v590
  %767 = vmatpush.bf16.msra.mxu0 %v589
  %768 = vmatpush.bf16.msra.mxu0 %v588
  %769 = vmatpush.bf16.msra.mxu0 %v587
  %770 = vmatpush.bf16.msra.mxu0 %v586
  %771 = vmatmul.bf16.gmra.mxu0 %v241
  %v772 = vpop.f32.mrf.mxu0
  %v773 = vadd.f32 %v754, %v772
  %v774 = vpop.f32.mrf.mxu0
  %v775 = vadd.f32 %v756, %v774
  %776 = vmatmul.bf16.gmra.mxu0 %v250
  %v777 = vpop.f32.mrf.mxu0
  %v778 = vadd.f32 %v759, %v777
  %v779 = vpop.f32.mrf.mxu0
  %v780 = vadd.f32 %v761, %v779
  %781 = vdwg.mxu0
  %782 = vmatpush.bf16.msra.mxu0 %v601
  %783 = vmatpush.bf16.msra.mxu0 %v600
  %784 = vmatpush.bf16.msra.mxu0 %v599
  %785 = vmatpush.bf16.msra.mxu0 %v598
  %786 = vmatpush.bf16.msra.mxu0 %v597
  %787 = vmatpush.bf16.msra.mxu0 %v596
  %788 = vmatpush.bf16.msra.mxu0 %v595
  %789 = vmatpush.bf16.msra.mxu0 %v594
  %790 = vmatmul.bf16.gmra.mxu0 %v242
  %v791 = vpop.f32.mrf.mxu0
  %v792 = vadd.f32 %v773, %v791
  %v793 = vpop.f32.mrf.mxu0
  %v794 = vadd.f32 %v775, %v793
  %795 = vmatmul.bf16.gmra.mxu0 %v251
  %v796 = vpop.f32.mrf.mxu0
  %v797 = vadd.f32 %v778, %v796
  %v798 = vpop.f32.mrf.mxu0
  %v799 = vadd.f32 %v780, %v798
  %800 = vdwg.mxu0
  %801 = vmatpush.bf16.msra.mxu0 %v609
  %802 = vmatpush.bf16.msra.mxu0 %v608
  %803 = vmatpush.bf16.msra.mxu0 %v607
  %804 = vmatpush.bf16.msra.mxu0 %v606
  %805 = vmatpush.bf16.msra.mxu0 %v605
  %806 = vmatpush.bf16.msra.mxu0 %v604
  %807 = vmatpush.bf16.msra.mxu0 %v603
  %808 = vmatpush.bf16.msra.mxu0 %v602
  %809 = vmatmul.bf16.gmra.mxu0 %v243
  %v810 = vpop.f32.mrf.mxu0
  %v811 = vadd.f32 %v792, %v810
  %v812 = vpop.f32.mrf.mxu0
  %v813 = vadd.f32 %v794, %v812
  %814 = vmatmul.bf16.gmra.mxu0 %v252
  %v815 = vpop.f32.mrf.mxu0
  %v816 = vadd.f32 %v797, %v815
  %v817 = vpop.f32.mrf.mxu0
  %v818 = vadd.f32 %v799, %v817
  %819 = vdwg.mxu0
  %820 = vmatpush.bf16.msra.mxu0 %v617
  %821 = vmatpush.bf16.msra.mxu0 %v616
  %822 = vmatpush.bf16.msra.mxu0 %v615
  %823 = vmatpush.bf16.msra.mxu0 %v614
  %824 = vmatpush.bf16.msra.mxu0 %v613
  %825 = vmatpush.bf16.msra.mxu0 %v612
  %826 = vmatpush.bf16.msra.mxu0 %v611
  %827 = vmatpush.bf16.msra.mxu0 %v610
  %828 = vmatmul.bf16.gmra.mxu0 %v244
  %v829 = vpop.f32.mrf.mxu0
  %v830 = vadd.f32 %v811, %v829
  %v831 = vpop.f32.mrf.mxu0
  %v832 = vadd.f32 %v813, %v831
  %833 = vmatmul.bf16.gmra.mxu0 %v253
  %v834 = vpop.f32.mrf.mxu0
  %v835 = vadd.f32 %v816, %v834
  %v836 = vpop.f32.mrf.mxu0
  %v837 = vadd.f32 %v818, %v836
  %838 = vdwg.mxu0
  %839 = vmatpush.bf16.msra.mxu0 %v625
  %840 = vmatpush.bf16.msra.mxu0 %v624
  %841 = vmatpush.bf16.msra.mxu0 %v623
  %842 = vmatpush.bf16.msra.mxu0 %v622
  %843 = vmatpush.bf16.msra.mxu0 %v621
  %844 = vmatpush.bf16.msra.mxu0 %v620
  %845 = vmatpush.bf16.msra.mxu0 %v619
  %846 = vmatpush.bf16.msra.mxu0 %v618
  %847 = vmatmul.bf16.gmra.mxu0 %v245
  %v848 = vpop.f32.mrf.mxu0
  %v849 = vadd.f32 %v830, %v848
  %v850 = vpop.f32.mrf.mxu0
  %v851 = vadd.f32 %v832, %v850
  %852 = vmatmul.bf16.gmra.mxu0 %v254
  %v853 = vpop.f32.mrf.mxu0
  %v854 = vadd.f32 %v835, %v853
  %v855 = vpop.f32.mrf.mxu0
  %v856 = vadd.f32 %v837, %v855
  %857 = vdwg.mxu0
  %858 = vmatpush.bf16.msra.mxu0 %v633
  %859 = vmatpush.bf16.msra.mxu0 %v632
  %860 = vmatpush.bf16.msra.mxu0 %v631
  %861 = vmatpush.bf16.msra.mxu0 %v630
  %862 = vmatpush.bf16.msra.mxu0 %v629
  %863 = vmatpush.bf16.msra.mxu0 %v628
  %864 = vmatpush.bf16.msra.mxu0 %v627
  %865 = vmatpush.bf16.msra.mxu0 %v626
  %866 = vmatmul.bf16.gmra.mxu0 %v246
  %v867 = vpop.f32.mrf.mxu0
  %v868 = vadd.f32 %v849, %v867
  %v869 = vpop.f32.mrf.mxu0
  %v870 = vadd.f32 %v851, %v869
  %871 = vmatmul.bf16.gmra.mxu0 %v255
  %v872 = vpop.f32.mrf.mxu0
  %v873 = vadd.f32 %v854, %v872
  %v874 = vpop.f32.mrf.mxu0
  %v875 = vadd.f32 %v856, %v874
  %876 = vdwg.mxu0
  %v877 = vmax.f32 %v868, 0.0
  %v878 = vmax.f32 %v870, 0.0
  %v879 = vmax.f32 %v873, 0.0
  %v880 = vmax.f32 %v875, 0.0
  %v881 = vpack.c.bf16 %v877, %v877
  %v882 = vpack.c.bf16 %v878, %v878
  %v883 = vpack.c.bf16 %v879, %v879
  %v884 = vpack.c.bf16 %v880, %v880
  %885 = vst [vmem:[%s3] sm:$0xf] %v881
  %886 = vst [vmem:[%s3 + $0x4] sm:$0xf] %v882
  %887 = vst [vmem:[%s3 + $0x8] sm:$0xf] %v883
  %888 = vst [vmem:[%s3 + $0xc] sm:$0xf] %v884
  // Predicated region
  $region14: #{shading_net_forward.20} parent=0 // pred_check
    _
  $region15: #{shading_net_forward.20} parent=0 // pred_check_branch
    %890 = sbr.rel (0) target = $region17
  $region16: #{shading_net_forward.20} parent=0 // pred_region
    _
  $region17: #{shading_net_forward.20} parent=0 // pred_fallthru
    _
  // Predicated region
  $region18: #{shading_net_forward.20} parent=0 // pred_check
    _
  $region19: #{shading_net_forward.20} parent=0 // pred_check_branch
    %892 = sbr.rel (0) target = $region21
  $region20: #{shading_net_forward.20} parent=0 // pred_region
    _
  $region21: #{shading_net_forward.20} parent=0 // pred_fallthru
    _

// kernel: shading_net_forward.19
$region0: #{shading_net_forward.19}
  #allocation0 [shape = 'u32[]', space=smem, size = 0x4, offset = 0x4, fixed_abs, tag = 'smem constant byte address 0x4 - core index']
  #allocation1 [shape = 'u32[72,128]{1,0:T(1,128)}', space=vmem, size = 0x9000, scoped, tag = 'internal scratch']
  %s0 = inlined_call_operand.vmem [shape: bf16[8,2304], index: 0, kind: input, shape index: {}]
  %s1 = inlined_call_operand.vmem [shape: bf16[2304,256], index: 1, kind: input, shape index: {}]
  %s2 = inlined_call_operand.vmem [shape: f32[1,256], index: 2, kind: input, shape index: {}]
  %s3 = inlined_call_operand.vmem [shape: bf16[8,256], index: 3, kind: output, shape index: {}]
  %s4 = sld [smem:[#allocation0]]
  $region22: #{shading_net_forward.19} parent=0
    _
  %s6 = ssub.s32 1, %s4
  %s7 = scalar_select 0, %s6, %s4
  // Predicated region
  $region2: #{shading_net_forward.19} parent=0 // pred_check
    _
  $region3: #{shading_net_forward.19} parent=0 // pred_check_branch
    %9 = sbr.rel (0) target = $region5
  $region4: #{shading_net_forward.19} parent=0 // pred_region
    _
  $region5: #{shading_net_forward.19} parent=0 // pred_fallthru
    _
  // Predicated region
  $region6: #{shading_net_forward.19} parent=0 // pred_check
    _
  $region7: #{shading_net_forward.19} parent=0 // pred_check_branch
    %11 = sbr.rel (0) target = $region9
  $region8: #{shading_net_forward.19} parent=0 // pred_region
    _
  $region9: #{shading_net_forward.19} parent=0 // pred_fallthru
    _
  // Predicated region
  $region10: #{shading_net_forward.19} parent=0 // pred_check
    _
  $region11: #{shading_net_forward.19} parent=0 // pred_check_branch
    %13 = sbr.rel (0) target = $region13
  $region12: #{shading_net_forward.19} parent=0 // pred_region
    _
  $region13: #{shading_net_forward.19} parent=0 // pred_fallthru
    _
  %v14 = vld [vmem:[%s0] sm:$0xff]
  %v15 = vld [vmem:[%s0 + $0x8] sm:$0xff]
  %v16 = vld [vmem:[%s0 + $0x10] sm:$0xff]
  %v17 = vld [vmem:[%s0 + $0x18] sm:$0xff]
  %v18 = vld [vmem:[%s0 + $0x20] sm:$0xff]
  %v19 = vld [vmem:[%s0 + $0x28] sm:$0xff]
  %v20 = vld [vmem:[%s0 + $0x30] sm:$0xff]
  %v21 = vld [vmem:[%s0 + $0x38] sm:$0xff]
  %v22 = vld [vmem:[%s0 + $0x40] sm:$0xff]
  %v23 = vld [vmem:[%s1] sm:$0xff]
  %v24 = vld [vmem:[%s1 + $0x8] sm:$0xff]
  %v25 = vld [vmem:[%s1 + $0x10] sm:$0xff]
  %v26 = vld [vmem:[%s1 + $0x18] sm:$0xff]
  %v27 = vld [vmem:[%s1 + $0x20] sm:$0xff]
  %v28 = vld [vmem:[%s1 + $0x28] sm:$0xff]
  %v29 = vld [vmem:[%s1 + $0x30] sm:$0xff]
  %v30 = vld [vmem:[%s1 + $0x38] sm:$0xff]
  %v31 = vld [vmem:[%s1 + $0x40] sm:$0xff]
  %v32 = vld [vmem:[%s1 + $0x48] sm:$0xff]
  %v33 = vld [vmem:[%s1 + $0x50] sm:$0xff]
  %v34 = vld [vmem:[%s1 + $0x58] sm:$0xff]
  %v35 = vld [vmem:[%s1 + $0x60] sm:$0xff]
  %v36 = vld [vmem:[%s1 + $0x68] sm:$0xff]
  %v37 = vld [vmem:[%s1 + $0x70] sm:$0xff]
  %v38 = vld [vmem:[%s1 + $0x78] sm:$0xff]
  %v39 = vld [vmem:[%s1 + $0x80] sm:$0xff]
  %v40 = vld [vmem:[%s1 + $0x88] sm:$0xff]
  %v41 = vld [vmem:[%s1 + $0x90] sm:$0xff]
  %v42 = vld [vmem:[%s1 + $0x98] sm:$0xff]
  %v43 = vld [vmem:[%s1 + $0xa0] sm:$0xff]
  %v44 = vld [vmem:[%s1 + $0xa8] sm:$0xff]
  %v45 = vld [vmem:[%s1 + $0xb0] sm:$0xff]
  %v46 = vld [vmem:[%s1 + $0xb8] sm:$0xff]
  %v47 = vld [vmem:[%s1 + $0xc0] sm:$0xff]
  %v48 = vld [vmem:[%s1 + $0xc8] sm:$0xff]
  %v49 = vld [vmem:[%s1 + $0xd0] sm:$0xff]
  %v50 = vld [vmem:[%s1 + $0xd8] sm:$0xff]
  %v51 = vld [vmem:[%s1 + $0xe0] sm:$0xff]
  %v52 = vld [vmem:[%s1 + $0xe8] sm:$0xff]
  %v53 = vld [vmem:[%s1 + $0xf0] sm:$0xff]
  %v54 = vld [vmem:[%s1 + $0xf8] sm:$0xff]
  %v55 = vld [vmem:[%s1 + $0x100] sm:$0xff]
  %v56 = vld [vmem:[%s1 + $0x108] sm:$0xff]
  %v57 = vld [vmem:[%s1 + $0x110] sm:$0xff]
  %v58 = vld [vmem:[%s1 + $0x118] sm:$0xff]
  %v59 = vld [vmem:[%s1 + $0x120] sm:$0xff]
  %v60 = vld [vmem:[%s1 + $0x128] sm:$0xff]
  %v61 = vld [vmem:[%s1 + $0x130] sm:$0xff]
  %v62 = vld [vmem:[%s1 + $0x138] sm:$0xff]
  %v63 = vld [vmem:[%s1 + $0x140] sm:$0xff]
  %v64 = vld [vmem:[%s1 + $0x148] sm:$0xff]
  %v65 = vld [vmem:[%s1 + $0x150] sm:$0xff]
  %v66 = vld [vmem:[%s1 + $0x158] sm:$0xff]
  %v67 = vld [vmem:[%s1 + $0x160] sm:$0xff]
  %v68 = vld [vmem:[%s1 + $0x168] sm:$0xff]
  %v69 = vld [vmem:[%s1 + $0x170] sm:$0xff]
  %v70 = vld [vmem:[%s1 + $0x178] sm:$0xff]
  %v71 = vld [vmem:[%s1 + $0x180] sm:$0xff]
  %v72 = vld [vmem:[%s1 + $0x188] sm:$0xff]
  %v73 = vld [vmem:[%s1 + $0x190] sm:$0xff]
  %v74 = vld [vmem:[%s1 + $0x198] sm:$0xff]
  %v75 = vld [vmem:[%s1 + $0x1a0] sm:$0xff]
  %v76 = vld [vmem:[%s1 + $0x1a8] sm:$0xff]
  %v77 = vld [vmem:[%s1 + $0x1b0] sm:$0xff]
  %v78 = vld [vmem:[%s1 + $0x1b8] sm:$0xff]
  %v79 = vld [vmem:[%s1 + $0x1c0] sm:$0xff]
  %v80 = vld [vmem:[%s1 + $0x1c8] sm:$0xff]
  %v81 = vld [vmem:[%s1 + $0x1d0] sm:$0xff]
  %v82 = vld [vmem:[%s1 + $0x1d8] sm:$0xff]
  %v83 = vld [vmem:[%s1 + $0x1e0] sm:$0xff]
  %v84 = vld [vmem:[%s1 + $0x1e8] sm:$0xff]
  %v85 = vld [vmem:[%s1 + $0x1f0] sm:$0xff]
  %v86 = vld [vmem:[%s1 + $0x1f8] sm:$0xff]
  %v87 = vld [vmem:[%s1 + $0x200] sm:$0xff]
  %v88 = vld [vmem:[%s1 + $0x208] sm:$0xff]
  %v89 = vld [vmem:[%s1 + $0x210] sm:$0xff]
  %v90 = vld [vmem:[%s1 + $0x218] sm:$0xff]
  %v91 = vld [vmem:[%s1 + $0x220] sm:$0xff]
  %v92 = vld [vmem:[%s1 + $0x228] sm:$0xff]
  %v93 = vld [vmem:[%s1 + $0x230] sm:$0xff]
  %v94 = vld [vmem:[%s1 + $0x238] sm:$0xff]
  %v95 = vld [vmem:[%s1 + $0x240] sm:$0xff]
  %v96 = vld [vmem:[%s1 + $0x248] sm:$0xff]
  %v97 = vld [vmem:[%s1 + $0x250] sm:$0xff]
  %v98 = vld [vmem:[%s1 + $0x258] sm:$0xff]
  %v99 = vld [vmem:[%s1 + $0x260] sm:$0xff]
  %v100 = vld [vmem:[%s1 + $0x268] sm:$0xff]
  %v101 = vld [vmem:[%s1 + $0x270] sm:$0xff]
  %v102 = vld [vmem:[%s1 + $0x278] sm:$0xff]
  %v103 = vld [vmem:[%s1 + $0x280] sm:$0xff]
  %v104 = vld [vmem:[%s1 + $0x288] sm:$0xff]
  %v105 = vld [vmem:[%s1 + $0x290] sm:$0xff]
  %v106 = vld [vmem:[%s1 + $0x298] sm:$0xff]
  %v107 = vld [vmem:[%s1 + $0x2a0] sm:$0xff]
  %v108 = vld [vmem:[%s1 + $0x2a8] sm:$0xff]
  %v109 = vld [vmem:[%s1 + $0x2b0] sm:$0xff]
  %v110 = vld [vmem:[%s1 + $0x2b8] sm:$0xff]
  %v111 = vld [vmem:[%s1 + $0x2c0] sm:$0xff]
  %v112 = vld [vmem:[%s1 + $0x2c8] sm:$0xff]
  %v113 = vld [vmem:[%s1 + $0x2d0] sm:$0xff]
  %v114 = vld [vmem:[%s1 + $0x2d8] sm:$0xff]
  %v115 = vld [vmem:[%s1 + $0x2e0] sm:$0xff]
  %v116 = vld [vmem:[%s1 + $0x2e8] sm:$0xff]
  %v117 = vld [vmem:[%s1 + $0x2f0] sm:$0xff]
  %v118 = vld [vmem:[%s1 + $0x2f8] sm:$0xff]
  %v119 = vld [vmem:[%s1 + $0x300] sm:$0xff]
  %v120 = vld [vmem:[%s1 + $0x308] sm:$0xff]
  %v121 = vld [vmem:[%s1 + $0x310] sm:$0xff]
  %v122 = vld [vmem:[%s1 + $0x318] sm:$0xff]
  %v123 = vld [vmem:[%s1 + $0x320] sm:$0xff]
  %v124 = vld [vmem:[%s1 + $0x328] sm:$0xff]
  %v125 = vld [vmem:[%s1 + $0x330] sm:$0xff]
  %v126 = vld [vmem:[%s1 + $0x338] sm:$0xff]
  %v127 = vld [vmem:[%s1 + $0x340] sm:$0xff]
  %v128 = vld [vmem:[%s1 + $0x348] sm:$0xff]
  %v129 = vld [vmem:[%s1 + $0x350] sm:$0xff]
  %v130 = vld [vmem:[%s1 + $0x358] sm:$0xff]
  %v131 = vld [vmem:[%s1 + $0x360] sm:$0xff]
  %v132 = vld [vmem:[%s1 + $0x368] sm:$0xff]
  %v133 = vld [vmem:[%s1 + $0x370] sm:$0xff]
  %v134 = vld [vmem:[%s1 + $0x378] sm:$0xff]
  %v135 = vld [vmem:[%s1 + $0x380] sm:$0xff]
  %v136 = vld [vmem:[%s1 + $0x388] sm:$0xff]
  %v137 = vld [vmem:[%s1 + $0x390] sm:$0xff]
  %v138 = vld [vmem:[%s1 + $0x398] sm:$0xff]
  %v139 = vld [vmem:[%s1 + $0x3a0] sm:$0xff]
  %v140 = vld [vmem:[%s1 + $0x3a8] sm:$0xff]
  %v141 = vld [vmem:[%s1 + $0x3b0] sm:$0xff]
  %v142 = vld [vmem:[%s1 + $0x3b8] sm:$0xff]
  %v143 = vld [vmem:[%s1 + $0x3c0] sm:$0xff]
  %v144 = vld [vmem:[%s1 + $0x3c8] sm:$0xff]
  %v145 = vld [vmem:[%s1 + $0x3d0] sm:$0xff]
  %v146 = vld [vmem:[%s1 + $0x3d8] sm:$0xff]
  %v147 = vld [vmem:[%s1 + $0x3e0] sm:$0xff]
  %v148 = vld [vmem:[%s1 + $0x3e8] sm:$0xff]
  %v149 = vld [vmem:[%s1 + $0x3f0] sm:$0xff]
  %v150 = vld [vmem:[%s1 + $0x3f8] sm:$0xff]
  %v151 = vld [vmem:[%s1 + $0x400] sm:$0xff]
  %v152 = vld [vmem:[%s1 + $0x408] sm:$0xff]
  %v153 = vld [vmem:[%s1 + $0x410] sm:$0xff]
  %v154 = vld [vmem:[%s1 + $0x418] sm:$0xff]
  %v155 = vld [vmem:[%s1 + $0x420] sm:$0xff]
  %v156 = vld [vmem:[%s1 + $0x428] sm:$0xff]
  %v157 = vld [vmem:[%s1 + $0x430] sm:$0xff]
  %v158 = vld [vmem:[%s1 + $0x438] sm:$0xff]
  %v159 = vld [vmem:[%s1 + $0x440] sm:$0xff]
  %v160 = vld [vmem:[%s1 + $0x448] sm:$0xff]
  %v161 = vld [vmem:[%s1 + $0x450] sm:$0xff]
  %v162 = vld [vmem:[%s1 + $0x458] sm:$0xff]
  %v163 = vld [vmem:[%s1 + $0x460] sm:$0xff]
  %v164 = vld [vmem:[%s1 + $0x468] sm:$0xff]
  %v165 = vld [vmem:[%s1 + $0x470] sm:$0xff]
  %v166 = vld [vmem:[%s1 + $0x478] sm:$0xff]
  %v167 = vld [vmem:[%s1 + $0x480] sm:$0xff]
  %v168 = vld [vmem:[%s1 + $0x488] sm:$0xff]
  %v169 = vld [vmem:[%s1 + $0x490] sm:$0xff]
  %v170 = vld [vmem:[%s1 + $0x498] sm:$0xff]
  %v171 = vld [vmem:[%s1 + $0x4a0] sm:$0xff]
  %v172 = vld [vmem:[%s1 + $0x4a8] sm:$0xff]
  %v173 = vld [vmem:[%s1 + $0x4b0] sm:$0xff]
  %v174 = vld [vmem:[%s1 + $0x4b8] sm:$0xff]
  %v175 = vld [vmem:[%s1 + $0x4c0] sm:$0xff]
  %v176 = vld [vmem:[%s1 + $0x4c8] sm:$0xff]
  %v177 = vld [vmem:[%s1 + $0x4d0] sm:$0xff]
  %v178 = vld [vmem:[%s1 + $0x4d8] sm:$0xff]
  %v179 = vld [vmem:[%s1 + $0x4e0] sm:$0xff]
  %v180 = vld [vmem:[%s1 + $0x4e8] sm:$0xff]
  %v181 = vld [vmem:[%s1 + $0x4f0] sm:$0xff]
  %v182 = vld [vmem:[%s1 + $0x4f8] sm:$0xff]
  %v183 = vld [vmem:[%s1 + $0x500] sm:$0xff]
  %v184 = vld [vmem:[%s1 + $0x508] sm:$0xff]
  %v185 = vld [vmem:[%s1 + $0x510] sm:$0xff]
  %v186 = vld [vmem:[%s1 + $0x518] sm:$0xff]
  %v187 = vld [vmem:[%s1 + $0x520] sm:$0xff]
  %v188 = vld [vmem:[%s1 + $0x528] sm:$0xff]
  %v189 = vld [vmem:[%s1 + $0x530] sm:$0xff]
  %v190 = vld [vmem:[%s1 + $0x538] sm:$0xff]
  %v191 = vld [vmem:[%s1 + $0x540] sm:$0xff]
  %v192 = vld [vmem:[%s1 + $0x548] sm:$0xff]
  %v193 = vld [vmem:[%s1 + $0x550] sm:$0xff]
  %v194 = vld [vmem:[%s1 + $0x558] sm:$0xff]
  %v195 = vld [vmem:[%s1 + $0x560] sm:$0xff]
  %v196 = vld [vmem:[%s1 + $0x568] sm:$0xff]
  %v197 = vld [vmem:[%s1 + $0x570] sm:$0xff]
  %v198 = vld [vmem:[%s1 + $0x578] sm:$0xff]
  %v199 = vld [vmem:[%s1 + $0x580] sm:$0xff]
  %v200 = vld [vmem:[%s1 + $0x588] sm:$0xff]
  %v201 = vld [vmem:[%s1 + $0x590] sm:$0xff]
  %v202 = vld [vmem:[%s1 + $0x598] sm:$0xff]
  %v203 = vld [vmem:[%s1 + $0x5a0] sm:$0xff]
  %v204 = vld [vmem:[%s1 + $0x5a8] sm:$0xff]
  %v205 = vld [vmem:[%s1 + $0x5b0] sm:$0xff]
  %v206 = vld [vmem:[%s1 + $0x5b8] sm:$0xff]
  %v207 = vld [vmem:[%s1 + $0x5c0] sm:$0xff]
  %v208 = vld [vmem:[%s1 + $0x5c8] sm:$0xff]
  %v209 = vld [vmem:[%s1 + $0x5d0] sm:$0xff]
  %v210 = vld [vmem:[%s1 + $0x5d8] sm:$0xff]
  %v211 = vld [vmem:[%s1 + $0x5e0] sm:$0xff]
  %v212 = vld [vmem:[%s1 + $0x5e8] sm:$0xff]
  %v213 = vld [vmem:[%s1 + $0x5f0] sm:$0xff]
  %v214 = vld [vmem:[%s1 + $0x5f8] sm:$0xff]
  %v215 = vld [vmem:[%s1 + $0x600] sm:$0xff]
  %v216 = vld [vmem:[%s1 + $0x608] sm:$0xff]
  %v217 = vld [vmem:[%s1 + $0x610] sm:$0xff]
  %v218 = vld [vmem:[%s1 + $0x618] sm:$0xff]
  %v219 = vld [vmem:[%s1 + $0x620] sm:$0xff]
  %v220 = vld [vmem:[%s1 + $0x628] sm:$0xff]
  %v221 = vld [vmem:[%s1 + $0x630] sm:$0xff]
  %v222 = vld [vmem:[%s1 + $0x638] sm:$0xff]
  %v223 = vld [vmem:[%s1 + $0x640] sm:$0xff]
  %v224 = vld [vmem:[%s1 + $0x648] sm:$0xff]
  %v225 = vld [vmem:[%s1 + $0x650] sm:$0xff]
  %v226 = vld [vmem:[%s1 + $0x658] sm:$0xff]
  %v227 = vld [vmem:[%s1 + $0x660] sm:$0xff]
  %v228 = vld [vmem:[%s1 + $0x668] sm:$0xff]
  %v229 = vld [vmem:[%s1 + $0x670] sm:$0xff]
  %v230 = vld [vmem:[%s1 + $0x678] sm:$0xff]
  %v231 = vld [vmem:[%s1 + $0x680] sm:$0xff]
  %v232 = vld [vmem:[%s1 + $0x688] sm:$0xff]
  %v233 = vld [vmem:[%s1 + $0x690] sm:$0xff]
  %v234 = vld [vmem:[%s1 + $0x698] sm:$0xff]
  %v235 = vld [vmem:[%s1 + $0x6a0] sm:$0xff]
  %v236 = vld [vmem:[%s1 + $0x6a8] sm:$0xff]
  %v237 = vld [vmem:[%s1 + $0x6b0] sm:$0xff]
  %v238 = vld [vmem:[%s1 + $0x6b8] sm:$0xff]
  %v239 = vld [vmem:[%s1 + $0x6c0] sm:$0xff]
  %v240 = vld [vmem:[%s1 + $0x6c8] sm:$0xff]
  %v241 = vld [vmem:[%s1 + $0x6d0] sm:$0xff]
  %v242 = vld [vmem:[%s1 + $0x6d8] sm:$0xff]
  %v243 = vld [vmem:[%s1 + $0x6e0] sm:$0xff]
  %v244 = vld [vmem:[%s1 + $0x6e8] sm:$0xff]
  %v245 = vld [vmem:[%s1 + $0x6f0] sm:$0xff]
  %v246 = vld [vmem:[%s1 + $0x6f8] sm:$0xff]
  %v247 = vld [vmem:[%s1 + $0x700] sm:$0xff]
  %v248 = vld [vmem:[%s1 + $0x708] sm:$0xff]
  %v249 = vld [vmem:[%s1 + $0x710] sm:$0xff]
  %v250 = vld [vmem:[%s1 + $0x718] sm:$0xff]
  %v251 = vld [vmem:[%s1 + $0x720] sm:$0xff]
  %v252 = vld [vmem:[%s1 + $0x728] sm:$0xff]
  %v253 = vld [vmem:[%s1 + $0x730] sm:$0xff]
  %v254 = vld [vmem:[%s1 + $0x738] sm:$0xff]
  %v255 = vld [vmem:[%s1 + $0x740] sm:$0xff]
  %v256 = vld [vmem:[%s1 + $0x748] sm:$0xff]
  %v257 = vld [vmem:[%s1 + $0x750] sm:$0xff]
  %v258 = vld [vmem:[%s1 + $0x758] sm:$0xff]
  %v259 = vld [vmem:[%s1 + $0x760] sm:$0xff]
  %v260 = vld [vmem:[%s1 + $0x768] sm:$0xff]
  %v261 = vld [vmem:[%s1 + $0x770] sm:$0xff]
  %v262 = vld [vmem:[%s1 + $0x778] sm:$0xff]
  %v263 = vld [vmem:[%s1 + $0x780] sm:$0xff]
  %v264 = vld [vmem:[%s1 + $0x788] sm:$0xff]
  %v265 = vld [vmem:[%s1 + $0x790] sm:$0xff]
  %v266 = vld [vmem:[%s1 + $0x798] sm:$0xff]
  %v267 = vld [vmem:[%s1 + $0x7a0] sm:$0xff]
  %v268 = vld [vmem:[%s1 + $0x7a8] sm:$0xff]
  %v269 = vld [vmem:[%s1 + $0x7b0] sm:$0xff]
  %v270 = vld [vmem:[%s1 + $0x7b8] sm:$0xff]
  %v271 = vld [vmem:[%s1 + $0x7c0] sm:$0xff]
  %v272 = vld [vmem:[%s1 + $0x7c8] sm:$0xff]
  %v273 = vld [vmem:[%s1 + $0x7d0] sm:$0xff]
  %v274 = vld [vmem:[%s1 + $0x7d8] sm:$0xff]
  %v275 = vld [vmem:[%s1 + $0x7e0] sm:$0xff]
  %v276 = vld [vmem:[%s1 + $0x7e8] sm:$0xff]
  %v277 = vld [vmem:[%s1 + $0x7f0] sm:$0xff]
  %v278 = vld [vmem:[%s1 + $0x7f8] sm:$0xff]
  %v279 = vld [vmem:[%s1 + $0x800] sm:$0xff]
  %v280 = vld [vmem:[%s1 + $0x808] sm:$0xff]
  %v281 = vld [vmem:[%s1 + $0x810] sm:$0xff]
  %v282 = vld [vmem:[%s1 + $0x818] sm:$0xff]
  %v283 = vld [vmem:[%s1 + $0x820] sm:$0xff]
  %v284 = vld [vmem:[%s1 + $0x828] sm:$0xff]
  %v285 = vld [vmem:[%s1 + $0x830] sm:$0xff]
  %v286 = vld [vmem:[%s1 + $0x838] sm:$0xff]
  %v287 = vld [vmem:[%s1 + $0x840] sm:$0xff]
  %v288 = vld [vmem:[%s1 + $0x848] sm:$0xff]
  %v289 = vld [vmem:[%s1 + $0x850] sm:$0xff]
  %v290 = vld [vmem:[%s1 + $0x858] sm:$0xff]
  %v291 = vld [vmem:[%s1 + $0x860] sm:$0xff]
  %v292 = vld [vmem:[%s1 + $0x868] sm:$0xff]
  %v293 = vld [vmem:[%s1 + $0x870] sm:$0xff]
  %v294 = vld [vmem:[%s1 + $0x878] sm:$0xff]
  %v295 = vld [vmem:[%s1 + $0x880] sm:$0xff]
  %v296 = vld [vmem:[%s1 + $0x888] sm:$0xff]
  %v297 = vld [vmem:[%s1 + $0x890] sm:$0xff]
  %v298 = vld [vmem:[%s1 + $0x898] sm:$0xff]
  %v299 = vld [vmem:[%s1 + $0x8a0] sm:$0xff]
  %v300 = vld [vmem:[%s1 + $0x8a8] sm:$0xff]
  %v301 = vld [vmem:[%s1 + $0x8b0] sm:$0xff]
  %v302 = vld [vmem:[%s1 + $0x8b8] sm:$0xff]
  %v303 = vld [vmem:[%s1 + $0x8c0] sm:$0xff]
  %v304 = vld [vmem:[%s1 + $0x8c8] sm:$0xff]
  %v305 = vld [vmem:[%s1 + $0x8d0] sm:$0xff]
  %v306 = vld [vmem:[%s1 + $0x8d8] sm:$0xff]
  %v307 = vld [vmem:[%s1 + $0x8e0] sm:$0xff]
  %v308 = vld [vmem:[%s1 + $0x8e8] sm:$0xff]
  %v309 = vld [vmem:[%s1 + $0x8f0] sm:$0xff]
  %v310 = vld [vmem:[%s1 + $0x8f8] sm:$0xff]
  %v311 = vld [vmem:[%s2] sm:$0x3]
  %v313 = vperm.slane %v311, 0
  %v314 = vperm.slane %v311, 1
  %v326 = vunpack.c.l.b16 %v14
  %v327 = vunpack.c.h.b16 %v14
  %v328 = vunpack.c.l.b16 %v15
  %v329 = vunpack.c.h.b16 %v15
  %v330 = vunpack.c.l.b16 %v16
  %v331 = vunpack.c.h.b16 %v16
  %v332 = vunpack.c.l.b16 %v17
  %v333 = vunpack.c.h.b16 %v17
  %v334 = vunpack.c.l.b16 %v18
  %v335 = vunpack.c.h.b16 %v18
  %v336 = vunpack.c.l.b16 %v19
  %v337 = vunpack.c.h.b16 %v19
  %v338 = vunpack.c.l.b16 %v20
  %v339 = vunpack.c.h.b16 %v20
  %v340 = vunpack.c.l.b16 %v21
  %v341 = vunpack.c.h.b16 %v21
  %v342 = vunpack.c.l.b16 %v22
  %v343 = vunpack.c.h.b16 %v22
  %v344 = vpack.c.b16 %v326, %v326
  %v345 = vpack.c.b16 %v327, %v327
  %v346 = vpack.c.b16 %v328, %v328
  %v347 = vpack.c.b16 %v329, %v329
  %v348 = vpack.c.b16 %v330, %v330
  %v349 = vpack.c.b16 %v331, %v331
  %v350 = vpack.c.b16 %v332, %v332
  %v351 = vpack.c.b16 %v333, %v333
  %v352 = vpack.c.b16 %v334, %v334
  %v353 = vpack.c.b16 %v335, %v335
  %v354 = vpack.c.b16 %v336, %v336
  %v355 = vpack.c.b16 %v337, %v337
  %v356 = vpack.c.b16 %v338, %v338
  %v357 = vpack.c.b16 %v339, %v339
  %v358 = vpack.c.b16 %v340, %v340
  %v359 = vpack.c.b16 %v341, %v341
  %v360 = vpack.c.b16 %v342, %v342
  %v361 = vpack.c.b16 %v343, %v343
  %v668 = vunpack.c.l.b16 %v23
  %v669 = vunpack.c.h.b16 %v23
  %v670 = vunpack.c.l.b16 %v24
  %v671 = vunpack.c.h.b16 %v24
  %v672 = vunpack.c.l.b16 %v25
  %v673 = vunpack.c.h.b16 %v25
  %v674 = vunpack.c.l.b16 %v26
  %v675 = vunpack.c.h.b16 %v26
  %v676 = vunpack.c.l.b16 %v27
  %v677 = vunpack.c.h.b16 %v27
  %v678 = vunpack.c.l.b16 %v28
  %v679 = vunpack.c.h.b16 %v28
  %v680 = vunpack.c.l.b16 %v29
  %v681 = vunpack.c.h.b16 %v29
  %v682 = vunpack.c.l.b16 %v30
  %v683 = vunpack.c.h.b16 %v30
  %v684 = vunpack.c.l.b16 %v31
  %v685 = vunpack.c.h.b16 %v31
  %v686 = vunpack.c.l.b16 %v32
  %v687 = vunpack.c.h.b16 %v32
  %v688 = vunpack.c.l.b16 %v33
  %v689 = vunpack.c.h.b16 %v33
  %v690 = vunpack.c.l.b16 %v34
  %v691 = vunpack.c.h.b16 %v34
  %v692 = vunpack.c.l.b16 %v35
  %v693 = vunpack.c.h.b16 %v35
  %v694 = vunpack.c.l.b16 %v36
  %v695 = vunpack.c.h.b16 %v36
  %v696 = vunpack.c.l.b16 %v37
  %v697 = vunpack.c.h.b16 %v37
  %v698 = vunpack.c.l.b16 %v38
  %v699 = vunpack.c.h.b16 %v38
  %v700 = vunpack.c.l.b16 %v39
  %v701 = vunpack.c.h.b16 %v39
  %v702 = vunpack.c.l.b16 %v40
  %v703 = vunpack.c.h.b16 %v40
  %v704 = vunpack.c.l.b16 %v41
  %v705 = vunpack.c.h.b16 %v41
  %v706 = vunpack.c.l.b16 %v42
  %v707 = vunpack.c.h.b16 %v42
  %v708 = vunpack.c.l.b16 %v43
  %v709 = vunpack.c.h.b16 %v43
  %v710 = vunpack.c.l.b16 %v44
  %v711 = vunpack.c.h.b16 %v44
  %v712 = vunpack.c.l.b16 %v45
  %v713 = vunpack.c.h.b16 %v45
  %v714 = vunpack.c.l.b16 %v46
  %v715 = vunpack.c.h.b16 %v46
  %v716 = vunpack.c.l.b16 %v47
  %v717 = vunpack.c.h.b16 %v47
  %v718 = vunpack.c.l.b16 %v48
  %v719 = vunpack.c.h.b16 %v48
  %v720 = vunpack.c.l.b16 %v49
  %v721 = vunpack.c.h.b16 %v49
  %v722 = vunpack.c.l.b16 %v50
  %v723 = vunpack.c.h.b16 %v50
  %v724 = vunpack.c.l.b16 %v51
  %v725 = vunpack.c.h.b16 %v51
  %v726 = vunpack.c.l.b16 %v52
  %v727 = vunpack.c.h.b16 %v52
  %v728 = vunpack.c.l.b16 %v53
  %v729 = vunpack.c.h.b16 %v53
  %v730 = vunpack.c.l.b16 %v54
  %v731 = vunpack.c.h.b16 %v54
  %v732 = vunpack.c.l.b16 %v55
  %v733 = vunpack.c.h.b16 %v55
  %v734 = vunpack.c.l.b16 %v56
  %v735 = vunpack.c.h.b16 %v56
  %v736 = vunpack.c.l.b16 %v57
  %v737 = vunpack.c.h.b16 %v57
  %v738 = vunpack.c.l.b16 %v58
  %v739 = vunpack.c.h.b16 %v58
  %v740 = vunpack.c.l.b16 %v59
  %v741 = vunpack.c.h.b16 %v59
  %v742 = vunpack.c.l.b16 %v60
  %v743 = vunpack.c.h.b16 %v60
  %v744 = vunpack.c.l.b16 %v61
  %v745 = vunpack.c.h.b16 %v61
  %v746 = vunpack.c.l.b16 %v62
  %v747 = vunpack.c.h.b16 %v62
  %v748 = vunpack.c.l.b16 %v63
  %v749 = vunpack.c.h.b16 %v63
  %v750 = vunpack.c.l.b16 %v64
  %v751 = vunpack.c.h.b16 %v64
  %v752 = vunpack.c.l.b16 %v65
  %v753 = vunpack.c.h.b16 %v65
  %v754 = vunpack.c.l.b16 %v66
  %v755 = vunpack.c.h.b16 %v66
  %v756 = vunpack.c.l.b16 %v67
  %v757 = vunpack.c.h.b16 %v67
  %v758 = vunpack.c.l.b16 %v68
  %v759 = vunpack.c.h.b16 %v68
  %v760 = vunpack.c.l.b16 %v69
  %v761 = vunpack.c.h.b16 %v69
  %v762 = vunpack.c.l.b16 %v70
  %v763 = vunpack.c.h.b16 %v70
  %v764 = vunpack.c.l.b16 %v71
  %v765 = vunpack.c.h.b16 %v71
  %v766 = vunpack.c.l.b16 %v72
  %v767 = vunpack.c.h.b16 %v72
  %v768 = vunpack.c.l.b16 %v73
  %v769 = vunpack.c.h.b16 %v73
  %v770 = vunpack.c.l.b16 %v74
  %v771 = vunpack.c.h.b16 %v74
  %v772 = vunpack.c.l.b16 %v75
  %v773 = vunpack.c.h.b16 %v75
  %v774 = vunpack.c.l.b16 %v76
  %v775 = vunpack.c.h.b16 %v76
  %v776 = vunpack.c.l.b16 %v77
  %v777 = vunpack.c.h.b16 %v77
  %v778 = vunpack.c.l.b16 %v78
  %v779 = vunpack.c.h.b16 %v78
  %v780 = vunpack.c.l.b16 %v79
  %v781 = vunpack.c.h.b16 %v79
  %v782 = vunpack.c.l.b16 %v80
  %v783 = vunpack.c.h.b16 %v80
  %v784 = vunpack.c.l.b16 %v81
  %v785 = vunpack.c.h.b16 %v81
  %v786 = vunpack.c.l.b16 %v82
  %v787 = vunpack.c.h.b16 %v82
  %v788 = vunpack.c.l.b16 %v83
  %v789 = vunpack.c.h.b16 %v83
  %v790 = vunpack.c.l.b16 %v84
  %v791 = vunpack.c.h.b16 %v84
  %v792 = vunpack.c.l.b16 %v85
  %v793 = vunpack.c.h.b16 %v85
  %v794 = vunpack.c.l.b16 %v86
  %v795 = vunpack.c.h.b16 %v86
  %v796 = vunpack.c.l.b16 %v87
  %v797 = vunpack.c.h.b16 %v87
  %v798 = vunpack.c.l.b16 %v88
  %v799 = vunpack.c.h.b16 %v88
  %v800 = vunpack.c.l.b16 %v89
  %v801 = vunpack.c.h.b16 %v89
  %v802 = vunpack.c.l.b16 %v90
  %v803 = vunpack.c.h.b16 %v90
  %v804 = vunpack.c.l.b16 %v91
  %v805 = vunpack.c.h.b16 %v91
  %v806 = vunpack.c.l.b16 %v92
  %v807 = vunpack.c.h.b16 %v92
  %v808 = vunpack.c.l.b16 %v93
  %v809 = vunpack.c.h.b16 %v93
  %v810 = vunpack.c.l.b16 %v94
  %v811 = vunpack.c.h.b16 %v94
  %v812 = vunpack.c.l.b16 %v95
  %v813 = vunpack.c.h.b16 %v95
  %v814 = vunpack.c.l.b16 %v96
  %v815 = vunpack.c.h.b16 %v96
  %v816 = vunpack.c.l.b16 %v97
  %v817 = vunpack.c.h.b16 %v97
  %v818 = vunpack.c.l.b16 %v98
  %v819 = vunpack.c.h.b16 %v98
  %v820 = vunpack.c.l.b16 %v99
  %v821 = vunpack.c.h.b16 %v99
  %v822 = vunpack.c.l.b16 %v100
  %v823 = vunpack.c.h.b16 %v100
  %v824 = vunpack.c.l.b16 %v101
  %v825 = vunpack.c.h.b16 %v101
  %v826 = vunpack.c.l.b16 %v102
  %v827 = vunpack.c.h.b16 %v102
  %v828 = vunpack.c.l.b16 %v103
  %v829 = vunpack.c.h.b16 %v103
  %v830 = vunpack.c.l.b16 %v104
  %v831 = vunpack.c.h.b16 %v104
  %v832 = vunpack.c.l.b16 %v105
  %v833 = vunpack.c.h.b16 %v105
  %v834 = vunpack.c.l.b16 %v106
  %v835 = vunpack.c.h.b16 %v106
  %v836 = vunpack.c.l.b16 %v107
  %v837 = vunpack.c.h.b16 %v107
  %v838 = vunpack.c.l.b16 %v108
  %v839 = vunpack.c.h.b16 %v108
  %v840 = vunpack.c.l.b16 %v109
  %v841 = vunpack.c.h.b16 %v109
  %v842 = vunpack.c.l.b16 %v110
  %v843 = vunpack.c.h.b16 %v110
  %v844 = vunpack.c.l.b16 %v111
  %v845 = vunpack.c.h.b16 %v111
  %v846 = vunpack.c.l.b16 %v112
  %v847 = vunpack.c.h.b16 %v112
  %v848 = vunpack.c.l.b16 %v113
  %v849 = vunpack.c.h.b16 %v113
  %v850 = vunpack.c.l.b16 %v114
  %v851 = vunpack.c.h.b16 %v114
  %v852 = vunpack.c.l.b16 %v115
  %v853 = vunpack.c.h.b16 %v115
  %v854 = vunpack.c.l.b16 %v116
  %v855 = vunpack.c.h.b16 %v116
  %v856 = vunpack.c.l.b16 %v117
  %v857 = vunpack.c.h.b16 %v117
  %v858 = vunpack.c.l.b16 %v118
  %v859 = vunpack.c.h.b16 %v118
  %v860 = vunpack.c.l.b16 %v119
  %v861 = vunpack.c.h.b16 %v119
  %v862 = vunpack.c.l.b16 %v120
  %v863 = vunpack.c.h.b16 %v120
  %v864 = vunpack.c.l.b16 %v121
  %v865 = vunpack.c.h.b16 %v121
  %v866 = vunpack.c.l.b16 %v122
  %v867 = vunpack.c.h.b16 %v122
  %v868 = vunpack.c.l.b16 %v123
  %v869 = vunpack.c.h.b16 %v123
  %v870 = vunpack.c.l.b16 %v124
  %v871 = vunpack.c.h.b16 %v124
  %v872 = vunpack.c.l.b16 %v125
  %v873 = vunpack.c.h.b16 %v125
  %v874 = vunpack.c.l.b16 %v126
  %v875 = vunpack.c.h.b16 %v126
  %v876 = vunpack.c.l.b16 %v127
  %v877 = vunpack.c.h.b16 %v127
  %v878 = vunpack.c.l.b16 %v128
  %v879 = vunpack.c.h.b16 %v128
  %v880 = vunpack.c.l.b16 %v129
  %v881 = vunpack.c.h.b16 %v129
  %v882 = vunpack.c.l.b16 %v130
  %v883 = vunpack.c.h.b16 %v130
  %v884 = vunpack.c.l.b16 %v131
  %v885 = vunpack.c.h.b16 %v131
  %v886 = vunpack.c.l.b16 %v132
  %v887 = vunpack.c.h.b16 %v132
  %v888 = vunpack.c.l.b16 %v133
  %v889 = vunpack.c.h.b16 %v133
  %v890 = vunpack.c.l.b16 %v134
  %v891 = vunpack.c.h.b16 %v134
  %v892 = vunpack.c.l.b16 %v135
  %v893 = vunpack.c.h.b16 %v135
  %v894 = vunpack.c.l.b16 %v136
  %v895 = vunpack.c.h.b16 %v136
  %v896 = vunpack.c.l.b16 %v137
  %v897 = vunpack.c.h.b16 %v137
  %v898 = vunpack.c.l.b16 %v138
  %v899 = vunpack.c.h.b16 %v138
  %v900 = vunpack.c.l.b16 %v139
  %v901 = vunpack.c.h.b16 %v139
  %v902 = vunpack.c.l.b16 %v140
  %v903 = vunpack.c.h.b16 %v140
  %v904 = vunpack.c.l.b16 %v141
  %v905 = vunpack.c.h.b16 %v141
  %v906 = vunpack.c.l.b16 %v142
  %v907 = vunpack.c.h.b16 %v142
  %v908 = vunpack.c.l.b16 %v143
  %v909 = vunpack.c.h.b16 %v143
  %v910 = vunpack.c.l.b16 %v144
  %v911 = vunpack.c.h.b16 %v144
  %v912 = vunpack.c.l.b16 %v145
  %v913 = vunpack.c.h.b16 %v145
  %v914 = vunpack.c.l.b16 %v146
  %v915 = vunpack.c.h.b16 %v146
  %v916 = vunpack.c.l.b16 %v147
  %v917 = vunpack.c.h.b16 %v147
  %v918 = vunpack.c.l.b16 %v148
  %v919 = vunpack.c.h.b16 %v148
  %v920 = vunpack.c.l.b16 %v149
  %v921 = vunpack.c.h.b16 %v149
  %v922 = vunpack.c.l.b16 %v150
  %v923 = vunpack.c.h.b16 %v150
  %v924 = vunpack.c.l.b16 %v151
  %v925 = vunpack.c.h.b16 %v151
  %v926 = vunpack.c.l.b16 %v152
  %v927 = vunpack.c.h.b16 %v152
  %v928 = vunpack.c.l.b16 %v153
  %v929 = vunpack.c.h.b16 %v153
  %v930 = vunpack.c.l.b16 %v154
  %v931 = vunpack.c.h.b16 %v154
  %v932 = vunpack.c.l.b16 %v155
  %v933 = vunpack.c.h.b16 %v155
  %v934 = vunpack.c.l.b16 %v156
  %v935 = vunpack.c.h.b16 %v156
  %v936 = vunpack.c.l.b16 %v157
  %v937 = vunpack.c.h.b16 %v157
  %v938 = vunpack.c.l.b16 %v158
  %v939 = vunpack.c.h.b16 %v158
  %v940 = vunpack.c.l.b16 %v159
  %v941 = vunpack.c.h.b16 %v159
  %v942 = vunpack.c.l.b16 %v160
  %v943 = vunpack.c.h.b16 %v160
  %v944 = vunpack.c.l.b16 %v161
  %v945 = vunpack.c.h.b16 %v161
  %v946 = vunpack.c.l.b16 %v162
  %v947 = vunpack.c.h.b16 %v162
  %v948 = vunpack.c.l.b16 %v163
  %v949 = vunpack.c.h.b16 %v163
  %v950 = vunpack.c.l.b16 %v164
  %v951 = vunpack.c.h.b16 %v164
  %v952 = vunpack.c.l.b16 %v165
  %v953 = vunpack.c.h.b16 %v165
  %v954 = vunpack.c.l.b16 %v166
  %v955 = vunpack.c.h.b16 %v166
  %v956 = vunpack.c.l.b16 %v167
  %v957 = vunpack.c.h.b16 %v167
  %v958 = vunpack.c.l.b16 %v168
  %v959 = vunpack.c.h.b16 %v168
  %v960 = vunpack.c.l.b16 %v169
  %v961 = vunpack.c.h.b16 %v169
  %v962 = vunpack.c.l.b16 %v170
  %v963 = vunpack.c.h.b16 %v170
  %v964 = vunpack.c.l.b16 %v171
  %v965 = vunpack.c.h.b16 %v171
  %v966 = vunpack.c.l.b16 %v172
  %v967 = vunpack.c.h.b16 %v172
  %v968 = vunpack.c.l.b16 %v173
  %v969 = vunpack.c.h.b16 %v173
  %v970 = vunpack.c.l.b16 %v174
  %v971 = vunpack.c.h.b16 %v174
  %v972 = vunpack.c.l.b16 %v175
  %v973 = vunpack.c.h.b16 %v175
  %v974 = vunpack.c.l.b16 %v176
  %v975 = vunpack.c.h.b16 %v176
  %v976 = vunpack.c.l.b16 %v177
  %v977 = vunpack.c.h.b16 %v177
  %v978 = vunpack.c.l.b16 %v178
  %v979 = vunpack.c.h.b16 %v178
  %v980 = vunpack.c.l.b16 %v179
  %v981 = vunpack.c.h.b16 %v179
  %v982 = vunpack.c.l.b16 %v180
  %v983 = vunpack.c.h.b16 %v180
  %v984 = vunpack.c.l.b16 %v181
  %v985 = vunpack.c.h.b16 %v181
  %v986 = vunpack.c.l.b16 %v182
  %v987 = vunpack.c.h.b16 %v182
  %v988 = vunpack.c.l.b16 %v183
  %v989 = vunpack.c.h.b16 %v183
  %v990 = vunpack.c.l.b16 %v184
  %v991 = vunpack.c.h.b16 %v184
  %v992 = vunpack.c.l.b16 %v185
  %v993 = vunpack.c.h.b16 %v185
  %v994 = vunpack.c.l.b16 %v186
  %v995 = vunpack.c.h.b16 %v186
  %v996 = vunpack.c.l.b16 %v187
  %v997 = vunpack.c.h.b16 %v187
  %v998 = vunpack.c.l.b16 %v188
  %v999 = vunpack.c.h.b16 %v188
  %v1000 = vunpack.c.l.b16 %v189
  %v1001 = vunpack.c.h.b16 %v189
  %v1002 = vunpack.c.l.b16 %v190
  %v1003 = vunpack.c.h.b16 %v190
  %v1004 = vunpack.c.l.b16 %v191
  %v1005 = vunpack.c.h.b16 %v191
  %v1006 = vunpack.c.l.b16 %v192
  %v1007 = vunpack.c.h.b16 %v192
  %v1008 = vunpack.c.l.b16 %v193
  %v1009 = vunpack.c.h.b16 %v193
  %v1010 = vunpack.c.l.b16 %v194
  %v1011 = vunpack.c.h.b16 %v194
  %v1012 = vunpack.c.l.b16 %v195
  %v1013 = vunpack.c.h.b16 %v195
  %v1014 = vunpack.c.l.b16 %v196
  %v1015 = vunpack.c.h.b16 %v196
  %v1016 = vunpack.c.l.b16 %v197
  %v1017 = vunpack.c.h.b16 %v197
  %v1018 = vunpack.c.l.b16 %v198
  %v1019 = vunpack.c.h.b16 %v198
  %v1020 = vunpack.c.l.b16 %v199
  %v1021 = vunpack.c.h.b16 %v199
  %v1022 = vunpack.c.l.b16 %v200
  %v1023 = vunpack.c.h.b16 %v200
  %v1024 = vunpack.c.l.b16 %v201
  %v1025 = vunpack.c.h.b16 %v201
  %v1026 = vunpack.c.l.b16 %v202
  %v1027 = vunpack.c.h.b16 %v202
  %v1028 = vunpack.c.l.b16 %v203
  %v1029 = vunpack.c.h.b16 %v203
  %v1030 = vunpack.c.l.b16 %v204
  %v1031 = vunpack.c.h.b16 %v204
  %v1032 = vunpack.c.l.b16 %v205
  %v1033 = vunpack.c.h.b16 %v205
  %v1034 = vunpack.c.l.b16 %v206
  %v1035 = vunpack.c.h.b16 %v206
  %v1036 = vunpack.c.l.b16 %v207
  %v1037 = vunpack.c.h.b16 %v207
  %v1038 = vunpack.c.l.b16 %v208
  %v1039 = vunpack.c.h.b16 %v208
  %v1040 = vunpack.c.l.b16 %v209
  %v1041 = vunpack.c.h.b16 %v209
  %v1042 = vunpack.c.l.b16 %v210
  %v1043 = vunpack.c.h.b16 %v210
  %v1044 = vunpack.c.l.b16 %v211
  %v1045 = vunpack.c.h.b16 %v211
  %v1046 = vunpack.c.l.b16 %v212
  %v1047 = vunpack.c.h.b16 %v212
  %v1048 = vunpack.c.l.b16 %v213
  %v1049 = vunpack.c.h.b16 %v213
  %v1050 = vunpack.c.l.b16 %v214
  %v1051 = vunpack.c.h.b16 %v214
  %v1052 = vunpack.c.l.b16 %v215
  %v1053 = vunpack.c.h.b16 %v215
  %v1054 = vunpack.c.l.b16 %v216
  %v1055 = vunpack.c.h.b16 %v216
  %v1056 = vunpack.c.l.b16 %v217
  %v1057 = vunpack.c.h.b16 %v217
  %v1058 = vunpack.c.l.b16 %v218
  %v1059 = vunpack.c.h.b16 %v218
  %v1060 = vunpack.c.l.b16 %v219
  %v1061 = vunpack.c.h.b16 %v219
  %v1062 = vunpack.c.l.b16 %v220
  %v1063 = vunpack.c.h.b16 %v220
  %v1064 = vunpack.c.l.b16 %v221
  %v1065 = vunpack.c.h.b16 %v221
  %v1066 = vunpack.c.l.b16 %v222
  %v1067 = vunpack.c.h.b16 %v222
  %v1068 = vunpack.c.l.b16 %v223
  %v1069 = vunpack.c.h.b16 %v223
  %v1070 = vunpack.c.l.b16 %v224
  %v1071 = vunpack.c.h.b16 %v224
  %v1072 = vunpack.c.l.b16 %v225
  %v1073 = vunpack.c.h.b16 %v225
  %v1074 = vunpack.c.l.b16 %v226
  %v1075 = vunpack.c.h.b16 %v226
  %v1076 = vunpack.c.l.b16 %v227
  %v1077 = vunpack.c.h.b16 %v227
  %v1078 = vunpack.c.l.b16 %v228
  %v1079 = vunpack.c.h.b16 %v228
  %v1080 = vunpack.c.l.b16 %v229
  %v1081 = vunpack.c.h.b16 %v229
  %v1082 = vunpack.c.l.b16 %v230
  %v1083 = vunpack.c.h.b16 %v230
  %v1084 = vunpack.c.l.b16 %v231
  %v1085 = vunpack.c.h.b16 %v231
  %v1086 = vunpack.c.l.b16 %v232
  %v1087 = vunpack.c.h.b16 %v232
  %v1088 = vunpack.c.l.b16 %v233
  %v1089 = vunpack.c.h.b16 %v233
  %v1090 = vunpack.c.l.b16 %v234
  %v1091 = vunpack.c.h.b16 %v234
  %v1092 = vunpack.c.l.b16 %v235
  %v1093 = vunpack.c.h.b16 %v235
  %v1094 = vunpack.c.l.b16 %v236
  %v1095 = vunpack.c.h.b16 %v236
  %v1096 = vunpack.c.l.b16 %v237
  %v1097 = vunpack.c.h.b16 %v237
  %v1098 = vunpack.c.l.b16 %v238
  %v1099 = vunpack.c.h.b16 %v238
  %v1100 = vunpack.c.l.b16 %v239
  %v1101 = vunpack.c.h.b16 %v239
  %v1102 = vunpack.c.l.b16 %v240
  %v1103 = vunpack.c.h.b16 %v240
  %v1104 = vunpack.c.l.b16 %v241
  %v1105 = vunpack.c.h.b16 %v241
  %v1106 = vunpack.c.l.b16 %v242
  %v1107 = vunpack.c.h.b16 %v242
  %v1108 = vunpack.c.l.b16 %v243
  %v1109 = vunpack.c.h.b16 %v243
  %v1110 = vunpack.c.l.b16 %v244
  %v1111 = vunpack.c.h.b16 %v244
  %v1112 = vunpack.c.l.b16 %v245
  %v1113 = vunpack.c.h.b16 %v245
  %v1114 = vunpack.c.l.b16 %v246
  %v1115 = vunpack.c.h.b16 %v246
  %v1116 = vunpack.c.l.b16 %v247
  %v1117 = vunpack.c.h.b16 %v247
  %v1118 = vunpack.c.l.b16 %v248
  %v1119 = vunpack.c.h.b16 %v248
  %v1120 = vunpack.c.l.b16 %v249
  %v1121 = vunpack.c.h.b16 %v249
  %v1122 = vunpack.c.l.b16 %v250
  %v1123 = vunpack.c.h.b16 %v250
  %v1124 = vunpack.c.l.b16 %v251
  %v1125 = vunpack.c.h.b16 %v251
  %v1126 = vunpack.c.l.b16 %v252
  %v1127 = vunpack.c.h.b16 %v252
  %v1128 = vunpack.c.l.b16 %v253
  %v1129 = vunpack.c.h.b16 %v253
  %v1130 = vunpack.c.l.b16 %v254
  %v1131 = vunpack.c.h.b16 %v254
  %v1132 = vunpack.c.l.b16 %v255
  %v1133 = vunpack.c.h.b16 %v255
  %v1134 = vunpack.c.l.b16 %v256
  %v1135 = vunpack.c.h.b16 %v256
  %v1136 = vunpack.c.l.b16 %v257
  %v1137 = vunpack.c.h.b16 %v257
  %v1138 = vunpack.c.l.b16 %v258
  %v1139 = vunpack.c.h.b16 %v258
  %v1140 = vunpack.c.l.b16 %v259
  %v1141 = vunpack.c.h.b16 %v259
  %v1142 = vunpack.c.l.b16 %v260
  %v1143 = vunpack.c.h.b16 %v260
  %v1144 = vunpack.c.l.b16 %v261
  %v1145 = vunpack.c.h.b16 %v261
  %v1146 = vunpack.c.l.b16 %v262
  %v1147 = vunpack.c.h.b16 %v262
  %v1148 = vunpack.c.l.b16 %v263
  %v1149 = vunpack.c.h.b16 %v263
  %v1150 = vunpack.c.l.b16 %v264
  %v1151 = vunpack.c.h.b16 %v264
  %v1152 = vunpack.c.l.b16 %v265
  %v1153 = vunpack.c.h.b16 %v265
  %v1154 = vunpack.c.l.b16 %v266
  %v1155 = vunpack.c.h.b16 %v266
  %v1156 = vunpack.c.l.b16 %v267
  %v1157 = vunpack.c.h.b16 %v267
  %v1158 = vunpack.c.l.b16 %v268
  %v1159 = vunpack.c.h.b16 %v268
  %v1160 = vunpack.c.l.b16 %v269
  %v1161 = vunpack.c.h.b16 %v269
  %v1162 = vunpack.c.l.b16 %v270
  %v1163 = vunpack.c.h.b16 %v270
  %v1164 = vunpack.c.l.b16 %v271
  %v1165 = vunpack.c.h.b16 %v271
  %v1166 = vunpack.c.l.b16 %v272
  %v1167 = vunpack.c.h.b16 %v272
  %v1168 = vunpack.c.l.b16 %v273
  %v1169 = vunpack.c.h.b16 %v273
  %v1170 = vunpack.c.l.b16 %v274
  %v1171 = vunpack.c.h.b16 %v274
  %v1172 = vunpack.c.l.b16 %v275
  %v1173 = vunpack.c.h.b16 %v275
  %v1174 = vunpack.c.l.b16 %v276
  %v1175 = vunpack.c.h.b16 %v276
  %v1176 = vunpack.c.l.b16 %v277
  %v1177 = vunpack.c.h.b16 %v277
  %v1178 = vunpack.c.l.b16 %v278
  %v1179 = vunpack.c.h.b16 %v278
  %v1180 = vunpack.c.l.b16 %v279
  %v1181 = vunpack.c.h.b16 %v279
  %v1182 = vunpack.c.l.b16 %v280
  %v1183 = vunpack.c.h.b16 %v280
  %v1184 = vunpack.c.l.b16 %v281
  %v1185 = vunpack.c.h.b16 %v281
  %v1186 = vunpack.c.l.b16 %v282
  %v1187 = vunpack.c.h.b16 %v282
  %v1188 = vunpack.c.l.b16 %v283
  %v1189 = vunpack.c.h.b16 %v283
  %v1190 = vunpack.c.l.b16 %v284
  %v1191 = vunpack.c.h.b16 %v284
  %v1192 = vunpack.c.l.b16 %v285
  %v1193 = vunpack.c.h.b16 %v285
  %v1194 = vunpack.c.l.b16 %v286
  %v1195 = vunpack.c.h.b16 %v286
  %v1196 = vunpack.c.l.b16 %v287
  %v1197 = vunpack.c.h.b16 %v287
  %v1198 = vunpack.c.l.b16 %v288
  %v1199 = vunpack.c.h.b16 %v288
  %v1200 = vunpack.c.l.b16 %v289
  %v1201 = vunpack.c.h.b16 %v289
  %v1202 = vunpack.c.l.b16 %v290
  %v1203 = vunpack.c.h.b16 %v290
  %v1204 = vunpack.c.l.b16 %v291
  %v1205 = vunpack.c.h.b16 %v291
  %v1206 = vunpack.c.l.b16 %v292
  %v1207 = vunpack.c.h.b16 %v292
  %v1208 = vunpack.c.l.b16 %v293
  %v1209 = vunpack.c.h.b16 %v293
  %v1210 = vunpack.c.l.b16 %v294
  %v1211 = vunpack.c.h.b16 %v294
  %v1212 = vunpack.c.l.b16 %v295
  %v1213 = vunpack.c.h.b16 %v295
  %v1214 = vunpack.c.l.b16 %v296
  %v1215 = vunpack.c.h.b16 %v296
  %v1216 = vunpack.c.l.b16 %v297
  %v1217 = vunpack.c.h.b16 %v297
  %v1218 = vunpack.c.l.b16 %v298
  %v1219 = vunpack.c.h.b16 %v298
  %v1220 = vunpack.c.l.b16 %v299
  %v1221 = vunpack.c.h.b16 %v299
  %v1222 = vunpack.c.l.b16 %v300
  %v1223 = vunpack.c.h.b16 %v300
  %v1224 = vunpack.c.l.b16 %v301
  %v1225 = vunpack.c.h.b16 %v301
  %v1226 = vunpack.c.l.b16 %v302
  %v1227 = vunpack.c.h.b16 %v302
  %v1228 = vunpack.c.l.b16 %v303
  %v1229 = vunpack.c.h.b16 %v303
  %v1230 = vunpack.c.l.b16 %v304
  %v1231 = vunpack.c.h.b16 %v304
  %v1232 = vunpack.c.l.b16 %v305
  %v1233 = vunpack.c.h.b16 %v305
  %v1234 = vunpack.c.l.b16 %v306
  %v1235 = vunpack.c.h.b16 %v306
  %v1236 = vunpack.c.l.b16 %v307
  %v1237 = vunpack.c.h.b16 %v307
  %v1238 = vunpack.c.l.b16 %v308
  %v1239 = vunpack.c.h.b16 %v308
  %v1240 = vunpack.c.l.b16 %v309
  %v1241 = vunpack.c.h.b16 %v309
  %v1242 = vunpack.c.l.b16 %v310
  %v1243 = vunpack.c.h.b16 %v310
  %v1244 = vpack.c.b16 %v670, %v668
  %v1245 = vpack.c.b16 %v671, %v669
  %v1246 = vpack.c.b16 %v674, %v672
  %v1247 = vpack.c.b16 %v675, %v673
  %v1248 = vpack.c.b16 %v678, %v676
  %v1249 = vpack.c.b16 %v679, %v677
  %v1250 = vpack.c.b16 %v682, %v680
  %v1251 = vpack.c.b16 %v683, %v681
  %v1252 = vpack.c.b16 %v686, %v684
  %v1253 = vpack.c.b16 %v687, %v685
  %v1254 = vpack.c.b16 %v690, %v688
  %v1255 = vpack.c.b16 %v691, %v689
  %v1256 = vpack.c.b16 %v694, %v692
  %v1257 = vpack.c.b16 %v695, %v693
  %v1258 = vpack.c.b16 %v698, %v696
  %v1259 = vpack.c.b16 %v699, %v697
  %v1260 = vpack.c.b16 %v702, %v700
  %v1261 = vpack.c.b16 %v703, %v701
  %v1262 = vpack.c.b16 %v706, %v704
  %v1263 = vpack.c.b16 %v707, %v705
  %v1264 = vpack.c.b16 %v710, %v708
  %v1265 = vpack.c.b16 %v711, %v709
  %v1266 = vpack.c.b16 %v714, %v712
  %v1267 = vpack.c.b16 %v715, %v713
  %v1268 = vpack.c.b16 %v718, %v716
  %v1269 = vpack.c.b16 %v719, %v717
  %v1270 = vpack.c.b16 %v722, %v720
  %v1271 = vpack.c.b16 %v723, %v721
  %v1272 = vpack.c.b16 %v726, %v724
  %v1273 = vpack.c.b16 %v727, %v725
  %v1274 = vpack.c.b16 %v730, %v728
  %v1275 = vpack.c.b16 %v731, %v729
  %v1276 = vpack.c.b16 %v734, %v732
  %v1277 = vpack.c.b16 %v735, %v733
  %v1278 = vpack.c.b16 %v738, %v736
  %v1279 = vpack.c.b16 %v739, %v737
  %v1280 = vpack.c.b16 %v742, %v740
  %v1281 = vpack.c.b16 %v743, %v741
  %v1282 = vpack.c.b16 %v746, %v744
  %v1283 = vpack.c.b16 %v747, %v745
  %v1284 = vpack.c.b16 %v750, %v748
  %v1285 = vpack.c.b16 %v751, %v749
  %v1286 = vpack.c.b16 %v754, %v752
  %v1287 = vpack.c.b16 %v755, %v753
  %v1288 = vpack.c.b16 %v758, %v756
  %v1289 = vpack.c.b16 %v759, %v757
  %v1290 = vpack.c.b16 %v762, %v760
  %v1291 = vpack.c.b16 %v763, %v761
  %v1292 = vpack.c.b16 %v766, %v764
  %v1293 = vpack.c.b16 %v767, %v765
  %v1294 = vpack.c.b16 %v770, %v768
  %v1295 = vpack.c.b16 %v771, %v769
  %v1296 = vpack.c.b16 %v774, %v772
  %v1297 = vpack.c.b16 %v775, %v773
  %v1298 = vpack.c.b16 %v778, %v776
  %v1299 = vpack.c.b16 %v779, %v777
  %v1300 = vpack.c.b16 %v782, %v780
  %v1301 = vpack.c.b16 %v783, %v781
  %v1302 = vpack.c.b16 %v786, %v784
  %v1303 = vpack.c.b16 %v787, %v785
  %v1304 = vpack.c.b16 %v790, %v788
  %v1305 = vpack.c.b16 %v791, %v789
  %v1306 = vpack.c.b16 %v794, %v792
  %v1307 = vpack.c.b16 %v795, %v793
  %v1308 = vpack.c.b16 %v798, %v796
  %v1309 = vpack.c.b16 %v799, %v797
  %v1310 = vpack.c.b16 %v802, %v800
  %v1311 = vpack.c.b16 %v803, %v801
  %v1312 = vpack.c.b16 %v806, %v804
  %v1313 = vpack.c.b16 %v807, %v805
  %v1314 = vpack.c.b16 %v810, %v808
  %v1315 = vpack.c.b16 %v811, %v809
  %v1316 = vpack.c.b16 %v814, %v812
  %v1317 = vpack.c.b16 %v815, %v813
  %v1318 = vpack.c.b16 %v818, %v816
  %v1319 = vpack.c.b16 %v819, %v817
  %v1320 = vpack.c.b16 %v822, %v820
  %v1321 = vpack.c.b16 %v823, %v821
  %v1322 = vpack.c.b16 %v826, %v824
  %v1323 = vpack.c.b16 %v827, %v825
  %v1324 = vpack.c.b16 %v830, %v828
  %v1325 = vpack.c.b16 %v831, %v829
  %v1326 = vpack.c.b16 %v834, %v832
  %v1327 = vpack.c.b16 %v835, %v833
  %v1328 = vpack.c.b16 %v838, %v836
  %v1329 = vpack.c.b16 %v839, %v837
  %v1330 = vpack.c.b16 %v842, %v840
  %v1331 = vpack.c.b16 %v843, %v841
  %v1332 = vpack.c.b16 %v846, %v844
  %v1333 = vpack.c.b16 %v847, %v845
  %v1334 = vpack.c.b16 %v850, %v848
  %v1335 = vpack.c.b16 %v851, %v849
  %v1336 = vpack.c.b16 %v854, %v852
  %v1337 = vpack.c.b16 %v855, %v853
  %v1338 = vpack.c.b16 %v858, %v856
  %v1339 = vpack.c.b16 %v859, %v857
  %v1340 = vpack.c.b16 %v862, %v860
  %v1341 = vpack.c.b16 %v863, %v861
  %v1342 = vpack.c.b16 %v866, %v864
  %v1343 = vpack.c.b16 %v867, %v865
  %v1344 = vpack.c.b16 %v870, %v868
  %v1345 = vpack.c.b16 %v871, %v869
  %v1346 = vpack.c.b16 %v874, %v872
  %v1347 = vpack.c.b16 %v875, %v873
  %v1348 = vpack.c.b16 %v878, %v876
  %v1349 = vpack.c.b16 %v879, %v877
  %v1350 = vpack.c.b16 %v882, %v880
  %v1351 = vpack.c.b16 %v883, %v881
  %v1352 = vpack.c.b16 %v886, %v884
  %v1353 = vpack.c.b16 %v887, %v885
  %v1354 = vpack.c.b16 %v890, %v888
  %v1355 = vpack.c.b16 %v891, %v889
  %v1356 = vpack.c.b16 %v894, %v892
  %v1357 = vpack.c.b16 %v895, %v893
  %v1358 = vpack.c.b16 %v898, %v896
  %v1359 = vpack.c.b16 %v899, %v897
  %v1360 = vpack.c.b16 %v902, %v900
  %v1361 = vpack.c.b16 %v903, %v901
  %v1362 = vpack.c.b16 %v906, %v904
  %v1363 = vpack.c.b16 %v907, %v905
  %v1364 = vpack.c.b16 %v910, %v908
  %v1365 = vpack.c.b16 %v911, %v909
  %v1366 = vpack.c.b16 %v914, %v912
  %v1367 = vpack.c.b16 %v915, %v913
  %v1368 = vpack.c.b16 %v918, %v916
  %v1369 = vpack.c.b16 %v919, %v917
  %v1370 = vpack.c.b16 %v922, %v920
  %v1371 = vpack.c.b16 %v923, %v921
  %v1372 = vpack.c.b16 %v926, %v924
  %v1373 = vpack.c.b16 %v927, %v925
  %v1374 = vpack.c.b16 %v930, %v928
  %v1375 = vpack.c.b16 %v931, %v929
  %v1376 = vpack.c.b16 %v934, %v932
  %v1377 = vpack.c.b16 %v935, %v933
  %v1378 = vpack.c.b16 %v938, %v936
  %v1379 = vpack.c.b16 %v939, %v937
  %v1380 = vpack.c.b16 %v942, %v940
  %v1381 = vpack.c.b16 %v943, %v941
  %v1382 = vpack.c.b16 %v946, %v944
  %v1383 = vpack.c.b16 %v947, %v945
  %v1384 = vpack.c.b16 %v950, %v948
  %v1385 = vpack.c.b16 %v951, %v949
  %v1386 = vpack.c.b16 %v954, %v952
  %v1387 = vpack.c.b16 %v955, %v953
  %v1388 = vpack.c.b16 %v958, %v956
  %v1389 = vpack.c.b16 %v959, %v957
  %v1390 = vpack.c.b16 %v962, %v960
  %v1391 = vpack.c.b16 %v963, %v961
  %v1392 = vpack.c.b16 %v966, %v964
  %v1393 = vpack.c.b16 %v967, %v965
  %v1394 = vpack.c.b16 %v970, %v968
  %v1395 = vpack.c.b16 %v971, %v969
  %v1396 = vpack.c.b16 %v974, %v972
  %v1397 = vpack.c.b16 %v975, %v973
  %v1398 = vpack.c.b16 %v978, %v976
  %v1399 = vpack.c.b16 %v979, %v977
  %v1400 = vpack.c.b16 %v982, %v980
  %v1401 = vpack.c.b16 %v983, %v981
  %v1402 = vpack.c.b16 %v986, %v984
  %v1403 = vpack.c.b16 %v987, %v985
  %v1404 = vpack.c.b16 %v990, %v988
  %v1405 = vpack.c.b16 %v991, %v989
  %v1406 = vpack.c.b16 %v994, %v992
  %v1407 = vpack.c.b16 %v995, %v993
  %v1408 = vpack.c.b16 %v998, %v996
  %v1409 = vpack.c.b16 %v999, %v997
  %v1410 = vpack.c.b16 %v1002, %v1000
  %v1411 = vpack.c.b16 %v1003, %v1001
  %v1412 = vpack.c.b16 %v1006, %v1004
  %v1413 = vpack.c.b16 %v1007, %v1005
  %v1414 = vpack.c.b16 %v1010, %v1008
  %v1415 = vpack.c.b16 %v1011, %v1009
  %v1416 = vpack.c.b16 %v1014, %v1012
  %v1417 = vpack.c.b16 %v1015, %v1013
  %v1418 = vpack.c.b16 %v1018, %v1016
  %v1419 = vpack.c.b16 %v1019, %v1017
  %v1420 = vpack.c.b16 %v1022, %v1020
  %v1421 = vpack.c.b16 %v1023, %v1021
  %v1422 = vpack.c.b16 %v1026, %v1024
  %v1423 = vpack.c.b16 %v1027, %v1025
  %v1424 = vpack.c.b16 %v1030, %v1028
  %v1425 = vpack.c.b16 %v1031, %v1029
  %v1426 = vpack.c.b16 %v1034, %v1032
  %v1427 = vpack.c.b16 %v1035, %v1033
  %v1428 = vpack.c.b16 %v1038, %v1036
  %v1429 = vpack.c.b16 %v1039, %v1037
  %v1430 = vpack.c.b16 %v1042, %v1040
  %v1431 = vpack.c.b16 %v1043, %v1041
  %v1432 = vpack.c.b16 %v1046, %v1044
  %v1433 = vpack.c.b16 %v1047, %v1045
  %v1434 = vpack.c.b16 %v1050, %v1048
  %v1435 = vpack.c.b16 %v1051, %v1049
  %v1436 = vpack.c.b16 %v1054, %v1052
  %v1437 = vpack.c.b16 %v1055, %v1053
  %v1438 = vpack.c.b16 %v1058, %v1056
  %v1439 = vpack.c.b16 %v1059, %v1057
  %v1440 = vpack.c.b16 %v1062, %v1060
  %v1441 = vpack.c.b16 %v1063, %v1061
  %v1442 = vpack.c.b16 %v1066, %v1064
  %v1443 = vpack.c.b16 %v1067, %v1065
  %v1444 = vpack.c.b16 %v1070, %v1068
  %v1445 = vpack.c.b16 %v1071, %v1069
  %v1446 = vpack.c.b16 %v1074, %v1072
  %v1447 = vpack.c.b16 %v1075, %v1073
  %v1448 = vpack.c.b16 %v1078, %v1076
  %v1449 = vpack.c.b16 %v1079, %v1077
  %v1450 = vpack.c.b16 %v1082, %v1080
  %v1451 = vpack.c.b16 %v1083, %v1081
  %v1452 = vpack.c.b16 %v1086, %v1084
  %v1453 = vpack.c.b16 %v1087, %v1085
  %v1454 = vpack.c.b16 %v1090, %v1088
  %v1455 = vpack.c.b16 %v1091, %v1089
  %v1456 = vpack.c.b16 %v1094, %v1092
  %v1457 = vpack.c.b16 %v1095, %v1093
  %v1458 = vpack.c.b16 %v1098, %v1096
  %v1459 = vpack.c.b16 %v1099, %v1097
  %v1460 = vpack.c.b16 %v1102, %v1100
  %v1461 = vpack.c.b16 %v1103, %v1101
  %v1462 = vpack.c.b16 %v1106, %v1104
  %v1463 = vpack.c.b16 %v1107, %v1105
  %v1464 = vpack.c.b16 %v1110, %v1108
  %v1465 = vpack.c.b16 %v1111, %v1109
  %v1466 = vpack.c.b16 %v1114, %v1112
  %v1467 = vpack.c.b16 %v1115, %v1113
  %v1468 = vpack.c.b16 %v1118, %v1116
  %v1469 = vpack.c.b16 %v1119, %v1117
  %v1470 = vpack.c.b16 %v1122, %v1120
  %v1471 = vpack.c.b16 %v1123, %v1121
  %v1472 = vpack.c.b16 %v1126, %v1124
  %v1473 = vpack.c.b16 %v1127, %v1125
  %v1474 = vpack.c.b16 %v1130, %v1128
  %v1475 = vpack.c.b16 %v1131, %v1129
  %v1476 = vpack.c.b16 %v1134, %v1132
  %v1477 = vpack.c.b16 %v1135, %v1133
  %v1478 = vpack.c.b16 %v1138, %v1136
  %v1479 = vpack.c.b16 %v1139, %v1137
  %v1480 = vpack.c.b16 %v1142, %v1140
  %v1481 = vpack.c.b16 %v1143, %v1141
  %v1482 = vpack.c.b16 %v1146, %v1144
  %v1483 = vpack.c.b16 %v1147, %v1145
  %v1484 = vpack.c.b16 %v1150, %v1148
  %v1485 = vpack.c.b16 %v1151, %v1149
  %v1486 = vpack.c.b16 %v1154, %v1152
  %v1487 = vpack.c.b16 %v1155, %v1153
  %v1488 = vpack.c.b16 %v1158, %v1156
  %v1489 = vpack.c.b16 %v1159, %v1157
  %v1490 = vpack.c.b16 %v1162, %v1160
  %v1491 = vpack.c.b16 %v1163, %v1161
  %v1492 = vpack.c.b16 %v1166, %v1164
  %v1493 = vpack.c.b16 %v1167, %v1165
  %v1494 = vpack.c.b16 %v1170, %v1168
  %v1495 = vpack.c.b16 %v1171, %v1169
  %v1496 = vpack.c.b16 %v1174, %v1172
  %v1497 = vpack.c.b16 %v1175, %v1173
  %v1498 = vpack.c.b16 %v1178, %v1176
  %v1499 = vpack.c.b16 %v1179, %v1177
  %v1500 = vpack.c.b16 %v1182, %v1180
  %v1501 = vpack.c.b16 %v1183, %v1181
  %v1502 = vpack.c.b16 %v1186, %v1184
  %v1503 = vpack.c.b16 %v1187, %v1185
  %v1504 = vpack.c.b16 %v1190, %v1188
  %v1505 = vpack.c.b16 %v1191, %v1189
  %v1506 = vpack.c.b16 %v1194, %v1192
  %v1507 = vpack.c.b16 %v1195, %v1193
  %v1508 = vpack.c.b16 %v1198, %v1196
  %v1509 = vpack.c.b16 %v1199, %v1197
  %v1510 = vpack.c.b16 %v1202, %v1200
  %v1511 = vpack.c.b16 %v1203, %v1201
  %v1512 = vpack.c.b16 %v1206, %v1204
  %v1513 = vpack.c.b16 %v1207, %v1205
  %v1514 = vpack.c.b16 %v1210, %v1208
  %v1515 = vpack.c.b16 %v1211, %v1209
  %v1516 = vpack.c.b16 %v1214, %v1212
  %v1517 = vpack.c.b16 %v1215, %v1213
  %v1518 = vpack.c.b16 %v1218, %v1216
  %v1519 = vpack.c.b16 %v1219, %v1217
  %v1520 = vpack.c.b16 %v1222, %v1220
  %v1521 = vpack.c.b16 %v1223, %v1221
  %v1522 = vpack.c.b16 %v1226, %v1224
  %v1523 = vpack.c.b16 %v1227, %v1225
  %v1524 = vpack.c.b16 %v1230, %v1228
  %v1525 = vpack.c.b16 %v1231, %v1229
  %v1526 = vpack.c.b16 %v1234, %v1232
  %v1527 = vpack.c.b16 %v1235, %v1233
  %v1528 = vpack.c.b16 %v1238, %v1236
  %v1529 = vpack.c.b16 %v1239, %v1237
  %v1530 = vpack.c.b16 %v1242, %v1240
  %v1531 = vpack.c.b16 %v1243, %v1241
  %1820 = vmatpush.bf16.msra.mxu0 %v1258
  %1821 = vmatpush.bf16.msra.mxu0 %v1256
  %1822 = vmatpush.bf16.msra.mxu0 %v1254
  %1823 = vmatpush.bf16.msra.mxu0 %v1252
  %1824 = vmatpush.bf16.msra.mxu0 %v1250
  %1825 = vmatpush.bf16.msra.mxu0 %v1248
  %1826 = vmatpush.bf16.msra.mxu0 %v1246
  %1827 = vmatpush.bf16.msra.mxu0 %v1244
  %1828 = vmatmul.bf16.gmra.mxu0 %v344
  %v1829 = vpop.f32.mrf.mxu0
  %v1830 = vadd.f32 %v313, %v1829
  %v1831 = vpop.f32.mrf.mxu0
  %1832 = vdwg.mxu0
  %1833 = vmatpush.bf16.msra.mxu0 %v1274
  %1834 = vmatpush.bf16.msra.mxu0 %v1272
  %1835 = vmatpush.bf16.msra.mxu0 %v1270
  %1836 = vmatpush.bf16.msra.mxu0 %v1268
  %1837 = vmatpush.bf16.msra.mxu0 %v1266
  %1838 = vmatpush.bf16.msra.mxu0 %v1264
  %1839 = vmatpush.bf16.msra.mxu0 %v1262
  %1840 = vmatpush.bf16.msra.mxu0 %v1260
  %1841 = vmatmul.bf16.gmra.mxu0 %v345
  %v1842 = vpop.f32.mrf.mxu0
  %v1843 = vadd.f32 %v1830, %v1842
  %v1844 = vpop.f32.mrf.mxu0
  %1845 = vdwg.mxu0
  %1846 = vmatpush.bf16.msra.mxu0 %v1290
  %1847 = vmatpush.bf16.msra.mxu0 %v1288
  %1848 = vmatpush.bf16.msra.mxu0 %v1286
  %1849 = vmatpush.bf16.msra.mxu0 %v1284
  %1850 = vmatpush.bf16.msra.mxu0 %v1282
  %1851 = vmatpush.bf16.msra.mxu0 %v1280
  %1852 = vmatpush.bf16.msra.mxu0 %v1278
  %1853 = vmatpush.bf16.msra.mxu0 %v1276
  %1854 = vmatmul.bf16.gmra.mxu0 %v346
  %v1855 = vpop.f32.mrf.mxu0
  %v1856 = vadd.f32 %v1843, %v1855
  %v1857 = vpop.f32.mrf.mxu0
  %1858 = vdwg.mxu0
  %1859 = vmatpush.bf16.msra.mxu0 %v1306
  %1860 = vmatpush.bf16.msra.mxu0 %v1304
  %1861 = vmatpush.bf16.msra.mxu0 %v1302
  %1862 = vmatpush.bf16.msra.mxu0 %v1300
  %1863 = vmatpush.bf16.msra.mxu0 %v1298
  %1864 = vmatpush.bf16.msra.mxu0 %v1296
  %1865 = vmatpush.bf16.msra.mxu0 %v1294
  %1866 = vmatpush.bf16.msra.mxu0 %v1292
  %1867 = vmatmul.bf16.gmra.mxu0 %v347
  %v1868 = vpop.f32.mrf.mxu0
  %v1869 = vadd.f32 %v1856, %v1868
  %v1870 = vpop.f32.mrf.mxu0
  %1871 = vdwg.mxu0
  %1872 = vmatpush.bf16.msra.mxu0 %v1322
  %1873 = vmatpush.bf16.msra.mxu0 %v1320
  %1874 = vmatpush.bf16.msra.mxu0 %v1318
  %1875 = vmatpush.bf16.msra.mxu0 %v1316
  %1876 = vmatpush.bf16.msra.mxu0 %v1314
  %1877 = vmatpush.bf16.msra.mxu0 %v1312
  %1878 = vmatpush.bf16.msra.mxu0 %v1310
  %1879 = vmatpush.bf16.msra.mxu0 %v1308
  %1880 = vmatmul.bf16.gmra.mxu0 %v348
  %v1881 = vpop.f32.mrf.mxu0
  %v1882 = vadd.f32 %v1869, %v1881
  %v1883 = vpop.f32.mrf.mxu0
  %1884 = vdwg.mxu0
  %1885 = vmatpush.bf16.msra.mxu0 %v1338
  %1886 = vmatpush.bf16.msra.mxu0 %v1336
  %1887 = vmatpush.bf16.msra.mxu0 %v1334
  %1888 = vmatpush.bf16.msra.mxu0 %v1332
  %1889 = vmatpush.bf16.msra.mxu0 %v1330
  %1890 = vmatpush.bf16.msra.mxu0 %v1328
  %1891 = vmatpush.bf16.msra.mxu0 %v1326
  %1892 = vmatpush.bf16.msra.mxu0 %v1324
  %1893 = vmatmul.bf16.gmra.mxu0 %v349
  %v1894 = vpop.f32.mrf.mxu0
  %v1895 = vadd.f32 %v1882, %v1894
  %v1896 = vpop.f32.mrf.mxu0
  %1897 = vdwg.mxu0
  %1898 = vmatpush.bf16.msra.mxu0 %v1354
  %1899 = vmatpush.bf16.msra.mxu0 %v1352
  %1900 = vmatpush.bf16.msra.mxu0 %v1350
  %1901 = vmatpush.bf16.msra.mxu0 %v1348
  %1902 = vmatpush.bf16.msra.mxu0 %v1346
  %1903 = vmatpush.bf16.msra.mxu0 %v1344
  %1904 = vmatpush.bf16.msra.mxu0 %v1342
  %1905 = vmatpush.bf16.msra.mxu0 %v1340
  %1906 = vmatmul.bf16.gmra.mxu0 %v350
  %v1907 = vpop.f32.mrf.mxu0
  %v1908 = vadd.f32 %v1895, %v1907
  %v1909 = vpop.f32.mrf.mxu0
  %1910 = vdwg.mxu0
  %1911 = vmatpush.bf16.msra.mxu0 %v1370
  %1912 = vmatpush.bf16.msra.mxu0 %v1368
  %1913 = vmatpush.bf16.msra.mxu0 %v1366
  %1914 = vmatpush.bf16.msra.mxu0 %v1364
  %1915 = vmatpush.bf16.msra.mxu0 %v1362
  %1916 = vmatpush.bf16.msra.mxu0 %v1360
  %1917 = vmatpush.bf16.msra.mxu0 %v1358
  %1918 = vmatpush.bf16.msra.mxu0 %v1356
  %1919 = vmatmul.bf16.gmra.mxu0 %v351
  %v1920 = vpop.f32.mrf.mxu0
  %v1921 = vadd.f32 %v1908, %v1920
  %v1922 = vpop.f32.mrf.mxu0
  %1923 = vdwg.mxu0
  %1924 = vmatpush.bf16.msra.mxu0 %v1386
  %1925 = vmatpush.bf16.msra.mxu0 %v1384
  %1926 = vmatpush.bf16.msra.mxu0 %v1382
  %1927 = vmatpush.bf16.msra.mxu0 %v1380
  %1928 = vmatpush.bf16.msra.mxu0 %v1378
  %1929 = vmatpush.bf16.msra.mxu0 %v1376
  %1930 = vmatpush.bf16.msra.mxu0 %v1374
  %1931 = vmatpush.bf16.msra.mxu0 %v1372
  %1932 = vmatmul.bf16.gmra.mxu0 %v352
  %v1933 = vpop.f32.mrf.mxu0
  %v1934 = vadd.f32 %v1921, %v1933
  %v1935 = vpop.f32.mrf.mxu0
  %1936 = vdwg.mxu0
  %1937 = vmatpush.bf16.msra.mxu0 %v1402
  %1938 = vmatpush.bf16.msra.mxu0 %v1400
  %1939 = vmatpush.bf16.msra.mxu0 %v1398
  %1940 = vmatpush.bf16.msra.mxu0 %v1396
  %1941 = vmatpush.bf16.msra.mxu0 %v1394
  %1942 = vmatpush.bf16.msra.mxu0 %v1392
  %1943 = vmatpush.bf16.msra.mxu0 %v1390
  %1944 = vmatpush.bf16.msra.mxu0 %v1388
  %1945 = vmatmul.bf16.gmra.mxu0 %v353
  %v1946 = vpop.f32.mrf.mxu0
  %v1947 = vadd.f32 %v1934, %v1946
  %v1948 = vpop.f32.mrf.mxu0
  %1949 = vdwg.mxu0
  %1950 = vmatpush.bf16.msra.mxu0 %v1418
  %1951 = vmatpush.bf16.msra.mxu0 %v1416
  %1952 = vmatpush.bf16.msra.mxu0 %v1414
  %1953 = vmatpush.bf16.msra.mxu0 %v1412
  %1954 = vmatpush.bf16.msra.mxu0 %v1410
  %1955 = vmatpush.bf16.msra.mxu0 %v1408
  %1956 = vmatpush.bf16.msra.mxu0 %v1406
  %1957 = vmatpush.bf16.msra.mxu0 %v1404
  %1958 = vmatmul.bf16.gmra.mxu0 %v354
  %v1959 = vpop.f32.mrf.mxu0
  %v1960 = vadd.f32 %v1947, %v1959
  %v1961 = vpop.f32.mrf.mxu0
  %1962 = vdwg.mxu0
  %1963 = vmatpush.bf16.msra.mxu0 %v1434
  %1964 = vmatpush.bf16.msra.mxu0 %v1432
  %1965 = vmatpush.bf16.msra.mxu0 %v1430
  %1966 = vmatpush.bf16.msra.mxu0 %v1428
  %1967 = vmatpush.bf16.msra.mxu0 %v1426
  %1968 = vmatpush.bf16.msra.mxu0 %v1424
  %1969 = vmatpush.bf16.msra.mxu0 %v1422
  %1970 = vmatpush.bf16.msra.mxu0 %v1420
  %1971 = vmatmul.bf16.gmra.mxu0 %v355
  %v1972 = vpop.f32.mrf.mxu0
  %v1973 = vadd.f32 %v1960, %v1972
  %v1974 = vpop.f32.mrf.mxu0
  %1975 = vdwg.mxu0
  %1976 = vmatpush.bf16.msra.mxu0 %v1450
  %1977 = vmatpush.bf16.msra.mxu0 %v1448
  %1978 = vmatpush.bf16.msra.mxu0 %v1446
  %1979 = vmatpush.bf16.msra.mxu0 %v1444
  %1980 = vmatpush.bf16.msra.mxu0 %v1442
  %1981 = vmatpush.bf16.msra.mxu0 %v1440
  %1982 = vmatpush.bf16.msra.mxu0 %v1438
  %1983 = vmatpush.bf16.msra.mxu0 %v1436
  %1984 = vmatmul.bf16.gmra.mxu0 %v356
  %v1985 = vpop.f32.mrf.mxu0
  %v1986 = vadd.f32 %v1973, %v1985
  %v1987 = vpop.f32.mrf.mxu0
  %1988 = vdwg.mxu0
  %1989 = vmatpush.bf16.msra.mxu0 %v1466
  %1990 = vmatpush.bf16.msra.mxu0 %v1464
  %1991 = vmatpush.bf16.msra.mxu0 %v1462
  %1992 = vmatpush.bf16.msra.mxu0 %v1460
  %1993 = vmatpush.bf16.msra.mxu0 %v1458
  %1994 = vmatpush.bf16.msra.mxu0 %v1456
  %1995 = vmatpush.bf16.msra.mxu0 %v1454
  %1996 = vmatpush.bf16.msra.mxu0 %v1452
  %1997 = vmatmul.bf16.gmra.mxu0 %v357
  %v1998 = vpop.f32.mrf.mxu0
  %v1999 = vadd.f32 %v1986, %v1998
  %v2000 = vpop.f32.mrf.mxu0
  %2001 = vdwg.mxu0
  %2002 = vmatpush.bf16.msra.mxu0 %v1482
  %2003 = vmatpush.bf16.msra.mxu0 %v1480
  %2004 = vmatpush.bf16.msra.mxu0 %v1478
  %2005 = vmatpush.bf16.msra.mxu0 %v1476
  %2006 = vmatpush.bf16.msra.mxu0 %v1474
  %2007 = vmatpush.bf16.msra.mxu0 %v1472
  %2008 = vmatpush.bf16.msra.mxu0 %v1470
  %2009 = vmatpush.bf16.msra.mxu0 %v1468
  %2010 = vmatmul.bf16.gmra.mxu0 %v358
  %v2011 = vpop.f32.mrf.mxu0
  %v2012 = vadd.f32 %v1999, %v2011
  %v2013 = vpop.f32.mrf.mxu0
  %2014 = vdwg.mxu0
  %2015 = vmatpush.bf16.msra.mxu0 %v1498
  %2016 = vmatpush.bf16.msra.mxu0 %v1496
  %2017 = vmatpush.bf16.msra.mxu0 %v1494
  %2018 = vmatpush.bf16.msra.mxu0 %v1492
  %2019 = vmatpush.bf16.msra.mxu0 %v1490
  %2020 = vmatpush.bf16.msra.mxu0 %v1488
  %2021 = vmatpush.bf16.msra.mxu0 %v1486
  %2022 = vmatpush.bf16.msra.mxu0 %v1484
  %2023 = vmatmul.bf16.gmra.mxu0 %v359
  %v2024 = vpop.f32.mrf.mxu0
  %v2025 = vadd.f32 %v2012, %v2024
  %v2026 = vpop.f32.mrf.mxu0
  %2027 = vdwg.mxu0
  %2028 = vmatpush.bf16.msra.mxu0 %v1514
  %2029 = vmatpush.bf16.msra.mxu0 %v1512
  %2030 = vmatpush.bf16.msra.mxu0 %v1510
  %2031 = vmatpush.bf16.msra.mxu0 %v1508
  %2032 = vmatpush.bf16.msra.mxu0 %v1506
  %2033 = vmatpush.bf16.msra.mxu0 %v1504
  %2034 = vmatpush.bf16.msra.mxu0 %v1502
  %2035 = vmatpush.bf16.msra.mxu0 %v1500
  %2036 = vmatmul.bf16.gmra.mxu0 %v360
  %v2037 = vpop.f32.mrf.mxu0
  %v2038 = vadd.f32 %v2025, %v2037
  %v2039 = vpop.f32.mrf.mxu0
  %2040 = vdwg.mxu0
  %2041 = vmatpush.bf16.msra.mxu0 %v1530
  %2042 = vmatpush.bf16.msra.mxu0 %v1528
  %2043 = vmatpush.bf16.msra.mxu0 %v1526
  %2044 = vmatpush.bf16.msra.mxu0 %v1524
  %2045 = vmatpush.bf16.msra.mxu0 %v1522
  %2046 = vmatpush.bf16.msra.mxu0 %v1520
  %2047 = vmatpush.bf16.msra.mxu0 %v1518
  %2048 = vmatpush.bf16.msra.mxu0 %v1516
  %2049 = vmatmul.bf16.gmra.mxu0 %v361
  %v2050 = vpop.f32.mrf.mxu0
  %v2051 = vadd.f32 %v2038, %v2050
  %v2052 = vpop.f32.mrf.mxu0
  %2053 = vdwg.mxu0
  %2054 = vmatpush.bf16.msra.mxu0 %v1259
  %2055 = vmatpush.bf16.msra.mxu0 %v1257
  %2056 = vmatpush.bf16.msra.mxu0 %v1255
  %2057 = vmatpush.bf16.msra.mxu0 %v1253
  %2058 = vmatpush.bf16.msra.mxu0 %v1251
  %2059 = vmatpush.bf16.msra.mxu0 %v1249
  %2060 = vmatpush.bf16.msra.mxu0 %v1247
  %2061 = vmatpush.bf16.msra.mxu0 %v1245
  %2062 = vmatmul.bf16.gmra.mxu0 %v344
  %v2063 = vpop.f32.mrf.mxu0
  %v2064 = vadd.f32 %v314, %v2063
  %v2065 = vpop.f32.mrf.mxu0
  %2066 = vdwg.mxu0
  %2067 = vmatpush.bf16.msra.mxu0 %v1275
  %2068 = vmatpush.bf16.msra.mxu0 %v1273
  %2069 = vmatpush.bf16.msra.mxu0 %v1271
  %2070 = vmatpush.bf16.msra.mxu0 %v1269
  %2071 = vmatpush.bf16.msra.mxu0 %v1267
  %2072 = vmatpush.bf16.msra.mxu0 %v1265
  %2073 = vmatpush.bf16.msra.mxu0 %v1263
  %2074 = vmatpush.bf16.msra.mxu0 %v1261
  %2075 = vmatmul.bf16.gmra.mxu0 %v345
  %v2076 = vpop.f32.mrf.mxu0
  %v2077 = vadd.f32 %v2064, %v2076
  %v2078 = vpop.f32.mrf.mxu0
  %2079 = vdwg.mxu0
  %2080 = vmatpush.bf16.msra.mxu0 %v1291
  %2081 = vmatpush.bf16.msra.mxu0 %v1289
  %2082 = vmatpush.bf16.msra.mxu0 %v1287
  %2083 = vmatpush.bf16.msra.mxu0 %v1285
  %2084 = vmatpush.bf16.msra.mxu0 %v1283
  %2085 = vmatpush.bf16.msra.mxu0 %v1281
  %2086 = vmatpush.bf16.msra.mxu0 %v1279
  %2087 = vmatpush.bf16.msra.mxu0 %v1277
  %2088 = vmatmul.bf16.gmra.mxu0 %v346
  %v2089 = vpop.f32.mrf.mxu0
  %v2090 = vadd.f32 %v2077, %v2089
  %v2091 = vpop.f32.mrf.mxu0
  %2092 = vdwg.mxu0
  %2093 = vmatpush.bf16.msra.mxu0 %v1307
  %2094 = vmatpush.bf16.msra.mxu0 %v1305
  %2095 = vmatpush.bf16.msra.mxu0 %v1303
  %2096 = vmatpush.bf16.msra.mxu0 %v1301
  %2097 = vmatpush.bf16.msra.mxu0 %v1299
  %2098 = vmatpush.bf16.msra.mxu0 %v1297
  %2099 = vmatpush.bf16.msra.mxu0 %v1295
  %2100 = vmatpush.bf16.msra.mxu0 %v1293
  %2101 = vmatmul.bf16.gmra.mxu0 %v347
  %v2102 = vpop.f32.mrf.mxu0
  %v2103 = vadd.f32 %v2090, %v2102
  %v2104 = vpop.f32.mrf.mxu0
  %2105 = vdwg.mxu0
  %2106 = vmatpush.bf16.msra.mxu0 %v1323
  %2107 = vmatpush.bf16.msra.mxu0 %v1321
  %2108 = vmatpush.bf16.msra.mxu0 %v1319
  %2109 = vmatpush.bf16.msra.mxu0 %v1317
  %2110 = vmatpush.bf16.msra.mxu0 %v1315
  %2111 = vmatpush.bf16.msra.mxu0 %v1313
  %2112 = vmatpush.bf16.msra.mxu0 %v1311
  %2113 = vmatpush.bf16.msra.mxu0 %v1309
  %2114 = vmatmul.bf16.gmra.mxu0 %v348
  %v2115 = vpop.f32.mrf.mxu0
  %v2116 = vadd.f32 %v2103, %v2115
  %v2117 = vpop.f32.mrf.mxu0
  %2118 = vdwg.mxu0
  %2119 = vmatpush.bf16.msra.mxu0 %v1339
  %2120 = vmatpush.bf16.msra.mxu0 %v1337
  %2121 = vmatpush.bf16.msra.mxu0 %v1335
  %2122 = vmatpush.bf16.msra.mxu0 %v1333
  %2123 = vmatpush.bf16.msra.mxu0 %v1331
  %2124 = vmatpush.bf16.msra.mxu0 %v1329
  %2125 = vmatpush.bf16.msra.mxu0 %v1327
  %2126 = vmatpush.bf16.msra.mxu0 %v1325
  %2127 = vmatmul.bf16.gmra.mxu0 %v349
  %v2128 = vpop.f32.mrf.mxu0
  %v2129 = vadd.f32 %v2116, %v2128
  %v2130 = vpop.f32.mrf.mxu0
  %2131 = vdwg.mxu0
  %2132 = vmatpush.bf16.msra.mxu0 %v1355
  %2133 = vmatpush.bf16.msra.mxu0 %v1353
  %2134 = vmatpush.bf16.msra.mxu0 %v1351
  %2135 = vmatpush.bf16.msra.mxu0 %v1349
  %2136 = vmatpush.bf16.msra.mxu0 %v1347
  %2137 = vmatpush.bf16.msra.mxu0 %v1345
  %2138 = vmatpush.bf16.msra.mxu0 %v1343
  %2139 = vmatpush.bf16.msra.mxu0 %v1341
  %2140 = vmatmul.bf16.gmra.mxu0 %v350
  %v2141 = vpop.f32.mrf.mxu0
  %v2142 = vadd.f32 %v2129, %v2141
  %v2143 = vpop.f32.mrf.mxu0
  %2144 = vdwg.mxu0
  %2145 = vmatpush.bf16.msra.mxu0 %v1371
  %2146 = vmatpush.bf16.msra.mxu0 %v1369
  %2147 = vmatpush.bf16.msra.mxu0 %v1367
  %2148 = vmatpush.bf16.msra.mxu0 %v1365
  %2149 = vmatpush.bf16.msra.mxu0 %v1363
  %2150 = vmatpush.bf16.msra.mxu0 %v1361
  %2151 = vmatpush.bf16.msra.mxu0 %v1359
  %2152 = vmatpush.bf16.msra.mxu0 %v1357
  %2153 = vmatmul.bf16.gmra.mxu0 %v351
  %v2154 = vpop.f32.mrf.mxu0
  %v2155 = vadd.f32 %v2142, %v2154
  %v2156 = vpop.f32.mrf.mxu0
  %2157 = vdwg.mxu0
  %2158 = vmatpush.bf16.msra.mxu0 %v1387
  %2159 = vmatpush.bf16.msra.mxu0 %v1385
  %2160 = vmatpush.bf16.msra.mxu0 %v1383
  %2161 = vmatpush.bf16.msra.mxu0 %v1381
  %2162 = vmatpush.bf16.msra.mxu0 %v1379
  %2163 = vmatpush.bf16.msra.mxu0 %v1377
  %2164 = vmatpush.bf16.msra.mxu0 %v1375
  %2165 = vmatpush.bf16.msra.mxu0 %v1373
  %2166 = vmatmul.bf16.gmra.mxu0 %v352
  %v2167 = vpop.f32.mrf.mxu0
  %v2168 = vadd.f32 %v2155, %v2167
  %v2169 = vpop.f32.mrf.mxu0
  %2170 = vdwg.mxu0
  %2171 = vmatpush.bf16.msra.mxu0 %v1403
  %2172 = vmatpush.bf16.msra.mxu0 %v1401
  %2173 = vmatpush.bf16.msra.mxu0 %v1399
  %2174 = vmatpush.bf16.msra.mxu0 %v1397
  %2175 = vmatpush.bf16.msra.mxu0 %v1395
  %2176 = vmatpush.bf16.msra.mxu0 %v1393
  %2177 = vmatpush.bf16.msra.mxu0 %v1391
  %2178 = vmatpush.bf16.msra.mxu0 %v1389
  %2179 = vmatmul.bf16.gmra.mxu0 %v353
  %v2180 = vpop.f32.mrf.mxu0
  %v2181 = vadd.f32 %v2168, %v2180
  %v2182 = vpop.f32.mrf.mxu0
  %2183 = vdwg.mxu0
  %2184 = vmatpush.bf16.msra.mxu0 %v1419
  %2185 = vmatpush.bf16.msra.mxu0 %v1417
  %2186 = vmatpush.bf16.msra.mxu0 %v1415
  %2187 = vmatpush.bf16.msra.mxu0 %v1413
  %2188 = vmatpush.bf16.msra.mxu0 %v1411
  %2189 = vmatpush.bf16.msra.mxu0 %v1409
  %2190 = vmatpush.bf16.msra.mxu0 %v1407
  %2191 = vmatpush.bf16.msra.mxu0 %v1405
  %2192 = vmatmul.bf16.gmra.mxu0 %v354
  %v2193 = vpop.f32.mrf.mxu0
  %v2194 = vadd.f32 %v2181, %v2193
  %v2195 = vpop.f32.mrf.mxu0
  %2196 = vdwg.mxu0
  %2197 = vmatpush.bf16.msra.mxu0 %v1435
  %2198 = vmatpush.bf16.msra.mxu0 %v1433
  %2199 = vmatpush.bf16.msra.mxu0 %v1431
  %2200 = vmatpush.bf16.msra.mxu0 %v1429
  %2201 = vmatpush.bf16.msra.mxu0 %v1427
  %2202 = vmatpush.bf16.msra.mxu0 %v1425
  %2203 = vmatpush.bf16.msra.mxu0 %v1423
  %2204 = vmatpush.bf16.msra.mxu0 %v1421
  %2205 = vmatmul.bf16.gmra.mxu0 %v355
  %v2206 = vpop.f32.mrf.mxu0
  %v2207 = vadd.f32 %v2194, %v2206
  %v2208 = vpop.f32.mrf.mxu0
  %2209 = vdwg.mxu0
  %2210 = vmatpush.bf16.msra.mxu0 %v1451
  %2211 = vmatpush.bf16.msra.mxu0 %v1449
  %2212 = vmatpush.bf16.msra.mxu0 %v1447
  %2213 = vmatpush.bf16.msra.mxu0 %v1445
  %2214 = vmatpush.bf16.msra.mxu0 %v1443
  %2215 = vmatpush.bf16.msra.mxu0 %v1441
  %2216 = vmatpush.bf16.msra.mxu0 %v1439
  %2217 = vmatpush.bf16.msra.mxu0 %v1437
  %2218 = vmatmul.bf16.gmra.mxu0 %v356
  %v2219 = vpop.f32.mrf.mxu0
  %v2220 = vadd.f32 %v2207, %v2219
  %v2221 = vpop.f32.mrf.mxu0
  %2222 = vdwg.mxu0
  %2223 = vmatpush.bf16.msra.mxu0 %v1467
  %2224 = vmatpush.bf16.msra.mxu0 %v1465
  %2225 = vmatpush.bf16.msra.mxu0 %v1463
  %2226 = vmatpush.bf16.msra.mxu0 %v1461
  %2227 = vmatpush.bf16.msra.mxu0 %v1459
  %2228 = vmatpush.bf16.msra.mxu0 %v1457
  %2229 = vmatpush.bf16.msra.mxu0 %v1455
  %2230 = vmatpush.bf16.msra.mxu0 %v1453
  %2231 = vmatmul.bf16.gmra.mxu0 %v357
  %v2232 = vpop.f32.mrf.mxu0
  %v2233 = vadd.f32 %v2220, %v2232
  %v2234 = vpop.f32.mrf.mxu0
  %2235 = vdwg.mxu0
  %2236 = vmatpush.bf16.msra.mxu0 %v1483
  %2237 = vmatpush.bf16.msra.mxu0 %v1481
  %2238 = vmatpush.bf16.msra.mxu0 %v1479
  %2239 = vmatpush.bf16.msra.mxu0 %v1477
  %2240 = vmatpush.bf16.msra.mxu0 %v1475
  %2241 = vmatpush.bf16.msra.mxu0 %v1473
  %2242 = vmatpush.bf16.msra.mxu0 %v1471
  %2243 = vmatpush.bf16.msra.mxu0 %v1469
  %2244 = vmatmul.bf16.gmra.mxu0 %v358
  %v2245 = vpop.f32.mrf.mxu0
  %v2246 = vadd.f32 %v2233, %v2245
  %v2247 = vpop.f32.mrf.mxu0
  %2248 = vdwg.mxu0
  %2249 = vmatpush.bf16.msra.mxu0 %v1499
  %2250 = vmatpush.bf16.msra.mxu0 %v1497
  %2251 = vmatpush.bf16.msra.mxu0 %v1495
  %2252 = vmatpush.bf16.msra.mxu0 %v1493
  %2253 = vmatpush.bf16.msra.mxu0 %v1491
  %2254 = vmatpush.bf16.msra.mxu0 %v1489
  %2255 = vmatpush.bf16.msra.mxu0 %v1487
  %2256 = vmatpush.bf16.msra.mxu0 %v1485
  %2257 = vmatmul.bf16.gmra.mxu0 %v359
  %v2258 = vpop.f32.mrf.mxu0
  %v2259 = vadd.f32 %v2246, %v2258
  %v2260 = vpop.f32.mrf.mxu0
  %2261 = vdwg.mxu0
  %2262 = vmatpush.bf16.msra.mxu0 %v1515
  %2263 = vmatpush.bf16.msra.mxu0 %v1513
  %2264 = vmatpush.bf16.msra.mxu0 %v1511
  %2265 = vmatpush.bf16.msra.mxu0 %v1509
  %2266 = vmatpush.bf16.msra.mxu0 %v1507
  %2267 = vmatpush.bf16.msra.mxu0 %v1505
  %2268 = vmatpush.bf16.msra.mxu0 %v1503
  %2269 = vmatpush.bf16.msra.mxu0 %v1501
  %2270 = vmatmul.bf16.gmra.mxu0 %v360
  %v2271 = vpop.f32.mrf.mxu0
  %v2272 = vadd.f32 %v2259, %v2271
  %v2273 = vpop.f32.mrf.mxu0
  %2274 = vdwg.mxu0
  %2275 = vmatpush.bf16.msra.mxu0 %v1531
  %2276 = vmatpush.bf16.msra.mxu0 %v1529
  %2277 = vmatpush.bf16.msra.mxu0 %v1527
  %2278 = vmatpush.bf16.msra.mxu0 %v1525
  %2279 = vmatpush.bf16.msra.mxu0 %v1523
  %2280 = vmatpush.bf16.msra.mxu0 %v1521
  %2281 = vmatpush.bf16.msra.mxu0 %v1519
  %2282 = vmatpush.bf16.msra.mxu0 %v1517
  %2283 = vmatmul.bf16.gmra.mxu0 %v361
  %v2284 = vpop.f32.mrf.mxu0
  %v2285 = vadd.f32 %v2272, %v2284
  %v2286 = vpop.f32.mrf.mxu0
  %2287 = vdwg.mxu0
  %v2288 = vmax.f32 %v2051, 0.0
  %v2289 = vmax.f32 %v2285, 0.0
  %v2290 = vpack.c.bf16 %v2289, %v2288
  %2291 = vst [vmem:[%s3] sm:$0xff] %v2290
  // Predicated region
  $region14: #{shading_net_forward.19} parent=0 // pred_check
    _
  $region15: #{shading_net_forward.19} parent=0 // pred_check_branch
    %2293 = sbr.rel (0) target = $region17
  $region16: #{shading_net_forward.19} parent=0 // pred_region
    _
  $region17: #{shading_net_forward.19} parent=0 // pred_fallthru
    _
  // Predicated region
  $region18: #{shading_net_forward.19} parent=0 // pred_check
    _
  $region19: #{shading_net_forward.19} parent=0 // pred_check_branch
    %2295 = sbr.rel (0) target = $region21
  $region20: #{shading_net_forward.19} parent=0 // pred_region
    _
  $region21: #{shading_net_forward.19} parent=0 // pred_fallthru
    _

// kernel: shading_net_forward.21
$region0: #{shading_net_forward.21}
  #allocation0 [shape = 'u32[]', space=smem, size = 0x4, offset = 0x4, fixed_abs, tag = 'smem constant byte address 0x4 - core index']
  #allocation1 [shape = 'u32[72,128]{1,0:T(1,128)}', space=vmem, size = 0x9000, scoped, tag = 'internal scratch']
  %s0 = inlined_call_operand.vmem [shape: bf16[128,576], index: 0, kind: input, shape index: {}]
  %s1 = inlined_call_operand.vmem [shape: bf16[576,128], index: 1, kind: input, shape index: {}]
  %s2 = inlined_call_operand.vmem [shape: f32[1,128], index: 2, kind: input, shape index: {}]
  %s3 = inlined_call_operand.vmem [shape: bf16[128,128], index: 3, kind: output, shape index: {}]
  %s4 = sld [smem:[#allocation0]]
  $region22: #{shading_net_forward.21} parent=0
    _
  %s6 = ssub.s32 1, %s4
  %s7 = scalar_select 0, %s6, %s4
  // Predicated region
  $region2: #{shading_net_forward.21} parent=0 // pred_check
    _
  $region3: #{shading_net_forward.21} parent=0 // pred_check_branch
    %9 = sbr.rel (0) target = $region5
  $region4: #{shading_net_forward.21} parent=0 // pred_region
    _
  $region5: #{shading_net_forward.21} parent=0 // pred_fallthru
    _
  // Predicated region
  $region6: #{shading_net_forward.21} parent=0 // pred_check
    _
  $region7: #{shading_net_forward.21} parent=0 // pred_check_branch
    %11 = sbr.rel (0) target = $region9
  $region8: #{shading_net_forward.21} parent=0 // pred_region
    _
  $region9: #{shading_net_forward.21} parent=0 // pred_fallthru
    _
  // Predicated region
  $region10: #{shading_net_forward.21} parent=0 // pred_check
    _
  $region11: #{shading_net_forward.21} parent=0 // pred_check_branch
    %13 = sbr.rel (0) target = $region13
  $region12: #{shading_net_forward.21} parent=0 // pred_region
    _
  $region13: #{shading_net_forward.21} parent=0 // pred_fallthru
    _
  %v15 = vld [vmem:[%s0] sm:$0xff]
  %v16 = vld [vmem:[%s0 + $0x8] sm:$0xff]
  %v17 = vld [vmem:[%s0 + $0x10] sm:$0xf]
  %v18 = vld [vmem:[%s0 + $0x14] sm:$0xff]
  %v19 = vld [vmem:[%s0 + $0x1c] sm:$0xff]
  %v20 = vld [vmem:[%s0 + $0x24] sm:$0xf]
  %v21 = vld [vmem:[%s0 + $0x28] sm:$0xff]
  %v22 = vld [vmem:[%s0 + $0x30] sm:$0xff]
  %v23 = vld [vmem:[%s0 + $0x38] sm:$0xf]
  %v24 = vld [vmem:[%s0 + $0x3c] sm:$0xff]
  %v25 = vld [vmem:[%s0 + $0x44] sm:$0xff]
  %v26 = vld [vmem:[%s0 + $0x4c] sm:$0xf]
  %v27 = vld [vmem:[%s0 + $0x50] sm:$0xff]
  %v28 = vld [vmem:[%s0 + $0x58] sm:$0xff]
  %v29 = vld [vmem:[%s0 + $0x60] sm:$0xf]
  %v30 = vld [vmem:[%s0 + $0x64] sm:$0xff]
  %v31 = vld [vmem:[%s0 + $0x6c] sm:$0xff]
  %v32 = vld [vmem:[%s0 + $0x74] sm:$0xf]
  %v33 = vld [vmem:[%s0 + $0x78] sm:$0xff]
  %v34 = vld [vmem:[%s0 + $0x80] sm:$0xff]
  %v35 = vld [vmem:[%s0 + $0x88] sm:$0xf]
  %v36 = vld [vmem:[%s0 + $0x8c] sm:$0xff]
  %v37 = vld [vmem:[%s0 + $0x94] sm:$0xff]
  %v38 = vld [vmem:[%s0 + $0x9c] sm:$0xf]
  %v39 = vld [vmem:[%s0 + $0xa0] sm:$0xff]
  %v40 = vld [vmem:[%s0 + $0xa8] sm:$0xff]
  %v41 = vld [vmem:[%s0 + $0xb0] sm:$0xf]
  %v42 = vld [vmem:[%s0 + $0xb4] sm:$0xff]
  %v43 = vld [vmem:[%s0 + $0xbc] sm:$0xff]
  %v44 = vld [vmem:[%s0 + $0xc4] sm:$0xf]
  %v45 = vld [vmem:[%s0 + $0xc8] sm:$0xff]
  %v46 = vld [vmem:[%s0 + $0xd0] sm:$0xff]
  %v47 = vld [vmem:[%s0 + $0xd8] sm:$0xf]
  %v48 = vld [vmem:[%s0 + $0xdc] sm:$0xff]
  %v49 = vld [vmem:[%s0 + $0xe4] sm:$0xff]
  %v50 = vld [vmem:[%s0 + $0xec] sm:$0xf]
  %v51 = vld [vmem:[%s0 + $0xf0] sm:$0xff]
  %v52 = vld [vmem:[%s0 + $0xf8] sm:$0xff]
  %v53 = vld [vmem:[%s0 + $0x100] sm:$0xf]
  %v54 = vld [vmem:[%s0 + $0x104] sm:$0xff]
  %v55 = vld [vmem:[%s0 + $0x10c] sm:$0xff]
  %v56 = vld [vmem:[%s0 + $0x114] sm:$0xf]
  %v57 = vld [vmem:[%s0 + $0x118] sm:$0xff]
  %v58 = vld [vmem:[%s0 + $0x120] sm:$0xff]
  %v59 = vld [vmem:[%s0 + $0x128] sm:$0xf]
  %v60 = vld [vmem:[%s0 + $0x12c] sm:$0xff]
  %v61 = vld [vmem:[%s0 + $0x134] sm:$0xff]
  %v62 = vld [vmem:[%s0 + $0x13c] sm:$0xf]
  %v63 = vld [vmem:[%s1] sm:$0xf]
  %v64 = vld [vmem:[%s1 + $0x4] sm:$0xf]
  %v65 = vld [vmem:[%s1 + $0x8] sm:$0xf]
  %v66 = vld [vmem:[%s1 + $0xc] sm:$0xf]
  %v67 = vld [vmem:[%s1 + $0x10] sm:$0xf]
  %v68 = vld [vmem:[%s1 + $0x14] sm:$0xf]
  %v69 = vld [vmem:[%s1 + $0x18] sm:$0xf]
  %v70 = vld [vmem:[%s1 + $0x1c] sm:$0xf]
  %v71 = vld [vmem:[%s1 + $0x20] sm:$0xf]
  %v72 = vld [vmem:[%s1 + $0x24] sm:$0xf]
  %v73 = vld [vmem:[%s1 + $0x28] sm:$0xf]
  %v74 = vld [vmem:[%s1 + $0x2c] sm:$0xf]
  %v75 = vld [vmem:[%s1 + $0x30] sm:$0xf]
  %v76 = vld [vmem:[%s1 + $0x34] sm:$0xf]
  %v77 = vld [vmem:[%s1 + $0x38] sm:$0xf]
  %v78 = vld [vmem:[%s1 + $0x3c] sm:$0xf]
  %v79 = vld [vmem:[%s1 + $0x40] sm:$0xf]
  %v80 = vld [vmem:[%s1 + $0x44] sm:$0xf]
  %v81 = vld [vmem:[%s1 + $0x48] sm:$0xf]
  %v82 = vld [vmem:[%s1 + $0x4c] sm:$0xf]
  %v83 = vld [vmem:[%s1 + $0x50] sm:$0xf]
  %v84 = vld [vmem:[%s1 + $0x54] sm:$0xf]
  %v85 = vld [vmem:[%s1 + $0x58] sm:$0xf]
  %v86 = vld [vmem:[%s1 + $0x5c] sm:$0xf]
  %v87 = vld [vmem:[%s1 + $0x60] sm:$0xf]
  %v88 = vld [vmem:[%s1 + $0x64] sm:$0xf]
  %v89 = vld [vmem:[%s1 + $0x68] sm:$0xf]
  %v90 = vld [vmem:[%s1 + $0x6c] sm:$0xf]
  %v91 = vld [vmem:[%s1 + $0x70] sm:$0xf]
  %v92 = vld [vmem:[%s1 + $0x74] sm:$0xf]
  %v93 = vld [vmem:[%s1 + $0x78] sm:$0xf]
  %v94 = vld [vmem:[%s1 + $0x7c] sm:$0xf]
  %v95 = vld [vmem:[%s1 + $0x80] sm:$0xf]
  %v96 = vld [vmem:[%s1 + $0x84] sm:$0xf]
  %v97 = vld [vmem:[%s1 + $0x88] sm:$0xf]
  %v98 = vld [vmem:[%s1 + $0x8c] sm:$0xf]
  %v99 = vld [vmem:[%s1 + $0x90] sm:$0xf]
  %v100 = vld [vmem:[%s1 + $0x94] sm:$0xf]
  %v101 = vld [vmem:[%s1 + $0x98] sm:$0xf]
  %v102 = vld [vmem:[%s1 + $0x9c] sm:$0xf]
  %v103 = vld [vmem:[%s1 + $0xa0] sm:$0xf]
  %v104 = vld [vmem:[%s1 + $0xa4] sm:$0xf]
  %v105 = vld [vmem:[%s1 + $0xa8] sm:$0xf]
  %v106 = vld [vmem:[%s1 + $0xac] sm:$0xf]
  %v107 = vld [vmem:[%s1 + $0xb0] sm:$0xf]
  %v108 = vld [vmem:[%s1 + $0xb4] sm:$0xf]
  %v109 = vld [vmem:[%s1 + $0xb8] sm:$0xf]
  %v110 = vld [vmem:[%s1 + $0xbc] sm:$0xf]
  %v111 = vld [vmem:[%s1 + $0xc0] sm:$0xf]
  %v112 = vld [vmem:[%s1 + $0xc4] sm:$0xf]
  %v113 = vld [vmem:[%s1 + $0xc8] sm:$0xf]
  %v114 = vld [vmem:[%s1 + $0xcc] sm:$0xf]
  %v115 = vld [vmem:[%s1 + $0xd0] sm:$0xf]
  %v116 = vld [vmem:[%s1 + $0xd4] sm:$0xf]
  %v117 = vld [vmem:[%s1 + $0xd8] sm:$0xf]
  %v118 = vld [vmem:[%s1 + $0xdc] sm:$0xf]
  %v119 = vld [vmem:[%s1 + $0xe0] sm:$0xf]
  %v120 = vld [vmem:[%s1 + $0xe4] sm:$0xf]
  %v121 = vld [vmem:[%s1 + $0xe8] sm:$0xf]
  %v122 = vld [vmem:[%s1 + $0xec] sm:$0xf]
  %v123 = vld [vmem:[%s1 + $0xf0] sm:$0xf]
  %v124 = vld [vmem:[%s1 + $0xf4] sm:$0xf]
  %v125 = vld [vmem:[%s1 + $0xf8] sm:$0xf]
  %v126 = vld [vmem:[%s1 + $0xfc] sm:$0xf]
  %v127 = vld [vmem:[%s1 + $0x100] sm:$0xf]
  %v128 = vld [vmem:[%s1 + $0x104] sm:$0xf]
  %v129 = vld [vmem:[%s1 + $0x108] sm:$0xf]
  %v130 = vld [vmem:[%s1 + $0x10c] sm:$0xf]
  %v131 = vld [vmem:[%s1 + $0x110] sm:$0xf]
  %v132 = vld [vmem:[%s1 + $0x114] sm:$0xf]
  %v133 = vld [vmem:[%s1 + $0x118] sm:$0xf]
  %v134 = vld [vmem:[%s1 + $0x11c] sm:$0xf]
  %v135 = vld [vmem:[%s2] sm:$0x1]
  %v137 = vperm.slane %v135, 0
  %v187 = vunpack.c.l.b16 %v15
  %v188 = vunpack.c.h.b16 %v15
  %v189 = vunpack.c.l.b16 %v16
  %v190 = vunpack.c.h.b16 %v16
  %v191 = vunpack.c.l.b16 %v17
  %v192 = vunpack.c.l.b16 %v18
  %v193 = vunpack.c.h.b16 %v18
  %v194 = vunpack.c.l.b16 %v19
  %v195 = vunpack.c.h.b16 %v19
  %v196 = vunpack.c.l.b16 %v20
  %v197 = vunpack.c.l.b16 %v21
  %v198 = vunpack.c.h.b16 %v21
  %v199 = vunpack.c.l.b16 %v22
  %v200 = vunpack.c.h.b16 %v22
  %v201 = vunpack.c.l.b16 %v23
  %v202 = vunpack.c.l.b16 %v24
  %v203 = vunpack.c.h.b16 %v24
  %v204 = vunpack.c.l.b16 %v25
  %v205 = vunpack.c.h.b16 %v25
  %v206 = vunpack.c.l.b16 %v26
  %v207 = vunpack.c.l.b16 %v27
  %v208 = vunpack.c.h.b16 %v27
  %v209 = vunpack.c.l.b16 %v28
  %v210 = vunpack.c.h.b16 %v28
  %v211 = vunpack.c.l.b16 %v29
  %v212 = vunpack.c.l.b16 %v30
  %v213 = vunpack.c.h.b16 %v30
  %v214 = vunpack.c.l.b16 %v31
  %v215 = vunpack.c.h.b16 %v31
  %v216 = vunpack.c.l.b16 %v32
  %v217 = vunpack.c.l.b16 %v33
  %v218 = vunpack.c.h.b16 %v33
  %v219 = vunpack.c.l.b16 %v34
  %v220 = vunpack.c.h.b16 %v34
  %v221 = vunpack.c.l.b16 %v35
  %v222 = vunpack.c.l.b16 %v36
  %v223 = vunpack.c.h.b16 %v36
  %v224 = vunpack.c.l.b16 %v37
  %v225 = vunpack.c.h.b16 %v37
  %v226 = vunpack.c.l.b16 %v38
  %v227 = vunpack.c.l.b16 %v39
  %v228 = vunpack.c.h.b16 %v39
  %v229 = vunpack.c.l.b16 %v40
  %v230 = vunpack.c.h.b16 %v40
  %v231 = vunpack.c.l.b16 %v41
  %v232 = vunpack.c.l.b16 %v42
  %v233 = vunpack.c.h.b16 %v42
  %v234 = vunpack.c.l.b16 %v43
  %v235 = vunpack.c.h.b16 %v43
  %v236 = vunpack.c.l.b16 %v44
  %v237 = vunpack.c.l.b16 %v45
  %v238 = vunpack.c.h.b16 %v45
  %v239 = vunpack.c.l.b16 %v46
  %v240 = vunpack.c.h.b16 %v46
  %v241 = vunpack.c.l.b16 %v47
  %v242 = vunpack.c.l.b16 %v48
  %v243 = vunpack.c.h.b16 %v48
  %v244 = vunpack.c.l.b16 %v49
  %v245 = vunpack.c.h.b16 %v49
  %v246 = vunpack.c.l.b16 %v50
  %v247 = vunpack.c.l.b16 %v51
  %v248 = vunpack.c.h.b16 %v51
  %v249 = vunpack.c.l.b16 %v52
  %v250 = vunpack.c.h.b16 %v52
  %v251 = vunpack.c.l.b16 %v53
  %v252 = vunpack.c.l.b16 %v54
  %v253 = vunpack.c.h.b16 %v54
  %v254 = vunpack.c.l.b16 %v55
  %v255 = vunpack.c.h.b16 %v55
  %v256 = vunpack.c.l.b16 %v56
  %v257 = vunpack.c.l.b16 %v57
  %v258 = vunpack.c.h.b16 %v57
  %v259 = vunpack.c.l.b16 %v58
  %v260 = vunpack.c.h.b16 %v58
  %v261 = vunpack.c.l.b16 %v59
  %v262 = vunpack.c.l.b16 %v60
  %v263 = vunpack.c.h.b16 %v60
  %v264 = vunpack.c.l.b16 %v61
  %v265 = vunpack.c.h.b16 %v61
  %v266 = vunpack.c.l.b16 %v62
  %v267 = vpack.c.b16 %v192, %v187
  %v268 = vpack.c.b16 %v193, %v188
  %v269 = vpack.c.b16 %v194, %v189
  %v270 = vpack.c.b16 %v195, %v190
  %v271 = vpack.c.b16 %v196, %v191
  %v272 = vpack.c.b16 %v202, %v197
  %v273 = vpack.c.b16 %v203, %v198
  %v274 = vpack.c.b16 %v204, %v199
  %v275 = vpack.c.b16 %v205, %v200
  %v276 = vpack.c.b16 %v206, %v201
  %v277 = vpack.c.b16 %v212, %v207
  %v278 = vpack.c.b16 %v213, %v208
  %v279 = vpack.c.b16 %v214, %v209
  %v280 = vpack.c.b16 %v215, %v210
  %v281 = vpack.c.b16 %v216, %v211
  %v282 = vpack.c.b16 %v222, %v217
  %v283 = vpack.c.b16 %v223, %v218
  %v284 = vpack.c.b16 %v224, %v219
  %v285 = vpack.c.b16 %v225, %v220
  %v286 = vpack.c.b16 %v226, %v221
  %v287 = vpack.c.b16 %v232, %v227
  %v288 = vpack.c.b16 %v233, %v228
  %v289 = vpack.c.b16 %v234, %v229
  %v290 = vpack.c.b16 %v235, %v230
  %v291 = vpack.c.b16 %v236, %v231
  %v292 = vpack.c.b16 %v242, %v237
  %v293 = vpack.c.b16 %v243, %v238
  %v294 = vpack.c.b16 %v244, %v239
  %v295 = vpack.c.b16 %v245, %v240
  %v296 = vpack.c.b16 %v246, %v241
  %v297 = vpack.c.b16 %v252, %v247
  %v298 = vpack.c.b16 %v253, %v248
  %v299 = vpack.c.b16 %v254, %v249
  %v300 = vpack.c.b16 %v255, %v250
  %v301 = vpack.c.b16 %v256, %v251
  %v302 = vpack.c.b16 %v262, %v257
  %v303 = vpack.c.b16 %v263, %v258
  %v304 = vpack.c.b16 %v264, %v259
  %v305 = vpack.c.b16 %v265, %v260
  %v306 = vpack.c.b16 %v266, %v261
  %v411 = vunpack.c.l.b16 %v63
  %v412 = vunpack.c.l.b16 %v64
  %v413 = vunpack.c.l.b16 %v65
  %v414 = vunpack.c.l.b16 %v66
  %v415 = vunpack.c.l.b16 %v67
  %v416 = vunpack.c.l.b16 %v68
  %v417 = vunpack.c.l.b16 %v69
  %v418 = vunpack.c.l.b16 %v70
  %v419 = vunpack.c.l.b16 %v71
  %v420 = vunpack.c.l.b16 %v72
  %v421 = vunpack.c.l.b16 %v73
  %v422 = vunpack.c.l.b16 %v74
  %v423 = vunpack.c.l.b16 %v75
  %v424 = vunpack.c.l.b16 %v76
  %v425 = vunpack.c.l.b16 %v77
  %v426 = vunpack.c.l.b16 %v78
  %v427 = vunpack.c.l.b16 %v79
  %v428 = vunpack.c.l.b16 %v80
  %v429 = vunpack.c.l.b16 %v81
  %v430 = vunpack.c.l.b16 %v82
  %v431 = vunpack.c.l.b16 %v83
  %v432 = vunpack.c.l.b16 %v84
  %v433 = vunpack.c.l.b16 %v85
  %v434 = vunpack.c.l.b16 %v86
  %v435 = vunpack.c.l.b16 %v87
  %v436 = vunpack.c.l.b16 %v88
  %v437 = vunpack.c.l.b16 %v89
  %v438 = vunpack.c.l.b16 %v90
  %v439 = vunpack.c.l.b16 %v91
  %v440 = vunpack.c.l.b16 %v92
  %v441 = vunpack.c.l.b16 %v93
  %v442 = vunpack.c.l.b16 %v94
  %v443 = vunpack.c.l.b16 %v95
  %v444 = vunpack.c.l.b16 %v96
  %v445 = vunpack.c.l.b16 %v97
  %v446 = vunpack.c.l.b16 %v98
  %v447 = vunpack.c.l.b16 %v99
  %v448 = vunpack.c.l.b16 %v100
  %v449 = vunpack.c.l.b16 %v101
  %v450 = vunpack.c.l.b16 %v102
  %v451 = vunpack.c.l.b16 %v103
  %v452 = vunpack.c.l.b16 %v104
  %v453 = vunpack.c.l.b16 %v105
  %v454 = vunpack.c.l.b16 %v106
  %v455 = vunpack.c.l.b16 %v107
  %v456 = vunpack.c.l.b16 %v108
  %v457 = vunpack.c.l.b16 %v109
  %v458 = vunpack.c.l.b16 %v110
  %v459 = vunpack.c.l.b16 %v111
  %v460 = vunpack.c.l.b16 %v112
  %v461 = vunpack.c.l.b16 %v113
  %v462 = vunpack.c.l.b16 %v114
  %v463 = vunpack.c.l.b16 %v115
  %v464 = vunpack.c.l.b16 %v116
  %v465 = vunpack.c.l.b16 %v117
  %v466 = vunpack.c.l.b16 %v118
  %v467 = vunpack.c.l.b16 %v119
  %v468 = vunpack.c.l.b16 %v120
  %v469 = vunpack.c.l.b16 %v121
  %v470 = vunpack.c.l.b16 %v122
  %v471 = vunpack.c.l.b16 %v123
  %v472 = vunpack.c.l.b16 %v124
  %v473 = vunpack.c.l.b16 %v125
  %v474 = vunpack.c.l.b16 %v126
  %v475 = vunpack.c.l.b16 %v127
  %v476 = vunpack.c.l.b16 %v128
  %v477 = vunpack.c.l.b16 %v129
  %v478 = vunpack.c.l.b16 %v130
  %v479 = vunpack.c.l.b16 %v131
  %v480 = vunpack.c.l.b16 %v132
  %v481 = vunpack.c.l.b16 %v133
  %v482 = vunpack.c.l.b16 %v134
  %v483 = vpack.c.b16 %v412, %v411
  %v484 = vpack.c.b16 %v414, %v413
  %v485 = vpack.c.b16 %v416, %v415
  %v486 = vpack.c.b16 %v418, %v417
  %v487 = vpack.c.b16 %v420, %v419
  %v488 = vpack.c.b16 %v422, %v421
  %v489 = vpack.c.b16 %v424, %v423
  %v490 = vpack.c.b16 %v426, %v425
  %v491 = vpack.c.b16 %v428, %v427
  %v492 = vpack.c.b16 %v430, %v429
  %v493 = vpack.c.b16 %v432, %v431
  %v494 = vpack.c.b16 %v434, %v433
  %v495 = vpack.c.b16 %v436, %v435
  %v496 = vpack.c.b16 %v438, %v437
  %v497 = vpack.c.b16 %v440, %v439
  %v498 = vpack.c.b16 %v442, %v441
  %v499 = vpack.c.b16 %v444, %v443
  %v500 = vpack.c.b16 %v446, %v445
  %v501 = vpack.c.b16 %v448, %v447
  %v502 = vpack.c.b16 %v450, %v449
  %v503 = vpack.c.b16 %v452, %v451
  %v504 = vpack.c.b16 %v454, %v453
  %v505 = vpack.c.b16 %v456, %v455
  %v506 = vpack.c.b16 %v458, %v457
  %v507 = vpack.c.b16 %v460, %v459
  %v508 = vpack.c.b16 %v462, %v461
  %v509 = vpack.c.b16 %v464, %v463
  %v510 = vpack.c.b16 %v466, %v465
  %v511 = vpack.c.b16 %v468, %v467
  %v512 = vpack.c.b16 %v470, %v469
  %v513 = vpack.c.b16 %v472, %v471
  %v514 = vpack.c.b16 %v474, %v473
  %v515 = vpack.c.b16 %v476, %v475
  %v516 = vpack.c.b16 %v478, %v477
  %v517 = vpack.c.b16 %v480, %v479
  %v518 = vpack.c.b16 %v482, %v481
  %vm555 = vcmask 523264
  %v557 = vsel %vm555, %v271, 0
  %v560 = vsel %vm555, %v276, 0
  %v563 = vsel %vm555, %v281, 0
  %v566 = vsel %vm555, %v286, 0
  %v569 = vsel %vm555, %v291, 0
  %v572 = vsel %vm555, %v296, 0
  %v575 = vsel %vm555, %v301, 0
  %v578 = vsel %vm555, %v306, 0
  %580 = vmatpush.bf16.msra.mxu0 %v490
  %581 = vmatpush.bf16.msra.mxu0 %v489
  %582 = vmatpush.bf16.msra.mxu0 %v488
  %583 = vmatpush.bf16.msra.mxu0 %v487
  %584 = vmatpush.bf16.msra.mxu0 %v486
  %585 = vmatpush.bf16.msra.mxu0 %v485
  %586 = vmatpush.bf16.msra.mxu0 %v484
  %587 = vmatpush.bf16.msra.mxu0 %v483
  %588 = vmatmul.bf16.gmra.mxu0 %v267
  %v589 = vpop.f32.mrf.mxu0
  %v590 = vadd.f32 %v137, %v589
  %v591 = vpop.f32.mrf.mxu0
  %v592 = vadd.f32 %v137, %v591
  %593 = vmatmul.bf16.gmra.mxu0 %v272
  %v594 = vpop.f32.mrf.mxu0
  %v595 = vadd.f32 %v137, %v594
  %v596 = vpop.f32.mrf.mxu0
  %v597 = vadd.f32 %v137, %v596
  %598 = vmatmul.bf16.gmra.mxu0 %v277
  %v599 = vpop.f32.mrf.mxu0
  %v600 = vadd.f32 %v137, %v599
  %v601 = vpop.f32.mrf.mxu0
  %v602 = vadd.f32 %v137, %v601
  %603 = vmatmul.bf16.gmra.mxu0 %v282
  %v604 = vpop.f32.mrf.mxu0
  %v605 = vadd.f32 %v137, %v604
  %v606 = vpop.f32.mrf.mxu0
  %v607 = vadd.f32 %v137, %v606
  %608 = vmatmul.bf16.gmra.mxu0 %v287
  %v609 = vpop.f32.mrf.mxu0
  %v610 = vadd.f32 %v137, %v609
  %v611 = vpop.f32.mrf.mxu0
  %v612 = vadd.f32 %v137, %v611
  %613 = vmatmul.bf16.gmra.mxu0 %v292
  %v614 = vpop.f32.mrf.mxu0
  %v615 = vadd.f32 %v137, %v614
  %v616 = vpop.f32.mrf.mxu0
  %v617 = vadd.f32 %v137, %v616
  %618 = vmatmul.bf16.gmra.mxu0 %v297
  %v619 = vpop.f32.mrf.mxu0
  %v620 = vadd.f32 %v137, %v619
  %v621 = vpop.f32.mrf.mxu0
  %v622 = vadd.f32 %v137, %v621
  %623 = vmatmul.bf16.gmra.mxu0 %v302
  %v624 = vpop.f32.mrf.mxu0
  %v625 = vadd.f32 %v137, %v624
  %v626 = vpop.f32.mrf.mxu0
  %v627 = vadd.f32 %v137, %v626
  %628 = vdwg.mxu0
  %629 = vmatpush.bf16.msra.mxu0 %v498
  %630 = vmatpush.bf16.msra.mxu0 %v497
  %631 = vmatpush.bf16.msra.mxu0 %v496
  %632 = vmatpush.bf16.msra.mxu0 %v495
  %633 = vmatpush.bf16.msra.mxu0 %v494
  %634 = vmatpush.bf16.msra.mxu0 %v493
  %635 = vmatpush.bf16.msra.mxu0 %v492
  %636 = vmatpush.bf16.msra.mxu0 %v491
  %637 = vmatmul.bf16.gmra.mxu0 %v268
  %v638 = vpop.f32.mrf.mxu0
  %v639 = vadd.f32 %v590, %v638
  %v640 = vpop.f32.mrf.mxu0
  %v641 = vadd.f32 %v592, %v640
  %642 = vmatmul.bf16.gmra.mxu0 %v273
  %v643 = vpop.f32.mrf.mxu0
  %v644 = vadd.f32 %v595, %v643
  %v645 = vpop.f32.mrf.mxu0
  %v646 = vadd.f32 %v597, %v645
  %647 = vmatmul.bf16.gmra.mxu0 %v278
  %v648 = vpop.f32.mrf.mxu0
  %v649 = vadd.f32 %v600, %v648
  %v650 = vpop.f32.mrf.mxu0
  %v651 = vadd.f32 %v602, %v650
  %652 = vmatmul.bf16.gmra.mxu0 %v283
  %v653 = vpop.f32.mrf.mxu0
  %v654 = vadd.f32 %v605, %v653
  %v655 = vpop.f32.mrf.mxu0
  %v656 = vadd.f32 %v607, %v655
  %657 = vmatmul.bf16.gmra.mxu0 %v288
  %v658 = vpop.f32.mrf.mxu0
  %v659 = vadd.f32 %v610, %v658
  %v660 = vpop.f32.mrf.mxu0
  %v661 = vadd.f32 %v612, %v660
  %662 = vmatmul.bf16.gmra.mxu0 %v293
  %v663 = vpop.f32.mrf.mxu0
  %v664 = vadd.f32 %v615, %v663
  %v665 = vpop.f32.mrf.mxu0
  %v666 = vadd.f32 %v617, %v665
  %667 = vmatmul.bf16.gmra.mxu0 %v298
  %v668 = vpop.f32.mrf.mxu0
  %v669 = vadd.f32 %v620, %v668
  %v670 = vpop.f32.mrf.mxu0
  %v671 = vadd.f32 %v622, %v670
  %672 = vmatmul.bf16.gmra.mxu0 %v303
  %v673 = vpop.f32.mrf.mxu0
  %v674 = vadd.f32 %v625, %v673
  %v675 = vpop.f32.mrf.mxu0
  %v676 = vadd.f32 %v627, %v675
  %677 = vdwg.mxu0
  %678 = vmatpush.bf16.msra.mxu0 %v506
  %679 = vmatpush.bf16.msra.mxu0 %v505
  %680 = vmatpush.bf16.msra.mxu0 %v504
  %681 = vmatpush.bf16.msra.mxu0 %v503
  %682 = vmatpush.bf16.msra.mxu0 %v502
  %683 = vmatpush.bf16.msra.mxu0 %v501
  %684 = vmatpush.bf16.msra.mxu0 %v500
  %685 = vmatpush.bf16.msra.mxu0 %v499
  %686 = vmatmul.bf16.gmra.mxu0 %v269
  %v687 = vpop.f32.mrf.mxu0
  %v688 = vadd.f32 %v639, %v687
  %v689 = vpop.f32.mrf.mxu0
  %v690 = vadd.f32 %v641, %v689
  %691 = vmatmul.bf16.gmra.mxu0 %v274
  %v692 = vpop.f32.mrf.mxu0
  %v693 = vadd.f32 %v644, %v692
  %v694 = vpop.f32.mrf.mxu0
  %v695 = vadd.f32 %v646, %v694
  %696 = vmatmul.bf16.gmra.mxu0 %v279
  %v697 = vpop.f32.mrf.mxu0
  %v698 = vadd.f32 %v649, %v697
  %v699 = vpop.f32.mrf.mxu0
  %v700 = vadd.f32 %v651, %v699
  %701 = vmatmul.bf16.gmra.mxu0 %v284
  %v702 = vpop.f32.mrf.mxu0
  %v703 = vadd.f32 %v654, %v702
  %v704 = vpop.f32.mrf.mxu0
  %v705 = vadd.f32 %v656, %v704
  %706 = vmatmul.bf16.gmra.mxu0 %v289
  %v707 = vpop.f32.mrf.mxu0
  %v708 = vadd.f32 %v659, %v707
  %v709 = vpop.f32.mrf.mxu0
  %v710 = vadd.f32 %v661, %v709
  %711 = vmatmul.bf16.gmra.mxu0 %v294
  %v712 = vpop.f32.mrf.mxu0
  %v713 = vadd.f32 %v664, %v712
  %v714 = vpop.f32.mrf.mxu0
  %v715 = vadd.f32 %v666, %v714
  %716 = vmatmul.bf16.gmra.mxu0 %v299
  %v717 = vpop.f32.mrf.mxu0
  %v718 = vadd.f32 %v669, %v717
  %v719 = vpop.f32.mrf.mxu0
  %v720 = vadd.f32 %v671, %v719
  %721 = vmatmul.bf16.gmra.mxu0 %v304
  %v722 = vpop.f32.mrf.mxu0
  %v723 = vadd.f32 %v674, %v722
  %v724 = vpop.f32.mrf.mxu0
  %v725 = vadd.f32 %v676, %v724
  %726 = vdwg.mxu0
  %727 = vmatpush.bf16.msra.mxu0 %v514
  %728 = vmatpush.bf16.msra.mxu0 %v513
  %729 = vmatpush.bf16.msra.mxu0 %v512
  %730 = vmatpush.bf16.msra.mxu0 %v511
  %731 = vmatpush.bf16.msra.mxu0 %v510
  %732 = vmatpush.bf16.msra.mxu0 %v509
  %733 = vmatpush.bf16.msra.mxu0 %v508
  %734 = vmatpush.bf16.msra.mxu0 %v507
  %735 = vmatmul.bf16.gmra.mxu0 %v270
  %v736 = vpop.f32.mrf.mxu0
  %v737 = vadd.f32 %v688, %v736
  %v738 = vpop.f32.mrf.mxu0
  %v739 = vadd.f32 %v690, %v738
  %740 = vmatmul.bf16.gmra.mxu0 %v275
  %v741 = vpop.f32.mrf.mxu0
  %v742 = vadd.f32 %v693, %v741
  %v743 = vpop.f32.mrf.mxu0
  %v744 = vadd.f32 %v695, %v743
  %745 = vmatmul.bf16.gmra.mxu0 %v280
  %v746 = vpop.f32.mrf.mxu0
  %v747 = vadd.f32 %v698, %v746
  %v748 = vpop.f32.mrf.mxu0
  %v749 = vadd.f32 %v700, %v748
  %750 = vmatmul.bf16.gmra.mxu0 %v285
  %v751 = vpop.f32.mrf.mxu0
  %v752 = vadd.f32 %v703, %v751
  %v753 = vpop.f32.mrf.mxu0
  %v754 = vadd.f32 %v705, %v753
  %755 = vmatmul.bf16.gmra.mxu0 %v290
  %v756 = vpop.f32.mrf.mxu0
  %v757 = vadd.f32 %v708, %v756
  %v758 = vpop.f32.mrf.mxu0
  %v759 = vadd.f32 %v710, %v758
  %760 = vmatmul.bf16.gmra.mxu0 %v295
  %v761 = vpop.f32.mrf.mxu0
  %v762 = vadd.f32 %v713, %v761
  %v763 = vpop.f32.mrf.mxu0
  %v764 = vadd.f32 %v715, %v763
  %765 = vmatmul.bf16.gmra.mxu0 %v300
  %v766 = vpop.f32.mrf.mxu0
  %v767 = vadd.f32 %v718, %v766
  %v768 = vpop.f32.mrf.mxu0
  %v769 = vadd.f32 %v720, %v768
  %770 = vmatmul.bf16.gmra.mxu0 %v305
  %v771 = vpop.f32.mrf.mxu0
  %v772 = vadd.f32 %v723, %v771
  %v773 = vpop.f32.mrf.mxu0
  %v774 = vadd.f32 %v725, %v773
  %775 = vdwg.mxu0
  %776 = vmatpush.bf16.msra.mxu0 0
  %777 = vmatpush.bf16.msra.mxu0 0
  %778 = vmatpush.bf16.msra.mxu0 0
  %779 = vmatpush.bf16.msra.mxu0 0
  %780 = vmatpush.bf16.msra.mxu0 %v518
  %781 = vmatpush.bf16.msra.mxu0 %v517
  %782 = vmatpush.bf16.msra.mxu0 %v516
  %783 = vmatpush.bf16.msra.mxu0 %v515
  %784 = vmatmul.bf16.gmra.mxu0 %v557
  %v785 = vpop.f32.mrf.mxu0
  %v786 = vadd.f32 %v737, %v785
  %v787 = vpop.f32.mrf.mxu0
  %v788 = vadd.f32 %v739, %v787
  %789 = vmatmul.bf16.gmra.mxu0 %v560
  %v790 = vpop.f32.mrf.mxu0
  %v791 = vadd.f32 %v742, %v790
  %v792 = vpop.f32.mrf.mxu0
  %v793 = vadd.f32 %v744, %v792
  %794 = vmatmul.bf16.gmra.mxu0 %v563
  %v795 = vpop.f32.mrf.mxu0
  %v796 = vadd.f32 %v747, %v795
  %v797 = vpop.f32.mrf.mxu0
  %v798 = vadd.f32 %v749, %v797
  %799 = vmatmul.bf16.gmra.mxu0 %v566
  %v800 = vpop.f32.mrf.mxu0
  %v801 = vadd.f32 %v752, %v800
  %v802 = vpop.f32.mrf.mxu0
  %v803 = vadd.f32 %v754, %v802
  %804 = vmatmul.bf16.gmra.mxu0 %v569
  %v805 = vpop.f32.mrf.mxu0
  %v806 = vadd.f32 %v757, %v805
  %v807 = vpop.f32.mrf.mxu0
  %v808 = vadd.f32 %v759, %v807
  %809 = vmatmul.bf16.gmra.mxu0 %v572
  %v810 = vpop.f32.mrf.mxu0
  %v811 = vadd.f32 %v762, %v810
  %v812 = vpop.f32.mrf.mxu0
  %v813 = vadd.f32 %v764, %v812
  %814 = vmatmul.bf16.gmra.mxu0 %v575
  %v815 = vpop.f32.mrf.mxu0
  %v816 = vadd.f32 %v767, %v815
  %v817 = vpop.f32.mrf.mxu0
  %v818 = vadd.f32 %v769, %v817
  %819 = vmatmul.bf16.gmra.mxu0 %v578
  %v820 = vpop.f32.mrf.mxu0
  %v821 = vadd.f32 %v772, %v820
  %v822 = vpop.f32.mrf.mxu0
  %v823 = vadd.f32 %v774, %v822
  %824 = vdwg.mxu0
  %v825 = vmax.f32 %v786, 0.0
  %v826 = vmax.f32 %v788, 0.0
  %v827 = vmax.f32 %v791, 0.0
  %v828 = vmax.f32 %v793, 0.0
  %v829 = vmax.f32 %v796, 0.0
  %v830 = vmax.f32 %v798, 0.0
  %v831 = vmax.f32 %v801, 0.0
  %v832 = vmax.f32 %v803, 0.0
  %v833 = vmax.f32 %v806, 0.0
  %v834 = vmax.f32 %v808, 0.0
  %v835 = vmax.f32 %v811, 0.0
  %v836 = vmax.f32 %v813, 0.0
  %v837 = vmax.f32 %v816, 0.0
  %v838 = vmax.f32 %v818, 0.0
  %v839 = vmax.f32 %v821, 0.0
  %v840 = vmax.f32 %v823, 0.0
  %v841 = vpack.c.bf16 %v825, %v825
  %v842 = vpack.c.bf16 %v826, %v826
  %v843 = vpack.c.bf16 %v827, %v827
  %v844 = vpack.c.bf16 %v828, %v828
  %v845 = vpack.c.bf16 %v829, %v829
  %v846 = vpack.c.bf16 %v830, %v830
  %v847 = vpack.c.bf16 %v831, %v831
  %v848 = vpack.c.bf16 %v832, %v832
  %v849 = vpack.c.bf16 %v833, %v833
  %v850 = vpack.c.bf16 %v834, %v834
  %v851 = vpack.c.bf16 %v835, %v835
  %v852 = vpack.c.bf16 %v836, %v836
  %v853 = vpack.c.bf16 %v837, %v837
  %v854 = vpack.c.bf16 %v838, %v838
  %v855 = vpack.c.bf16 %v839, %v839
  %v856 = vpack.c.bf16 %v840, %v840
  %857 = vst [vmem:[%s3] sm:$0xf] %v841
  %858 = vst [vmem:[%s3 + $0x4] sm:$0xf] %v842
  %859 = vst [vmem:[%s3 + $0x8] sm:$0xf] %v843
  %860 = vst [vmem:[%s3 + $0xc] sm:$0xf] %v844
  %861 = vst [vmem:[%s3 + $0x10] sm:$0xf] %v845
  %862 = vst [vmem:[%s3 + $0x14] sm:$0xf] %v846
  %863 = vst [vmem:[%s3 + $0x18] sm:$0xf] %v847
  %864 = vst [vmem:[%s3 + $0x1c] sm:$0xf] %v848
  %865 = vst [vmem:[%s3 + $0x20] sm:$0xf] %v849
  %866 = vst [vmem:[%s3 + $0x24] sm:$0xf] %v850
  %867 = vst [vmem:[%s3 + $0x28] sm:$0xf] %v851
  %868 = vst [vmem:[%s3 + $0x2c] sm:$0xf] %v852
  %869 = vst [vmem:[%s3 + $0x30] sm:$0xf] %v853
  %870 = vst [vmem:[%s3 + $0x34] sm:$0xf] %v854
  %871 = vst [vmem:[%s3 + $0x38] sm:$0xf] %v855
  %872 = vst [vmem:[%s3 + $0x3c] sm:$0xf] %v856
  // Predicated region
  $region14: #{shading_net_forward.21} parent=0 // pred_check
    _
  $region15: #{shading_net_forward.21} parent=0 // pred_check_branch
    %874 = sbr.rel (0) target = $region17
  $region16: #{shading_net_forward.21} parent=0 // pred_region
    _
  $region17: #{shading_net_forward.21} parent=0 // pred_fallthru
    _
  // Predicated region
  $region18: #{shading_net_forward.21} parent=0 // pred_check
    _
  $region19: #{shading_net_forward.21} parent=0 // pred_check_branch
    %876 = sbr.rel (0) target = $region21
  $region20: #{shading_net_forward.21} parent=0 // pred_region
    _
  $region21: #{shading_net_forward.21} parent=0 // pred_fallthru
    _

// kernel: shading_net_forward.22
$region0: #{shading_net_forward.22}
  #allocation0 [shape = 'u32[]', space=smem, size = 0x4, offset = 0x4, fixed_abs, tag = 'smem constant byte address 0x4 - core index']
  #allocation1 [shape = 'u32[72,128]{1,0:T(1,128)}', space=vmem, size = 0x9000, scoped, tag = 'internal scratch']
  %s0 = inlined_call_operand.vmem [shape: bf16[512,288], index: 0, kind: input, shape index: {}]
  %s1 = inlined_call_operand.vmem [shape: bf16[288,128], index: 1, kind: input, shape index: {}]
  %s2 = inlined_call_operand.vmem [shape: f32[1,128], index: 2, kind: input, shape index: {}]
  %s3 = inlined_call_operand.vmem [shape: bf16[512,128], index: 3, kind: output, shape index: {}]
  %s4 = sld [smem:[#allocation0]]
  $region45: #{shading_net_forward.22} parent=0
    _
  %s6 = ssub.s32 1, %s4
  %s7 = scalar_select 0, %s6, %s4
  loop: start=0, step=1, limit=4
  $region2: #{shading_net_forward.22} parent=0 // loop_pre_header
    _
  $region3: #{shading_net_forward.22} parent=0 // loop_header
    %s9 = sphi 0, %s13
    %p10 = scmp.ge.s32.totalorder %s9, 4
    %s16 = sphi 0, %s28
    %s17 = sphi 0, %s24
    %s18 = sphi 0, %s16
    %s19 = sphi 0, %s17
    %s20 = sphi 0, %s18
    %s21 = sphi 0, %s19
    %s31 = sphi 0, %s33
    %s34 = sphi 0, %s31
    %s35 = sphi 0, %s34
    %s51 = sphi 0, %s35
    %s57 = sphi 0, %s59
    %s60 = sphi 0, %s57
    %s61 = sphi 0, %s60
    %s77 = sphi 0, %s61
    %s83 = sphi 0, %s85
    %s86 = sphi 0, %s83
    %s87 = sphi 0, %s86
    %s103 = sphi 0, %s87
    %s111 = sphi 0, %s113
    %s114 = sphi 0, %s111
    %s115 = sphi 0, %s114
    %s131 = sphi 0, %s115
  $region4: #{shading_net_forward.22} parent=0 // loop_header_branch
    %12 = sbr.rel (%p10) target = $region8
  $region5: #{shading_net_forward.22} parent=0 // loop_body
    %s14 = ssub.s32 %s9, 1
    %s15 = ssub.s32 %s9, 2
    %s22 = sadd.s32 1, %s17
    %p23 = scmp.ge.s32.totalorder %s22, 1
    %s24 = scalar_select %p23, 0, %s22
    %s25 = sadd.s32 1, %s16
    %s26 = scalar_select %p23, %s25, %s16
    %p27 = scmp.ge.s32.totalorder %s26, 2
    %s28 = scalar_select %p27, 0, %s26
    %s29 = ssub.s32 %s16, %s28
    %p30 = scmp.eq.s32.totalorder %s29, 0
    %s32 = sadd.s32 %s31, 1
    %s33 = scalar_select %p30, %s31, %s32
    %p36 = pneg %p30
    %p37 = scmp.eq.s32.totalorder %s9, 1
    %p38 = por %p36, %p37
    %p39 = scmp.ne.s32.totalorder %s31, %s34
    %p40 = scmp.eq.s32.totalorder %s9, 0
    %p41 = por %p39, %p40
    %p42 = scmp.ne.s32.totalorder %s31, %s34
    %p43 = scmp.eq.s32.totalorder %s14, 1
    %p44 = por %p42, %p43
    %p45 = scmp.ne.s32.totalorder %s34, %s35
    %p46 = scmp.eq.s32.totalorder %s14, 0
    %p47 = por %p45, %p46
    %p48 = scmp.ne.s32.totalorder %s34, %s35
    %p49 = scmp.eq.s32.totalorder %s15, 1
    %p50 = por %p48, %p49
    %p52 = scmp.ne.s32.totalorder %s35, %s51
    %p53 = scmp.eq.s32.totalorder %s15, 0
    %p54 = por %p52, %p53
    %s55 = ssub.s32 %s17, %s24
    %p56 = scmp.eq.s32.totalorder %s55, 0
    %s58 = sadd.s32 %s57, 1
    %s59 = scalar_select %p56, %s57, %s58
    %p62 = pneg %p56
    %p63 = scmp.eq.s32.totalorder %s9, 1
    %p64 = por %p62, %p63
    %p65 = scmp.ne.s32.totalorder %s57, %s60
    %p66 = scmp.eq.s32.totalorder %s9, 0
    %p67 = por %p65, %p66
    %p68 = scmp.ne.s32.totalorder %s57, %s60
    %p69 = scmp.eq.s32.totalorder %s14, 1
    %p70 = por %p68, %p69
    %p71 = scmp.ne.s32.totalorder %s60, %s61
    %p72 = scmp.eq.s32.totalorder %s14, 0
    %p73 = por %p71, %p72
    %p74 = scmp.ne.s32.totalorder %s60, %s61
    %p75 = scmp.eq.s32.totalorder %s15, 1
    %p76 = por %p74, %p75
    %p78 = scmp.ne.s32.totalorder %s61, %s77
    %p79 = scmp.eq.s32.totalorder %s15, 0
    %p80 = por %p78, %p79
    %s81 = ssub.s32 %s17, %s24
    %p82 = scmp.eq.s32.totalorder %s81, 0
    %s84 = sadd.s32 %s83, 1
    %s85 = scalar_select %p82, %s83, %s84
    %p88 = pneg %p82
    %p89 = scmp.eq.s32.totalorder %s9, 1
    %p90 = por %p88, %p89
    %p91 = scmp.ne.s32.totalorder %s83, %s86
    %p92 = scmp.eq.s32.totalorder %s9, 0
    %p93 = por %p91, %p92
    %p94 = scmp.ne.s32.totalorder %s83, %s86
    %p95 = scmp.eq.s32.totalorder %s14, 1
    %p96 = por %p94, %p95
    %p97 = scmp.ne.s32.totalorder %s86, %s87
    %p98 = scmp.eq.s32.totalorder %s14, 0
    %p99 = por %p97, %p98
    %p100 = scmp.ne.s32.totalorder %s86, %s87
    %p101 = scmp.eq.s32.totalorder %s15, 1
    %p102 = por %p100, %p101
    %p104 = scmp.ne.s32.totalorder %s87, %s103
    %p105 = scmp.eq.s32.totalorder %s15, 0
    %p106 = por %p104, %p105
    %s107 = ssub.s32 %s16, %s28
    %s108 = ssub.s32 %s17, %s24
    %s109 = sor.u32 %s107, %s108
    %p110 = scmp.eq.s32.totalorder %s109, 0
    %s112 = sadd.s32 %s111, 1
    %s113 = scalar_select %p110, %s111, %s112
    %p116 = pneg %p110
    %p117 = scmp.eq.s32.totalorder %s9, 1
    %p118 = por %p116, %p117
    %p119 = scmp.ne.s32.totalorder %s111, %s114
    %p120 = scmp.eq.s32.totalorder %s9, 0
    %p121 = por %p119, %p120
    %p122 = scmp.ne.s32.totalorder %s111, %s114
    %p123 = scmp.eq.s32.totalorder %s14, 1
    %p124 = por %p122, %p123
    %p125 = scmp.ne.s32.totalorder %s114, %s115
    %p126 = scmp.eq.s32.totalorder %s14, 0
    %p127 = por %p125, %p126
    %p128 = scmp.ne.s32.totalorder %s114, %s115
    %p129 = scmp.eq.s32.totalorder %s15, 1
    %p130 = por %p128, %p129
    %p132 = scmp.ne.s32.totalorder %s115, %s131
    %p133 = scmp.eq.s32.totalorder %s15, 0
    %p134 = por %p132, %p133
    %p135 = scmp.le.s32.totalorder 1, %s9
    %p136 = scmp.lt.s32.totalorder %s9, 3
    %p137 = pnand %p135, %p136
    %p138 = pneg %p137
    // Predicated region
    $region9: #{shading_net_forward.22} parent=5 // pred_check
      _
    $region10: #{shading_net_forward.22} parent=5 // pred_check_branch
      %140 = sbr.rel (%p137) target = $region12
    $region11: #{shading_net_forward.22} parent=5 // pred_region
      %s141 = ssub.s32 %s9, 1
      // Predicated region
      $region13: #{shading_net_forward.22} parent=11 // pred_check
        %p142 = pneg %p73
      $region14: #{shading_net_forward.22} parent=11 // pred_check_branch
        %144 = sbr.rel (%p142) target = $region16
      $region15: #{shading_net_forward.22} parent=11 // pred_region
        %p145 = scmp.lt.s32.totalorder %s19, 0
        %s146 = scalar_select %p145, %s19, 0
        %s147 = smul.addr %s146, 4
        %s148 = scalar_lea.vmem %s1, %s147
      $region16: #{shading_net_forward.22} parent=11 // pred_fallthru
        _
      // Predicated region
      $region17: #{shading_net_forward.22} parent=11 // pred_check
        %p149 = pneg %p99
      $region18: #{shading_net_forward.22} parent=11 // pred_check_branch
        %151 = sbr.rel (%p149) target = $region20
      $region19: #{shading_net_forward.22} parent=11 // pred_region
        %p152 = scmp.lt.s32.totalorder %s19, 0
        %s153 = scalar_select %p152, %s19, 0
        %s154 = scalar_lea.vmem %s2, %s153
      $region20: #{shading_net_forward.22} parent=11 // pred_fallthru
        _
    $region12: #{shading_net_forward.22} parent=5 // pred_fallthru
      _
    %p155 = scmp.lt.s32.totalorder %s9, 2
    // Predicated region
    $region21: #{shading_net_forward.22} parent=5 // pred_check
      %p156 = pneg %p155
    $region22: #{shading_net_forward.22} parent=5 // pred_check_branch
      %158 = sbr.rel (%p156) target = $region24
    $region23: #{shading_net_forward.22} parent=5 // pred_region
      // Predicated region
      $region25: #{shading_net_forward.22} parent=23 // pred_check
        %p159 = pneg %p41
      $region26: #{shading_net_forward.22} parent=23 // pred_check_branch
        %161 = sbr.rel (%p159) target = $region28
      $region27: #{shading_net_forward.22} parent=23 // pred_region
        %s162 = smul.u32 32, %s16
        %p163 = scmp.lt.s32.totalorder %s162, 63
        %s164 = scalar_select %p163, %s162, 63
        %s165 = smul.addr %s164, 3
        %s166 = smul.addr %s165, 4
        %s167 = scalar_lea.vmem %s0, %s166
        %s168 = smul.u32 32, %s16
      $region28: #{shading_net_forward.22} parent=23 // pred_fallthru
        _
    $region24: #{shading_net_forward.22} parent=5 // pred_fallthru
      _
    %p169 = scmp.le.s32.totalorder 1, %s9
    %p170 = scmp.lt.s32.totalorder %s9, 3
    %p171 = pnand %p169, %p170
    %p172 = pneg %p171
    // Predicated region
    $region29: #{shading_net_forward.22} parent=5 // pred_check
      _
    $region30: #{shading_net_forward.22} parent=5 // pred_check_branch
      %174 = sbr.rel (%p171) target = $region32
    $region31: #{shading_net_forward.22} parent=5 // pred_region
      %s175 = ssub.s32 %s9, 1
      %s176 = smul.u32 32, %s18
      %p177 = scmp.lt.s32.totalorder %s176, 63
      %s178 = scalar_select %p177, %s176, 63
      %s179 = smul.addr %s178, 3
      %s180 = smul.addr %s179, 4
      %s181 = scalar_lea.vmem %s0, %s180
      %p182 = pneg %p47
      %p183 = pneg %p44
      %p184 = scmp.lt.s32.totalorder %s19, 0
      %s185 = scalar_select %p184, %s19, 0
      %s186 = smul.addr %s185, 4
      %s187 = scalar_lea.vmem %s1, %s186
      %p188 = pneg %p73
      %p189 = pneg %p70
      %p190 = scmp.lt.s32.totalorder %s19, 0
      %s191 = scalar_select %p190, %s19, 0
      %s192 = scalar_lea.vmem %s2, %s191
      %p193 = pneg %p99
      %p194 = pneg %p96
      %p195 = pneg %p127
      %p196 = pneg %p124
      %s197 = smul.u32 32, %s18
      %p198 = scmp.lt.s32.totalorder %s197, 63
      %s199 = scalar_select %p198, %s197, 63
      %p200 = scmp.lt.s32.totalorder %s19, 0
      %s201 = scalar_select %p200, %s19, 0
      %s202 = sadd.s32 %s201, %s199
      %s203 = smul.addr %s202, 4
      %s204 = scalar_lea.vmem %s3, %s203
      %s205 = smul.u32 32, %s18
      %p206 = scmp.lt.s32.totalorder %s205, 63
      %s207 = scalar_select %p206, %s205, 63
      %s208 = smul.addr %s207, 3
      %s209 = smul.addr %s208, 4
      %s210 = scalar_lea.vmem %s0, %s209
      %s211 = smul.u32 32, %s18
      %p212 = scmp.lt.s32.totalorder %s19, 0
      %s213 = scalar_select %p212, %s19, 0
      %s214 = smul.addr %s213, 4
      %s215 = scalar_lea.vmem %s1, %s214
      %p216 = scmp.lt.s32.totalorder %s19, 0
      %s217 = scalar_select %p216, %s19, 0
      %s218 = scalar_lea.vmem %s2, %s217
      %s219 = smul.u32 32, %s18
      %p220 = scmp.lt.s32.totalorder %s219, 63
      %s221 = scalar_select %p220, %s219, 63
      %p222 = scmp.lt.s32.totalorder %s19, 0
      %s223 = scalar_select %p222, %s19, 0
      %s224 = sadd.s32 %s223, %s221
      %s225 = smul.addr %s224, 4
      %s226 = scalar_lea.vmem %s3, %s225
      %s227 = smul.u32 32, %s18
      %v229 = vld [vmem:[%s210] sm:$0xff]
      %v230 = vld [vmem:[%s210 + $0x8] sm:$0xf]
      %v231 = vld [vmem:[%s210 + $0xc] sm:$0xff]
      %v232 = vld [vmem:[%s210 + $0x14] sm:$0xf]
      %v233 = vld [vmem:[%s210 + $0x18] sm:$0xff]
      %v234 = vld [vmem:[%s210 + $0x20] sm:$0xf]
      %v235 = vld [vmem:[%s210 + $0x24] sm:$0xff]
      %v236 = vld [vmem:[%s210 + $0x2c] sm:$0xf]
      %v237 = vld [vmem:[%s210 + $0x30] sm:$0xff]
      %v238 = vld [vmem:[%s210 + $0x38] sm:$0xf]
      %v239 = vld [vmem:[%s210 + $0x3c] sm:$0xff]
      %v240 = vld [vmem:[%s210 + $0x44] sm:$0xf]
      %v241 = vld [vmem:[%s210 + $0x48] sm:$0xff]
      %v242 = vld [vmem:[%s210 + $0x50] sm:$0xf]
      %v243 = vld [vmem:[%s210 + $0x54] sm:$0xff]
      %v244 = vld [vmem:[%s210 + $0x5c] sm:$0xf]
      %v245 = vld [vmem:[%s210 + $0x60] sm:$0xff]
      %v246 = vld [vmem:[%s210 + $0x68] sm:$0xf]
      %v247 = vld [vmem:[%s210 + $0x6c] sm:$0xff]
      %v248 = vld [vmem:[%s210 + $0x74] sm:$0xf]
      %v249 = vld [vmem:[%s210 + $0x78] sm:$0xff]
      %v250 = vld [vmem:[%s210 + $0x80] sm:$0xf]
      %v251 = vld [vmem:[%s210 + $0x84] sm:$0xff]
      %v252 = vld [vmem:[%s210 + $0x8c] sm:$0xf]
      %v253 = vld [vmem:[%s210 + $0x90] sm:$0xff]
      %v254 = vld [vmem:[%s210 + $0x98] sm:$0xf]
      %v255 = vld [vmem:[%s210 + $0x9c] sm:$0xff]
      %v256 = vld [vmem:[%s210 + $0xa4] sm:$0xf]
      %v257 = vld [vmem:[%s210 + $0xa8] sm:$0xff]
      %v258 = vld [vmem:[%s210 + $0xb0] sm:$0xf]
      %v259 = vld [vmem:[%s210 + $0xb4] sm:$0xff]
      %v260 = vld [vmem:[%s210 + $0xbc] sm:$0xf]
      %v261 = vld [vmem:[%s210 + $0xc0] sm:$0xff]
      %v262 = vld [vmem:[%s210 + $0xc8] sm:$0xf]
      %v263 = vld [vmem:[%s210 + $0xcc] sm:$0xff]
      %v264 = vld [vmem:[%s210 + $0xd4] sm:$0xf]
      %v265 = vld [vmem:[%s210 + $0xd8] sm:$0xff]
      %v266 = vld [vmem:[%s210 + $0xe0] sm:$0xf]
      %v267 = vld [vmem:[%s210 + $0xe4] sm:$0xff]
      %v268 = vld [vmem:[%s210 + $0xec] sm:$0xf]
      %v269 = vld [vmem:[%s210 + $0xf0] sm:$0xff]
      %v270 = vld [vmem:[%s210 + $0xf8] sm:$0xf]
      %v271 = vld [vmem:[%s210 + $0xfc] sm:$0xff]
      %v272 = vld [vmem:[%s210 + $0x104] sm:$0xf]
      %v273 = vld [vmem:[%s210 + $0x108] sm:$0xff]
      %v274 = vld [vmem:[%s210 + $0x110] sm:$0xf]
      %v275 = vld [vmem:[%s210 + $0x114] sm:$0xff]
      %v276 = vld [vmem:[%s210 + $0x11c] sm:$0xf]
      %v277 = vld [vmem:[%s210 + $0x120] sm:$0xff]
      %v278 = vld [vmem:[%s210 + $0x128] sm:$0xf]
      %v279 = vld [vmem:[%s210 + $0x12c] sm:$0xff]
      %v280 = vld [vmem:[%s210 + $0x134] sm:$0xf]
      %v281 = vld [vmem:[%s210 + $0x138] sm:$0xff]
      %v282 = vld [vmem:[%s210 + $0x140] sm:$0xf]
      %v283 = vld [vmem:[%s210 + $0x144] sm:$0xff]
      %v284 = vld [vmem:[%s210 + $0x14c] sm:$0xf]
      %v285 = vld [vmem:[%s210 + $0x150] sm:$0xff]
      %v286 = vld [vmem:[%s210 + $0x158] sm:$0xf]
      %v287 = vld [vmem:[%s210 + $0x15c] sm:$0xff]
      %v288 = vld [vmem:[%s210 + $0x164] sm:$0xf]
      %v289 = vld [vmem:[%s210 + $0x168] sm:$0xff]
      %v290 = vld [vmem:[%s210 + $0x170] sm:$0xf]
      %v291 = vld [vmem:[%s210 + $0x174] sm:$0xff]
      %v292 = vld [vmem:[%s210 + $0x17c] sm:$0xf]
      %v293 = vld [vmem:[%s215] sm:$0xf]
      %v294 = vld [vmem:[%s215 + $0x4] sm:$0xf]
      %v295 = vld [vmem:[%s215 + $0x8] sm:$0xf]
      %v296 = vld [vmem:[%s215 + $0xc] sm:$0xf]
      %v297 = vld [vmem:[%s215 + $0x10] sm:$0xf]
      %v298 = vld [vmem:[%s215 + $0x14] sm:$0xf]
      %v299 = vld [vmem:[%s215 + $0x18] sm:$0xf]
      %v300 = vld [vmem:[%s215 + $0x1c] sm:$0xf]
      %v301 = vld [vmem:[%s215 + $0x20] sm:$0xf]
      %v302 = vld [vmem:[%s215 + $0x24] sm:$0xf]
      %v303 = vld [vmem:[%s215 + $0x28] sm:$0xf]
      %v304 = vld [vmem:[%s215 + $0x2c] sm:$0xf]
      %v305 = vld [vmem:[%s215 + $0x30] sm:$0xf]
      %v306 = vld [vmem:[%s215 + $0x34] sm:$0xf]
      %v307 = vld [vmem:[%s215 + $0x38] sm:$0xf]
      %v308 = vld [vmem:[%s215 + $0x3c] sm:$0xf]
      %v309 = vld [vmem:[%s215 + $0x40] sm:$0xf]
      %v310 = vld [vmem:[%s215 + $0x44] sm:$0xf]
      %v311 = vld [vmem:[%s215 + $0x48] sm:$0xf]
      %v312 = vld [vmem:[%s215 + $0x4c] sm:$0xf]
      %v313 = vld [vmem:[%s215 + $0x50] sm:$0xf]
      %v314 = vld [vmem:[%s215 + $0x54] sm:$0xf]
      %v315 = vld [vmem:[%s215 + $0x58] sm:$0xf]
      %v316 = vld [vmem:[%s215 + $0x5c] sm:$0xf]
      %v317 = vld [vmem:[%s215 + $0x60] sm:$0xf]
      %v318 = vld [vmem:[%s215 + $0x64] sm:$0xf]
      %v319 = vld [vmem:[%s215 + $0x68] sm:$0xf]
      %v320 = vld [vmem:[%s215 + $0x6c] sm:$0xf]
      %v321 = vld [vmem:[%s215 + $0x70] sm:$0xf]
      %v322 = vld [vmem:[%s215 + $0x74] sm:$0xf]
      %v323 = vld [vmem:[%s215 + $0x78] sm:$0xf]
      %v324 = vld [vmem:[%s215 + $0x7c] sm:$0xf]
      %v325 = vld [vmem:[%s215 + $0x80] sm:$0xf]
      %v326 = vld [vmem:[%s215 + $0x84] sm:$0xf]
      %v327 = vld [vmem:[%s215 + $0x88] sm:$0xf]
      %v328 = vld [vmem:[%s215 + $0x8c] sm:$0xf]
      %v329 = vld [vmem:[%s218] sm:$0x1]
      %v331 = vperm.slane %v329, 0
      %v397 = vunpack.c.l.b16 %v229
      %v398 = vunpack.c.h.b16 %v229
      %v399 = vunpack.c.l.b16 %v230
      %v400 = vunpack.c.l.b16 %v231
      %v401 = vunpack.c.h.b16 %v231
      %v402 = vunpack.c.l.b16 %v232
      %v403 = vunpack.c.l.b16 %v233
      %v404 = vunpack.c.h.b16 %v233
      %v405 = vunpack.c.l.b16 %v234
      %v406 = vunpack.c.l.b16 %v235
      %v407 = vunpack.c.h.b16 %v235
      %v408 = vunpack.c.l.b16 %v236
      %v409 = vunpack.c.l.b16 %v237
      %v410 = vunpack.c.h.b16 %v237
      %v411 = vunpack.c.l.b16 %v238
      %v412 = vunpack.c.l.b16 %v239
      %v413 = vunpack.c.h.b16 %v239
      %v414 = vunpack.c.l.b16 %v240
      %v415 = vunpack.c.l.b16 %v241
      %v416 = vunpack.c.h.b16 %v241
      %v417 = vunpack.c.l.b16 %v242
      %v418 = vunpack.c.l.b16 %v243
      %v419 = vunpack.c.h.b16 %v243
      %v420 = vunpack.c.l.b16 %v244
      %v421 = vunpack.c.l.b16 %v245
      %v422 = vunpack.c.h.b16 %v245
      %v423 = vunpack.c.l.b16 %v246
      %v424 = vunpack.c.l.b16 %v247
      %v425 = vunpack.c.h.b16 %v247
      %v426 = vunpack.c.l.b16 %v248
      %v427 = vunpack.c.l.b16 %v249
      %v428 = vunpack.c.h.b16 %v249
      %v429 = vunpack.c.l.b16 %v250
      %v430 = vunpack.c.l.b16 %v251
      %v431 = vunpack.c.h.b16 %v251
      %v432 = vunpack.c.l.b16 %v252
      %v433 = vunpack.c.l.b16 %v253
      %v434 = vunpack.c.h.b16 %v253
      %v435 = vunpack.c.l.b16 %v254
      %v436 = vunpack.c.l.b16 %v255
      %v437 = vunpack.c.h.b16 %v255
      %v438 = vunpack.c.l.b16 %v256
      %v439 = vunpack.c.l.b16 %v257
      %v440 = vunpack.c.h.b16 %v257
      %v441 = vunpack.c.l.b16 %v258
      %v442 = vunpack.c.l.b16 %v259
      %v443 = vunpack.c.h.b16 %v259
      %v444 = vunpack.c.l.b16 %v260
      %v445 = vunpack.c.l.b16 %v261
      %v446 = vunpack.c.h.b16 %v261
      %v447 = vunpack.c.l.b16 %v262
      %v448 = vunpack.c.l.b16 %v263
      %v449 = vunpack.c.h.b16 %v263
      %v450 = vunpack.c.l.b16 %v264
      %v451 = vunpack.c.l.b16 %v265
      %v452 = vunpack.c.h.b16 %v265
      %v453 = vunpack.c.l.b16 %v266
      %v454 = vunpack.c.l.b16 %v267
      %v455 = vunpack.c.h.b16 %v267
      %v456 = vunpack.c.l.b16 %v268
      %v457 = vunpack.c.l.b16 %v269
      %v458 = vunpack.c.h.b16 %v269
      %v459 = vunpack.c.l.b16 %v270
      %v460 = vunpack.c.l.b16 %v271
      %v461 = vunpack.c.h.b16 %v271
      %v462 = vunpack.c.l.b16 %v272
      %v463 = vunpack.c.l.b16 %v273
      %v464 = vunpack.c.h.b16 %v273
      %v465 = vunpack.c.l.b16 %v274
      %v466 = vunpack.c.l.b16 %v275
      %v467 = vunpack.c.h.b16 %v275
      %v468 = vunpack.c.l.b16 %v276
      %v469 = vunpack.c.l.b16 %v277
      %v470 = vunpack.c.h.b16 %v277
      %v471 = vunpack.c.l.b16 %v278
      %v472 = vunpack.c.l.b16 %v279
      %v473 = vunpack.c.h.b16 %v279
      %v474 = vunpack.c.l.b16 %v280
      %v475 = vunpack.c.l.b16 %v281
      %v476 = vunpack.c.h.b16 %v281
      %v477 = vunpack.c.l.b16 %v282
      %v478 = vunpack.c.l.b16 %v283
      %v479 = vunpack.c.h.b16 %v283
      %v480 = vunpack.c.l.b16 %v284
      %v481 = vunpack.c.l.b16 %v285
      %v482 = vunpack.c.h.b16 %v285
      %v483 = vunpack.c.l.b16 %v286
      %v484 = vunpack.c.l.b16 %v287
      %v485 = vunpack.c.h.b16 %v287
      %v486 = vunpack.c.l.b16 %v288
      %v487 = vunpack.c.l.b16 %v289
      %v488 = vunpack.c.h.b16 %v289
      %v489 = vunpack.c.l.b16 %v290
      %v490 = vunpack.c.l.b16 %v291
      %v491 = vunpack.c.h.b16 %v291
      %v492 = vunpack.c.l.b16 %v292
      %v493 = vpack.c.b16 %v400, %v397
      %v494 = vpack.c.b16 %v401, %v398
      %v495 = vpack.c.b16 %v402, %v399
      %v496 = vpack.c.b16 %v406, %v403
      %v497 = vpack.c.b16 %v407, %v404
      %v498 = vpack.c.b16 %v408, %v405
      %v499 = vpack.c.b16 %v412, %v409
      %v500 = vpack.c.b16 %v413, %v410
      %v501 = vpack.c.b16 %v414, %v411
      %v502 = vpack.c.b16 %v418, %v415
      %v503 = vpack.c.b16 %v419, %v416
      %v504 = vpack.c.b16 %v420, %v417
      %v505 = vpack.c.b16 %v424, %v421
      %v506 = vpack.c.b16 %v425, %v422
      %v507 = vpack.c.b16 %v426, %v423
      %v508 = vpack.c.b16 %v430, %v427
      %v509 = vpack.c.b16 %v431, %v428
      %v510 = vpack.c.b16 %v432, %v429
      %v511 = vpack.c.b16 %v436, %v433
      %v512 = vpack.c.b16 %v437, %v434
      %v513 = vpack.c.b16 %v438, %v435
      %v514 = vpack.c.b16 %v442, %v439
      %v515 = vpack.c.b16 %v443, %v440
      %v516 = vpack.c.b16 %v444, %v441
      %v517 = vpack.c.b16 %v448, %v445
      %v518 = vpack.c.b16 %v449, %v446
      %v519 = vpack.c.b16 %v450, %v447
      %v520 = vpack.c.b16 %v454, %v451
      %v521 = vpack.c.b16 %v455, %v452
      %v522 = vpack.c.b16 %v456, %v453
      %v523 = vpack.c.b16 %v460, %v457
      %v524 = vpack.c.b16 %v461, %v458
      %v525 = vpack.c.b16 %v462, %v459
      %v526 = vpack.c.b16 %v466, %v463
      %v527 = vpack.c.b16 %v467, %v464
      %v528 = vpack.c.b16 %v468, %v465
      %v529 = vpack.c.b16 %v472, %v469
      %v530 = vpack.c.b16 %v473, %v470
      %v531 = vpack.c.b16 %v474, %v471
      %v532 = vpack.c.b16 %v478, %v475
      %v533 = vpack.c.b16 %v479, %v476
      %v534 = vpack.c.b16 %v480, %v477
      %v535 = vpack.c.b16 %v484, %v481
      %v536 = vpack.c.b16 %v485, %v482
      %v537 = vpack.c.b16 %v486, %v483
      %v538 = vpack.c.b16 %v490, %v487
      %v539 = vpack.c.b16 %v491, %v488
      %v540 = vpack.c.b16 %v492, %v489
      %v609 = vunpack.c.l.b16 %v293
      %v610 = vunpack.c.l.b16 %v294
      %v611 = vunpack.c.l.b16 %v295
      %v612 = vunpack.c.l.b16 %v296
      %v613 = vunpack.c.l.b16 %v297
      %v614 = vunpack.c.l.b16 %v298
      %v615 = vunpack.c.l.b16 %v299
      %v616 = vunpack.c.l.b16 %v300
      %v617 = vunpack.c.l.b16 %v301
      %v618 = vunpack.c.l.b16 %v302
      %v619 = vunpack.c.l.b16 %v303
      %v620 = vunpack.c.l.b16 %v304
      %v621 = vunpack.c.l.b16 %v305
      %v622 = vunpack.c.l.b16 %v306
      %v623 = vunpack.c.l.b16 %v307
      %v624 = vunpack.c.l.b16 %v308
      %v625 = vunpack.c.l.b16 %v309
      %v626 = vunpack.c.l.b16 %v310
      %v627 = vunpack.c.l.b16 %v311
      %v628 = vunpack.c.l.b16 %v312
      %v629 = vunpack.c.l.b16 %v313
      %v630 = vunpack.c.l.b16 %v314
      %v631 = vunpack.c.l.b16 %v315
      %v632 = vunpack.c.l.b16 %v316
      %v633 = vunpack.c.l.b16 %v317
      %v634 = vunpack.c.l.b16 %v318
      %v635 = vunpack.c.l.b16 %v319
      %v636 = vunpack.c.l.b16 %v320
      %v637 = vunpack.c.l.b16 %v321
      %v638 = vunpack.c.l.b16 %v322
      %v639 = vunpack.c.l.b16 %v323
      %v640 = vunpack.c.l.b16 %v324
      %v641 = vunpack.c.l.b16 %v325
      %v642 = vunpack.c.l.b16 %v326
      %v643 = vunpack.c.l.b16 %v327
      %v644 = vunpack.c.l.b16 %v328
      %v645 = vpack.c.b16 %v610, %v609
      %v646 = vpack.c.b16 %v612, %v611
      %v647 = vpack.c.b16 %v614, %v613
      %v648 = vpack.c.b16 %v616, %v615
      %v649 = vpack.c.b16 %v618, %v617
      %v650 = vpack.c.b16 %v620, %v619
      %v651 = vpack.c.b16 %v622, %v621
      %v652 = vpack.c.b16 %v624, %v623
      %v653 = vpack.c.b16 %v626, %v625
      %v654 = vpack.c.b16 %v628, %v627
      %v655 = vpack.c.b16 %v630, %v629
      %v656 = vpack.c.b16 %v632, %v631
      %v657 = vpack.c.b16 %v634, %v633
      %v658 = vpack.c.b16 %v636, %v635
      %v659 = vpack.c.b16 %v638, %v637
      %v660 = vpack.c.b16 %v640, %v639
      %v661 = vpack.c.b16 %v642, %v641
      %v662 = vpack.c.b16 %v644, %v643
      %vm681 = vcmask 261120
      %v683 = vsel %vm681, %v495, 0
      %v686 = vsel %vm681, %v498, 0
      %v689 = vsel %vm681, %v501, 0
      %v692 = vsel %vm681, %v504, 0
      %v695 = vsel %vm681, %v507, 0
      %v698 = vsel %vm681, %v510, 0
      %v701 = vsel %vm681, %v513, 0
      %v704 = vsel %vm681, %v516, 0
      %v707 = vsel %vm681, %v519, 0
      %v710 = vsel %vm681, %v522, 0
      %v713 = vsel %vm681, %v525, 0
      %v716 = vsel %vm681, %v528, 0
      %v719 = vsel %vm681, %v531, 0
      %v722 = vsel %vm681, %v534, 0
      %v725 = vsel %vm681, %v537, 0
      %v728 = vsel %vm681, %v540, 0
      %730 = vmatpush.bf16.msra.mxu0 %v652
      %731 = vmatpush.bf16.msra.mxu0 %v651
      %732 = vmatpush.bf16.msra.mxu0 %v650
      %733 = vmatpush.bf16.msra.mxu0 %v649
      %734 = vmatpush.bf16.msra.mxu0 %v648
      %735 = vmatpush.bf16.msra.mxu0 %v647
      %736 = vmatpush.bf16.msra.mxu0 %v646
      %737 = vmatpush.bf16.msra.mxu0 %v645
      %738 = vmatmul.bf16.gmra.mxu0 %v493
      %v739 = vpop.f32.mrf.mxu0
      %v740 = vadd.f32 %v331, %v739
      %v741 = vpop.f32.mrf.mxu0
      %v742 = vadd.f32 %v331, %v741
      %743 = vmatmul.bf16.gmra.mxu0 %v496
      %v744 = vpop.f32.mrf.mxu0
      %v745 = vadd.f32 %v331, %v744
      %v746 = vpop.f32.mrf.mxu0
      %v747 = vadd.f32 %v331, %v746
      %748 = vmatmul.bf16.gmra.mxu0 %v499
      %v749 = vpop.f32.mrf.mxu0
      %v750 = vadd.f32 %v331, %v749
      %v751 = vpop.f32.mrf.mxu0
      %v752 = vadd.f32 %v331, %v751
      %753 = vmatmul.bf16.gmra.mxu0 %v502
      %v754 = vpop.f32.mrf.mxu0
      %v755 = vadd.f32 %v331, %v754
      %v756 = vpop.f32.mrf.mxu0
      %v757 = vadd.f32 %v331, %v756
      %758 = vmatmul.bf16.gmra.mxu0 %v505
      %v759 = vpop.f32.mrf.mxu0
      %v760 = vadd.f32 %v331, %v759
      %v761 = vpop.f32.mrf.mxu0
      %v762 = vadd.f32 %v331, %v761
      %763 = vmatmul.bf16.gmra.mxu0 %v508
      %v764 = vpop.f32.mrf.mxu0
      %v765 = vadd.f32 %v331, %v764
      %v766 = vpop.f32.mrf.mxu0
      %v767 = vadd.f32 %v331, %v766
      %768 = vmatmul.bf16.gmra.mxu0 %v511
      %v769 = vpop.f32.mrf.mxu0
      %v770 = vadd.f32 %v331, %v769
      %v771 = vpop.f32.mrf.mxu0
      %v772 = vadd.f32 %v331, %v771
      %773 = vmatmul.bf16.gmra.mxu0 %v514
      %v774 = vpop.f32.mrf.mxu0
      %v775 = vadd.f32 %v331, %v774
      %v776 = vpop.f32.mrf.mxu0
      %v777 = vadd.f32 %v331, %v776
      %778 = vmatmul.bf16.gmra.mxu0 %v517
      %v779 = vpop.f32.mrf.mxu0
      %v780 = vadd.f32 %v331, %v779
      %v781 = vpop.f32.mrf.mxu0
      %v782 = vadd.f32 %v331, %v781
      %783 = vmatmul.bf16.gmra.mxu0 %v520
      %v784 = vpop.f32.mrf.mxu0
      %v785 = vadd.f32 %v331, %v784
      %v786 = vpop.f32.mrf.mxu0
      %v787 = vadd.f32 %v331, %v786
      %788 = vmatmul.bf16.gmra.mxu0 %v523
      %v789 = vpop.f32.mrf.mxu0
      %v790 = vadd.f32 %v331, %v789
      %v791 = vpop.f32.mrf.mxu0
      %v792 = vadd.f32 %v331, %v791
      %793 = vmatmul.bf16.gmra.mxu0 %v526
      %v794 = vpop.f32.mrf.mxu0
      %v795 = vadd.f32 %v331, %v794
      %v796 = vpop.f32.mrf.mxu0
      %v797 = vadd.f32 %v331, %v796
      %798 = vmatmul.bf16.gmra.mxu0 %v529
      %v799 = vpop.f32.mrf.mxu0
      %v800 = vadd.f32 %v331, %v799
      %v801 = vpop.f32.mrf.mxu0
      %v802 = vadd.f32 %v331, %v801
      %803 = vmatmul.bf16.gmra.mxu0 %v532
      %v804 = vpop.f32.mrf.mxu0
      %v805 = vadd.f32 %v331, %v804
      %v806 = vpop.f32.mrf.mxu0
      %v807 = vadd.f32 %v331, %v806
      %808 = vmatmul.bf16.gmra.mxu0 %v535
      %v809 = vpop.f32.mrf.mxu0
      %v810 = vadd.f32 %v331, %v809
      %v811 = vpop.f32.mrf.mxu0
      %v812 = vadd.f32 %v331, %v811
      %813 = vmatmul.bf16.gmra.mxu0 %v538
      %v814 = vpop.f32.mrf.mxu0
      %v815 = vadd.f32 %v331, %v814
      %v816 = vpop.f32.mrf.mxu0
      %v817 = vadd.f32 %v331, %v816
      %818 = vdwg.mxu0
      %819 = vmatpush.bf16.msra.mxu0 %v660
      %820 = vmatpush.bf16.msra.mxu0 %v659
      %821 = vmatpush.bf16.msra.mxu0 %v658
      %822 = vmatpush.bf16.msra.mxu0 %v657
      %823 = vmatpush.bf16.msra.mxu0 %v656
      %824 = vmatpush.bf16.msra.mxu0 %v655
      %825 = vmatpush.bf16.msra.mxu0 %v654
      %826 = vmatpush.bf16.msra.mxu0 %v653
      %827 = vmatmul.bf16.gmra.mxu0 %v494
      %v828 = vpop.f32.mrf.mxu0
      %v829 = vadd.f32 %v740, %v828
      %v830 = vpop.f32.mrf.mxu0
      %v831 = vadd.f32 %v742, %v830
      %832 = vmatmul.bf16.gmra.mxu0 %v497
      %v833 = vpop.f32.mrf.mxu0
      %v834 = vadd.f32 %v745, %v833
      %v835 = vpop.f32.mrf.mxu0
      %v836 = vadd.f32 %v747, %v835
      %837 = vmatmul.bf16.gmra.mxu0 %v500
      %v838 = vpop.f32.mrf.mxu0
      %v839 = vadd.f32 %v750, %v838
      %v840 = vpop.f32.mrf.mxu0
      %v841 = vadd.f32 %v752, %v840
      %842 = vmatmul.bf16.gmra.mxu0 %v503
      %v843 = vpop.f32.mrf.mxu0
      %v844 = vadd.f32 %v755, %v843
      %v845 = vpop.f32.mrf.mxu0
      %v846 = vadd.f32 %v757, %v845
      %847 = vmatmul.bf16.gmra.mxu0 %v506
      %v848 = vpop.f32.mrf.mxu0
      %v849 = vadd.f32 %v760, %v848
      %v850 = vpop.f32.mrf.mxu0
      %v851 = vadd.f32 %v762, %v850
      %852 = vmatmul.bf16.gmra.mxu0 %v509
      %v853 = vpop.f32.mrf.mxu0
      %v854 = vadd.f32 %v765, %v853
      %v855 = vpop.f32.mrf.mxu0
      %v856 = vadd.f32 %v767, %v855
      %857 = vmatmul.bf16.gmra.mxu0 %v512
      %v858 = vpop.f32.mrf.mxu0
      %v859 = vadd.f32 %v770, %v858
      %v860 = vpop.f32.mrf.mxu0
      %v861 = vadd.f32 %v772, %v860
      %862 = vmatmul.bf16.gmra.mxu0 %v515
      %v863 = vpop.f32.mrf.mxu0
      %v864 = vadd.f32 %v775, %v863
      %v865 = vpop.f32.mrf.mxu0
      %v866 = vadd.f32 %v777, %v865
      %867 = vmatmul.bf16.gmra.mxu0 %v518
      %v868 = vpop.f32.mrf.mxu0
      %v869 = vadd.f32 %v780, %v868
      %v870 = vpop.f32.mrf.mxu0
      %v871 = vadd.f32 %v782, %v870
      %872 = vmatmul.bf16.gmra.mxu0 %v521
      %v873 = vpop.f32.mrf.mxu0
      %v874 = vadd.f32 %v785, %v873
      %v875 = vpop.f32.mrf.mxu0
      %v876 = vadd.f32 %v787, %v875
      %877 = vmatmul.bf16.gmra.mxu0 %v524
      %v878 = vpop.f32.mrf.mxu0
      %v879 = vadd.f32 %v790, %v878
      %v880 = vpop.f32.mrf.mxu0
      %v881 = vadd.f32 %v792, %v880
      %882 = vmatmul.bf16.gmra.mxu0 %v527
      %v883 = vpop.f32.mrf.mxu0
      %v884 = vadd.f32 %v795, %v883
      %v885 = vpop.f32.mrf.mxu0
      %v886 = vadd.f32 %v797, %v885
      %887 = vmatmul.bf16.gmra.mxu0 %v530
      %v888 = vpop.f32.mrf.mxu0
      %v889 = vadd.f32 %v800, %v888
      %v890 = vpop.f32.mrf.mxu0
      %v891 = vadd.f32 %v802, %v890
      %892 = vmatmul.bf16.gmra.mxu0 %v533
      %v893 = vpop.f32.mrf.mxu0
      %v894 = vadd.f32 %v805, %v893
      %v895 = vpop.f32.mrf.mxu0
      %v896 = vadd.f32 %v807, %v895
      %897 = vmatmul.bf16.gmra.mxu0 %v536
      %v898 = vpop.f32.mrf.mxu0
      %v899 = vadd.f32 %v810, %v898
      %v900 = vpop.f32.mrf.mxu0
      %v901 = vadd.f32 %v812, %v900
      %902 = vmatmul.bf16.gmra.mxu0 %v539
      %v903 = vpop.f32.mrf.mxu0
      %v904 = vadd.f32 %v815, %v903
      %v905 = vpop.f32.mrf.mxu0
      %v906 = vadd.f32 %v817, %v905
      %907 = vdwg.mxu0
      %908 = vmatpush.bf16.msra.mxu0 0
      %909 = vmatpush.bf16.msra.mxu0 0
      %910 = vmatpush.bf16.msra.mxu0 0
      %911 = vmatpush.bf16.msra.mxu0 0
      %912 = vmatpush.bf16.msra.mxu0 0
      %913 = vmatpush.bf16.msra.mxu0 0
      %914 = vmatpush.bf16.msra.mxu0 %v662
      %915 = vmatpush.bf16.msra.mxu0 %v661
      %916 = vmatmul.bf16.gmra.mxu0 %v683
      %v917 = vpop.f32.mrf.mxu0
      %v918 = vadd.f32 %v829, %v917
      %v919 = vpop.f32.mrf.mxu0
      %v920 = vadd.f32 %v831, %v919
      %921 = vmatmul.bf16.gmra.mxu0 %v686
      %v922 = vpop.f32.mrf.mxu0
      %v923 = vadd.f32 %v834, %v922
      %v924 = vpop.f32.mrf.mxu0
      %v925 = vadd.f32 %v836, %v924
      %926 = vmatmul.bf16.gmra.mxu0 %v689
      %v927 = vpop.f32.mrf.mxu0
      %v928 = vadd.f32 %v839, %v927
      %v929 = vpop.f32.mrf.mxu0
      %v930 = vadd.f32 %v841, %v929
      %931 = vmatmul.bf16.gmra.mxu0 %v692
      %v932 = vpop.f32.mrf.mxu0
      %v933 = vadd.f32 %v844, %v932
      %v934 = vpop.f32.mrf.mxu0
      %v935 = vadd.f32 %v846, %v934
      %936 = vmatmul.bf16.gmra.mxu0 %v695
      %v937 = vpop.f32.mrf.mxu0
      %v938 = vadd.f32 %v849, %v937
      %v939 = vpop.f32.mrf.mxu0
      %v940 = vadd.f32 %v851, %v939
      %941 = vmatmul.bf16.gmra.mxu0 %v698
      %v942 = vpop.f32.mrf.mxu0
      %v943 = vadd.f32 %v854, %v942
      %v944 = vpop.f32.mrf.mxu0
      %v945 = vadd.f32 %v856, %v944
      %946 = vmatmul.bf16.gmra.mxu0 %v701
      %v947 = vpop.f32.mrf.mxu0
      %v948 = vadd.f32 %v859, %v947
      %v949 = vpop.f32.mrf.mxu0
      %v950 = vadd.f32 %v861, %v949
      %951 = vmatmul.bf16.gmra.mxu0 %v704
      %v952 = vpop.f32.mrf.mxu0
      %v953 = vadd.f32 %v864, %v952
      %v954 = vpop.f32.mrf.mxu0
      %v955 = vadd.f32 %v866, %v954
      %956 = vmatmul.bf16.gmra.mxu0 %v707
      %v957 = vpop.f32.mrf.mxu0
      %v958 = vadd.f32 %v869, %v957
      %v959 = vpop.f32.mrf.mxu0
      %v960 = vadd.f32 %v871, %v959
      %961 = vmatmul.bf16.gmra.mxu0 %v710
      %v962 = vpop.f32.mrf.mxu0
      %v963 = vadd.f32 %v874, %v962
      %v964 = vpop.f32.mrf.mxu0
      %v965 = vadd.f32 %v876, %v964
      %966 = vmatmul.bf16.gmra.mxu0 %v713
      %v967 = vpop.f32.mrf.mxu0
      %v968 = vadd.f32 %v879, %v967
      %v969 = vpop.f32.mrf.mxu0
      %v970 = vadd.f32 %v881, %v969
      %971 = vmatmul.bf16.gmra.mxu0 %v716
      %v972 = vpop.f32.mrf.mxu0
      %v973 = vadd.f32 %v884, %v972
      %v974 = vpop.f32.mrf.mxu0
      %v975 = vadd.f32 %v886, %v974
      %976 = vmatmul.bf16.gmra.mxu0 %v719
      %v977 = vpop.f32.mrf.mxu0
      %v978 = vadd.f32 %v889, %v977
      %v979 = vpop.f32.mrf.mxu0
      %v980 = vadd.f32 %v891, %v979
      %981 = vmatmul.bf16.gmra.mxu0 %v722
      %v982 = vpop.f32.mrf.mxu0
      %v983 = vadd.f32 %v894, %v982
      %v984 = vpop.f32.mrf.mxu0
      %v985 = vadd.f32 %v896, %v984
      %986 = vmatmul.bf16.gmra.mxu0 %v725
      %v987 = vpop.f32.mrf.mxu0
      %v988 = vadd.f32 %v899, %v987
      %v989 = vpop.f32.mrf.mxu0
      %v990 = vadd.f32 %v901, %v989
      %991 = vmatmul.bf16.gmra.mxu0 %v728
      %v992 = vpop.f32.mrf.mxu0
      %v993 = vadd.f32 %v904, %v992
      %v994 = vpop.f32.mrf.mxu0
      %v995 = vadd.f32 %v906, %v994
      %996 = vdwg.mxu0
      %v997 = vmax.f32 %v918, 0.0
      %v998 = vmax.f32 %v920, 0.0
      %v999 = vmax.f32 %v923, 0.0
      %v1000 = vmax.f32 %v925, 0.0
      %v1001 = vmax.f32 %v928, 0.0
      %v1002 = vmax.f32 %v930, 0.0
      %v1003 = vmax.f32 %v933, 0.0
      %v1004 = vmax.f32 %v935, 0.0
      %v1005 = vmax.f32 %v938, 0.0
      %v1006 = vmax.f32 %v940, 0.0
      %v1007 = vmax.f32 %v943, 0.0
      %v1008 = vmax.f32 %v945, 0.0
      %v1009 = vmax.f32 %v948, 0.0
      %v1010 = vmax.f32 %v950, 0.0
      %v1011 = vmax.f32 %v953, 0.0
      %v1012 = vmax.f32 %v955, 0.0
      %v1013 = vmax.f32 %v958, 0.0
      %v1014 = vmax.f32 %v960, 0.0
      %v1015 = vmax.f32 %v963, 0.0
      %v1016 = vmax.f32 %v965, 0.0
      %v1017 = vmax.f32 %v968, 0.0
      %v1018 = vmax.f32 %v970, 0.0
      %v1019 = vmax.f32 %v973, 0.0
      %v1020 = vmax.f32 %v975, 0.0
      %v1021 = vmax.f32 %v978, 0.0
      %v1022 = vmax.f32 %v980, 0.0
      %v1023 = vmax.f32 %v983, 0.0
      %v1024 = vmax.f32 %v985, 0.0
      %v1025 = vmax.f32 %v988, 0.0
      %v1026 = vmax.f32 %v990, 0.0
      %v1027 = vmax.f32 %v993, 0.0
      %v1028 = vmax.f32 %v995, 0.0
      %v1029 = vpack.c.bf16 %v997, %v997
      %v1030 = vpack.c.bf16 %v998, %v998
      %v1031 = vpack.c.bf16 %v999, %v999
      %v1032 = vpack.c.bf16 %v1000, %v1000
      %v1033 = vpack.c.bf16 %v1001, %v1001
      %v1034 = vpack.c.bf16 %v1002, %v1002
      %v1035 = vpack.c.bf16 %v1003, %v1003
      %v1036 = vpack.c.bf16 %v1004, %v1004
      %v1037 = vpack.c.bf16 %v1005, %v1005
      %v1038 = vpack.c.bf16 %v1006, %v1006
      %v1039 = vpack.c.bf16 %v1007, %v1007
      %v1040 = vpack.c.bf16 %v1008, %v1008
      %v1041 = vpack.c.bf16 %v1009, %v1009
      %v1042 = vpack.c.bf16 %v1010, %v1010
      %v1043 = vpack.c.bf16 %v1011, %v1011
      %v1044 = vpack.c.bf16 %v1012, %v1012
      %v1045 = vpack.c.bf16 %v1013, %v1013
      %v1046 = vpack.c.bf16 %v1014, %v1014
      %v1047 = vpack.c.bf16 %v1015, %v1015
      %v1048 = vpack.c.bf16 %v1016, %v1016
      %v1049 = vpack.c.bf16 %v1017, %v1017
      %v1050 = vpack.c.bf16 %v1018, %v1018
      %v1051 = vpack.c.bf16 %v1019, %v1019
      %v1052 = vpack.c.bf16 %v1020, %v1020
      %v1053 = vpack.c.bf16 %v1021, %v1021
      %v1054 = vpack.c.bf16 %v1022, %v1022
      %v1055 = vpack.c.bf16 %v1023, %v1023
      %v1056 = vpack.c.bf16 %v1024, %v1024
      %v1057 = vpack.c.bf16 %v1025, %v1025
      %v1058 = vpack.c.bf16 %v1026, %v1026
      %v1059 = vpack.c.bf16 %v1027, %v1027
      %v1060 = vpack.c.bf16 %v1028, %v1028
      %1061 = vst [vmem:[%s226] sm:$0xf] %v1029
      %1062 = vst [vmem:[%s226 + $0x4] sm:$0xf] %v1030
      %1063 = vst [vmem:[%s226 + $0x8] sm:$0xf] %v1031
      %1064 = vst [vmem:[%s226 + $0xc] sm:$0xf] %v1032
      %1065 = vst [vmem:[%s226 + $0x10] sm:$0xf] %v1033
      %1066 = vst [vmem:[%s226 + $0x14] sm:$0xf] %v1034
      %1067 = vst [vmem:[%s226 + $0x18] sm:$0xf] %v1035
      %1068 = vst [vmem:[%s226 + $0x1c] sm:$0xf] %v1036
      %1069 = vst [vmem:[%s226 + $0x20] sm:$0xf] %v1037
      %1070 = vst [vmem:[%s226 + $0x24] sm:$0xf] %v1038
      %1071 = vst [vmem:[%s226 + $0x28] sm:$0xf] %v1039
      %1072 = vst [vmem:[%s226 + $0x2c] sm:$0xf] %v1040
      %1073 = vst [vmem:[%s226 + $0x30] sm:$0xf] %v1041
      %1074 = vst [vmem:[%s226 + $0x34] sm:$0xf] %v1042
      %1075 = vst [vmem:[%s226 + $0x38] sm:$0xf] %v1043
      %1076 = vst [vmem:[%s226 + $0x3c] sm:$0xf] %v1044
      %1077 = vst [vmem:[%s226 + $0x40] sm:$0xf] %v1045
      %1078 = vst [vmem:[%s226 + $0x44] sm:$0xf] %v1046
      %1079 = vst [vmem:[%s226 + $0x48] sm:$0xf] %v1047
      %1080 = vst [vmem:[%s226 + $0x4c] sm:$0xf] %v1048
      %1081 = vst [vmem:[%s226 + $0x50] sm:$0xf] %v1049
      %1082 = vst [vmem:[%s226 + $0x54] sm:$0xf] %v1050
      %1083 = vst [vmem:[%s226 + $0x58] sm:$0xf] %v1051
      %1084 = vst [vmem:[%s226 + $0x5c] sm:$0xf] %v1052
      %1085 = vst [vmem:[%s226 + $0x60] sm:$0xf] %v1053
      %1086 = vst [vmem:[%s226 + $0x64] sm:$0xf] %v1054
      %1087 = vst [vmem:[%s226 + $0x68] sm:$0xf] %v1055
      %1088 = vst [vmem:[%s226 + $0x6c] sm:$0xf] %v1056
      %1089 = vst [vmem:[%s226 + $0x70] sm:$0xf] %v1057
      %1090 = vst [vmem:[%s226 + $0x74] sm:$0xf] %v1058
      %1091 = vst [vmem:[%s226 + $0x78] sm:$0xf] %v1059
      %1092 = vst [vmem:[%s226 + $0x7c] sm:$0xf] %v1060
      %s1093 = smul.u32 32, %s18
      %p1094 = scmp.lt.s32.totalorder %s1093, 63
      %s1095 = scalar_select %p1094, %s1093, 63
      %p1096 = scmp.lt.s32.totalorder %s19, 0
      %s1097 = scalar_select %p1096, %s19, 0
      %s1098 = sadd.s32 %s1097, %s1095
      %s1099 = smul.addr %s1098, 4
      %s1100 = scalar_lea.vmem %s3, %s1099
      // Predicated region
      $region33: #{shading_net_forward.22} parent=31 // pred_check
        %p1101 = pneg %p124
      $region34: #{shading_net_forward.22} parent=31 // pred_check_branch
        %1103 = sbr.rel (%p1101) target = $region36
      $region35: #{shading_net_forward.22} parent=31 // pred_region
        %s1104 = smul.u32 32, %s18
      $region36: #{shading_net_forward.22} parent=31 // pred_fallthru
        _
    $region32: #{shading_net_forward.22} parent=5 // pred_fallthru
      _
    %p1105 = scmp.le.s32.totalorder 2, %s9
    // Predicated region
    $region37: #{shading_net_forward.22} parent=5 // pred_check
      %p1106 = pneg %p1105
    $region38: #{shading_net_forward.22} parent=5 // pred_check_branch
      %1108 = sbr.rel (%p1106) target = $region40
    $region39: #{shading_net_forward.22} parent=5 // pred_region
      %s1109 = ssub.s32 %s9, 2
      // Predicated region
      $region41: #{shading_net_forward.22} parent=39 // pred_check
        %p1110 = pneg %p130
      $region42: #{shading_net_forward.22} parent=39 // pred_check_branch
        %1112 = sbr.rel (%p1110) target = $region44
      $region43: #{shading_net_forward.22} parent=39 // pred_region
        %s1113 = smul.u32 32, %s20
        %p1114 = scmp.lt.s32.totalorder %s1113, 63
        %s1115 = scalar_select %p1114, %s1113, 63
        %p1116 = scmp.lt.s32.totalorder %s21, 0
        %s1117 = scalar_select %p1116, %s21, 0
        %s1118 = sadd.s32 %s1117, %s1115
        %s1119 = smul.addr %s1118, 4
        %s1120 = scalar_lea.vmem %s3, %s1119
      $region44: #{shading_net_forward.22} parent=39 // pred_fallthru
        _
    $region40: #{shading_net_forward.22} parent=5 // pred_fallthru
      _
  $region6: #{shading_net_forward.22} parent=0 // loop_footer
    %s13 = sadd.s32 1, %s9
  $region7: #{shading_net_forward.22} parent=0 // loop_footer_branch
    %8 = sbr.rel target = $region3
  $region8: #{shading_net_forward.22} parent=0 // loop_exit
    _

// kernel: shading_net_forward.23
$region0: #{shading_net_forward.23}
  #allocation0 [shape = 'u32[]', space=smem, size = 0x4, offset = 0x4, fixed_abs, tag = 'smem constant byte address 0x4 - core index']
  #allocation1 [shape = 'u32[72,128]{1,0:T(1,128)}', space=vmem, size = 0x9000, scoped, tag = 'internal scratch']
  #allocation2 [shape = 'f32[1,1]{1,0:T(1,128)S(1)}', space=vmem, size = 0x200, scoped, tag = 'scoped memory for shading_net_forward.23']
  %s0 = inlined_call_operand.vmem [shape: bf16[1,144], index: 0, kind: input, shape index: {}]
  %s1 = inlined_call_operand.vmem [shape: bf16[144,2048], index: 1, kind: input, shape index: {}]
  %s2 = inlined_call_operand.<no memory space> [shape: f32[1,1], index: 2, kind: input, shape index: {}]
  %s3 = inlined_call_operand.vmem [shape: f32[1,2048], index: 3, kind: input, shape index: {}]
  %s4 = inlined_call_operand.vmem [shape: f32[1,2048], index: 4, kind: output, shape index: {}]
  %s5 = sld [smem:[#allocation0]]
  $region72: #{shading_net_forward.23} parent=0
    _
  %s7 = ssub.s32 1, %s5
  %s8 = scalar_select 0, %s7, %s5
  %v9 = vstv %s2
  %10 = vst [vmem:[#allocation2] sm:$0x1] %v9
  $region1: #{shading_net_forward.23} parent=0
    #allocation3 [shape = 'u8[589824]{0}', space=vmem, size = 0x90000, scoped, tag = 'input window, operand 1']
    loop: start=0, step=1, limit=4
    $region2: #{shading_net_forward.23} parent=1 // loop_pre_header
      _
    $region3: #{shading_net_forward.23} parent=1 // loop_header
      %s12 = sphi 0, %s16
      %p13 = scmp.ge.s32.totalorder %s12, 4
      %s20 = sphi 0, %s20
      %s22 = sphi 0, %s20
      %s23 = sphi 0, %s22
      %s37 = sphi 0, %s23
      %s43 = sphi 0, %s45
      %s46 = sphi 0, %s43
      %s47 = sphi 0, %s46
      %s63 = sphi 0, %s47
      %s67 = sphi 0, %s67
      %s69 = sphi 0, %s67
      %s70 = sphi 0, %s69
      %s84 = sphi 0, %s70
      %s90 = sphi 0, %s92
      %s93 = sphi 0, %s90
      %s94 = sphi 0, %s93
      %s110 = sphi 0, %s94
      %s116 = sphi 0, %s118
      %s119 = sphi 0, %s116
      %s120 = sphi 0, %s119
      %s136 = sphi 0, %s120
    $region4: #{shading_net_forward.23} parent=1 // loop_header_branch
      %15 = sbr.rel (%p13) target = $region8
    $region5: #{shading_net_forward.23} parent=1 // loop_body
      %s17 = ssub.s32 %s12, 1
      %s18 = ssub.s32 %s12, 2
      %s19 = sadd.s32 %s12, 1
      %s21 = sadd.s32 %s20, 1
      %p24 = scmp.eq.s32.totalorder %s12, 1
      %p25 = scmp.ne.s32.totalorder %s20, %s22
      %p26 = scmp.eq.s32.totalorder %s12, 0
      %p27 = por %p25, %p26
      %p28 = scmp.ne.s32.totalorder %s20, %s22
      %p29 = scmp.eq.s32.totalorder %s17, 1
      %p30 = por %p28, %p29
      %p31 = scmp.ne.s32.totalorder %s22, %s23
      %p32 = scmp.eq.s32.totalorder %s17, 0
      %p33 = por %p31, %p32
      %p34 = scmp.ne.s32.totalorder %s22, %s23
      %p35 = scmp.eq.s32.totalorder %s18, 1
      %p36 = por %p34, %p35
      %p38 = scmp.ne.s32.totalorder %s23, %s37
      %p39 = scmp.eq.s32.totalorder %s18, 0
      %p40 = por %p38, %p39
      %s41 = ssub.s32 %s12, %s19
      %p42 = scmp.eq.s32.totalorder %s41, 0
      %s44 = sadd.s32 %s43, 1
      %s45 = scalar_select %p42, %s43, %s44
      %p48 = pneg %p42
      %p49 = scmp.eq.s32.totalorder %s12, 1
      %p50 = por %p48, %p49
      %p51 = scmp.ne.s32.totalorder %s43, %s46
      %p52 = scmp.eq.s32.totalorder %s12, 0
      %p53 = por %p51, %p52
      %p54 = scmp.ne.s32.totalorder %s43, %s46
      %p55 = scmp.eq.s32.totalorder %s17, 1
      %p56 = por %p54, %p55
      %p57 = scmp.ne.s32.totalorder %s46, %s47
      %p58 = scmp.eq.s32.totalorder %s17, 0
      %p59 = por %p57, %p58
      %p60 = scmp.ne.s32.totalorder %s46, %s47
      %p61 = scmp.eq.s32.totalorder %s18, 1
      %p62 = por %p60, %p61
      %p64 = scmp.ne.s32.totalorder %s47, %s63
      %p65 = scmp.eq.s32.totalorder %s18, 0
      %p66 = por %p64, %p65
      %s68 = sadd.s32 %s67, 1
      %p71 = scmp.eq.s32.totalorder %s12, 1
      %p72 = scmp.ne.s32.totalorder %s67, %s69
      %p73 = scmp.eq.s32.totalorder %s12, 0
      %p74 = por %p72, %p73
      %p75 = scmp.ne.s32.totalorder %s67, %s69
      %p76 = scmp.eq.s32.totalorder %s17, 1
      %p77 = por %p75, %p76
      %p78 = scmp.ne.s32.totalorder %s69, %s70
      %p79 = scmp.eq.s32.totalorder %s17, 0
      %p80 = por %p78, %p79
      %p81 = scmp.ne.s32.totalorder %s69, %s70
      %p82 = scmp.eq.s32.totalorder %s18, 1
      %p83 = por %p81, %p82
      %p85 = scmp.ne.s32.totalorder %s70, %s84
      %p86 = scmp.eq.s32.totalorder %s18, 0
      %p87 = por %p85, %p86
      %s88 = ssub.s32 %s12, %s19
      %p89 = scmp.eq.s32.totalorder %s88, 0
      %s91 = sadd.s32 %s90, 1
      %s92 = scalar_select %p89, %s90, %s91
      %p95 = pneg %p89
      %p96 = scmp.eq.s32.totalorder %s12, 1
      %p97 = por %p95, %p96
      %p98 = scmp.ne.s32.totalorder %s90, %s93
      %p99 = scmp.eq.s32.totalorder %s12, 0
      %p100 = por %p98, %p99
      %p101 = scmp.ne.s32.totalorder %s90, %s93
      %p102 = scmp.eq.s32.totalorder %s17, 1
      %p103 = por %p101, %p102
      %p104 = scmp.ne.s32.totalorder %s93, %s94
      %p105 = scmp.eq.s32.totalorder %s17, 0
      %p106 = por %p104, %p105
      %p107 = scmp.ne.s32.totalorder %s93, %s94
      %p108 = scmp.eq.s32.totalorder %s18, 1
      %p109 = por %p107, %p108
      %p111 = scmp.ne.s32.totalorder %s94, %s110
      %p112 = scmp.eq.s32.totalorder %s18, 0
      %p113 = por %p111, %p112
      %s114 = ssub.s32 %s12, %s19
      %p115 = scmp.eq.s32.totalorder %s114, 0
      %s117 = sadd.s32 %s116, 1
      %s118 = scalar_select %p115, %s116, %s117
      %p121 = pneg %p115
      %p122 = scmp.eq.s32.totalorder %s12, 1
      %p123 = por %p121, %p122
      %p124 = scmp.ne.s32.totalorder %s116, %s119
      %p125 = scmp.eq.s32.totalorder %s12, 0
      %p126 = por %p124, %p125
      %p127 = scmp.ne.s32.totalorder %s116, %s119
      %p128 = scmp.eq.s32.totalorder %s17, 1
      %p129 = por %p127, %p128
      %p130 = scmp.ne.s32.totalorder %s119, %s120
      %p131 = scmp.eq.s32.totalorder %s17, 0
      %p132 = por %p130, %p131
      %p133 = scmp.ne.s32.totalorder %s119, %s120
      %p134 = scmp.eq.s32.totalorder %s18, 1
      %p135 = por %p133, %p134
      %p137 = scmp.ne.s32.totalorder %s120, %s136
      %p138 = scmp.eq.s32.totalorder %s18, 0
      %p139 = por %p137, %p138
      %p140 = scmp.le.s32.totalorder 1, %s12
      %p141 = scmp.lt.s32.totalorder %s12, 3
      %p142 = pnand %p140, %p141
      %p143 = pneg %p142
      // Predicated region
      $region9: #{shading_net_forward.23} parent=5 // pred_check
        _
      $region10: #{shading_net_forward.23} parent=5 // pred_check_branch
        %145 = sbr.rel (%p142) target = $region12
      $region11: #{shading_net_forward.23} parent=5 // pred_region
        %s146 = ssub.s32 %s12, 1
        // Predicated region
        $region13: #{shading_net_forward.23} parent=11 // pred_check
          %p147 = pneg %p33
        $region14: #{shading_net_forward.23} parent=11 // pred_check_branch
          %149 = sbr.rel (%p147) target = $region16
        $region15: #{shading_net_forward.23} parent=11 // pred_region
          _
        $region16: #{shading_net_forward.23} parent=11 // pred_fallthru
          _
        // Predicated region
        $region17: #{shading_net_forward.23} parent=11 // pred_check
          %p150 = pneg %p80
        $region18: #{shading_net_forward.23} parent=11 // pred_check_branch
          %152 = sbr.rel (%p150) target = $region20
        $region19: #{shading_net_forward.23} parent=11 // pred_region
          _
        $region20: #{shading_net_forward.23} parent=11 // pred_fallthru
          _
      $region12: #{shading_net_forward.23} parent=5 // pred_fallthru
        _
      %p153 = scmp.lt.s32.totalorder %s12, 2
      // Predicated region
      $region21: #{shading_net_forward.23} parent=5 // pred_check
        %p154 = pneg %p153
      $region22: #{shading_net_forward.23} parent=5 // pred_check_branch
        %156 = sbr.rel (%p154) target = $region24
      $region23: #{shading_net_forward.23} parent=5 // pred_region
        // Predicated region
        $region25: #{shading_net_forward.23} parent=23 // pred_check
          %p157 = pneg %p53
        $region26: #{shading_net_forward.23} parent=23 // pred_check_branch
          %159 = sbr.rel (%p157) target = $region28
        $region27: #{shading_net_forward.23} parent=23 // pred_region
          %s160 = sand.u32 %s43, 1
          %s161 = sand.u32 %s43, 1
          %s162 = smul.addr %s161, 576
          %s163 = scalar_lea.vmem [#allocation3], %s162
          %s164 = smul.u32 8, %s12
          %s165 = smul.addr %s164, 4
          %s166 = scalar_lea.vmem %s1, %s165
          // Predicated region
          $region29: #{shading_net_forward.23} parent=27 // pred_check
            _
          $region30: #{shading_net_forward.23} parent=27 // pred_check_branch
            %168 = sbr.rel (0) target = $region32
          $region31: #{shading_net_forward.23} parent=27 // pred_region
            // Predicated region
            $region33: #{shading_net_forward.23} parent=31 // pred_check
              _
            $region34: #{shading_net_forward.23} parent=31 // pred_check_branch
              %170 = sbr.rel (0) target = $region36
            $region35: #{shading_net_forward.23} parent=31 // pred_region
              loop: start=0, step=1, limit=1
              $region37: #{shading_net_forward.23} parent=35 // loop_pre_header
                _
              $region38: #{shading_net_forward.23} parent=35 // loop_header
                %s172 = sphi 0, %s176
                %p173 = scmp.ge.s32.totalorder %s172, 1
                %s177 = sphi %s166, %s166
                %s178 = sphi %s163, %s163
              $region39: #{shading_net_forward.23} parent=35 // loop_header_branch
                %175 = sbr.rel (%p173) target = $region43
              $region40: #{shading_net_forward.23} parent=35 // loop_body
                %v179 = vld [vmem:[%s177] sm:$0xff]
                %180 = vst [vmem:[%s178] sm:$0xff] %v179
                %v181 = vld [vmem:[%s177 + $0x8] sm:$0xff]
                %182 = vst [vmem:[%s178 + $0x8] sm:$0xff] %v181
                %v183 = vld [vmem:[%s177 + $0x10] sm:$0xff]
                %184 = vst [vmem:[%s178 + $0x10] sm:$0xff] %v183
                %v185 = vld [vmem:[%s177 + $0x18] sm:$0xff]
                %186 = vst [vmem:[%s178 + $0x18] sm:$0xff] %v185
                %v187 = vld [vmem:[%s177 + $0x40] sm:$0xff]
                %188 = vst [vmem:[%s178 + $0x20] sm:$0xff] %v187
                %v189 = vld [vmem:[%s177 + $0x48] sm:$0xff]
                %190 = vst [vmem:[%s178 + $0x28] sm:$0xff] %v189
                %v191 = vld [vmem:[%s177 + $0x50] sm:$0xff]
                %192 = vst [vmem:[%s178 + $0x30] sm:$0xff] %v191
                %v193 = vld [vmem:[%s177 + $0x58] sm:$0xff]
                %194 = vst [vmem:[%s178 + $0x38] sm:$0xff] %v193
                %v195 = vld [vmem:[%s177 + $0x80] sm:$0xff]
                %196 = vst [vmem:[%s178 + $0x40] sm:$0xff] %v195
                %v197 = vld [vmem:[%s177 + $0x88] sm:$0xff]
                %198 = vst [vmem:[%s178 + $0x48] sm:$0xff] %v197
                %v199 = vld [vmem:[%s177 + $0x90] sm:$0xff]
                %200 = vst [vmem:[%s178 + $0x50] sm:$0xff] %v199
                %v201 = vld [vmem:[%s177 + $0x98] sm:$0xff]
                %202 = vst [vmem:[%s178 + $0x58] sm:$0xff] %v201
                %v203 = vld [vmem:[%s177 + $0xc0] sm:$0xff]
                %204 = vst [vmem:[%s178 + $0x60] sm:$0xff] %v203
                %v205 = vld [vmem:[%s177 + $0xc8] sm:$0xff]
                %206 = vst [vmem:[%s178 + $0x68] sm:$0xff] %v205
                %v207 = vld [vmem:[%s177 + $0xd0] sm:$0xff]
                %208 = vst [vmem:[%s178 + $0x70] sm:$0xff] %v207
                %v209 = vld [vmem:[%s177 + $0xd8] sm:$0xff]
                %210 = vst [vmem:[%s178 + $0x78] sm:$0xff] %v209
                %v211 = vld [vmem:[%s177 + $0x100] sm:$0xff]
                %212 = vst [vmem:[%s178 + $0x80] sm:$0xff] %v211
                %v213 = vld [vmem:[%s177 + $0x108] sm:$0xff]
                %214 = vst [vmem:[%s178 + $0x88] sm:$0xff] %v213
                %v215 = vld [vmem:[%s177 + $0x110] sm:$0xff]
                %216 = vst [vmem:[%s178 + $0x90] sm:$0xff] %v215
                %v217 = vld [vmem:[%s177 + $0x118] sm:$0xff]
                %218 = vst [vmem:[%s178 + $0x98] sm:$0xff] %v217
                %v219 = vld [vmem:[%s177 + $0x140] sm:$0xff]
                %220 = vst [vmem:[%s178 + $0xa0] sm:$0xff] %v219
                %v221 = vld [vmem:[%s177 + $0x148] sm:$0xff]
                %222 = vst [vmem:[%s178 + $0xa8] sm:$0xff] %v221
                %v223 = vld [vmem:[%s177 + $0x150] sm:$0xff]
                %224 = vst [vmem:[%s178 + $0xb0] sm:$0xff] %v223
                %v225 = vld [vmem:[%s177 + $0x158] sm:$0xff]
                %226 = vst [vmem:[%s178 + $0xb8] sm:$0xff] %v225
                %v227 = vld [vmem:[%s177 + $0x180] sm:$0xff]
                %228 = vst [vmem:[%s178 + $0xc0] sm:$0xff] %v227
                %v229 = vld [vmem:[%s177 + $0x188] sm:$0xff]
                %230 = vst [vmem:[%s178 + $0xc8] sm:$0xff] %v229
                %v231 = vld [vmem:[%s177 + $0x190] sm:$0xff]
                %232 = vst [vmem:[%s178 + $0xd0] sm:$0xff] %v231
                %v233 = vld [vmem:[%s177 + $0x198] sm:$0xff]
                %234 = vst [vmem:[%s178 + $0xd8] sm:$0xff] %v233
                %v235 = vld [vmem:[%s177 + $0x1c0] sm:$0xff]
                %236 = vst [vmem:[%s178 + $0xe0] sm:$0xff] %v235
                %v237 = vld [vmem:[%s177 + $0x1c8] sm:$0xff]
                %238 = vst [vmem:[%s178 + $0xe8] sm:$0xff] %v237
                %v239 = vld [vmem:[%s177 + $0x1d0] sm:$0xff]
                %240 = vst [vmem:[%s178 + $0xf0] sm:$0xff] %v239
                %v241 = vld [vmem:[%s177 + $0x1d8] sm:$0xff]
                %242 = vst [vmem:[%s178 + $0xf8] sm:$0xff] %v241
                %v243 = vld [vmem:[%s177 + $0x200] sm:$0xff]
                %244 = vst [vmem:[%s178 + $0x100] sm:$0xff] %v243
                %v245 = vld [vmem:[%s177 + $0x208] sm:$0xff]
                %246 = vst [vmem:[%s178 + $0x108] sm:$0xff] %v245
                %v247 = vld [vmem:[%s177 + $0x210] sm:$0xff]
                %248 = vst [vmem:[%s178 + $0x110] sm:$0xff] %v247
                %v249 = vld [vmem:[%s177 + $0x218] sm:$0xff]
                %250 = vst [vmem:[%s178 + $0x118] sm:$0xff] %v249
                %v251 = vld [vmem:[%s177 + $0x240] sm:$0xff]
                %252 = vst [vmem:[%s178 + $0x120] sm:$0xff] %v251
                %v253 = vld [vmem:[%s177 + $0x248] sm:$0xff]
                %254 = vst [vmem:[%s178 + $0x128] sm:$0xff] %v253
                %v255 = vld [vmem:[%s177 + $0x250] sm:$0xff]
                %256 = vst [vmem:[%s178 + $0x130] sm:$0xff] %v255
                %v257 = vld [vmem:[%s177 + $0x258] sm:$0xff]
                %258 = vst [vmem:[%s178 + $0x138] sm:$0xff] %v257
                %v259 = vld [vmem:[%s177 + $0x280] sm:$0xff]
                %260 = vst [vmem:[%s178 + $0x140] sm:$0xff] %v259
                %v261 = vld [vmem:[%s177 + $0x288] sm:$0xff]
                %262 = vst [vmem:[%s178 + $0x148] sm:$0xff] %v261
                %v263 = vld [vmem:[%s177 + $0x290] sm:$0xff]
                %264 = vst [vmem:[%s178 + $0x150] sm:$0xff] %v263
                %v265 = vld [vmem:[%s177 + $0x298] sm:$0xff]
                %266 = vst [vmem:[%s178 + $0x158] sm:$0xff] %v265
                %v267 = vld [vmem:[%s177 + $0x2c0] sm:$0xff]
                %268 = vst [vmem:[%s178 + $0x160] sm:$0xff] %v267
                %v269 = vld [vmem:[%s177 + $0x2c8] sm:$0xff]
                %270 = vst [vmem:[%s178 + $0x168] sm:$0xff] %v269
                %v271 = vld [vmem:[%s177 + $0x2d0] sm:$0xff]
                %272 = vst [vmem:[%s178 + $0x170] sm:$0xff] %v271
                %v273 = vld [vmem:[%s177 + $0x2d8] sm:$0xff]
                %274 = vst [vmem:[%s178 + $0x178] sm:$0xff] %v273
                %v275 = vld [vmem:[%s177 + $0x300] sm:$0xff]
                %276 = vst [vmem:[%s178 + $0x180] sm:$0xff] %v275
                %v277 = vld [vmem:[%s177 + $0x308] sm:$0xff]
                %278 = vst [vmem:[%s178 + $0x188] sm:$0xff] %v277
                %v279 = vld [vmem:[%s177 + $0x310] sm:$0xff]
                %280 = vst [vmem:[%s178 + $0x190] sm:$0xff] %v279
                %v281 = vld [vmem:[%s177 + $0x318] sm:$0xff]
                %282 = vst [vmem:[%s178 + $0x198] sm:$0xff] %v281
                %v283 = vld [vmem:[%s177 + $0x340] sm:$0xff]
                %284 = vst [vmem:[%s178 + $0x1a0] sm:$0xff] %v283
                %v285 = vld [vmem:[%s177 + $0x348] sm:$0xff]
                %286 = vst [vmem:[%s178 + $0x1a8] sm:$0xff] %v285
                %v287 = vld [vmem:[%s177 + $0x350] sm:$0xff]
                %288 = vst [vmem:[%s178 + $0x1b0] sm:$0xff] %v287
                %v289 = vld [vmem:[%s177 + $0x358] sm:$0xff]
                %290 = vst [vmem:[%s178 + $0x1b8] sm:$0xff] %v289
                %v291 = vld [vmem:[%s177 + $0x380] sm:$0xff]
                %292 = vst [vmem:[%s178 + $0x1c0] sm:$0xff] %v291
                %v293 = vld [vmem:[%s177 + $0x388] sm:$0xff]
                %294 = vst [vmem:[%s178 + $0x1c8] sm:$0xff] %v293
                %v295 = vld [vmem:[%s177 + $0x390] sm:$0xff]
                %296 = vst [vmem:[%s178 + $0x1d0] sm:$0xff] %v295
                %v297 = vld [vmem:[%s177 + $0x398] sm:$0xff]
                %298 = vst [vmem:[%s178 + $0x1d8] sm:$0xff] %v297
                %v299 = vld [vmem:[%s177 + $0x3c0] sm:$0xff]
                %300 = vst [vmem:[%s178 + $0x1e0] sm:$0xff] %v299
                %v301 = vld [vmem:[%s177 + $0x3c8] sm:$0xff]
                %302 = vst [vmem:[%s178 + $0x1e8] sm:$0xff] %v301
                %v303 = vld [vmem:[%s177 + $0x3d0] sm:$0xff]
                %304 = vst [vmem:[%s178 + $0x1f0] sm:$0xff] %v303
                %v305 = vld [vmem:[%s177 + $0x3d8] sm:$0xff]
                %306 = vst [vmem:[%s178 + $0x1f8] sm:$0xff] %v305
                %v307 = vld [vmem:[%s177 + $0x400] sm:$0xff]
                %308 = vst [vmem:[%s178 + $0x200] sm:$0xff] %v307
                %v309 = vld [vmem:[%s177 + $0x408] sm:$0xff]
                %310 = vst [vmem:[%s178 + $0x208] sm:$0xff] %v309
                %v311 = vld [vmem:[%s177 + $0x410] sm:$0xff]
                %312 = vst [vmem:[%s178 + $0x210] sm:$0xff] %v311
                %v313 = vld [vmem:[%s177 + $0x418] sm:$0xff]
                %314 = vst [vmem:[%s178 + $0x218] sm:$0xff] %v313
                %v315 = vld [vmem:[%s177 + $0x440] sm:$0xff]
                %316 = vst [vmem:[%s178 + $0x220] sm:$0xff] %v315
                %v317 = vld [vmem:[%s177 + $0x448] sm:$0xff]
                %318 = vst [vmem:[%s178 + $0x228] sm:$0xff] %v317
                %v319 = vld [vmem:[%s177 + $0x450] sm:$0xff]
                %320 = vst [vmem:[%s178 + $0x230] sm:$0xff] %v319
                %v321 = vld [vmem:[%s177 + $0x458] sm:$0xff]
                %322 = vst [vmem:[%s178 + $0x238] sm:$0xff] %v321
              $region41: #{shading_net_forward.23} parent=35 // loop_footer
                %s176 = sadd.s32 1, %s172
              $region42: #{shading_net_forward.23} parent=35 // loop_footer_branch
                %171 = sbr.rel target = $region38
              $region43: #{shading_net_forward.23} parent=35 // loop_exit
                _
            $region36: #{shading_net_forward.23} parent=31 // pred_fallthru
              _
            // Predicated region
            $region44: #{shading_net_forward.23} parent=31 // pred_check
              _
            $region45: #{shading_net_forward.23} parent=31 // pred_check_branch
              %324 = sbr.rel target = $region47
            $region46: #{shading_net_forward.23} parent=31 // pred_region
              _
            $region47: #{shading_net_forward.23} parent=31 // pred_fallthru
              _
          $region32: #{shading_net_forward.23} parent=27 // pred_fallthru
            _
          %325 = vnop
        $region28: #{shading_net_forward.23} parent=23 // pred_fallthru
          _
        // Predicated region
        $region48: #{shading_net_forward.23} parent=23 // pred_check
          %p326 = pneg %p100
        $region49: #{shading_net_forward.23} parent=23 // pred_check_branch
          %328 = sbr.rel (%p326) target = $region51
        $region50: #{shading_net_forward.23} parent=23 // pred_region
          %s329 = smul.u32 8, %s12
          %p330 = scmp.lt.s32.totalorder %s329, 15
          %s331 = scalar_select %p330, %s329, 15
          %s332 = scalar_lea.vmem %s3, %s331
          %s333 = smul.u32 8, %s12
        $region51: #{shading_net_forward.23} parent=23 // pred_fallthru
          _
      $region24: #{shading_net_forward.23} parent=5 // pred_fallthru
        _
      %p334 = scmp.le.s32.totalorder 1, %s12
      %p335 = scmp.lt.s32.totalorder %s12, 3
      %p336 = pnand %p334, %p335
      %p337 = pneg %p336
      // Predicated region
      $region52: #{shading_net_forward.23} parent=5 // pred_check
        _
      $region53: #{shading_net_forward.23} parent=5 // pred_check_branch
        %339 = sbr.rel (%p336) target = $region55
      $region54: #{shading_net_forward.23} parent=5 // pred_region
        %s340 = ssub.s32 %s12, 1
        %s341 = sand.u32 %s46, 1
        %s342 = sand.u32 %s46, 1
        %s343 = smul.addr %s342, 576
        %s344 = scalar_lea.vmem [#allocation3], %s343
        // Predicated region
        $region56: #{shading_net_forward.23} parent=54 // pred_check
          %p345 = pneg %p59
        $region57: #{shading_net_forward.23} parent=54 // pred_check_branch
          %347 = sbr.rel (%p345) target = $region59
        $region58: #{shading_net_forward.23} parent=54 // pred_region
          _
        $region59: #{shading_net_forward.23} parent=54 // pred_fallthru
          _
        %p348 = pneg %p33
        %p349 = pneg %p30
        %s350 = sand.u32 %s46, 1
        %s351 = sand.u32 %s46, 1
        %s352 = smul.addr %s351, 576
        %s353 = scalar_lea.vmem [#allocation3], %s352
        %p354 = pneg %p59
        %p355 = pneg %p56
        %p356 = pneg %p80
        %p357 = pneg %p77
        %s358 = smul.u32 8, %s17
        %p359 = scmp.lt.s32.totalorder %s358, 15
        %s360 = scalar_select %p359, %s358, 15
        %s361 = scalar_lea.vmem %s3, %s360
        %p362 = pneg %p106
        %p363 = pneg %p103
        %p364 = pneg %p132
        %p365 = pneg %p129
        %s366 = smul.u32 8, %s17
        %p367 = scmp.lt.s32.totalorder %s366, 15
        %s368 = scalar_select %p367, %s366, 15
        %s369 = scalar_lea.vmem %s4, %s368
        %s370 = smul.u32 8, %s17
        %s371 = smul.u32 8, %s17
        %p372 = scmp.lt.s32.totalorder %s371, 15
        %s373 = scalar_select %p372, %s371, 15
        %s374 = scalar_lea.vmem %s3, %s373
        %s375 = smul.u32 8, %s17
        %s376 = smul.u32 8, %s17
        %p377 = scmp.lt.s32.totalorder %s376, 15
        %s378 = scalar_select %p377, %s376, 15
        %s379 = scalar_lea.vmem %s4, %s378
        %s380 = smul.u32 8, %s17
        %v382 = vld [vmem:[%s0] sm:$0x3]
        %v383 = vld [vmem:[%s344] sm:$0xff]
        %v384 = vld [vmem:[%s344 + $0x8] sm:$0xff]
        %v385 = vld [vmem:[%s344 + $0x10] sm:$0xff]
        %v386 = vld [vmem:[%s344 + $0x18] sm:$0xff]
        %v387 = vld [vmem:[%s344 + $0x20] sm:$0xff]
        %v388 = vld [vmem:[%s344 + $0x28] sm:$0xff]
        %v389 = vld [vmem:[%s344 + $0x30] sm:$0xff]
        %v390 = vld [vmem:[%s344 + $0x38] sm:$0xff]
        %v391 = vld [vmem:[%s344 + $0x40] sm:$0xff]
        %v392 = vld [vmem:[%s344 + $0x48] sm:$0xff]
        %v393 = vld [vmem:[%s344 + $0x50] sm:$0xff]
        %v394 = vld [vmem:[%s344 + $0x58] sm:$0xff]
        %v395 = vld [vmem:[%s344 + $0x60] sm:$0xff]
        %v396 = vld [vmem:[%s344 + $0x68] sm:$0xff]
        %v397 = vld [vmem:[%s344 + $0x70] sm:$0xff]
        %v398 = vld [vmem:[%s344 + $0x78] sm:$0xff]
        %v399 = vld [vmem:[%s344 + $0x80] sm:$0xff]
        %v400 = vld [vmem:[%s344 + $0x88] sm:$0xff]
        %v401 = vld [vmem:[%s344 + $0x90] sm:$0xff]
        %v402 = vld [vmem:[%s344 + $0x98] sm:$0xff]
        %v403 = vld [vmem:[%s344 + $0xa0] sm:$0xff]
        %v404 = vld [vmem:[%s344 + $0xa8] sm:$0xff]
        %v405 = vld [vmem:[%s344 + $0xb0] sm:$0xff]
        %v406 = vld [vmem:[%s344 + $0xb8] sm:$0xff]
        %v407 = vld [vmem:[%s344 + $0xc0] sm:$0xff]
        %v408 = vld [vmem:[%s344 + $0xc8] sm:$0xff]
        %v409 = vld [vmem:[%s344 + $0xd0] sm:$0xff]
        %v410 = vld [vmem:[%s344 + $0xd8] sm:$0xff]
        %v411 = vld [vmem:[%s344 + $0xe0] sm:$0xff]
        %v412 = vld [vmem:[%s344 + $0xe8] sm:$0xff]
        %v413 = vld [vmem:[%s344 + $0xf0] sm:$0xff]
        %v414 = vld [vmem:[%s344 + $0xf8] sm:$0xff]
        %v415 = vld [vmem:[%s344 + $0x100] sm:$0xff]
        %v416 = vld [vmem:[%s344 + $0x108] sm:$0xff]
        %v417 = vld [vmem:[%s344 + $0x110] sm:$0xff]
        %v418 = vld [vmem:[%s344 + $0x118] sm:$0xff]
        %v419 = vld [vmem:[%s344 + $0x120] sm:$0xff]
        %v420 = vld [vmem:[%s344 + $0x128] sm:$0xff]
        %v421 = vld [vmem:[%s344 + $0x130] sm:$0xff]
        %v422 = vld [vmem:[%s344 + $0x138] sm:$0xff]
        %v423 = vld [vmem:[%s344 + $0x140] sm:$0xff]
        %v424 = vld [vmem:[%s344 + $0x148] sm:$0xff]
        %v425 = vld [vmem:[%s344 + $0x150] sm:$0xff]
        %v426 = vld [vmem:[%s344 + $0x158] sm:$0xff]
        %v427 = vld [vmem:[%s344 + $0x160] sm:$0xff]
        %v428 = vld [vmem:[%s344 + $0x168] sm:$0xff]
        %v429 = vld [vmem:[%s344 + $0x170] sm:$0xff]
        %v430 = vld [vmem:[%s344 + $0x178] sm:$0xff]
        %v431 = vld [vmem:[%s344 + $0x180] sm:$0xff]
        %v432 = vld [vmem:[%s344 + $0x188] sm:$0xff]
        %v433 = vld [vmem:[%s344 + $0x190] sm:$0xff]
        %v434 = vld [vmem:[%s344 + $0x198] sm:$0xff]
        %v435 = vld [vmem:[%s344 + $0x1a0] sm:$0xff]
        %v436 = vld [vmem:[%s344 + $0x1a8] sm:$0xff]
        %v437 = vld [vmem:[%s344 + $0x1b0] sm:$0xff]
        %v438 = vld [vmem:[%s344 + $0x1b8] sm:$0xff]
        %v439 = vld [vmem:[%s344 + $0x1c0] sm:$0xff]
        %v440 = vld [vmem:[%s344 + $0x1c8] sm:$0xff]
        %v441 = vld [vmem:[%s344 + $0x1d0] sm:$0xff]
        %v442 = vld [vmem:[%s344 + $0x1d8] sm:$0xff]
        %v443 = vld [vmem:[%s344 + $0x1e0] sm:$0xff]
        %v444 = vld [vmem:[%s344 + $0x1e8] sm:$0xff]
        %v445 = vld [vmem:[%s344 + $0x1f0] sm:$0xff]
        %v446 = vld [vmem:[%s344 + $0x1f8] sm:$0xff]
        %v447 = vld [vmem:[%s344 + $0x200] sm:$0xff]
        %v448 = vld [vmem:[%s344 + $0x208] sm:$0xff]
        %v449 = vld [vmem:[%s344 + $0x210] sm:$0xff]
        %v450 = vld [vmem:[%s344 + $0x218] sm:$0xff]
        %v451 = vld [vmem:[%s344 + $0x220] sm:$0xff]
        %v452 = vld [vmem:[%s344 + $0x228] sm:$0xff]
        %v453 = vld [vmem:[%s344 + $0x230] sm:$0xff]
        %v454 = vld [vmem:[%s344 + $0x238] sm:$0xff]
        %v455 = vld [vmem:[#allocation2] sm:$0x1]
        %457 = vset.pattern.permute.xlu0 0
        %458 = vperm.xlu0 %457, %v455
        %v459 = vpop.permute.xlu0 %458
        %v461 = vperm.slane %v459, 0
        %463 = vst [vmem:[#allocation1] ss:$9 sm:$0xff] %v382
        %v464 = vld [vmem:[#allocation1] sm:$0xff]
        %v465 = vld [vmem:[#allocation1 + $0x9] sm:$0xff]
        %v539 = vunpack.c.l.b16 %v383
        %v540 = vunpack.c.h.b16 %v383
        %v541 = vunpack.c.l.b16 %v384
        %v542 = vunpack.c.h.b16 %v384
        %v543 = vunpack.c.l.b16 %v385
        %v544 = vunpack.c.h.b16 %v385
        %v545 = vunpack.c.l.b16 %v386
        %v546 = vunpack.c.h.b16 %v386
        %v547 = vunpack.c.l.b16 %v387
        %v548 = vunpack.c.h.b16 %v387
        %v549 = vunpack.c.l.b16 %v388
        %v550 = vunpack.c.h.b16 %v388
        %v551 = vunpack.c.l.b16 %v389
        %v552 = vunpack.c.h.b16 %v389
        %v553 = vunpack.c.l.b16 %v390
        %v554 = vunpack.c.h.b16 %v390
        %v555 = vunpack.c.l.b16 %v391
        %v556 = vunpack.c.h.b16 %v391
        %v557 = vunpack.c.l.b16 %v392
        %v558 = vunpack.c.h.b16 %v392
        %v559 = vunpack.c.l.b16 %v393
        %v560 = vunpack.c.h.b16 %v393
        %v561 = vunpack.c.l.b16 %v394
        %v562 = vunpack.c.h.b16 %v394
        %v563 = vunpack.c.l.b16 %v395
        %v564 = vunpack.c.h.b16 %v395
        %v565 = vunpack.c.l.b16 %v396
        %v566 = vunpack.c.h.b16 %v396
        %v567 = vunpack.c.l.b16 %v397
        %v568 = vunpack.c.h.b16 %v397
        %v569 = vunpack.c.l.b16 %v398
        %v570 = vunpack.c.h.b16 %v398
        %v571 = vunpack.c.l.b16 %v399
        %v572 = vunpack.c.h.b16 %v399
        %v573 = vunpack.c.l.b16 %v400
        %v574 = vunpack.c.h.b16 %v400
        %v575 = vunpack.c.l.b16 %v401
        %v576 = vunpack.c.h.b16 %v401
        %v577 = vunpack.c.l.b16 %v402
        %v578 = vunpack.c.h.b16 %v402
        %v579 = vunpack.c.l.b16 %v403
        %v580 = vunpack.c.h.b16 %v403
        %v581 = vunpack.c.l.b16 %v404
        %v582 = vunpack.c.h.b16 %v404
        %v583 = vunpack.c.l.b16 %v405
        %v584 = vunpack.c.h.b16 %v405
        %v585 = vunpack.c.l.b16 %v406
        %v586 = vunpack.c.h.b16 %v406
        %v587 = vunpack.c.l.b16 %v407
        %v588 = vunpack.c.h.b16 %v407
        %v589 = vunpack.c.l.b16 %v408
        %v590 = vunpack.c.h.b16 %v408
        %v591 = vunpack.c.l.b16 %v409
        %v592 = vunpack.c.h.b16 %v409
        %v593 = vunpack.c.l.b16 %v410
        %v594 = vunpack.c.h.b16 %v410
        %v595 = vunpack.c.l.b16 %v411
        %v596 = vunpack.c.h.b16 %v411
        %v597 = vunpack.c.l.b16 %v412
        %v598 = vunpack.c.h.b16 %v412
        %v599 = vunpack.c.l.b16 %v413
        %v600 = vunpack.c.h.b16 %v413
        %v601 = vunpack.c.l.b16 %v414
        %v602 = vunpack.c.h.b16 %v414
        %v603 = vunpack.c.l.b16 %v415
        %v604 = vunpack.c.h.b16 %v415
        %v605 = vunpack.c.l.b16 %v416
        %v606 = vunpack.c.h.b16 %v416
        %v607 = vunpack.c.l.b16 %v417
        %v608 = vunpack.c.h.b16 %v417
        %v609 = vunpack.c.l.b16 %v418
        %v610 = vunpack.c.h.b16 %v418
        %v611 = vunpack.c.l.b16 %v419
        %v612 = vunpack.c.h.b16 %v419
        %v613 = vunpack.c.l.b16 %v420
        %v614 = vunpack.c.h.b16 %v420
        %v615 = vunpack.c.l.b16 %v421
        %v616 = vunpack.c.h.b16 %v421
        %v617 = vunpack.c.l.b16 %v422
        %v618 = vunpack.c.h.b16 %v422
        %v619 = vunpack.c.l.b16 %v423
        %v620 = vunpack.c.h.b16 %v423
        %v621 = vunpack.c.l.b16 %v424
        %v622 = vunpack.c.h.b16 %v424
        %v623 = vunpack.c.l.b16 %v425
        %v624 = vunpack.c.h.b16 %v425
        %v625 = vunpack.c.l.b16 %v426
        %v626 = vunpack.c.h.b16 %v426
        %v627 = vunpack.c.l.b16 %v427
        %v628 = vunpack.c.h.b16 %v427
        %v629 = vunpack.c.l.b16 %v428
        %v630 = vunpack.c.h.b16 %v428
        %v631 = vunpack.c.l.b16 %v429
        %v632 = vunpack.c.h.b16 %v429
        %v633 = vunpack.c.l.b16 %v430
        %v634 = vunpack.c.h.b16 %v430
        %v635 = vunpack.c.l.b16 %v431
        %v636 = vunpack.c.h.b16 %v431
        %v637 = vunpack.c.l.b16 %v432
        %v638 = vunpack.c.h.b16 %v432
        %v639 = vunpack.c.l.b16 %v433
        %v640 = vunpack.c.h.b16 %v433
        %v641 = vunpack.c.l.b16 %v434
        %v642 = vunpack.c.h.b16 %v434
        %v643 = vunpack.c.l.b16 %v435
        %v644 = vunpack.c.h.b16 %v435
        %v645 = vunpack.c.l.b16 %v436
        %v646 = vunpack.c.h.b16 %v436
        %v647 = vunpack.c.l.b16 %v437
        %v648 = vunpack.c.h.b16 %v437
        %v649 = vunpack.c.l.b16 %v438
        %v650 = vunpack.c.h.b16 %v438
        %v651 = vunpack.c.l.b16 %v439
        %v652 = vunpack.c.h.b16 %v439
        %v653 = vunpack.c.l.b16 %v440
        %v654 = vunpack.c.h.b16 %v440
        %v655 = vunpack.c.l.b16 %v441
        %v656 = vunpack.c.h.b16 %v441
        %v657 = vunpack.c.l.b16 %v442
        %v658 = vunpack.c.h.b16 %v442
        %v659 = vunpack.c.l.b16 %v443
        %v660 = vunpack.c.h.b16 %v443
        %v661 = vunpack.c.l.b16 %v444
        %v662 = vunpack.c.h.b16 %v444
        %v663 = vunpack.c.l.b16 %v445
        %v664 = vunpack.c.h.b16 %v445
        %v665 = vunpack.c.l.b16 %v446
        %v666 = vunpack.c.h.b16 %v446
        %v667 = vunpack.c.l.b16 %v447
        %v668 = vunpack.c.h.b16 %v447
        %v669 = vunpack.c.l.b16 %v448
        %v670 = vunpack.c.h.b16 %v448
        %v671 = vunpack.c.l.b16 %v449
        %v672 = vunpack.c.h.b16 %v449
        %v673 = vunpack.c.l.b16 %v450
        %v674 = vunpack.c.h.b16 %v450
        %v675 = vunpack.c.l.b16 %v451
        %v676 = vunpack.c.h.b16 %v451
        %v677 = vunpack.c.l.b16 %v452
        %v678 = vunpack.c.h.b16 %v452
        %v679 = vunpack.c.l.b16 %v453
        %v680 = vunpack.c.h.b16 %v453
        %v681 = vunpack.c.l.b16 %v454
        %v682 = vunpack.c.h.b16 %v454
        %v683 = vpack.c.b16 %v547, %v539
        %v684 = vpack.c.b16 %v548, %v540
        %v685 = vpack.c.b16 %v549, %v541
        %v686 = vpack.c.b16 %v550, %v542
        %v687 = vpack.c.b16 %v551, %v543
        %v688 = vpack.c.b16 %v552, %v544
        %v689 = vpack.c.b16 %v553, %v545
        %v690 = vpack.c.b16 %v554, %v546
        %v691 = vpack.c.b16 %v563, %v555
        %v692 = vpack.c.b16 %v564, %v556
        %v693 = vpack.c.b16 %v565, %v557
        %v694 = vpack.c.b16 %v566, %v558
        %v695 = vpack.c.b16 %v567, %v559
        %v696 = vpack.c.b16 %v568, %v560
        %v697 = vpack.c.b16 %v569, %v561
        %v698 = vpack.c.b16 %v570, %v562
        %v699 = vpack.c.b16 %v579, %v571
        %v700 = vpack.c.b16 %v580, %v572
        %v701 = vpack.c.b16 %v581, %v573
        %v702 = vpack.c.b16 %v582, %v574
        %v703 = vpack.c.b16 %v583, %v575
        %v704 = vpack.c.b16 %v584, %v576
        %v705 = vpack.c.b16 %v585, %v577
        %v706 = vpack.c.b16 %v586, %v578
        %v707 = vpack.c.b16 %v595, %v587
        %v708 = vpack.c.b16 %v596, %v588
        %v709 = vpack.c.b16 %v597, %v589
        %v710 = vpack.c.b16 %v598, %v590
        %v711 = vpack.c.b16 %v599, %v591
        %v712 = vpack.c.b16 %v600, %v592
        %v713 = vpack.c.b16 %v601, %v593
        %v714 = vpack.c.b16 %v602, %v594
        %v715 = vpack.c.b16 %v611, %v603
        %v716 = vpack.c.b16 %v612, %v604
        %v717 = vpack.c.b16 %v613, %v605
        %v718 = vpack.c.b16 %v614, %v606
        %v719 = vpack.c.b16 %v615, %v607
        %v720 = vpack.c.b16 %v616, %v608
        %v721 = vpack.c.b16 %v617, %v609
        %v722 = vpack.c.b16 %v618, %v610
        %v723 = vpack.c.b16 %v627, %v619
        %v724 = vpack.c.b16 %v628, %v620
        %v725 = vpack.c.b16 %v629, %v621
        %v726 = vpack.c.b16 %v630, %v622
        %v727 = vpack.c.b16 %v631, %v623
        %v728 = vpack.c.b16 %v632, %v624
        %v729 = vpack.c.b16 %v633, %v625
        %v730 = vpack.c.b16 %v634, %v626
        %v731 = vpack.c.b16 %v643, %v635
        %v732 = vpack.c.b16 %v644, %v636
        %v733 = vpack.c.b16 %v645, %v637
        %v734 = vpack.c.b16 %v646, %v638
        %v735 = vpack.c.b16 %v647, %v639
        %v736 = vpack.c.b16 %v648, %v640
        %v737 = vpack.c.b16 %v649, %v641
        %v738 = vpack.c.b16 %v650, %v642
        %v739 = vpack.c.b16 %v659, %v651
        %v740 = vpack.c.b16 %v660, %v652
        %v741 = vpack.c.b16 %v661, %v653
        %v742 = vpack.c.b16 %v662, %v654
        %v743 = vpack.c.b16 %v663, %v655
        %v744 = vpack.c.b16 %v664, %v656
        %v745 = vpack.c.b16 %v665, %v657
        %v746 = vpack.c.b16 %v666, %v658
        %v747 = vpack.c.b16 %v675, %v667
        %v748 = vpack.c.b16 %v676, %v668
        %v749 = vpack.c.b16 %v677, %v669
        %v750 = vpack.c.b16 %v678, %v670
        %v751 = vpack.c.b16 %v679, %v671
        %v752 = vpack.c.b16 %v680, %v672
        %v753 = vpack.c.b16 %v681, %v673
        %v754 = vpack.c.b16 %v682, %v674
        %vm827 = vcmask 130048
        %v828 = vsel %vm827, %v465, 0
        %830 = vmatpush.bf16.msra.mxu0 %v739
        %831 = vmatpush.bf16.msra.mxu0 %v731
        %832 = vmatpush.bf16.msra.mxu0 %v723
        %833 = vmatpush.bf16.msra.mxu0 %v715
        %834 = vmatpush.bf16.msra.mxu0 %v707
        %835 = vmatpush.bf16.msra.mxu0 %v699
        %836 = vmatpush.bf16.msra.mxu0 %v691
        %837 = vmatpush.bf16.msra.mxu0 %v683
        %838 = vmatmul.bf16.gmra.mxu0 %v464
        %v839 = vpop.f32.mrf.mxu0
        %v840 = vadd.f32 %v461, %v839
        %v841 = vpop.f32.mrf.mxu0
        %842 = vdwg.mxu0
        %843 = vmatpush.bf16.msra.mxu0 0
        %844 = vmatpush.bf16.msra.mxu0 0
        %845 = vmatpush.bf16.msra.mxu0 0
        %846 = vmatpush.bf16.msra.mxu0 0
        %847 = vmatpush.bf16.msra.mxu0 0
        %848 = vmatpush.bf16.msra.mxu0 0
        %849 = vmatpush.bf16.msra.mxu0 0
        %850 = vmatpush.bf16.msra.mxu0 %v747
        %851 = vmatmul.bf16.gmra.mxu0 %v828
        %v852 = vpop.f32.mrf.mxu0
        %v853 = vadd.f32 %v840, %v852
        %v854 = vpop.f32.mrf.mxu0
        %855 = vdwg.mxu0
        %856 = vmatpush.bf16.msra.mxu0 %v740
        %857 = vmatpush.bf16.msra.mxu0 %v732
        %858 = vmatpush.bf16.msra.mxu0 %v724
        %859 = vmatpush.bf16.msra.mxu0 %v716
        %860 = vmatpush.bf16.msra.mxu0 %v708
        %861 = vmatpush.bf16.msra.mxu0 %v700
        %862 = vmatpush.bf16.msra.mxu0 %v692
        %863 = vmatpush.bf16.msra.mxu0 %v684
        %864 = vmatmul.bf16.gmra.mxu0 %v464
        %v865 = vpop.f32.mrf.mxu0
        %v866 = vadd.f32 %v461, %v865
        %v867 = vpop.f32.mrf.mxu0
        %868 = vdwg.mxu0
        %869 = vmatpush.bf16.msra.mxu0 0
        %870 = vmatpush.bf16.msra.mxu0 0
        %871 = vmatpush.bf16.msra.mxu0 0
        %872 = vmatpush.bf16.msra.mxu0 0
        %873 = vmatpush.bf16.msra.mxu0 0
        %874 = vmatpush.bf16.msra.mxu0 0
        %875 = vmatpush.bf16.msra.mxu0 0
        %876 = vmatpush.bf16.msra.mxu0 %v748
        %877 = vmatmul.bf16.gmra.mxu0 %v828
        %v878 = vpop.f32.mrf.mxu0
        %v879 = vadd.f32 %v866, %v878
        %v880 = vpop.f32.mrf.mxu0
        %881 = vdwg.mxu0
        %882 = vmatpush.bf16.msra.mxu0 %v741
        %883 = vmatpush.bf16.msra.mxu0 %v733
        %884 = vmatpush.bf16.msra.mxu0 %v725
        %885 = vmatpush.bf16.msra.mxu0 %v717
        %886 = vmatpush.bf16.msra.mxu0 %v709
        %887 = vmatpush.bf16.msra.mxu0 %v701
        %888 = vmatpush.bf16.msra.mxu0 %v693
        %889 = vmatpush.bf16.msra.mxu0 %v685
        %890 = vmatmul.bf16.gmra.mxu0 %v464
        %v891 = vpop.f32.mrf.mxu0
        %v892 = vadd.f32 %v461, %v891
        %v893 = vpop.f32.mrf.mxu0
        %894 = vdwg.mxu0
        %895 = vmatpush.bf16.msra.mxu0 0
        %896 = vmatpush.bf16.msra.mxu0 0
        %897 = vmatpush.bf16.msra.mxu0 0
        %898 = vmatpush.bf16.msra.mxu0 0
        %899 = vmatpush.bf16.msra.mxu0 0
        %900 = vmatpush.bf16.msra.mxu0 0
        %901 = vmatpush.bf16.msra.mxu0 0
        %902 = vmatpush.bf16.msra.mxu0 %v749
        %903 = vmatmul.bf16.gmra.mxu0 %v828
        %v904 = vpop.f32.mrf.mxu0
        %v905 = vadd.f32 %v892, %v904
        %v906 = vpop.f32.mrf.mxu0
        %907 = vdwg.mxu0
        %908 = vmatpush.bf16.msra.mxu0 %v742
        %909 = vmatpush.bf16.msra.mxu0 %v734
        %910 = vmatpush.bf16.msra.mxu0 %v726
        %911 = vmatpush.bf16.msra.mxu0 %v718
        %912 = vmatpush.bf16.msra.mxu0 %v710
        %913 = vmatpush.bf16.msra.mxu0 %v702
        %914 = vmatpush.bf16.msra.mxu0 %v694
        %915 = vmatpush.bf16.msra.mxu0 %v686
        %916 = vmatmul.bf16.gmra.mxu0 %v464
        %v917 = vpop.f32.mrf.mxu0
        %v918 = vadd.f32 %v461, %v917
        %v919 = vpop.f32.mrf.mxu0
        %920 = vdwg.mxu0
        %921 = vmatpush.bf16.msra.mxu0 0
        %922 = vmatpush.bf16.msra.mxu0 0
        %923 = vmatpush.bf16.msra.mxu0 0
        %924 = vmatpush.bf16.msra.mxu0 0
        %925 = vmatpush.bf16.msra.mxu0 0
        %926 = vmatpush.bf16.msra.mxu0 0
        %927 = vmatpush.bf16.msra.mxu0 0
        %928 = vmatpush.bf16.msra.mxu0 %v750
        %929 = vmatmul.bf16.gmra.mxu0 %v828
        %v930 = vpop.f32.mrf.mxu0
        %v931 = vadd.f32 %v918, %v930
        %v932 = vpop.f32.mrf.mxu0
        %933 = vdwg.mxu0
        %934 = vmatpush.bf16.msra.mxu0 %v743
        %935 = vmatpush.bf16.msra.mxu0 %v735
        %936 = vmatpush.bf16.msra.mxu0 %v727
        %937 = vmatpush.bf16.msra.mxu0 %v719
        %938 = vmatpush.bf16.msra.mxu0 %v711
        %939 = vmatpush.bf16.msra.mxu0 %v703
        %940 = vmatpush.bf16.msra.mxu0 %v695
        %941 = vmatpush.bf16.msra.mxu0 %v687
        %942 = vmatmul.bf16.gmra.mxu0 %v464
        %v943 = vpop.f32.mrf.mxu0
        %v944 = vadd.f32 %v461, %v943
        %v945 = vpop.f32.mrf.mxu0
        %946 = vdwg.mxu0
        %947 = vmatpush.bf16.msra.mxu0 0
        %948 = vmatpush.bf16.msra.mxu0 0
        %949 = vmatpush.bf16.msra.mxu0 0
        %950 = vmatpush.bf16.msra.mxu0 0
        %951 = vmatpush.bf16.msra.mxu0 0
        %952 = vmatpush.bf16.msra.mxu0 0
        %953 = vmatpush.bf16.msra.mxu0 0
        %954 = vmatpush.bf16.msra.mxu0 %v751
        %955 = vmatmul.bf16.gmra.mxu0 %v828
        %v956 = vpop.f32.mrf.mxu0
        %v957 = vadd.f32 %v944, %v956
        %v958 = vpop.f32.mrf.mxu0
        %959 = vdwg.mxu0
        %960 = vmatpush.bf16.msra.mxu0 %v744
        %961 = vmatpush.bf16.msra.mxu0 %v736
        %962 = vmatpush.bf16.msra.mxu0 %v728
        %963 = vmatpush.bf16.msra.mxu0 %v720
        %964 = vmatpush.bf16.msra.mxu0 %v712
        %965 = vmatpush.bf16.msra.mxu0 %v704
        %966 = vmatpush.bf16.msra.mxu0 %v696
        %967 = vmatpush.bf16.msra.mxu0 %v688
        %968 = vmatmul.bf16.gmra.mxu0 %v464
        %v969 = vpop.f32.mrf.mxu0
        %v970 = vadd.f32 %v461, %v969
        %v971 = vpop.f32.mrf.mxu0
        %972 = vdwg.mxu0
        %973 = vmatpush.bf16.msra.mxu0 0
        %974 = vmatpush.bf16.msra.mxu0 0
        %975 = vmatpush.bf16.msra.mxu0 0
        %976 = vmatpush.bf16.msra.mxu0 0
        %977 = vmatpush.bf16.msra.mxu0 0
        %978 = vmatpush.bf16.msra.mxu0 0
        %979 = vmatpush.bf16.msra.mxu0 0
        %980 = vmatpush.bf16.msra.mxu0 %v752
        %981 = vmatmul.bf16.gmra.mxu0 %v828
        %v982 = vpop.f32.mrf.mxu0
        %v983 = vadd.f32 %v970, %v982
        %v984 = vpop.f32.mrf.mxu0
        %985 = vdwg.mxu0
        %986 = vmatpush.bf16.msra.mxu0 %v745
        %987 = vmatpush.bf16.msra.mxu0 %v737
        %988 = vmatpush.bf16.msra.mxu0 %v729
        %989 = vmatpush.bf16.msra.mxu0 %v721
        %990 = vmatpush.bf16.msra.mxu0 %v713
        %991 = vmatpush.bf16.msra.mxu0 %v705
        %992 = vmatpush.bf16.msra.mxu0 %v697
        %993 = vmatpush.bf16.msra.mxu0 %v689
        %994 = vmatmul.bf16.gmra.mxu0 %v464
        %v995 = vpop.f32.mrf.mxu0
        %v996 = vadd.f32 %v461, %v995
        %v997 = vpop.f32.mrf.mxu0
        %998 = vdwg.mxu0
        %999 = vmatpush.bf16.msra.mxu0 0
        %1000 = vmatpush.bf16.msra.mxu0 0
        %1001 = vmatpush.bf16.msra.mxu0 0
        %1002 = vmatpush.bf16.msra.mxu0 0
        %1003 = vmatpush.bf16.msra.mxu0 0
        %1004 = vmatpush.bf16.msra.mxu0 0
        %1005 = vmatpush.bf16.msra.mxu0 0
        %1006 = vmatpush.bf16.msra.mxu0 %v753
        %1007 = vmatmul.bf16.gmra.mxu0 %v828
        %v1008 = vpop.f32.mrf.mxu0
        %v1009 = vadd.f32 %v996, %v1008
        %v1010 = vpop.f32.mrf.mxu0
        %1011 = vdwg.mxu0
        %1012 = vmatpush.bf16.msra.mxu0 %v746
        %1013 = vmatpush.bf16.msra.mxu0 %v738
        %1014 = vmatpush.bf16.msra.mxu0 %v730
        %1015 = vmatpush.bf16.msra.mxu0 %v722
        %1016 = vmatpush.bf16.msra.mxu0 %v714
        %1017 = vmatpush.bf16.msra.mxu0 %v706
        %1018 = vmatpush.bf16.msra.mxu0 %v698
        %1019 = vmatpush.bf16.msra.mxu0 %v690
        %1020 = vmatmul.bf16.gmra.mxu0 %v464
        %v1021 = vpop.f32.mrf.mxu0
        %v1022 = vadd.f32 %v461, %v1021
        %v1023 = vpop.f32.mrf.mxu0
        %1024 = vdwg.mxu0
        %1025 = vmatpush.bf16.msra.mxu0 0
        %1026 = vmatpush.bf16.msra.mxu0 0
        %1027 = vmatpush.bf16.msra.mxu0 0
        %1028 = vmatpush.bf16.msra.mxu0 0
        %1029 = vmatpush.bf16.msra.mxu0 0
        %1030 = vmatpush.bf16.msra.mxu0 0
        %1031 = vmatpush.bf16.msra.mxu0 0
        %1032 = vmatpush.bf16.msra.mxu0 %v754
        %1033 = vmatmul.bf16.gmra.mxu0 %v828
        %v1034 = vpop.f32.mrf.mxu0
        %v1035 = vadd.f32 %v1022, %v1034
        %v1036 = vpop.f32.mrf.mxu0
        %1037 = vdwg.mxu0
        %v1038 = vld [vmem:[%s374] sm:$0xff]
        %v1040 = vperm.slane %v1038, 0
        %v1041 = vperm.slane %v1038, 1
        %v1042 = vperm.slane %v1038, 2
        %v1043 = vperm.slane %v1038, 3
        %v1044 = vperm.slane %v1038, 4
        %v1045 = vperm.slane %v1038, 5
        %v1046 = vperm.slane %v1038, 6
        %v1047 = vperm.slane %v1038, 7
        %v1056 = vmul.f32 %v853, %v1040
        %v1057 = vmul.f32 %v879, %v1041
        %v1058 = vmul.f32 %v905, %v1042
        %v1059 = vmul.f32 %v931, %v1043
        %v1060 = vmul.f32 %v957, %v1044
        %v1061 = vmul.f32 %v983, %v1045
        %v1062 = vmul.f32 %v1009, %v1046
        %v1063 = vmul.f32 %v1035, %v1047
        %v1072 = vrot.slane %v1057, 7
        %v1073 = vrot.slane %v1058, 6
        %v1074 = vrot.slane %v1059, 5
        %v1075 = vrot.slane %v1060, 4
        %v1076 = vrot.slane %v1061, 3
        %v1077 = vrot.slane %v1062, 2
        %v1078 = vrot.slane %v1063, 1
        %vm1079 = vcmask 1040384
        %v1080 = vsel %vm1079, %v1056, %v1072
        %vm1081 = vcmask 1042434
        %v1082 = vsel %vm1081, %v1073, %v1074
        %vm1083 = vcmask 1041408
        %v1084 = vsel %vm1083, %v1080, %v1082
        %vm1085 = vcmask 1044484
        %v1086 = vsel %vm1085, %v1075, %v1076
        %vm1087 = vcmask 1046534
        %v1088 = vsel %vm1087, %v1077, %v1078
        %vm1089 = vcmask 1045508
        %v1090 = vsel %vm1089, %v1086, %v1088
        %vm1091 = vcmask 1043456
        %v1092 = vsel %vm1091, %v1084, %v1090
        %1094 = vst [vmem:[%s379] sm:$0xff] %v1092
        %s1095 = smul.u32 8, %s17
        %p1096 = scmp.lt.s32.totalorder %s1095, 15
        %s1097 = scalar_select %p1096, %s1095, 15
        %s1098 = scalar_lea.vmem %s4, %s1097
        // Predicated region
        $region60: #{shading_net_forward.23} parent=54 // pred_check
          %p1099 = pneg %p129
        $region61: #{shading_net_forward.23} parent=54 // pred_check_branch
          %1101 = sbr.rel (%p1099) target = $region63
        $region62: #{shading_net_forward.23} parent=54 // pred_region
          %s1102 = smul.u32 8, %s17
        $region63: #{shading_net_forward.23} parent=54 // pred_fallthru
          _
      $region55: #{shading_net_forward.23} parent=5 // pred_fallthru
        _
      %p1103 = scmp.le.s32.totalorder 2, %s12
      // Predicated region
      $region64: #{shading_net_forward.23} parent=5 // pred_check
        %p1104 = pneg %p1103
      $region65: #{shading_net_forward.23} parent=5 // pred_check_branch
        %1106 = sbr.rel (%p1104) target = $region67
      $region66: #{shading_net_forward.23} parent=5 // pred_region
        %s1107 = ssub.s32 %s12, 2
        // Predicated region
        $region68: #{shading_net_forward.23} parent=66 // pred_check
          %p1108 = pneg %p135
        $region69: #{shading_net_forward.23} parent=66 // pred_check_branch
          %1110 = sbr.rel (%p1108) target = $region71
        $region70: #{shading_net_forward.23} parent=66 // pred_region
          %s1111 = smul.u32 8, %s18
          %p1112 = scmp.lt.s32.totalorder %s1111, 15
          %s1113 = scalar_select %p1112, %s1111, 15
          %s1114 = scalar_lea.vmem %s4, %s1113
        $region71: #{shading_net_forward.23} parent=66 // pred_fallthru
          _
      $region67: #{shading_net_forward.23} parent=5 // pred_fallthru
        _
    $region6: #{shading_net_forward.23} parent=1 // loop_footer
      %s16 = sadd.s32 1, %s12
    $region7: #{shading_net_forward.23} parent=1 // loop_footer_branch
      %11 = sbr.rel target = $region3
    $region8: #{shading_net_forward.23} parent=1 // loop_exit
      _

</llo_original>
